<compile_context>
chip_gen: v7x
topology: tpu7x:2x2x1
jax: 0.10.0
libtpu: 0.0.40
codegen_flags: <defaults>
</compile_context>

<pallas_src>
import functools

import jax
import jax.numpy as jnp
from jax.experimental import pallas as pl
from jax.experimental.pallas import tpu as pltpu

BN_EPS = 1e-3
LANE = 128
SUBLANE = 8
VMEM_LIMIT = 32 * 1024 * 1024


def _round_up(x, m):
    return (x + m - 1) // m * m


# ----------------------------------------------------------------------------
# Pallas kernels
# ----------------------------------------------------------------------------
def matmul_stats_kernel(x_ref, w_ref, y_ref, stats_ref):
    """Tiled conv-as-matmul + per-tile BN partial statistics.

    x_ref:     (TM, K)       bf16 im2col patch tile
    w_ref:     (K, Cp)       bf16 weight (Cout padded to multiple of 128)
    y_ref:     (TM, Cp)      f32 conv output tile
    stats_ref: (1, 2, Cp)    f32 per-tile [sum, sum_of_squares] over rows
    """
    acc = jnp.dot(x_ref[...], w_ref[...], preferred_element_type=jnp.float32)
    y_ref[...] = acc
    # Single-pass stats (sum / sum of squares), accumulated in f32.
    stats_ref[0, 0:1, :] = jnp.sum(acc, axis=0, keepdims=True)
    stats_ref[0, 1:2, :] = jnp.sum(acc * acc, axis=0, keepdims=True)


def bn_relu_kernel(y_ref, a_ref, b_ref, o_ref):
    """Fused BN-affine + ReLU:  o = max(y * a + b, 0).

    y_ref: (TM, Cp) f32;  a_ref/b_ref: (1, Cp) f32 pre-folded scale/shift.
    """
    y = y_ref[...] * a_ref[...] + b_ref[...]
    o_ref[...] = jnp.maximum(y, 0.0).astype(o_ref.dtype)


def maxpool_kernel(ho, wo, ee_ref, eo_ref, oe_ref, oo_ref, o_ref):
    """3x3 stride-2 max pool over one batch element.

    The stride-2 subsampling was done once in glue by splitting the input into
    its four (row parity, col parity) phases; each of the 9 taps is then a
    static contiguous slice of one phase.
    ee/eo/oe/oo_ref: (1, Hq, Wq, C);  o_ref: (1, ho, wo, C)
    """
    refs = ((ee_ref, eo_ref), (oe_ref, oo_ref))
    acc = None
    for ki in range(3):
        for kj in range(3):
            r = refs[ki % 2][kj % 2]
            r0, c0 = ki // 2, kj // 2
            tap = r[0, r0:r0 + ho, c0:c0 + wo, :]
            acc = tap if acc is None else jnp.maximum(acc, tap)
    o_ref[0] = acc


# ----------------------------------------------------------------------------
# Glue: im2col + layer wrappers
# ----------------------------------------------------------------------------
def _im2col(x, kh, kw, stride, pad_h, pad_w):
    """x: (N, H, W, C) NHWC -> (N*Ho*Wo, kh*kw*C), plus output dims.

    For 1x1 convs this is just a reshape (no duplication)."""
    x = jnp.pad(x, ((0, 0), (pad_h, pad_h), (pad_w, pad_w), (0, 0)))
    n, h, w, c = x.shape
    ho = (h - kh) // stride + 1
    wo = (w - kw) // stride + 1
    taps = []
    for i in range(kh):
        for j in range(kw):
            taps.append(x[:, i:i + stride * ho:stride, j:j + stride * wo:stride, :])
    p = jnp.stack(taps, axis=3)                 # (N, Ho, Wo, kh*kw, C)
    return p.reshape(n * ho * wo, kh * kw * c), (n, ho, wo)


def basic_conv(x, params, stride=1, padding=(0, 0), tile_m=256):
    """BasicConv: conv(bias=False) + BatchNorm(batch stats) + ReLU."""
    w, gamma, beta = params
    kh, kw, cin, cout = w.shape

    # im2col in glue (identity for 1x1).  bf16 operands halve HBM/VMEM traffic.
    # TODO(synk): walk conv taps in-kernel over the NHWC activation to avoid
    # the KH*KW im2col duplication for the 3x3 / 1x7 / 7x1 layers.
    patches, (n, ho, wo) = _im2col(x, kh, kw, stride, padding[0], padding[1])
    m = patches.shape[0]                         # true row count = N*Ho*Wo
    k = kh * kw * cin

    # Lane/sublane alignment: Cout -> multiple of 128, M -> multiple of TM.
    cp = _round_up(cout, LANE)
    tm = min(tile_m, _round_up(m, SUBLANE))
    mp = _round_up(m, tm)
    num_tiles = mp // tm

    patches = jnp.pad(patches.astype(jnp.bfloat16), ((0, mp - m), (0, 0)))
    w2 = jnp.pad(w.reshape(k, cout), ((0, 0), (0, cp - cout))).astype(jnp.bfloat16)

    flops = 2 * mp * k * cp
    bytes_accessed = (patches.size * 2 + w2.size * 2
                      + mp * cp * 4 + num_tiles * 2 * cp * 4)

    # Pass 1: tiled matmul + per-tile partial BN statistics.
    conv_out, partial_stats = pl.pallas_call(
        matmul_stats_kernel,
        out_shape=(jax.ShapeDtypeStruct((mp, cp), jnp.float32),
                   jax.ShapeDtypeStruct((num_tiles, 2, cp), jnp.float32)),
        grid_spec=pltpu.PrefetchScalarGridSpec(
            num_scalar_prefetch=0,
            grid=(num_tiles,),
            in_specs=[pl.BlockSpec((tm, k), lambda i: (i, 0)),
                      pl.BlockSpec((k, cp), lambda i: (0, 0))],
            out_specs=[pl.BlockSpec((tm, cp), lambda i: (i, 0)),
                       pl.BlockSpec((1, 2, cp), lambda i: (i, 0, 0))]),
        compiler_params=pltpu.CompilerParams(
            dimension_semantics=("parallel",),
            vmem_limit_bytes=VMEM_LIMIT),
        cost_estimate=pl.CostEstimate(flops=flops, transcendentals=0,
                                      bytes_accessed=bytes_accessed),
    )(patches, w2)

    # Reduce partial stats (tiny) and fold BN into one scale/shift pair.
    # Pad rows/channels are all-zero so dividing by the true M is exact.
    sums = jnp.sum(partial_stats, axis=0)              # (2, cp)
    count = jnp.float32(m)
    mean = sums[0] / count
    var = sums[1] / count - mean * mean                # biased, as torch
    inv = jax.lax.rsqrt(var + BN_EPS)
    gamma_p = jnp.pad(gamma, (0, cp - cout))
    beta_p = jnp.pad(beta, (0, cp - cout))
    a = (gamma_p * inv).reshape(1, cp).astype(jnp.float32)
    b = (beta_p - mean * gamma_p * inv).reshape(1, cp).astype(jnp.float32)

    # Pass 2: tiled normalize (single FMA) + ReLU.
    out = pl.pallas_call(
        bn_relu_kernel,
        out_shape=jax.ShapeDtypeStruct((mp, cp), jnp.float32),
        grid_spec=pltpu.PrefetchScalarGridSpec(
            num_scalar_prefetch=0,
            grid=(num_tiles,),
            in_specs=[pl.BlockSpec((tm, cp), lambda i: (i, 0)),
                      pl.BlockSpec((1, cp), lambda i: (0, 0)),
                      pl.BlockSpec((1, cp), lambda i: (0, 0))],
            out_specs=pl.BlockSpec((tm, cp), lambda i: (i, 0))),
        compiler_params=pltpu.CompilerParams(
            dimension_semantics=("parallel",),
            vmem_limit_bytes=VMEM_LIMIT),
    )(conv_out, a, b)

    return out[:m, :cout].reshape(n, ho, wo, cout)


def maxpool_3x3_s2(x):
    """3x3 stride-2 max pool, NHWC, no padding."""
    n, h, w, c = x.shape
    ho = (h - 3) // 2 + 1
    wo = (w - 3) // 2 + 1
    # Split into the 4 (row, col)-parity phases once (total ~1x the input);
    # the kernel takes the 9 taps with static slices of these phases.
    parts = [x[:, i::2, j::2, :] for i in range(2) for j in range(2)]
    kernel = functools.partial(maxpool_kernel, ho, wo)
    out = pl.pallas_call(
        kernel,
        out_shape=jax.ShapeDtypeStruct((n, ho, wo, c), x.dtype),
        grid_spec=pltpu.PrefetchScalarGridSpec(
            num_scalar_prefetch=0,
            grid=(n,),
            in_specs=[pl.BlockSpec((1,) + p.shape[1:], lambda bi: (bi, 0, 0, 0))
                      for p in parts],
            out_specs=pl.BlockSpec((1, ho, wo, c), lambda bi: (bi, 0, 0, 0))),
        compiler_params=pltpu.CompilerParams(
            dimension_semantics=("parallel",),
            vmem_limit_bytes=VMEM_LIMIT),
    )(*parts)
    return out


# ----------------------------------------------------------------------------
# Parameter init (deterministic, synthetic) and InceptionD forward
# ----------------------------------------------------------------------------
def _init_basic_conv(key, cin, cout, kh, kw):
    kw_, kg, kb = jax.random.split(key, 3)
    w = 0.1 * jax.random.normal(kw_, (kh, kw, cin, cout), jnp.float32)
    gamma = jax.random.uniform(kg, (cout,), jnp.float32, 0.5, 1.5)
    beta = 0.1 * jax.random.normal(kb, (cout,), jnp.float32)
    return (w, gamma, beta)


def init_inception_d(key, inchannel):
    keys = jax.random.split(key, 6)
    return {
        "b1_1": _init_basic_conv(keys[0], inchannel, 192, 1, 1),
        "b1_2": _init_basic_conv(keys[1], 192, 320, 3, 3),
        "b2_1": _init_basic_conv(keys[2], inchannel, 192, 1, 1),
        "b2_2": _init_basic_conv(keys[3], 192, 192, 1, 7),
        "b2_3": _init_basic_conv(keys[4], 192, 192, 7, 1),
        "b2_4": _init_basic_conv(keys[5], 192, 192, 3, 3),
    }


@jax.jit
def inception_d_forward(x_nchw, params):
    # NCHW (torch convention) -> NHWC for the kernels.
    x = jnp.transpose(x_nchw, (0, 2, 3, 1))

    # branch1: 1x1 -> 3x3 stride 2
    b1 = basic_conv(x, params["b1_1"], stride=1, padding=(0, 0))
    b1 = basic_conv(b1, params["b1_2"], stride=2, padding=(0, 0))

    # branch2: 1x1 -> 1x7(pad 0,3) -> 7x1(pad 3,0) -> 3x3 stride 2
    b2 = basic_conv(x, params["b2_1"], stride=1, padding=(0, 0))
    b2 = basic_conv(b2, params["b2_2"], stride=1, padding=(0, 3))
    b2 = basic_conv(b2, params["b2_3"], stride=1, padding=(3, 0))
    b2 = basic_conv(b2, params["b2_4"], stride=2, padding=(0, 0))

    # branch_pool: maxpool 3x3 stride 2
    b3 = maxpool_3x3_s2(x)

    out = jnp.concatenate([b1, b2, b3], axis=-1)        # channel concat (NHWC)
    return jnp.transpose(out, (0, 3, 1, 2))             # back to NCHW


# ----------------------------------------------------------------------------
if __name__ == "__main__":
    key = jax.random.PRNGKey(0)
    k_x, k_p = jax.random.split(key)

    N, C_IN, H, W = 2, 16, 9, 9            # small shapes; out spatial = 4x4
    x = jax.random.normal(k_x, (N, C_IN, H, W), jnp.float32)
    params = init_inception_d(k_p, C_IN)

    out = inception_d_forward(x, params)
    out = jax.block_until_ready(out)

    expected_shape = (N, 320 + 192 + C_IN, (H - 3) // 2 + 1, (W - 3) // 2 + 1)
    assert out.shape == expected_shape, out.shape
    assert bool(jnp.all(jnp.isfinite(out)))
    print("KERNEL_OK")
</pallas_src>

<mosaic_0001>
module attributes {stable_mosaic.version = 11 : i64} {
  func.func @matmul_stats_kernel(%arg0: i32, %arg1: memref<168x16xbf16, #tpu.memory_space<vmem>>, %arg2: memref<16x256xbf16, #tpu.memory_space<vmem>>, %arg3: memref<168x256xf32, #tpu.memory_space<vmem>>, %arg4: memref<1x2x256xf32, #tpu.memory_space<vmem>>) attributes {dimension_semantics = [#tpu.dimension_semantics<parallel>], iteration_bounds = array<i64: 1>, scalar_prefetch = 0 : i64, scratch_operands = 0 : i64, tpu.core_type = #tpu.core_type<tc>, window_params = [{transform_indices = @transform_0, window_bounds = array<i64: 168, 16>}, {pipeline_mode = #tpu.pipeline_mode<synchronous>, transform_indices = @transform_1, window_bounds = array<i64: 16, 256>}, {transform_indices = @transform_2, window_bounds = array<i64: 168, 256>}, {transform_indices = @transform_3, window_bounds = array<i64: 1, 2, 256>}]} {
    %c0 = arith.constant 0 : index
    %c0_0 = arith.constant 0 : index
    %0 = vector.load %arg1[%c0, %c0_0] : memref<168x16xbf16, #tpu.memory_space<vmem>>, vector<168x16xbf16>
    %c0_1 = arith.constant 0 : index
    %c0_2 = arith.constant 0 : index
    %1 = vector.load %arg2[%c0_1, %c0_2] : memref<16x256xbf16, #tpu.memory_space<vmem>>, vector<16x256xbf16>
    %cst = arith.constant dense<0.000000e+00> : vector<168x256xf32>
    %2 = tpu.matmul %0, %1, %cst {dimension_numbers = #tpu.dot_dimension_numbers<[1], [0], [0], [1], [0, 0, 1, 1], [], []>} : vector<168x16xbf16>, vector<16x256xbf16>, vector<168x256xf32> -> vector<168x256xf32>
    %c0_3 = arith.constant 0 : index
    %c0_4 = arith.constant 0 : index
    %3 = vector.load %arg3[%c0_3, %c0_4] : memref<168x256xf32, #tpu.memory_space<vmem>>, vector<168x256xf32>
    tpu.vector_store %arg3[%c0_3, %c0_4], %2 {strides = array<i32>} : memref<168x256xf32, #tpu.memory_space<vmem>>, vector<168x256xf32>,
    %cst_5 = arith.constant dense<0.000000e+00> : vector<256xf32>
    %4 = vector.multi_reduction <add>, %2, %cst_5 [0] : vector<168x256xf32> to vector<256xf32>
    %5 = vector.shape_cast %4 : vector<256xf32> to vector<1x256xf32>
    %c0_6 = arith.constant 0 : index
    %c0_7 = arith.constant 0 : index
    %c0_8 = arith.constant 0 : index
    %6 = vector.load %arg4[%c0_6, %c0_7, %c0_8] : memref<1x2x256xf32, #tpu.memory_space<vmem>>, vector<1x1x256xf32>
    %7 = vector.shape_cast %6 : vector<1x1x256xf32> to vector<1x256xf32>
    %8 = vector.shape_cast %5 : vector<1x256xf32> to vector<1x1x256xf32>
    tpu.vector_store %arg4[%c0_6, %c0_7, %c0_8], %8 {strides = array<i32>} : memref<1x2x256xf32, #tpu.memory_space<vmem>>, vector<1x1x256xf32>,
    %9 = arith.mulf %2, %2 : vector<168x256xf32>
    %cst_9 = arith.constant dense<0.000000e+00> : vector<256xf32>
    %10 = vector.multi_reduction <add>, %9, %cst_9 [0] : vector<168x256xf32> to vector<256xf32>
    %11 = vector.shape_cast %10 : vector<256xf32> to vector<1x256xf32>
    %c0_10 = arith.constant 0 : index
    %c1 = arith.constant 1 : index
    %c0_11 = arith.constant 0 : index
    %12 = vector.load %arg4[%c0_10, %c1, %c0_11] : memref<1x2x256xf32, #tpu.memory_space<vmem>>, vector<1x1x256xf32>
    %13 = vector.shape_cast %12 : vector<1x1x256xf32> to vector<1x256xf32>
    %14 = vector.shape_cast %11 : vector<1x256xf32> to vector<1x1x256xf32>
    tpu.vector_store %arg4[%c0_10, %c1, %c0_11], %14 {strides = array<i32>} : memref<1x2x256xf32, #tpu.memory_space<vmem>>, vector<1x1x256xf32>,
    return
  }
  func.func @transform_0(%arg0: i32) -> (i32, i32) {
    %c0_i32 = arith.constant 0 : i32
    %c0_i32_0 = arith.constant 0 : i32
    return %arg0, %c0_i32 : i32, i32
  }
  func.func @transform_1(%arg0: i32) -> (i32, i32) {
    %c0_i32 = arith.constant 0 : i32
    %c0_i32_0 = arith.constant 0 : i32
    %c0_i32_1 = arith.constant 0 : i32
    return %c0_i32, %c0_i32_0 : i32, i32
  }
  func.func @transform_2(%arg0: i32) -> (i32, i32) {
    %c0_i32 = arith.constant 0 : i32
    %c0_i32_0 = arith.constant 0 : i32
    return %arg0, %c0_i32 : i32, i32
  }
  func.func @transform_3(%arg0: i32) -> (i32, i32, i32) {
    %c0_i32 = arith.constant 0 : i32
    %c0_i32_0 = arith.constant 0 : i32
    %c0_i32_1 = arith.constant 0 : i32
    return %arg0, %c0_i32, %c0_i32_0 : i32, i32, i32
  }
}

module attributes {stable_mosaic.version = 11 : i64} {
  func.func @bn_relu_kernel(%arg0: i32, %arg1: memref<168x256xf32, #tpu.memory_space<vmem>>, %arg2: memref<1x256xf32, #tpu.memory_space<vmem>>, %arg3: memref<1x256xf32, #tpu.memory_space<vmem>>, %arg4: memref<168x256xf32, #tpu.memory_space<vmem>>) attributes {dimension_semantics = [#tpu.dimension_semantics<parallel>], iteration_bounds = array<i64: 1>, scalar_prefetch = 0 : i64, scratch_operands = 0 : i64, tpu.core_type = #tpu.core_type<tc>, window_params = [{transform_indices = @transform_0, window_bounds = array<i64: 168, 256>}, {pipeline_mode = #tpu.pipeline_mode<synchronous>, transform_indices = @transform_1, window_bounds = array<i64: 1, 256>}, {pipeline_mode = #tpu.pipeline_mode<synchronous>, transform_indices = @transform_2, window_bounds = array<i64: 1, 256>}, {transform_indices = @transform_3, window_bounds = array<i64: 168, 256>}]} {
    %c0 = arith.constant 0 : index
    %c0_0 = arith.constant 0 : index
    %0 = vector.load %arg1[%c0, %c0_0] : memref<168x256xf32, #tpu.memory_space<vmem>>, vector<168x256xf32>
    %c0_1 = arith.constant 0 : index
    %c0_2 = arith.constant 0 : index
    %1 = vector.load %arg2[%c0_1, %c0_2] : memref<1x256xf32, #tpu.memory_space<vmem>>, vector<1x256xf32>
    %2 = vector.broadcast %1 : vector<1x256xf32> to vector<168x256xf32>
    %3 = arith.mulf %0, %2 : vector<168x256xf32>
    %c0_3 = arith.constant 0 : index
    %c0_4 = arith.constant 0 : index
    %4 = vector.load %arg3[%c0_3, %c0_4] : memref<1x256xf32, #tpu.memory_space<vmem>>, vector<1x256xf32>
    %5 = vector.broadcast %4 : vector<1x256xf32> to vector<168x256xf32>
    %6 = arith.addf %3, %5 : vector<168x256xf32>
    %cst = arith.constant 0.000000e+00 : f32
    %7 = vector.broadcast %cst : f32 to vector<168x256xf32>
    %8 = arith.maximumf %6, %7 : vector<168x256xf32>
    %c0_5 = arith.constant 0 : index
    %c0_6 = arith.constant 0 : index
    %9 = vector.load %arg4[%c0_5, %c0_6] : memref<168x256xf32, #tpu.memory_space<vmem>>, vector<168x256xf32>
    tpu.vector_store %arg4[%c0_5, %c0_6], %8 {strides = array<i32>} : memref<168x256xf32, #tpu.memory_space<vmem>>, vector<168x256xf32>,
    return
  }
  func.func @transform_0(%arg0: i32) -> (i32, i32) {
    %c0_i32 = arith.constant 0 : i32
    %c0_i32_0 = arith.constant 0 : i32
    return %arg0, %c0_i32 : i32, i32
  }
  func.func @transform_1(%arg0: i32) -> (i32, i32) {
    %c0_i32 = arith.constant 0 : i32
    %c0_i32_0 = arith.constant 0 : i32
    %c0_i32_1 = arith.constant 0 : i32
    return %c0_i32, %c0_i32_0 : i32, i32
  }
  func.func @transform_2(%arg0: i32) -> (i32, i32) {
    %c0_i32 = arith.constant 0 : i32
    %c0_i32_0 = arith.constant 0 : i32
    %c0_i32_1 = arith.constant 0 : i32
    return %c0_i32, %c0_i32_0 : i32, i32
  }
  func.func @transform_3(%arg0: i32) -> (i32, i32) {
    %c0_i32 = arith.constant 0 : i32
    %c0_i32_0 = arith.constant 0 : i32
    return %arg0, %c0_i32 : i32, i32
  }
}

module attributes {stable_mosaic.version = 11 : i64} {
  func.func @matmul_stats_kernel(%arg0: i32, %arg1: memref<32x1728xbf16, #tpu.memory_space<vmem>>, %arg2: memref<1728x384xbf16, #tpu.memory_space<vmem>>, %arg3: memref<32x384xf32, #tpu.memory_space<vmem>>, %arg4: memref<1x2x384xf32, #tpu.memory_space<vmem>>) attributes {dimension_semantics = [#tpu.dimension_semantics<parallel>], iteration_bounds = array<i64: 1>, scalar_prefetch = 0 : i64, scratch_operands = 0 : i64, tpu.core_type = #tpu.core_type<tc>, window_params = [{transform_indices = @transform_0, window_bounds = array<i64: 32, 1728>}, {pipeline_mode = #tpu.pipeline_mode<synchronous>, transform_indices = @transform_1, window_bounds = array<i64: 1728, 384>}, {transform_indices = @transform_2, window_bounds = array<i64: 32, 384>}, {transform_indices = @transform_3, window_bounds = array<i64: 1, 2, 384>}]} {
    %c0 = arith.constant 0 : index
    %c0_0 = arith.constant 0 : index
    %0 = vector.load %arg1[%c0, %c0_0] : memref<32x1728xbf16, #tpu.memory_space<vmem>>, vector<32x1728xbf16>
    %c0_1 = arith.constant 0 : index
    %c0_2 = arith.constant 0 : index
    %1 = vector.load %arg2[%c0_1, %c0_2] : memref<1728x384xbf16, #tpu.memory_space<vmem>>, vector<1728x384xbf16>
    %cst = arith.constant dense<0.000000e+00> : vector<32x384xf32>
    %2 = tpu.matmul %0, %1, %cst {dimension_numbers = #tpu.dot_dimension_numbers<[1], [0], [0], [1], [0, 0, 1, 1], [], []>} : vector<32x1728xbf16>, vector<1728x384xbf16>, vector<32x384xf32> -> vector<32x384xf32>
    %c0_3 = arith.constant 0 : index
    %c0_4 = arith.constant 0 : index
    %3 = vector.load %arg3[%c0_3, %c0_4] : memref<32x384xf32, #tpu.memory_space<vmem>>, vector<32x384xf32>
    tpu.vector_store %arg3[%c0_3, %c0_4], %2 {strides = array<i32>} : memref<32x384xf32, #tpu.memory_space<vmem>>, vector<32x384xf32>,
    %cst_5 = arith.constant dense<0.000000e+00> : vector<384xf32>
    %4 = vector.multi_reduction <add>, %2, %cst_5 [0] : vector<32x384xf32> to vector<384xf32>
    %5 = vector.shape_cast %4 : vector<384xf32> to vector<1x384xf32>
    %c0_6 = arith.constant 0 : index
    %c0_7 = arith.constant 0 : index
    %c0_8 = arith.constant 0 : index
    %6 = vector.load %arg4[%c0_6, %c0_7, %c0_8] : memref<1x2x384xf32, #tpu.memory_space<vmem>>, vector<1x1x384xf32>
    %7 = vector.shape_cast %6 : vector<1x1x384xf32> to vector<1x384xf32>
    %8 = vector.shape_cast %5 : vector<1x384xf32> to vector<1x1x384xf32>
    tpu.vector_store %arg4[%c0_6, %c0_7, %c0_8], %8 {strides = array<i32>} : memref<1x2x384xf32, #tpu.memory_space<vmem>>, vector<1x1x384xf32>,
    %9 = arith.mulf %2, %2 : vector<32x384xf32>
    %cst_9 = arith.constant dense<0.000000e+00> : vector<384xf32>
    %10 = vector.multi_reduction <add>, %9, %cst_9 [0] : vector<32x384xf32> to vector<384xf32>
    %11 = vector.shape_cast %10 : vector<384xf32> to vector<1x384xf32>
    %c0_10 = arith.constant 0 : index
    %c1 = arith.constant 1 : index
    %c0_11 = arith.constant 0 : index
    %12 = vector.load %arg4[%c0_10, %c1, %c0_11] : memref<1x2x384xf32, #tpu.memory_space<vmem>>, vector<1x1x384xf32>
    %13 = vector.shape_cast %12 : vector<1x1x384xf32> to vector<1x384xf32>
    %14 = vector.shape_cast %11 : vector<1x384xf32> to vector<1x1x384xf32>
    tpu.vector_store %arg4[%c0_10, %c1, %c0_11], %14 {strides = array<i32>} : memref<1x2x384xf32, #tpu.memory_space<vmem>>, vector<1x1x384xf32>,
    return
  }
  func.func @transform_0(%arg0: i32) -> (i32, i32) {
    %c0_i32 = arith.constant 0 : i32
    %c0_i32_0 = arith.constant 0 : i32
    return %arg0, %c0_i32 : i32, i32
  }
  func.func @transform_1(%arg0: i32) -> (i32, i32) {
    %c0_i32 = arith.constant 0 : i32
    %c0_i32_0 = arith.constant 0 : i32
    %c0_i32_1 = arith.constant 0 : i32
    return %c0_i32, %c0_i32_0 : i32, i32
  }
  func.func @transform_2(%arg0: i32) -> (i32, i32) {
    %c0_i32 = arith.constant 0 : i32
    %c0_i32_0 = arith.constant 0 : i32
    return %arg0, %c0_i32 : i32, i32
  }
  func.func @transform_3(%arg0: i32) -> (i32, i32, i32) {
    %c0_i32 = arith.constant 0 : i32
    %c0_i32_0 = arith.constant 0 : i32
    %c0_i32_1 = arith.constant 0 : i32
    return %arg0, %c0_i32, %c0_i32_0 : i32, i32, i32
  }
}

module attributes {stable_mosaic.version = 11 : i64} {
  func.func @bn_relu_kernel(%arg0: i32, %arg1: memref<32x384xf32, #tpu.memory_space<vmem>>, %arg2: memref<1x384xf32, #tpu.memory_space<vmem>>, %arg3: memref<1x384xf32, #tpu.memory_space<vmem>>, %arg4: memref<32x384xf32, #tpu.memory_space<vmem>>) attributes {dimension_semantics = [#tpu.dimension_semantics<parallel>], iteration_bounds = array<i64: 1>, scalar_prefetch = 0 : i64, scratch_operands = 0 : i64, tpu.core_type = #tpu.core_type<tc>, window_params = [{transform_indices = @transform_0, window_bounds = array<i64: 32, 384>}, {pipeline_mode = #tpu.pipeline_mode<synchronous>, transform_indices = @transform_1, window_bounds = array<i64: 1, 384>}, {pipeline_mode = #tpu.pipeline_mode<synchronous>, transform_indices = @transform_2, window_bounds = array<i64: 1, 384>}, {transform_indices = @transform_3, window_bounds = array<i64: 32, 384>}]} {
    %c0 = arith.constant 0 : index
    %c0_0 = arith.constant 0 : index
    %0 = vector.load %arg1[%c0, %c0_0] : memref<32x384xf32, #tpu.memory_space<vmem>>, vector<32x384xf32>
    %c0_1 = arith.constant 0 : index
    %c0_2 = arith.constant 0 : index
    %1 = vector.load %arg2[%c0_1, %c0_2] : memref<1x384xf32, #tpu.memory_space<vmem>>, vector<1x384xf32>
    %2 = vector.broadcast %1 : vector<1x384xf32> to vector<32x384xf32>
    %3 = arith.mulf %0, %2 : vector<32x384xf32>
    %c0_3 = arith.constant 0 : index
    %c0_4 = arith.constant 0 : index
    %4 = vector.load %arg3[%c0_3, %c0_4] : memref<1x384xf32, #tpu.memory_space<vmem>>, vector<1x384xf32>
    %5 = vector.broadcast %4 : vector<1x384xf32> to vector<32x384xf32>
    %6 = arith.addf %3, %5 : vector<32x384xf32>
    %cst = arith.constant 0.000000e+00 : f32
    %7 = vector.broadcast %cst : f32 to vector<32x384xf32>
    %8 = arith.maximumf %6, %7 : vector<32x384xf32>
    %c0_5 = arith.constant 0 : index
    %c0_6 = arith.constant 0 : index
    %9 = vector.load %arg4[%c0_5, %c0_6] : memref<32x384xf32, #tpu.memory_space<vmem>>, vector<32x384xf32>
    tpu.vector_store %arg4[%c0_5, %c0_6], %8 {strides = array<i32>} : memref<32x384xf32, #tpu.memory_space<vmem>>, vector<32x384xf32>,
    return
  }
  func.func @transform_0(%arg0: i32) -> (i32, i32) {
    %c0_i32 = arith.constant 0 : i32
    %c0_i32_0 = arith.constant 0 : i32
    return %arg0, %c0_i32 : i32, i32
  }
  func.func @transform_1(%arg0: i32) -> (i32, i32) {
    %c0_i32 = arith.constant 0 : i32
    %c0_i32_0 = arith.constant 0 : i32
    %c0_i32_1 = arith.constant 0 : i32
    return %c0_i32, %c0_i32_0 : i32, i32
  }
  func.func @transform_2(%arg0: i32) -> (i32, i32) {
    %c0_i32 = arith.constant 0 : i32
    %c0_i32_0 = arith.constant 0 : i32
    %c0_i32_1 = arith.constant 0 : i32
    return %c0_i32, %c0_i32_0 : i32, i32
  }
  func.func @transform_3(%arg0: i32) -> (i32, i32) {
    %c0_i32 = arith.constant 0 : i32
    %c0_i32_0 = arith.constant 0 : i32
    return %arg0, %c0_i32 : i32, i32
  }
}

module attributes {stable_mosaic.version = 11 : i64} {
  func.func @matmul_stats_kernel(%arg0: i32, %arg1: memref<168x1344xbf16, #tpu.memory_space<vmem>>, %arg2: memref<1344x256xbf16, #tpu.memory_space<vmem>>, %arg3: memref<168x256xf32, #tpu.memory_space<vmem>>, %arg4: memref<1x2x256xf32, #tpu.memory_space<vmem>>) attributes {dimension_semantics = [#tpu.dimension_semantics<parallel>], iteration_bounds = array<i64: 1>, scalar_prefetch = 0 : i64, scratch_operands = 0 : i64, tpu.core_type = #tpu.core_type<tc>, window_params = [{transform_indices = @transform_0, window_bounds = array<i64: 168, 1344>}, {pipeline_mode = #tpu.pipeline_mode<synchronous>, transform_indices = @transform_1, window_bounds = array<i64: 1344, 256>}, {transform_indices = @transform_2, window_bounds = array<i64: 168, 256>}, {transform_indices = @transform_3, window_bounds = array<i64: 1, 2, 256>}]} {
    %c0 = arith.constant 0 : index
    %c0_0 = arith.constant 0 : index
    %0 = vector.load %arg1[%c0, %c0_0] : memref<168x1344xbf16, #tpu.memory_space<vmem>>, vector<168x1344xbf16>
    %c0_1 = arith.constant 0 : index
    %c0_2 = arith.constant 0 : index
    %1 = vector.load %arg2[%c0_1, %c0_2] : memref<1344x256xbf16, #tpu.memory_space<vmem>>, vector<1344x256xbf16>
    %cst = arith.constant dense<0.000000e+00> : vector<168x256xf32>
    %2 = tpu.matmul %0, %1, %cst {dimension_numbers = #tpu.dot_dimension_numbers<[1], [0], [0], [1], [0, 0, 1, 1], [], []>} : vector<168x1344xbf16>, vector<1344x256xbf16>, vector<168x256xf32> -> vector<168x256xf32>
    %c0_3 = arith.constant 0 : index
    %c0_4 = arith.constant 0 : index
    %3 = vector.load %arg3[%c0_3, %c0_4] : memref<168x256xf32, #tpu.memory_space<vmem>>, vector<168x256xf32>
    tpu.vector_store %arg3[%c0_3, %c0_4], %2 {strides = array<i32>} : memref<168x256xf32, #tpu.memory_space<vmem>>, vector<168x256xf32>,
    %cst_5 = arith.constant dense<0.000000e+00> : vector<256xf32>
    %4 = vector.multi_reduction <add>, %2, %cst_5 [0] : vector<168x256xf32> to vector<256xf32>
    %5 = vector.shape_cast %4 : vector<256xf32> to vector<1x256xf32>
    %c0_6 = arith.constant 0 : index
    %c0_7 = arith.constant 0 : index
    %c0_8 = arith.constant 0 : index
    %6 = vector.load %arg4[%c0_6, %c0_7, %c0_8] : memref<1x2x256xf32, #tpu.memory_space<vmem>>, vector<1x1x256xf32>
    %7 = vector.shape_cast %6 : vector<1x1x256xf32> to vector<1x256xf32>
    %8 = vector.shape_cast %5 : vector<1x256xf32> to vector<1x1x256xf32>
    tpu.vector_store %arg4[%c0_6, %c0_7, %c0_8], %8 {strides = array<i32>} : memref<1x2x256xf32, #tpu.memory_space<vmem>>, vector<1x1x256xf32>,
    %9 = arith.mulf %2, %2 : vector<168x256xf32>
    %cst_9 = arith.constant dense<0.000000e+00> : vector<256xf32>
    %10 = vector.multi_reduction <add>, %9, %cst_9 [0] : vector<168x256xf32> to vector<256xf32>
    %11 = vector.shape_cast %10 : vector<256xf32> to vector<1x256xf32>
    %c0_10 = arith.constant 0 : index
    %c1 = arith.constant 1 : index
    %c0_11 = arith.constant 0 : index
    %12 = vector.load %arg4[%c0_10, %c1, %c0_11] : memref<1x2x256xf32, #tpu.memory_space<vmem>>, vector<1x1x256xf32>
    %13 = vector.shape_cast %12 : vector<1x1x256xf32> to vector<1x256xf32>
    %14 = vector.shape_cast %11 : vector<1x256xf32> to vector<1x1x256xf32>
    tpu.vector_store %arg4[%c0_10, %c1, %c0_11], %14 {strides = array<i32>} : memref<1x2x256xf32, #tpu.memory_space<vmem>>, vector<1x1x256xf32>,
    return
  }
  func.func @transform_0(%arg0: i32) -> (i32, i32) {
    %c0_i32 = arith.constant 0 : i32
    %c0_i32_0 = arith.constant 0 : i32
    return %arg0, %c0_i32 : i32, i32
  }
  func.func @transform_1(%arg0: i32) -> (i32, i32) {
    %c0_i32 = arith.constant 0 : i32
    %c0_i32_0 = arith.constant 0 : i32
    %c0_i32_1 = arith.constant 0 : i32
    return %c0_i32, %c0_i32_0 : i32, i32
  }
  func.func @transform_2(%arg0: i32) -> (i32, i32) {
    %c0_i32 = arith.constant 0 : i32
    %c0_i32_0 = arith.constant 0 : i32
    return %arg0, %c0_i32 : i32, i32
  }
  func.func @transform_3(%arg0: i32) -> (i32, i32, i32) {
    %c0_i32 = arith.constant 0 : i32
    %c0_i32_0 = arith.constant 0 : i32
    %c0_i32_1 = arith.constant 0 : i32
    return %arg0, %c0_i32, %c0_i32_0 : i32, i32, i32
  }
}

module attributes {stable_mosaic.version = 11 : i64} {
  func.func @matmul_stats_kernel(%arg0: i32, %arg1: memref<32x1728xbf16, #tpu.memory_space<vmem>>, %arg2: memref<1728x256xbf16, #tpu.memory_space<vmem>>, %arg3: memref<32x256xf32, #tpu.memory_space<vmem>>, %arg4: memref<1x2x256xf32, #tpu.memory_space<vmem>>) attributes {dimension_semantics = [#tpu.dimension_semantics<parallel>], iteration_bounds = array<i64: 1>, scalar_prefetch = 0 : i64, scratch_operands = 0 : i64, tpu.core_type = #tpu.core_type<tc>, window_params = [{transform_indices = @transform_0, window_bounds = array<i64: 32, 1728>}, {pipeline_mode = #tpu.pipeline_mode<synchronous>, transform_indices = @transform_1, window_bounds = array<i64: 1728, 256>}, {transform_indices = @transform_2, window_bounds = array<i64: 32, 256>}, {transform_indices = @transform_3, window_bounds = array<i64: 1, 2, 256>}]} {
    %c0 = arith.constant 0 : index
    %c0_0 = arith.constant 0 : index
    %0 = vector.load %arg1[%c0, %c0_0] : memref<32x1728xbf16, #tpu.memory_space<vmem>>, vector<32x1728xbf16>
    %c0_1 = arith.constant 0 : index
    %c0_2 = arith.constant 0 : index
    %1 = vector.load %arg2[%c0_1, %c0_2] : memref<1728x256xbf16, #tpu.memory_space<vmem>>, vector<1728x256xbf16>
    %cst = arith.constant dense<0.000000e+00> : vector<32x256xf32>
    %2 = tpu.matmul %0, %1, %cst {dimension_numbers = #tpu.dot_dimension_numbers<[1], [0], [0], [1], [0, 0, 1, 1], [], []>} : vector<32x1728xbf16>, vector<1728x256xbf16>, vector<32x256xf32> -> vector<32x256xf32>
    %c0_3 = arith.constant 0 : index
    %c0_4 = arith.constant 0 : index
    %3 = vector.load %arg3[%c0_3, %c0_4] : memref<32x256xf32, #tpu.memory_space<vmem>>, vector<32x256xf32>
    tpu.vector_store %arg3[%c0_3, %c0_4], %2 {strides = array<i32>} : memref<32x256xf32, #tpu.memory_space<vmem>>, vector<32x256xf32>,
    %cst_5 = arith.constant dense<0.000000e+00> : vector<256xf32>
    %4 = vector.multi_reduction <add>, %2, %cst_5 [0] : vector<32x256xf32> to vector<256xf32>
    %5 = vector.shape_cast %4 : vector<256xf32> to vector<1x256xf32>
    %c0_6 = arith.constant 0 : index
    %c0_7 = arith.constant 0 : index
    %c0_8 = arith.constant 0 : index
    %6 = vector.load %arg4[%c0_6, %c0_7, %c0_8] : memref<1x2x256xf32, #tpu.memory_space<vmem>>, vector<1x1x256xf32>
    %7 = vector.shape_cast %6 : vector<1x1x256xf32> to vector<1x256xf32>
    %8 = vector.shape_cast %5 : vector<1x256xf32> to vector<1x1x256xf32>
    tpu.vector_store %arg4[%c0_6, %c0_7, %c0_8], %8 {strides = array<i32>} : memref<1x2x256xf32, #tpu.memory_space<vmem>>, vector<1x1x256xf32>,
    %9 = arith.mulf %2, %2 : vector<32x256xf32>
    %cst_9 = arith.constant dense<0.000000e+00> : vector<256xf32>
    %10 = vector.multi_reduction <add>, %9, %cst_9 [0] : vector<32x256xf32> to vector<256xf32>
    %11 = vector.shape_cast %10 : vector<256xf32> to vector<1x256xf32>
    %c0_10 = arith.constant 0 : index
    %c1 = arith.constant 1 : index
    %c0_11 = arith.constant 0 : index
    %12 = vector.load %arg4[%c0_10, %c1, %c0_11] : memref<1x2x256xf32, #tpu.memory_space<vmem>>, vector<1x1x256xf32>
    %13 = vector.shape_cast %12 : vector<1x1x256xf32> to vector<1x256xf32>
    %14 = vector.shape_cast %11 : vector<1x256xf32> to vector<1x1x256xf32>
    tpu.vector_store %arg4[%c0_10, %c1, %c0_11], %14 {strides = array<i32>} : memref<1x2x256xf32, #tpu.memory_space<vmem>>, vector<1x1x256xf32>,
    return
  }
  func.func @transform_0(%arg0: i32) -> (i32, i32) {
    %c0_i32 = arith.constant 0 : i32
    %c0_i32_0 = arith.constant 0 : i32
    return %arg0, %c0_i32 : i32, i32
  }
  func.func @transform_1(%arg0: i32) -> (i32, i32) {
    %c0_i32 = arith.constant 0 : i32
    %c0_i32_0 = arith.constant 0 : i32
    %c0_i32_1 = arith.constant 0 : i32
    return %c0_i32, %c0_i32_0 : i32, i32
  }
  func.func @transform_2(%arg0: i32) -> (i32, i32) {
    %c0_i32 = arith.constant 0 : i32
    %c0_i32_0 = arith.constant 0 : i32
    return %arg0, %c0_i32 : i32, i32
  }
  func.func @transform_3(%arg0: i32) -> (i32, i32, i32) {
    %c0_i32 = arith.constant 0 : i32
    %c0_i32_0 = arith.constant 0 : i32
    %c0_i32_1 = arith.constant 0 : i32
    return %arg0, %c0_i32, %c0_i32_0 : i32, i32, i32
  }
}

module attributes {stable_mosaic.version = 11 : i64} {
  func.func @bn_relu_kernel(%arg0: i32, %arg1: memref<32x256xf32, #tpu.memory_space<vmem>>, %arg2: memref<1x256xf32, #tpu.memory_space<vmem>>, %arg3: memref<1x256xf32, #tpu.memory_space<vmem>>, %arg4: memref<32x256xf32, #tpu.memory_space<vmem>>) attributes {dimension_semantics = [#tpu.dimension_semantics<parallel>], iteration_bounds = array<i64: 1>, scalar_prefetch = 0 : i64, scratch_operands = 0 : i64, tpu.core_type = #tpu.core_type<tc>, window_params = [{transform_indices = @transform_0, window_bounds = array<i64: 32, 256>}, {pipeline_mode = #tpu.pipeline_mode<synchronous>, transform_indices = @transform_1, window_bounds = array<i64: 1, 256>}, {pipeline_mode = #tpu.pipeline_mode<synchronous>, transform_indices = @transform_2, window_bounds = array<i64: 1, 256>}, {transform_indices = @transform_3, window_bounds = array<i64: 32, 256>}]} {
    %c0 = arith.constant 0 : index
    %c0_0 = arith.constant 0 : index
    %0 = vector.load %arg1[%c0, %c0_0] : memref<32x256xf32, #tpu.memory_space<vmem>>, vector<32x256xf32>
    %c0_1 = arith.constant 0 : index
    %c0_2 = arith.constant 0 : index
    %1 = vector.load %arg2[%c0_1, %c0_2] : memref<1x256xf32, #tpu.memory_space<vmem>>, vector<1x256xf32>
    %2 = vector.broadcast %1 : vector<1x256xf32> to vector<32x256xf32>
    %3 = arith.mulf %0, %2 : vector<32x256xf32>
    %c0_3 = arith.constant 0 : index
    %c0_4 = arith.constant 0 : index
    %4 = vector.load %arg3[%c0_3, %c0_4] : memref<1x256xf32, #tpu.memory_space<vmem>>, vector<1x256xf32>
    %5 = vector.broadcast %4 : vector<1x256xf32> to vector<32x256xf32>
    %6 = arith.addf %3, %5 : vector<32x256xf32>
    %cst = arith.constant 0.000000e+00 : f32
    %7 = vector.broadcast %cst : f32 to vector<32x256xf32>
    %8 = arith.maximumf %6, %7 : vector<32x256xf32>
    %c0_5 = arith.constant 0 : index
    %c0_6 = arith.constant 0 : index
    %9 = vector.load %arg4[%c0_5, %c0_6] : memref<32x256xf32, #tpu.memory_space<vmem>>, vector<32x256xf32>
    tpu.vector_store %arg4[%c0_5, %c0_6], %8 {strides = array<i32>} : memref<32x256xf32, #tpu.memory_space<vmem>>, vector<32x256xf32>,
    return
  }
  func.func @transform_0(%arg0: i32) -> (i32, i32) {
    %c0_i32 = arith.constant 0 : i32
    %c0_i32_0 = arith.constant 0 : i32
    return %arg0, %c0_i32 : i32, i32
  }
  func.func @transform_1(%arg0: i32) -> (i32, i32) {
    %c0_i32 = arith.constant 0 : i32
    %c0_i32_0 = arith.constant 0 : i32
    %c0_i32_1 = arith.constant 0 : i32
    return %c0_i32, %c0_i32_0 : i32, i32
  }
  func.func @transform_2(%arg0: i32) -> (i32, i32) {
    %c0_i32 = arith.constant 0 : i32
    %c0_i32_0 = arith.constant 0 : i32
    %c0_i32_1 = arith.constant 0 : i32
    return %c0_i32, %c0_i32_0 : i32, i32
  }
  func.func @transform_3(%arg0: i32) -> (i32, i32) {
    %c0_i32 = arith.constant 0 : i32
    %c0_i32_0 = arith.constant 0 : i32
    return %arg0, %c0_i32 : i32, i32
  }
}

module attributes {stable_mosaic.version = 11 : i64} {
  func.func @maxpool_kernel(%arg0: i32, %arg1: memref<1x5x5x16xf32, #tpu.memory_space<vmem>>, %arg2: memref<1x5x4x16xf32, #tpu.memory_space<vmem>>, %arg3: memref<1x4x5x16xf32, #tpu.memory_space<vmem>>, %arg4: memref<1x4x4x16xf32, #tpu.memory_space<vmem>>, %arg5: memref<1x4x4x16xf32, #tpu.memory_space<vmem>>) attributes {dimension_semantics = [#tpu.dimension_semantics<parallel>], iteration_bounds = array<i64: 2>, scalar_prefetch = 0 : i64, scratch_operands = 0 : i64, tpu.core_type = #tpu.core_type<tc>, window_params = [{transform_indices = @transform_0, window_bounds = array<i64: 1, 5, 5, 16>}, {transform_indices = @transform_1, window_bounds = array<i64: 1, 5, 4, 16>}, {transform_indices = @transform_2, window_bounds = array<i64: 1, 4, 5, 16>}, {transform_indices = @transform_3, window_bounds = array<i64: 1, 4, 4, 16>}, {transform_indices = @transform_4, window_bounds = array<i64: 1, 4, 4, 16>}]} {
    %c0 = arith.constant 0 : index
    %c0_0 = arith.constant 0 : index
    %c0_1 = arith.constant 0 : index
    %c0_2 = arith.constant 0 : index
    %0 = vector.load %arg1[%c0, %c0_0, %c0_1, %c0_2] : memref<1x5x5x16xf32, #tpu.memory_space<vmem>>, vector<1x4x4x16xf32>
    %1 = vector.shape_cast %0 : vector<1x4x4x16xf32> to vector<4x4x16xf32>
    %c0_3 = arith.constant 0 : index
    %c0_4 = arith.constant 0 : index
    %c0_5 = arith.constant 0 : index
    %c0_6 = arith.constant 0 : index
    %2 = vector.load %arg2[%c0_3, %c0_4, %c0_5, %c0_6] : memref<1x5x4x16xf32, #tpu.memory_space<vmem>>, vector<1x4x4x16xf32>
    %3 = vector.shape_cast %2 : vector<1x4x4x16xf32> to vector<4x4x16xf32>
    %4 = arith.maximumf %1, %3 : vector<4x4x16xf32>
    %c0_7 = arith.constant 0 : index
    %c0_8 = arith.constant 0 : index
    %c1 = arith.constant 1 : index
    %c0_9 = arith.constant 0 : index
    %5 = vector.load %arg1[%c0_7, %c0_8, %c1, %c0_9] : memref<1x5x5x16xf32, #tpu.memory_space<vmem>>, vector<1x4x4x16xf32>
    %6 = vector.shape_cast %5 : vector<1x4x4x16xf32> to vector<4x4x16xf32>
    %7 = arith.maximumf %4, %6 : vector<4x4x16xf32>
    %c0_10 = arith.constant 0 : index
    %c0_11 = arith.constant 0 : index
    %c0_12 = arith.constant 0 : index
    %c0_13 = arith.constant 0 : index
    %8 = vector.load %arg3[%c0_10, %c0_11, %c0_12, %c0_13] : memref<1x4x5x16xf32, #tpu.memory_space<vmem>>, vector<1x4x4x16xf32>
    %9 = vector.shape_cast %8 : vector<1x4x4x16xf32> to vector<4x4x16xf32>
    %10 = arith.maximumf %7, %9 : vector<4x4x16xf32>
    %c0_14 = arith.constant 0 : index
    %c0_15 = arith.constant 0 : index
    %c0_16 = arith.constant 0 : index
    %c0_17 = arith.constant 0 : index
    %11 = vector.load %arg4[%c0_14, %c0_15, %c0_16, %c0_17] : memref<1x4x4x16xf32, #tpu.memory_space<vmem>>, vector<1x4x4x16xf32>
    %12 = vector.shape_cast %11 : vector<1x4x4x16xf32> to vector<4x4x16xf32>
    %13 = arith.maximumf %10, %12 : vector<4x4x16xf32>
    %c0_18 = arith.constant 0 : index
    %c0_19 = arith.constant 0 : index
    %c1_20 = arith.constant 1 : index
    %c0_21 = arith.constant 0 : index
    %14 = vector.load %arg3[%c0_18, %c0_19, %c1_20, %c0_21] : memref<1x4x5x16xf32, #tpu.memory_space<vmem>>, vector<1x4x4x16xf32>
    %15 = vector.shape_cast %14 : vector<1x4x4x16xf32> to vector<4x4x16xf32>
    %16 = arith.maximumf %13, %15 : vector<4x4x16xf32>
    %c0_22 = arith.constant 0 : index
    %c1_23 = arith.constant 1 : index
    %c0_24 = arith.constant 0 : index
    %c0_25 = arith.constant 0 : index
    %17 = vector.load %arg1[%c0_22, %c1_23, %c0_24, %c0_25] : memref<1x5x5x16xf32, #tpu.memory_space<vmem>>, vector<1x4x4x16xf32>
    %18 = vector.shape_cast %17 : vector<1x4x4x16xf32> to vector<4x4x16xf32>
    %19 = arith.maximumf %16, %18 : vector<4x4x16xf32>
    %c0_26 = arith.constant 0 : index
    %c1_27 = arith.constant 1 : index
    %c0_28 = arith.constant 0 : index
    %c0_29 = arith.constant 0 : index
    %20 = vector.load %arg2[%c0_26, %c1_27, %c0_28, %c0_29] : memref<1x5x4x16xf32, #tpu.memory_space<vmem>>, vector<1x4x4x16xf32>
    %21 = vector.shape_cast %20 : vector<1x4x4x16xf32> to vector<4x4x16xf32>
    %22 = arith.maximumf %19, %21 : vector<4x4x16xf32>
    %c0_30 = arith.constant 0 : index
    %c1_31 = arith.constant 1 : index
    %c1_32 = arith.constant 1 : index
    %c0_33 = arith.constant 0 : index
    %23 = vector.load %arg1[%c0_30, %c1_31, %c1_32, %c0_33] : memref<1x5x5x16xf32, #tpu.memory_space<vmem>>, vector<1x4x4x16xf32>
    %24 = vector.shape_cast %23 : vector<1x4x4x16xf32> to vector<4x4x16xf32>
    %25 = arith.maximumf %22, %24 : vector<4x4x16xf32>
    %c0_34 = arith.constant 0 : index
    %c0_35 = arith.constant 0 : index
    %c0_36 = arith.constant 0 : index
    %c0_37 = arith.constant 0 : index
    %26 = vector.load %arg5[%c0_34, %c0_35, %c0_36, %c0_37] : memref<1x4x4x16xf32, #tpu.memory_space<vmem>>, vector<1x4x4x16xf32>
    %27 = vector.shape_cast %26 : vector<1x4x4x16xf32> to vector<4x4x16xf32>
    %28 = vector.shape_cast %25 : vector<4x4x16xf32> to vector<1x4x4x16xf32>
    tpu.vector_store %arg5[%c0_34, %c0_35, %c0_36, %c0_37], %28 {strides = array<i32>} : memref<1x4x4x16xf32, #tpu.memory_space<vmem>>, vector<1x4x4x16xf32>,
    return
  }
  func.func @transform_0(%arg0: i32) -> (i32, i32, i32, i32) {
    %c0_i32 = arith.constant 0 : i32
    %c0_i32_0 = arith.constant 0 : i32
    %c0_i32_1 = arith.constant 0 : i32
    %c0_i32_2 = arith.constant 0 : i32
    return %arg0, %c0_i32, %c0_i32_0, %c0_i32_1 : i32, i32, i32, i32
  }
  func.func @transform_1(%arg0: i32) -> (i32, i32, i32, i32) {
    %c0_i32 = arith.constant 0 : i32
    %c0_i32_0 = arith.constant 0 : i32
    %c0_i32_1 = arith.constant 0 : i32
    %c0_i32_2 = arith.constant 0 : i32
    return %arg0, %c0_i32, %c0_i32_0, %c0_i32_1 : i32, i32, i32, i32
  }
  func.func @transform_2(%arg0: i32) -> (i32, i32, i32, i32) {
    %c0_i32 = arith.constant 0 : i32
    %c0_i32_0 = arith.constant 0 : i32
    %c0_i32_1 = arith.constant 0 : i32
    %c0_i32_2 = arith.constant 0 : i32
    return %arg0, %c0_i32, %c0_i32_0, %c0_i32_1 : i32, i32, i32, i32
  }
  func.func @transform_3(%arg0: i32) -> (i32, i32, i32, i32) {
    %c0_i32 = arith.constant 0 : i32
    %c0_i32_0 = arith.constant 0 : i32
    %c0_i32_1 = arith.constant 0 : i32
    %c0_i32_2 = arith.constant 0 : i32
    return %arg0, %c0_i32, %c0_i32_0, %c0_i32_1 : i32, i32, i32, i32
  }
  func.func @transform_4(%arg0: i32) -> (i32, i32, i32, i32) {
    %c0_i32 = arith.constant 0 : i32
    %c0_i32_0 = arith.constant 0 : i32
    %c0_i32_1 = arith.constant 0 : i32
    %c0_i32_2 = arith.constant 0 : i32
    return %arg0, %c0_i32, %c0_i32_0, %c0_i32_1 : i32, i32, i32, i32
  }
}

</mosaic_0001>

<llo_original>
// kernel: inception_d_forward.14
$region0: #{inception_d_forward.14}
  #allocation0 [shape = 'u32[]', space=smem, size = 0x4, offset = 0x4, fixed_abs, tag = 'smem constant byte address 0x4 - core index']
  #allocation1 [shape = 'u32[144,128]{1,0:T(1,128)}', space=vmem, size = 0x12000, scoped, tag = 'internal scratch']
  %s0 = inlined_call_operand.vmem [shape: f32[168,256], index: 0, kind: input, shape index: {}]
  %s1 = inlined_call_operand.vmem [shape: f32[1,256], index: 1, kind: input, shape index: {}]
  %s2 = inlined_call_operand.vmem [shape: f32[1,256], index: 2, kind: input, shape index: {}]
  %s3 = inlined_call_operand.vmem [shape: f32[168,256], index: 3, kind: output, shape index: {}]
  %s4 = sld [smem:[#allocation0]]
  $region22: #{inception_d_forward.14} parent=0
    _
  %s6 = ssub.s32 1, %s4
  %s7 = scalar_select 0, %s6, %s4
  // Predicated region
  $region2: #{inception_d_forward.14} parent=0 // pred_check
    _
  $region3: #{inception_d_forward.14} parent=0 // pred_check_branch
    %9 = sbr.rel (0) target = $region5
  $region4: #{inception_d_forward.14} parent=0 // pred_region
    _
  $region5: #{inception_d_forward.14} parent=0 // pred_fallthru
    _
  // Predicated region
  $region6: #{inception_d_forward.14} parent=0 // pred_check
    _
  $region7: #{inception_d_forward.14} parent=0 // pred_check_branch
    %11 = sbr.rel (0) target = $region9
  $region8: #{inception_d_forward.14} parent=0 // pred_region
    _
  $region9: #{inception_d_forward.14} parent=0 // pred_fallthru
    _
  // Predicated region
  $region10: #{inception_d_forward.14} parent=0 // pred_check
    _
  $region11: #{inception_d_forward.14} parent=0 // pred_check_branch
    %13 = sbr.rel (0) target = $region13
  $region12: #{inception_d_forward.14} parent=0 // pred_region
    _
  $region13: #{inception_d_forward.14} parent=0 // pred_fallthru
    _
  %v14 = vld [vmem:[%s0] sm:$0xff]
  %v15 = vld [vmem:[%s0 + $0x8] sm:$0xff]
  %v16 = vld [vmem:[%s0 + $0x10] sm:$0xff]
  %v17 = vld [vmem:[%s0 + $0x18] sm:$0xff]
  %v18 = vld [vmem:[%s0 + $0x20] sm:$0xff]
  %v19 = vld [vmem:[%s0 + $0x28] sm:$0xff]
  %v20 = vld [vmem:[%s0 + $0x30] sm:$0xff]
  %v21 = vld [vmem:[%s0 + $0x38] sm:$0xff]
  %v22 = vld [vmem:[%s0 + $0x40] sm:$0xff]
  %v23 = vld [vmem:[%s0 + $0x48] sm:$0xff]
  %v24 = vld [vmem:[%s0 + $0x50] sm:$0xff]
  %v25 = vld [vmem:[%s0 + $0x58] sm:$0xff]
  %v26 = vld [vmem:[%s0 + $0x60] sm:$0xff]
  %v27 = vld [vmem:[%s0 + $0x68] sm:$0xff]
  %v28 = vld [vmem:[%s0 + $0x70] sm:$0xff]
  %v29 = vld [vmem:[%s0 + $0x78] sm:$0xff]
  %v30 = vld [vmem:[%s0 + $0x80] sm:$0xff]
  %v31 = vld [vmem:[%s0 + $0x88] sm:$0xff]
  %v32 = vld [vmem:[%s0 + $0x90] sm:$0xff]
  %v33 = vld [vmem:[%s0 + $0x98] sm:$0xff]
  %v34 = vld [vmem:[%s0 + $0xa0] sm:$0xff]
  %v35 = vld [vmem:[%s0 + $0xa8] sm:$0xff]
  %v36 = vld [vmem:[%s0 + $0xb0] sm:$0xff]
  %v37 = vld [vmem:[%s0 + $0xb8] sm:$0xff]
  %v38 = vld [vmem:[%s0 + $0xc0] sm:$0xff]
  %v39 = vld [vmem:[%s0 + $0xc8] sm:$0xff]
  %v40 = vld [vmem:[%s0 + $0xd0] sm:$0xff]
  %v41 = vld [vmem:[%s0 + $0xd8] sm:$0xff]
  %v42 = vld [vmem:[%s0 + $0xe0] sm:$0xff]
  %v43 = vld [vmem:[%s0 + $0xe8] sm:$0xff]
  %v44 = vld [vmem:[%s0 + $0xf0] sm:$0xff]
  %v45 = vld [vmem:[%s0 + $0xf8] sm:$0xff]
  %v46 = vld [vmem:[%s0 + $0x100] sm:$0xff]
  %v47 = vld [vmem:[%s0 + $0x108] sm:$0xff]
  %v48 = vld [vmem:[%s0 + $0x110] sm:$0xff]
  %v49 = vld [vmem:[%s0 + $0x118] sm:$0xff]
  %v50 = vld [vmem:[%s0 + $0x120] sm:$0xff]
  %v51 = vld [vmem:[%s0 + $0x128] sm:$0xff]
  %v52 = vld [vmem:[%s0 + $0x130] sm:$0xff]
  %v53 = vld [vmem:[%s0 + $0x138] sm:$0xff]
  %v54 = vld [vmem:[%s0 + $0x140] sm:$0xff]
  %v55 = vld [vmem:[%s0 + $0x148] sm:$0xff]
  %v56 = vld [vmem:[%s1] sm:$0x3]
  %v58 = vlaneseq
  %v59 = vshrl.u32 %v58, 7
  %v60 = vsub.s32 0, %v59
  %v61 = vrot.slane %v56, %v60
  %v62 = vlaneseq
  %v63 = vshrl.u32 %v62, 7
  %v64 = vsub.s32 1, %v63
  %v65 = vrot.slane %v56, %v64
  %v68 = vmul.f32 %v14, %v61
  %v69 = vmul.f32 %v15, %v65
  %v70 = vmul.f32 %v16, %v61
  %v71 = vmul.f32 %v17, %v65
  %v72 = vmul.f32 %v18, %v61
  %v73 = vmul.f32 %v19, %v65
  %v74 = vmul.f32 %v20, %v61
  %v75 = vmul.f32 %v21, %v65
  %v76 = vmul.f32 %v22, %v61
  %v77 = vmul.f32 %v23, %v65
  %v78 = vmul.f32 %v24, %v61
  %v79 = vmul.f32 %v25, %v65
  %v80 = vmul.f32 %v26, %v61
  %v81 = vmul.f32 %v27, %v65
  %v82 = vmul.f32 %v28, %v61
  %v83 = vmul.f32 %v29, %v65
  %v84 = vmul.f32 %v30, %v61
  %v85 = vmul.f32 %v31, %v65
  %v86 = vmul.f32 %v32, %v61
  %v87 = vmul.f32 %v33, %v65
  %v88 = vmul.f32 %v34, %v61
  %v89 = vmul.f32 %v35, %v65
  %v90 = vmul.f32 %v36, %v61
  %v91 = vmul.f32 %v37, %v65
  %v92 = vmul.f32 %v38, %v61
  %v93 = vmul.f32 %v39, %v65
  %v94 = vmul.f32 %v40, %v61
  %v95 = vmul.f32 %v41, %v65
  %v96 = vmul.f32 %v42, %v61
  %v97 = vmul.f32 %v43, %v65
  %v98 = vmul.f32 %v44, %v61
  %v99 = vmul.f32 %v45, %v65
  %v100 = vmul.f32 %v46, %v61
  %v101 = vmul.f32 %v47, %v65
  %v102 = vmul.f32 %v48, %v61
  %v103 = vmul.f32 %v49, %v65
  %v104 = vmul.f32 %v50, %v61
  %v105 = vmul.f32 %v51, %v65
  %v106 = vmul.f32 %v52, %v61
  %v107 = vmul.f32 %v53, %v65
  %v108 = vmul.f32 %v54, %v61
  %v109 = vmul.f32 %v55, %v65
  %v110 = vld [vmem:[%s2] sm:$0x3]
  %v112 = vlaneseq
  %v113 = vshrl.u32 %v112, 7
  %v114 = vsub.s32 0, %v113
  %v115 = vrot.slane %v110, %v114
  %v116 = vlaneseq
  %v117 = vshrl.u32 %v116, 7
  %v118 = vsub.s32 1, %v117
  %v119 = vrot.slane %v110, %v118
  %v122 = vadd.f32 %v68, %v115
  %v123 = vadd.f32 %v69, %v119
  %v124 = vadd.f32 %v70, %v115
  %v125 = vadd.f32 %v71, %v119
  %v126 = vadd.f32 %v72, %v115
  %v127 = vadd.f32 %v73, %v119
  %v128 = vadd.f32 %v74, %v115
  %v129 = vadd.f32 %v75, %v119
  %v130 = vadd.f32 %v76, %v115
  %v131 = vadd.f32 %v77, %v119
  %v132 = vadd.f32 %v78, %v115
  %v133 = vadd.f32 %v79, %v119
  %v134 = vadd.f32 %v80, %v115
  %v135 = vadd.f32 %v81, %v119
  %v136 = vadd.f32 %v82, %v115
  %v137 = vadd.f32 %v83, %v119
  %v138 = vadd.f32 %v84, %v115
  %v139 = vadd.f32 %v85, %v119
  %v140 = vadd.f32 %v86, %v115
  %v141 = vadd.f32 %v87, %v119
  %v142 = vadd.f32 %v88, %v115
  %v143 = vadd.f32 %v89, %v119
  %v144 = vadd.f32 %v90, %v115
  %v145 = vadd.f32 %v91, %v119
  %v146 = vadd.f32 %v92, %v115
  %v147 = vadd.f32 %v93, %v119
  %v148 = vadd.f32 %v94, %v115
  %v149 = vadd.f32 %v95, %v119
  %v150 = vadd.f32 %v96, %v115
  %v151 = vadd.f32 %v97, %v119
  %v152 = vadd.f32 %v98, %v115
  %v153 = vadd.f32 %v99, %v119
  %v154 = vadd.f32 %v100, %v115
  %v155 = vadd.f32 %v101, %v119
  %v156 = vadd.f32 %v102, %v115
  %v157 = vadd.f32 %v103, %v119
  %v158 = vadd.f32 %v104, %v115
  %v159 = vadd.f32 %v105, %v119
  %v160 = vadd.f32 %v106, %v115
  %v161 = vadd.f32 %v107, %v119
  %v162 = vadd.f32 %v108, %v115
  %v163 = vadd.f32 %v109, %v119
  %v164 = vmax.f32 %v122, 0.0
  %v165 = vmax.f32 %v123, 0.0
  %v166 = vmax.f32 %v124, 0.0
  %v167 = vmax.f32 %v125, 0.0
  %v168 = vmax.f32 %v126, 0.0
  %v169 = vmax.f32 %v127, 0.0
  %v170 = vmax.f32 %v128, 0.0
  %v171 = vmax.f32 %v129, 0.0
  %v172 = vmax.f32 %v130, 0.0
  %v173 = vmax.f32 %v131, 0.0
  %v174 = vmax.f32 %v132, 0.0
  %v175 = vmax.f32 %v133, 0.0
  %v176 = vmax.f32 %v134, 0.0
  %v177 = vmax.f32 %v135, 0.0
  %v178 = vmax.f32 %v136, 0.0
  %v179 = vmax.f32 %v137, 0.0
  %v180 = vmax.f32 %v138, 0.0
  %v181 = vmax.f32 %v139, 0.0
  %v182 = vmax.f32 %v140, 0.0
  %v183 = vmax.f32 %v141, 0.0
  %v184 = vmax.f32 %v142, 0.0
  %v185 = vmax.f32 %v143, 0.0
  %v186 = vmax.f32 %v144, 0.0
  %v187 = vmax.f32 %v145, 0.0
  %v188 = vmax.f32 %v146, 0.0
  %v189 = vmax.f32 %v147, 0.0
  %v190 = vmax.f32 %v148, 0.0
  %v191 = vmax.f32 %v149, 0.0
  %v192 = vmax.f32 %v150, 0.0
  %v193 = vmax.f32 %v151, 0.0
  %v194 = vmax.f32 %v152, 0.0
  %v195 = vmax.f32 %v153, 0.0
  %v196 = vmax.f32 %v154, 0.0
  %v197 = vmax.f32 %v155, 0.0
  %v198 = vmax.f32 %v156, 0.0
  %v199 = vmax.f32 %v157, 0.0
  %v200 = vmax.f32 %v158, 0.0
  %v201 = vmax.f32 %v159, 0.0
  %v202 = vmax.f32 %v160, 0.0
  %v203 = vmax.f32 %v161, 0.0
  %v204 = vmax.f32 %v162, 0.0
  %v205 = vmax.f32 %v163, 0.0
  %206 = vst [vmem:[%s3] sm:$0xff] %v164
  %207 = vst [vmem:[%s3 + $0x8] sm:$0xff] %v165
  %208 = vst [vmem:[%s3 + $0x10] sm:$0xff] %v166
  %209 = vst [vmem:[%s3 + $0x18] sm:$0xff] %v167
  %210 = vst [vmem:[%s3 + $0x20] sm:$0xff] %v168
  %211 = vst [vmem:[%s3 + $0x28] sm:$0xff] %v169
  %212 = vst [vmem:[%s3 + $0x30] sm:$0xff] %v170
  %213 = vst [vmem:[%s3 + $0x38] sm:$0xff] %v171
  %214 = vst [vmem:[%s3 + $0x40] sm:$0xff] %v172
  %215 = vst [vmem:[%s3 + $0x48] sm:$0xff] %v173
  %216 = vst [vmem:[%s3 + $0x50] sm:$0xff] %v174
  %217 = vst [vmem:[%s3 + $0x58] sm:$0xff] %v175
  %218 = vst [vmem:[%s3 + $0x60] sm:$0xff] %v176
  %219 = vst [vmem:[%s3 + $0x68] sm:$0xff] %v177
  %220 = vst [vmem:[%s3 + $0x70] sm:$0xff] %v178
  %221 = vst [vmem:[%s3 + $0x78] sm:$0xff] %v179
  %222 = vst [vmem:[%s3 + $0x80] sm:$0xff] %v180
  %223 = vst [vmem:[%s3 + $0x88] sm:$0xff] %v181
  %224 = vst [vmem:[%s3 + $0x90] sm:$0xff] %v182
  %225 = vst [vmem:[%s3 + $0x98] sm:$0xff] %v183
  %226 = vst [vmem:[%s3 + $0xa0] sm:$0xff] %v184
  %227 = vst [vmem:[%s3 + $0xa8] sm:$0xff] %v185
  %228 = vst [vmem:[%s3 + $0xb0] sm:$0xff] %v186
  %229 = vst [vmem:[%s3 + $0xb8] sm:$0xff] %v187
  %230 = vst [vmem:[%s3 + $0xc0] sm:$0xff] %v188
  %231 = vst [vmem:[%s3 + $0xc8] sm:$0xff] %v189
  %232 = vst [vmem:[%s3 + $0xd0] sm:$0xff] %v190
  %233 = vst [vmem:[%s3 + $0xd8] sm:$0xff] %v191
  %234 = vst [vmem:[%s3 + $0xe0] sm:$0xff] %v192
  %235 = vst [vmem:[%s3 + $0xe8] sm:$0xff] %v193
  %236 = vst [vmem:[%s3 + $0xf0] sm:$0xff] %v194
  %237 = vst [vmem:[%s3 + $0xf8] sm:$0xff] %v195
  %238 = vst [vmem:[%s3 + $0x100] sm:$0xff] %v196
  %239 = vst [vmem:[%s3 + $0x108] sm:$0xff] %v197
  %240 = vst [vmem:[%s3 + $0x110] sm:$0xff] %v198
  %241 = vst [vmem:[%s3 + $0x118] sm:$0xff] %v199
  %242 = vst [vmem:[%s3 + $0x120] sm:$0xff] %v200
  %243 = vst [vmem:[%s3 + $0x128] sm:$0xff] %v201
  %244 = vst [vmem:[%s3 + $0x130] sm:$0xff] %v202
  %245 = vst [vmem:[%s3 + $0x138] sm:$0xff] %v203
  %246 = vst [vmem:[%s3 + $0x140] sm:$0xff] %v204
  %247 = vst [vmem:[%s3 + $0x148] sm:$0xff] %v205
  // Predicated region
  $region14: #{inception_d_forward.14} parent=0 // pred_check
    _
  $region15: #{inception_d_forward.14} parent=0 // pred_check_branch
    %249 = sbr.rel (0) target = $region17
  $region16: #{inception_d_forward.14} parent=0 // pred_region
    _
  $region17: #{inception_d_forward.14} parent=0 // pred_fallthru
    _
  // Predicated region
  $region18: #{inception_d_forward.14} parent=0 // pred_check
    _
  $region19: #{inception_d_forward.14} parent=0 // pred_check_branch
    %251 = sbr.rel (0) target = $region21
  $region20: #{inception_d_forward.14} parent=0 // pred_region
    _
  $region21: #{inception_d_forward.14} parent=0 // pred_fallthru
    _

// kernel: inception_d_forward.13
$region0: #{inception_d_forward.13}
  #allocation0 [shape = 'u32[]', space=smem, size = 0x4, offset = 0x4, fixed_abs, tag = 'smem constant byte address 0x4 - core index']
  #allocation1 [shape = 'u32[144,128]{1,0:T(1,128)}', space=vmem, size = 0x12000, scoped, tag = 'internal scratch']
  %s0 = inlined_call_operand.vmem [shape: bf16[168,16], index: 0, kind: input, shape index: {}]
  %s1 = inlined_call_operand.vmem [shape: bf16[16,256], index: 1, kind: input, shape index: {}]
  %s2 = inlined_call_operand.vmem [shape: f32[168,256], index: 2, kind: output, shape index: {0}]
  %s3 = inlined_call_operand.vmem [shape: f32[1,2,256], index: 3, kind: output, shape index: {1}]
  %4 = xla_tuple %s2, %s3
  %s5 = sld [smem:[#allocation0]]
  $region26: #{inception_d_forward.13} parent=0
    _
  %s7 = ssub.s32 1, %s5
  %s8 = scalar_select 0, %s7, %s5
  // Predicated region
  $region2: #{inception_d_forward.13} parent=0 // pred_check
    _
  $region3: #{inception_d_forward.13} parent=0 // pred_check_branch
    %10 = sbr.rel (0) target = $region5
  $region4: #{inception_d_forward.13} parent=0 // pred_region
    _
  $region5: #{inception_d_forward.13} parent=0 // pred_fallthru
    _
  // Predicated region
  $region6: #{inception_d_forward.13} parent=0 // pred_check
    _
  $region7: #{inception_d_forward.13} parent=0 // pred_check_branch
    %12 = sbr.rel (0) target = $region9
  $region8: #{inception_d_forward.13} parent=0 // pred_region
    _
  $region9: #{inception_d_forward.13} parent=0 // pred_fallthru
    _
  %v14 = vld [vmem:[%s0] sm:$0xf]
  %v15 = vld [vmem:[%s0 + $0x4] sm:$0xf]
  %v16 = vld [vmem:[%s0 + $0x8] sm:$0xf]
  %v17 = vld [vmem:[%s0 + $0xc] sm:$0xf]
  %v18 = vld [vmem:[%s0 + $0x10] sm:$0xf]
  %v19 = vld [vmem:[%s0 + $0x14] sm:$0xf]
  %v20 = vld [vmem:[%s0 + $0x18] sm:$0xf]
  %v21 = vld [vmem:[%s0 + $0x1c] sm:$0xf]
  %v22 = vld [vmem:[%s0 + $0x20] sm:$0xf]
  %v23 = vld [vmem:[%s0 + $0x24] sm:$0xf]
  %v24 = vld [vmem:[%s0 + $0x28] sm:$0xf]
  %v25 = vld [vmem:[%s0 + $0x2c] sm:$0xf]
  %v26 = vld [vmem:[%s0 + $0x30] sm:$0xf]
  %v27 = vld [vmem:[%s0 + $0x34] sm:$0xf]
  %v28 = vld [vmem:[%s0 + $0x38] sm:$0xf]
  %v29 = vld [vmem:[%s0 + $0x3c] sm:$0xf]
  %v30 = vld [vmem:[%s0 + $0x40] sm:$0xf]
  %v31 = vld [vmem:[%s0 + $0x44] sm:$0xf]
  %v32 = vld [vmem:[%s0 + $0x48] sm:$0xf]
  %v33 = vld [vmem:[%s0 + $0x4c] sm:$0xf]
  %v34 = vld [vmem:[%s0 + $0x50] sm:$0xf]
  %v35 = vld [vmem:[%s1] sm:$0xff]
  %v36 = vld [vmem:[%s1 + $0x8] sm:$0xff]
  %v58 = vunpack.c.l.b16 %v14
  %v59 = vunpack.c.l.b16 %v15
  %v60 = vunpack.c.l.b16 %v16
  %v61 = vunpack.c.l.b16 %v17
  %v62 = vunpack.c.l.b16 %v18
  %v63 = vunpack.c.l.b16 %v19
  %v64 = vunpack.c.l.b16 %v20
  %v65 = vunpack.c.l.b16 %v21
  %v66 = vunpack.c.l.b16 %v22
  %v67 = vunpack.c.l.b16 %v23
  %v68 = vunpack.c.l.b16 %v24
  %v69 = vunpack.c.l.b16 %v25
  %v70 = vunpack.c.l.b16 %v26
  %v71 = vunpack.c.l.b16 %v27
  %v72 = vunpack.c.l.b16 %v28
  %v73 = vunpack.c.l.b16 %v29
  %v74 = vunpack.c.l.b16 %v30
  %v75 = vunpack.c.l.b16 %v31
  %v76 = vunpack.c.l.b16 %v32
  %v77 = vunpack.c.l.b16 %v33
  %v78 = vunpack.c.l.b16 %v34
  %v79 = vpack.c.b16 %v59, %v58
  %v80 = vpack.c.b16 %v61, %v60
  %v81 = vpack.c.b16 %v63, %v62
  %v82 = vpack.c.b16 %v65, %v64
  %v83 = vpack.c.b16 %v67, %v66
  %v84 = vpack.c.b16 %v69, %v68
  %v85 = vpack.c.b16 %v71, %v70
  %v86 = vpack.c.b16 %v73, %v72
  %v87 = vpack.c.b16 %v75, %v74
  %v88 = vpack.c.b16 %v77, %v76
  %v89 = vpack.c.b16 %v78, %v78
  %v92 = vunpack.c.l.b16 %v35
  %v93 = vunpack.c.h.b16 %v35
  %v94 = vunpack.c.l.b16 %v36
  %v95 = vunpack.c.h.b16 %v36
  %v96 = vpack.c.b16 %v94, %v92
  %v97 = vpack.c.b16 %v95, %v93
  %vm100 = vcmask 130048
  %v102 = vsel %vm100, %v79, 0
  %v105 = vsel %vm100, %v80, 0
  %v108 = vsel %vm100, %v81, 0
  %v111 = vsel %vm100, %v82, 0
  %v114 = vsel %vm100, %v83, 0
  %v117 = vsel %vm100, %v84, 0
  %v120 = vsel %vm100, %v85, 0
  %v123 = vsel %vm100, %v86, 0
  %v126 = vsel %vm100, %v87, 0
  %v129 = vsel %vm100, %v88, 0
  %v132 = vsel %vm100, %v89, 0
  %134 = vmatprep.subr.bf16.mxu0 %v97
  %135 = vmatpush1.bf16.msra.mxu0 %v96
  %136 = vmatprep.subr.bf16.mxu0 0
  %137 = vmatpush1.bf16.msra.mxu0 0
  %138 = vmatprep.subr.bf16.mxu0 0
  %139 = vmatpush1.bf16.msra.mxu0 0
  %140 = vmatprep.subr.bf16.mxu0 0
  %141 = vmatpush1.bf16.msra.mxu0 0
  %142 = vmatprep.subr.bf16.mxu0 0
  %143 = vmatpush1.bf16.msra.mxu0 0
  %144 = vmatprep.subr.bf16.mxu0 0
  %145 = vmatpush1.bf16.msra.mxu0 0
  %146 = vmatprep.subr.bf16.mxu0 0
  %147 = vmatpush1.bf16.msra.mxu0 0
  %148 = vmatprep.subr.bf16.mxu0 0
  %149 = vmatpush1.bf16.msra.mxu0 0
  %150 = vmatprep.subr.bf16.mxu0 0
  %151 = vmatpush1.bf16.msra.mxu0 0
  %152 = vmatprep.subr.bf16.mxu0 0
  %153 = vmatpush1.bf16.msra.mxu0 0
  %154 = vmatprep.subr.bf16.mxu0 0
  %155 = vmatpush1.bf16.msra.mxu0 0
  %156 = vmatprep.subr.bf16.mxu0 0
  %157 = vmatpush1.bf16.msra.mxu0 0
  %158 = vmatprep.subr.bf16.mxu0 0
  %159 = vmatpush1.bf16.msra.mxu0 0
  %160 = vmatprep.subr.bf16.mxu0 0
  %161 = vmatpush1.bf16.msra.mxu0 0
  %162 = vmatprep.subr.bf16.mxu0 0
  %163 = vmatpush1.bf16.msra.mxu0 0
  %164 = vmatprep.subr.bf16.mxu0 0
  %165 = vmatpush1.bf16.msra.mxu0 0
  %166 = vmatprep.mubr.bf16.mxu0 0
  %167 = vmatmul.mubr.bf16.gmra.mrb[0].mxu0 %v102
  %v168 = vpop.f32.mrb[0].mxu0
  %v169 = vadd.f32 0.0, %v168
  %v170 = vpop.f32.mrb[0].mxu0
  %v171 = vadd.f32 0.0, %v170
  %v172 = vpop.f32.mrb[0].mxu0
  %v173 = vadd.f32 0.0, %v172
  %v174 = vpop.f32.mrb[0].mxu0
  %v175 = vadd.f32 0.0, %v174
  %176 = vmatprep.mubr.bf16.mxu0 0
  %177 = vmatmul.mubr.bf16.gmra.mrb[0].mxu0 %v105
  %v178 = vpop.f32.mrb[0].mxu0
  %v179 = vadd.f32 0.0, %v178
  %v180 = vpop.f32.mrb[0].mxu0
  %v181 = vadd.f32 0.0, %v180
  %v182 = vpop.f32.mrb[0].mxu0
  %v183 = vadd.f32 0.0, %v182
  %v184 = vpop.f32.mrb[0].mxu0
  %v185 = vadd.f32 0.0, %v184
  %186 = vmatprep.mubr.bf16.mxu0 0
  %187 = vmatmul.mubr.bf16.gmra.mrb[0].mxu0 %v108
  %v188 = vpop.f32.mrb[0].mxu0
  %v189 = vadd.f32 0.0, %v188
  %v190 = vpop.f32.mrb[0].mxu0
  %v191 = vadd.f32 0.0, %v190
  %v192 = vpop.f32.mrb[0].mxu0
  %v193 = vadd.f32 0.0, %v192
  %v194 = vpop.f32.mrb[0].mxu0
  %v195 = vadd.f32 0.0, %v194
  %196 = vmatprep.mubr.bf16.mxu0 0
  %197 = vmatmul.mubr.bf16.gmra.mrb[0].mxu0 %v111
  %v198 = vpop.f32.mrb[0].mxu0
  %v199 = vadd.f32 0.0, %v198
  %v200 = vpop.f32.mrb[0].mxu0
  %v201 = vadd.f32 0.0, %v200
  %v202 = vpop.f32.mrb[0].mxu0
  %v203 = vadd.f32 0.0, %v202
  %v204 = vpop.f32.mrb[0].mxu0
  %v205 = vadd.f32 0.0, %v204
  %206 = vmatprep.mubr.bf16.mxu0 0
  %207 = vmatmul.mubr.bf16.gmra.mrb[0].mxu0 %v114
  %v208 = vpop.f32.mrb[0].mxu0
  %v209 = vadd.f32 0.0, %v208
  %v210 = vpop.f32.mrb[0].mxu0
  %v211 = vadd.f32 0.0, %v210
  %v212 = vpop.f32.mrb[0].mxu0
  %v213 = vadd.f32 0.0, %v212
  %v214 = vpop.f32.mrb[0].mxu0
  %v215 = vadd.f32 0.0, %v214
  %216 = vmatprep.mubr.bf16.mxu0 0
  %217 = vmatmul.mubr.bf16.gmra.mrb[0].mxu0 %v117
  %v218 = vpop.f32.mrb[0].mxu0
  %v219 = vadd.f32 0.0, %v218
  %v220 = vpop.f32.mrb[0].mxu0
  %v221 = vadd.f32 0.0, %v220
  %v222 = vpop.f32.mrb[0].mxu0
  %v223 = vadd.f32 0.0, %v222
  %v224 = vpop.f32.mrb[0].mxu0
  %v225 = vadd.f32 0.0, %v224
  %226 = vmatprep.mubr.bf16.mxu0 0
  %227 = vmatmul.mubr.bf16.gmra.mrb[0].mxu0 %v120
  %v228 = vpop.f32.mrb[0].mxu0
  %v229 = vadd.f32 0.0, %v228
  %v230 = vpop.f32.mrb[0].mxu0
  %v231 = vadd.f32 0.0, %v230
  %v232 = vpop.f32.mrb[0].mxu0
  %v233 = vadd.f32 0.0, %v232
  %v234 = vpop.f32.mrb[0].mxu0
  %v235 = vadd.f32 0.0, %v234
  %236 = vmatprep.mubr.bf16.mxu0 0
  %237 = vmatmul.mubr.bf16.gmra.mrb[0].mxu0 %v123
  %v238 = vpop.f32.mrb[0].mxu0
  %v239 = vadd.f32 0.0, %v238
  %v240 = vpop.f32.mrb[0].mxu0
  %v241 = vadd.f32 0.0, %v240
  %v242 = vpop.f32.mrb[0].mxu0
  %v243 = vadd.f32 0.0, %v242
  %v244 = vpop.f32.mrb[0].mxu0
  %v245 = vadd.f32 0.0, %v244
  %246 = vmatprep.mubr.bf16.mxu0 0
  %247 = vmatmul.mubr.bf16.gmra.mrb[0].mxu0 %v126
  %v248 = vpop.f32.mrb[0].mxu0
  %v249 = vadd.f32 0.0, %v248
  %v250 = vpop.f32.mrb[0].mxu0
  %v251 = vadd.f32 0.0, %v250
  %v252 = vpop.f32.mrb[0].mxu0
  %v253 = vadd.f32 0.0, %v252
  %v254 = vpop.f32.mrb[0].mxu0
  %v255 = vadd.f32 0.0, %v254
  %256 = vmatprep.mubr.bf16.mxu0 0
  %257 = vmatmul.mubr.bf16.gmra.mrb[0].mxu0 %v129
  %v258 = vpop.f32.mrb[0].mxu0
  %v259 = vadd.f32 0.0, %v258
  %v260 = vpop.f32.mrb[0].mxu0
  %v261 = vadd.f32 0.0, %v260
  %v262 = vpop.f32.mrb[0].mxu0
  %v263 = vadd.f32 0.0, %v262
  %v264 = vpop.f32.mrb[0].mxu0
  %v265 = vadd.f32 0.0, %v264
  %266 = vmatprep.mubr.bf16.mxu0 0
  %267 = vmatmul.mubr.bf16.gmra.mrb[0].mxu0 %v132
  %v268 = vpop.f32.mrb[0].mxu0
  %v269 = vadd.f32 0.0, %v268
  %v270 = vpop.f32.mrb[0].mxu0
  %v271 = vadd.f32 0.0, %v270
  %v272 = vpop.f32.mrb[0].mxu0
  %v273 = vpop.f32.mrb[0].mxu0
  %274 = vdwg.mxu0
  %275 = vst [vmem:[%s2] sm:$0xff] %v169
  %276 = vst [vmem:[%s2 + $0x8] sm:$0xff] %v171
  %277 = vst [vmem:[%s2 + $0x10] sm:$0xff] %v173
  %278 = vst [vmem:[%s2 + $0x18] sm:$0xff] %v175
  %279 = vst [vmem:[%s2 + $0x20] sm:$0xff] %v179
  %280 = vst [vmem:[%s2 + $0x28] sm:$0xff] %v181
  %281 = vst [vmem:[%s2 + $0x30] sm:$0xff] %v183
  %282 = vst [vmem:[%s2 + $0x38] sm:$0xff] %v185
  %283 = vst [vmem:[%s2 + $0x40] sm:$0xff] %v189
  %284 = vst [vmem:[%s2 + $0x48] sm:$0xff] %v191
  %285 = vst [vmem:[%s2 + $0x50] sm:$0xff] %v193
  %286 = vst [vmem:[%s2 + $0x58] sm:$0xff] %v195
  %287 = vst [vmem:[%s2 + $0x60] sm:$0xff] %v199
  %288 = vst [vmem:[%s2 + $0x68] sm:$0xff] %v201
  %289 = vst [vmem:[%s2 + $0x70] sm:$0xff] %v203
  %290 = vst [vmem:[%s2 + $0x78] sm:$0xff] %v205
  %291 = vst [vmem:[%s2 + $0x80] sm:$0xff] %v209
  %292 = vst [vmem:[%s2 + $0x88] sm:$0xff] %v211
  %293 = vst [vmem:[%s2 + $0x90] sm:$0xff] %v213
  %294 = vst [vmem:[%s2 + $0x98] sm:$0xff] %v215
  %295 = vst [vmem:[%s2 + $0xa0] sm:$0xff] %v219
  %296 = vst [vmem:[%s2 + $0xa8] sm:$0xff] %v221
  %297 = vst [vmem:[%s2 + $0xb0] sm:$0xff] %v223
  %298 = vst [vmem:[%s2 + $0xb8] sm:$0xff] %v225
  %299 = vst [vmem:[%s2 + $0xc0] sm:$0xff] %v229
  %300 = vst [vmem:[%s2 + $0xc8] sm:$0xff] %v231
  %301 = vst [vmem:[%s2 + $0xd0] sm:$0xff] %v233
  %302 = vst [vmem:[%s2 + $0xd8] sm:$0xff] %v235
  %303 = vst [vmem:[%s2 + $0xe0] sm:$0xff] %v239
  %304 = vst [vmem:[%s2 + $0xe8] sm:$0xff] %v241
  %305 = vst [vmem:[%s2 + $0xf0] sm:$0xff] %v243
  %306 = vst [vmem:[%s2 + $0xf8] sm:$0xff] %v245
  %307 = vst [vmem:[%s2 + $0x100] sm:$0xff] %v249
  %308 = vst [vmem:[%s2 + $0x108] sm:$0xff] %v251
  %309 = vst [vmem:[%s2 + $0x110] sm:$0xff] %v253
  %310 = vst [vmem:[%s2 + $0x118] sm:$0xff] %v255
  %311 = vst [vmem:[%s2 + $0x120] sm:$0xff] %v259
  %312 = vst [vmem:[%s2 + $0x128] sm:$0xff] %v261
  %313 = vst [vmem:[%s2 + $0x130] sm:$0xff] %v263
  %314 = vst [vmem:[%s2 + $0x138] sm:$0xff] %v265
  %315 = vst [vmem:[%s2 + $0x140] sm:$0xff] %v269
  %316 = vst [vmem:[%s2 + $0x148] sm:$0xff] %v271
  %v317 = vadd.f32 %v169, %v173
  %v318 = vadd.f32 %v317, %v179
  %v319 = vadd.f32 %v318, %v183
  %v320 = vadd.f32 %v319, %v189
  %v321 = vadd.f32 %v320, %v193
  %v322 = vadd.f32 %v321, %v199
  %v323 = vadd.f32 %v322, %v203
  %v324 = vadd.f32 %v323, %v209
  %v325 = vadd.f32 %v324, %v213
  %v326 = vadd.f32 %v325, %v219
  %v327 = vadd.f32 %v326, %v223
  %v328 = vadd.f32 %v327, %v229
  %v329 = vadd.f32 %v328, %v233
  %v330 = vadd.f32 %v329, %v239
  %v331 = vadd.f32 %v330, %v243
  %v332 = vadd.f32 %v331, %v249
  %v333 = vadd.f32 %v332, %v253
  %v334 = vadd.f32 %v333, %v259
  %v335 = vadd.f32 %v334, %v263
  %v336 = vadd.f32 %v335, %v269
  %v337 = vrot.slane %v336, 4
  %v338 = vadd.f32 %v336, %v337
  %v339 = vrot.slane %v338, 2
  %v340 = vadd.f32 %v338, %v339
  %v341 = vrot.slane %v340, 1
  %v342 = vadd.f32 %v340, %v341
  %v343 = vadd.f32 %v171, %v175
  %v344 = vadd.f32 %v343, %v181
  %v345 = vadd.f32 %v344, %v185
  %v346 = vadd.f32 %v345, %v191
  %v347 = vadd.f32 %v346, %v195
  %v348 = vadd.f32 %v347, %v201
  %v349 = vadd.f32 %v348, %v205
  %v350 = vadd.f32 %v349, %v211
  %v351 = vadd.f32 %v350, %v215
  %v352 = vadd.f32 %v351, %v221
  %v353 = vadd.f32 %v352, %v225
  %v354 = vadd.f32 %v353, %v231
  %v355 = vadd.f32 %v354, %v235
  %v356 = vadd.f32 %v355, %v241
  %v357 = vadd.f32 %v356, %v245
  %v358 = vadd.f32 %v357, %v251
  %v359 = vadd.f32 %v358, %v255
  %v360 = vadd.f32 %v359, %v261
  %v361 = vadd.f32 %v360, %v265
  %v362 = vadd.f32 %v361, %v271
  %v363 = vrot.slane %v362, 4
  %v364 = vadd.f32 %v362, %v363
  %v365 = vrot.slane %v364, 2
  %v366 = vadd.f32 %v364, %v365
  %v367 = vrot.slane %v366, 1
  %v368 = vadd.f32 %v366, %v367
  %v371 = vcombine.low %v342, %v368
  %v373 = vunpack.c.l.s4 1966171168
  %v374 = vunpack.c.0.s8 %v373
  %v375 = vlaneseq
  %v376 = vshrl.u32 %v375, 7
  %v377 = vsub.s32 %v374, %v376
  %v378 = vrot.slane %v371, %v377
  %v380 = vunpack.c.l.s4 1966171168
  %v381 = vunpack.c.0.s8 %v380
  %v382 = vlaneseq
  %v383 = vshrl.u32 %v382, 7
  %v384 = vsub.s32 %v381, %v383
  %v385 = vrot.slane %v378, %v384
  %v387 = vlaneseq
  %vm388 = vcmp.ge.s32.totalorder %v387, 0
  %vm389 = vcmp.lt.s32.totalorder %v387, 256
  %vm390 = vmand %vm388, %vm389
  %391 = vst.msk [vmem:[%s3] ss:$2 sm:$0x3] %vm390, %v385
  %v392 = vmul.f32 %v169, %v169
  %v393 = vmul.f32 %v171, %v171
  %v394 = vmul.f32 %v173, %v173
  %v395 = vmul.f32 %v175, %v175
  %v396 = vmul.f32 %v179, %v179
  %v397 = vmul.f32 %v181, %v181
  %v398 = vmul.f32 %v183, %v183
  %v399 = vmul.f32 %v185, %v185
  %v400 = vmul.f32 %v189, %v189
  %v401 = vmul.f32 %v191, %v191
  %v402 = vmul.f32 %v193, %v193
  %v403 = vmul.f32 %v195, %v195
  %v404 = vmul.f32 %v199, %v199
  %v405 = vmul.f32 %v201, %v201
  %v406 = vmul.f32 %v203, %v203
  %v407 = vmul.f32 %v205, %v205
  %v408 = vmul.f32 %v209, %v209
  %v409 = vmul.f32 %v211, %v211
  %v410 = vmul.f32 %v213, %v213
  %v411 = vmul.f32 %v215, %v215
  %v412 = vmul.f32 %v219, %v219
  %v413 = vmul.f32 %v221, %v221
  %v414 = vmul.f32 %v223, %v223
  %v415 = vmul.f32 %v225, %v225
  %v416 = vmul.f32 %v229, %v229
  %v417 = vmul.f32 %v231, %v231
  %v418 = vmul.f32 %v233, %v233
  %v419 = vmul.f32 %v235, %v235
  %v420 = vmul.f32 %v239, %v239
  %v421 = vmul.f32 %v241, %v241
  %v422 = vmul.f32 %v243, %v243
  %v423 = vmul.f32 %v245, %v245
  %v424 = vmul.f32 %v249, %v249
  %v425 = vmul.f32 %v251, %v251
  %v426 = vmul.f32 %v253, %v253
  %v427 = vmul.f32 %v255, %v255
  %v428 = vmul.f32 %v259, %v259
  %v429 = vmul.f32 %v261, %v261
  %v430 = vmul.f32 %v263, %v263
  %v431 = vmul.f32 %v265, %v265
  %v432 = vmul.f32 %v269, %v269
  %v433 = vmul.f32 %v271, %v271
  %v434 = vadd.f32 %v392, %v394
  %v435 = vadd.f32 %v434, %v396
  %v436 = vadd.f32 %v435, %v398
  %v437 = vadd.f32 %v436, %v400
  %v438 = vadd.f32 %v437, %v402
  %v439 = vadd.f32 %v438, %v404
  %v440 = vadd.f32 %v439, %v406
  %v441 = vadd.f32 %v440, %v408
  %v442 = vadd.f32 %v441, %v410
  %v443 = vadd.f32 %v442, %v412
  %v444 = vadd.f32 %v443, %v414
  %v445 = vadd.f32 %v444, %v416
  %v446 = vadd.f32 %v445, %v418
  %v447 = vadd.f32 %v446, %v420
  %v448 = vadd.f32 %v447, %v422
  %v449 = vadd.f32 %v448, %v424
  %v450 = vadd.f32 %v449, %v426
  %v451 = vadd.f32 %v450, %v428
  %v452 = vadd.f32 %v451, %v430
  %v453 = vadd.f32 %v452, %v432
  %v454 = vrot.slane %v453, 4
  %v455 = vadd.f32 %v453, %v454
  %v456 = vrot.slane %v455, 2
  %v457 = vadd.f32 %v455, %v456
  %v458 = vrot.slane %v457, 1
  %v459 = vadd.f32 %v457, %v458
  %v460 = vadd.f32 %v393, %v395
  %v461 = vadd.f32 %v460, %v397
  %v462 = vadd.f32 %v461, %v399
  %v463 = vadd.f32 %v462, %v401
  %v464 = vadd.f32 %v463, %v403
  %v465 = vadd.f32 %v464, %v405
  %v466 = vadd.f32 %v465, %v407
  %v467 = vadd.f32 %v466, %v409
  %v468 = vadd.f32 %v467, %v411
  %v469 = vadd.f32 %v468, %v413
  %v470 = vadd.f32 %v469, %v415
  %v471 = vadd.f32 %v470, %v417
  %v472 = vadd.f32 %v471, %v419
  %v473 = vadd.f32 %v472, %v421
  %v474 = vadd.f32 %v473, %v423
  %v475 = vadd.f32 %v474, %v425
  %v476 = vadd.f32 %v475, %v427
  %v477 = vadd.f32 %v476, %v429
  %v478 = vadd.f32 %v477, %v431
  %v479 = vadd.f32 %v478, %v433
  %v480 = vrot.slane %v479, 4
  %v481 = vadd.f32 %v479, %v480
  %v482 = vrot.slane %v481, 2
  %v483 = vadd.f32 %v481, %v482
  %v484 = vrot.slane %v483, 1
  %v485 = vadd.f32 %v483, %v484
  %v488 = vcombine.low %v459, %v485
  %v490 = vunpack.c.l.s4 1966171168
  %v491 = vunpack.c.0.s8 %v490
  %v492 = vlaneseq
  %v493 = vshrl.u32 %v492, 7
  %v494 = vsub.s32 %v491, %v493
  %v495 = vrot.slane %v488, %v494
  %v497 = vunpack.c.l.s4 1966171168
  %v498 = vunpack.c.0.s8 %v497
  %v499 = vlaneseq
  %v500 = vshrl.u32 %v499, 7
  %v501 = vsub.s32 %v498, %v500
  %v502 = vrot.slane %v495, %v501
  %s504 = scalar_lea.vmem %s3, 1
  %505 = vst.msk [vmem:[%s504] ss:$2 sm:$0x3] %vm390, %v502
  // Predicated region
  $region10: #{inception_d_forward.13} parent=0 // pred_check
    _
  $region11: #{inception_d_forward.13} parent=0 // pred_check_branch
    %507 = sbr.rel (0) target = $region13
  $region12: #{inception_d_forward.13} parent=0 // pred_region
    _
  $region13: #{inception_d_forward.13} parent=0 // pred_fallthru
    _
  // Predicated region
  $region14: #{inception_d_forward.13} parent=0 // pred_check
    _
  $region15: #{inception_d_forward.13} parent=0 // pred_check_branch
    %509 = sbr.rel (0) target = $region17
  $region16: #{inception_d_forward.13} parent=0 // pred_region
    _
  $region17: #{inception_d_forward.13} parent=0 // pred_fallthru
    _
  // Predicated region
  $region18: #{inception_d_forward.13} parent=0 // pred_check
    _
  $region19: #{inception_d_forward.13} parent=0 // pred_check_branch
    %511 = sbr.rel (0) target = $region21
  $region20: #{inception_d_forward.13} parent=0 // pred_region
    _
  $region21: #{inception_d_forward.13} parent=0 // pred_fallthru
    _
  // Predicated region
  $region22: #{inception_d_forward.13} parent=0 // pred_check
    _
  $region23: #{inception_d_forward.13} parent=0 // pred_check_branch
    %513 = sbr.rel (0) target = $region25
  $region24: #{inception_d_forward.13} parent=0 // pred_region
    _
  $region25: #{inception_d_forward.13} parent=0 // pred_fallthru
    _

// kernel: inception_d_forward.16
$region0: #{inception_d_forward.16}
  #allocation0 [shape = 'u32[]', space=smem, size = 0x4, offset = 0x4, fixed_abs, tag = 'smem constant byte address 0x4 - core index']
  #allocation1 [shape = 'u32[144,128]{1,0:T(1,128)}', space=vmem, size = 0x12000, scoped, tag = 'internal scratch']
  %s0 = inlined_call_operand.vmem [shape: f32[32,384], index: 0, kind: input, shape index: {}]
  %s1 = inlined_call_operand.vmem [shape: f32[1,384], index: 1, kind: input, shape index: {}]
  %s2 = inlined_call_operand.vmem [shape: f32[1,384], index: 2, kind: input, shape index: {}]
  %s3 = inlined_call_operand.vmem [shape: f32[32,384], index: 3, kind: output, shape index: {}]
  %s4 = sld [smem:[#allocation0]]
  $region22: #{inception_d_forward.16} parent=0
    _
  %s6 = ssub.s32 1, %s4
  %s7 = scalar_select 0, %s6, %s4
  // Predicated region
  $region2: #{inception_d_forward.16} parent=0 // pred_check
    _
  $region3: #{inception_d_forward.16} parent=0 // pred_check_branch
    %9 = sbr.rel (0) target = $region5
  $region4: #{inception_d_forward.16} parent=0 // pred_region
    _
  $region5: #{inception_d_forward.16} parent=0 // pred_fallthru
    _
  // Predicated region
  $region6: #{inception_d_forward.16} parent=0 // pred_check
    _
  $region7: #{inception_d_forward.16} parent=0 // pred_check_branch
    %11 = sbr.rel (0) target = $region9
  $region8: #{inception_d_forward.16} parent=0 // pred_region
    _
  $region9: #{inception_d_forward.16} parent=0 // pred_fallthru
    _
  // Predicated region
  $region10: #{inception_d_forward.16} parent=0 // pred_check
    _
  $region11: #{inception_d_forward.16} parent=0 // pred_check_branch
    %13 = sbr.rel (0) target = $region13
  $region12: #{inception_d_forward.16} parent=0 // pred_region
    _
  $region13: #{inception_d_forward.16} parent=0 // pred_fallthru
    _
  %v14 = vld [vmem:[%s0] sm:$0xff]
  %v15 = vld [vmem:[%s0 + $0x8] sm:$0xff]
  %v16 = vld [vmem:[%s0 + $0x10] sm:$0xff]
  %v17 = vld [vmem:[%s0 + $0x18] sm:$0xff]
  %v18 = vld [vmem:[%s0 + $0x20] sm:$0xff]
  %v19 = vld [vmem:[%s0 + $0x28] sm:$0xff]
  %v20 = vld [vmem:[%s0 + $0x30] sm:$0xff]
  %v21 = vld [vmem:[%s0 + $0x38] sm:$0xff]
  %v22 = vld [vmem:[%s0 + $0x40] sm:$0xff]
  %v23 = vld [vmem:[%s0 + $0x48] sm:$0xff]
  %v24 = vld [vmem:[%s0 + $0x50] sm:$0xff]
  %v25 = vld [vmem:[%s0 + $0x58] sm:$0xff]
  %v26 = vld [vmem:[%s1] sm:$0x7]
  %v28 = vlaneseq
  %v29 = vshrl.u32 %v28, 7
  %v30 = vsub.s32 0, %v29
  %v31 = vrot.slane %v26, %v30
  %v32 = vlaneseq
  %v33 = vshrl.u32 %v32, 7
  %v34 = vsub.s32 1, %v33
  %v35 = vrot.slane %v26, %v34
  %v36 = vlaneseq
  %v37 = vshrl.u32 %v36, 7
  %v38 = vsub.s32 2, %v37
  %v39 = vrot.slane %v26, %v38
  %v43 = vmul.f32 %v14, %v31
  %v44 = vmul.f32 %v15, %v35
  %v45 = vmul.f32 %v16, %v39
  %v46 = vmul.f32 %v17, %v31
  %v47 = vmul.f32 %v18, %v35
  %v48 = vmul.f32 %v19, %v39
  %v49 = vmul.f32 %v20, %v31
  %v50 = vmul.f32 %v21, %v35
  %v51 = vmul.f32 %v22, %v39
  %v52 = vmul.f32 %v23, %v31
  %v53 = vmul.f32 %v24, %v35
  %v54 = vmul.f32 %v25, %v39
  %v55 = vld [vmem:[%s2] sm:$0x7]
  %v57 = vlaneseq
  %v58 = vshrl.u32 %v57, 7
  %v59 = vsub.s32 0, %v58
  %v60 = vrot.slane %v55, %v59
  %v61 = vlaneseq
  %v62 = vshrl.u32 %v61, 7
  %v63 = vsub.s32 1, %v62
  %v64 = vrot.slane %v55, %v63
  %v65 = vlaneseq
  %v66 = vshrl.u32 %v65, 7
  %v67 = vsub.s32 2, %v66
  %v68 = vrot.slane %v55, %v67
  %v72 = vadd.f32 %v43, %v60
  %v73 = vadd.f32 %v44, %v64
  %v74 = vadd.f32 %v45, %v68
  %v75 = vadd.f32 %v46, %v60
  %v76 = vadd.f32 %v47, %v64
  %v77 = vadd.f32 %v48, %v68
  %v78 = vadd.f32 %v49, %v60
  %v79 = vadd.f32 %v50, %v64
  %v80 = vadd.f32 %v51, %v68
  %v81 = vadd.f32 %v52, %v60
  %v82 = vadd.f32 %v53, %v64
  %v83 = vadd.f32 %v54, %v68
  %v84 = vmax.f32 %v72, 0.0
  %v85 = vmax.f32 %v73, 0.0
  %v86 = vmax.f32 %v74, 0.0
  %v87 = vmax.f32 %v75, 0.0
  %v88 = vmax.f32 %v76, 0.0
  %v89 = vmax.f32 %v77, 0.0
  %v90 = vmax.f32 %v78, 0.0
  %v91 = vmax.f32 %v79, 0.0
  %v92 = vmax.f32 %v80, 0.0
  %v93 = vmax.f32 %v81, 0.0
  %v94 = vmax.f32 %v82, 0.0
  %v95 = vmax.f32 %v83, 0.0
  %96 = vst [vmem:[%s3] sm:$0xff] %v84
  %97 = vst [vmem:[%s3 + $0x8] sm:$0xff] %v85
  %98 = vst [vmem:[%s3 + $0x10] sm:$0xff] %v86
  %99 = vst [vmem:[%s3 + $0x18] sm:$0xff] %v87
  %100 = vst [vmem:[%s3 + $0x20] sm:$0xff] %v88
  %101 = vst [vmem:[%s3 + $0x28] sm:$0xff] %v89
  %102 = vst [vmem:[%s3 + $0x30] sm:$0xff] %v90
  %103 = vst [vmem:[%s3 + $0x38] sm:$0xff] %v91
  %104 = vst [vmem:[%s3 + $0x40] sm:$0xff] %v92
  %105 = vst [vmem:[%s3 + $0x48] sm:$0xff] %v93
  %106 = vst [vmem:[%s3 + $0x50] sm:$0xff] %v94
  %107 = vst [vmem:[%s3 + $0x58] sm:$0xff] %v95
  // Predicated region
  $region14: #{inception_d_forward.16} parent=0 // pred_check
    _
  $region15: #{inception_d_forward.16} parent=0 // pred_check_branch
    %109 = sbr.rel (0) target = $region17
  $region16: #{inception_d_forward.16} parent=0 // pred_region
    _
  $region17: #{inception_d_forward.16} parent=0 // pred_fallthru
    _
  // Predicated region
  $region18: #{inception_d_forward.16} parent=0 // pred_check
    _
  $region19: #{inception_d_forward.16} parent=0 // pred_check_branch
    %111 = sbr.rel (0) target = $region21
  $region20: #{inception_d_forward.16} parent=0 // pred_region
    _
  $region21: #{inception_d_forward.16} parent=0 // pred_fallthru
    _

// kernel: inception_d_forward.15
$region0: #{inception_d_forward.15}
  #allocation0 [shape = 'u32[]', space=smem, size = 0x4, offset = 0x4, fixed_abs, tag = 'smem constant byte address 0x4 - core index']
  #allocation1 [shape = 'u32[144,128]{1,0:T(1,128)}', space=vmem, size = 0x12000, scoped, tag = 'internal scratch']
  %s0 = inlined_call_operand.vmem [shape: bf16[32,1728], index: 0, kind: input, shape index: {}]
  %s1 = inlined_call_operand.vmem [shape: bf16[1728,384], index: 1, kind: input, shape index: {}]
  %s2 = inlined_call_operand.vmem [shape: f32[32,384], index: 2, kind: output, shape index: {0}]
  %s3 = inlined_call_operand.vmem [shape: f32[1,2,384], index: 3, kind: output, shape index: {1}]
  %4 = xla_tuple %s2, %s3
  %s5 = sld [smem:[#allocation0]]
  $region26: #{inception_d_forward.15} parent=0
    _
  %s7 = ssub.s32 1, %s5
  %s8 = scalar_select 0, %s7, %s5
  // Predicated region
  $region2: #{inception_d_forward.15} parent=0 // pred_check
    _
  $region3: #{inception_d_forward.15} parent=0 // pred_check_branch
    %10 = sbr.rel (0) target = $region5
  $region4: #{inception_d_forward.15} parent=0 // pred_region
    _
  $region5: #{inception_d_forward.15} parent=0 // pred_fallthru
    _
  // Predicated region
  $region6: #{inception_d_forward.15} parent=0 // pred_check
    _
  $region7: #{inception_d_forward.15} parent=0 // pred_check_branch
    %12 = sbr.rel (0) target = $region9
  $region8: #{inception_d_forward.15} parent=0 // pred_region
    _
  $region9: #{inception_d_forward.15} parent=0 // pred_fallthru
    _
  %v14 = vld [vmem:[%s0] sm:$0xff]
  %v15 = vld [vmem:[%s0 + $0x8] sm:$0xff]
  %v16 = vld [vmem:[%s0 + $0x10] sm:$0xff]
  %v17 = vld [vmem:[%s0 + $0x18] sm:$0xff]
  %v18 = vld [vmem:[%s0 + $0x20] sm:$0xff]
  %v19 = vld [vmem:[%s0 + $0x28] sm:$0xff]
  %v20 = vld [vmem:[%s0 + $0x30] sm:$0xff]
  %v21 = vld [vmem:[%s0 + $0x38] sm:$0xff]
  %v22 = vld [vmem:[%s0 + $0x40] sm:$0xff]
  %v23 = vld [vmem:[%s0 + $0x48] sm:$0xff]
  %v24 = vld [vmem:[%s0 + $0x50] sm:$0xff]
  %v25 = vld [vmem:[%s0 + $0x58] sm:$0xff]
  %v26 = vld [vmem:[%s0 + $0x60] sm:$0xff]
  %v27 = vld [vmem:[%s0 + $0x68] sm:$0xff]
  %v28 = vld [vmem:[%s0 + $0x70] sm:$0xff]
  %v29 = vld [vmem:[%s0 + $0x78] sm:$0xff]
  %v30 = vld [vmem:[%s0 + $0x80] sm:$0xff]
  %v31 = vld [vmem:[%s0 + $0x88] sm:$0xff]
  %v32 = vld [vmem:[%s0 + $0x90] sm:$0xff]
  %v33 = vld [vmem:[%s0 + $0x98] sm:$0xff]
  %v34 = vld [vmem:[%s0 + $0xa0] sm:$0xff]
  %v35 = vld [vmem:[%s0 + $0xa8] sm:$0xff]
  %v36 = vld [vmem:[%s0 + $0xb0] sm:$0xff]
  %v37 = vld [vmem:[%s0 + $0xb8] sm:$0xff]
  %v38 = vld [vmem:[%s0 + $0xc0] sm:$0xff]
  %v39 = vld [vmem:[%s0 + $0xc8] sm:$0xff]
  %v40 = vld [vmem:[%s0 + $0xd0] sm:$0xff]
  %v41 = vld [vmem:[%s0 + $0xd8] sm:$0xff]
  %v42 = vld [vmem:[%s1] sm:$0xff]
  %v43 = vld [vmem:[%s1 + $0x8] sm:$0xf]
  %v44 = vld [vmem:[%s1 + $0xc] sm:$0xff]
  %v45 = vld [vmem:[%s1 + $0x14] sm:$0xf]
  %v46 = vld [vmem:[%s1 + $0x18] sm:$0xff]
  %v47 = vld [vmem:[%s1 + $0x20] sm:$0xf]
  %v48 = vld [vmem:[%s1 + $0x24] sm:$0xff]
  %v49 = vld [vmem:[%s1 + $0x2c] sm:$0xf]
  %v50 = vld [vmem:[%s1 + $0x30] sm:$0xff]
  %v51 = vld [vmem:[%s1 + $0x38] sm:$0xf]
  %v52 = vld [vmem:[%s1 + $0x3c] sm:$0xff]
  %v53 = vld [vmem:[%s1 + $0x44] sm:$0xf]
  %v54 = vld [vmem:[%s1 + $0x48] sm:$0xff]
  %v55 = vld [vmem:[%s1 + $0x50] sm:$0xf]
  %v56 = vld [vmem:[%s1 + $0x54] sm:$0xff]
  %v57 = vld [vmem:[%s1 + $0x5c] sm:$0xf]
  %v58 = vld [vmem:[%s1 + $0x60] sm:$0xff]
  %v59 = vld [vmem:[%s1 + $0x68] sm:$0xf]
  %v60 = vld [vmem:[%s1 + $0x6c] sm:$0xff]
  %v61 = vld [vmem:[%s1 + $0x74] sm:$0xf]
  %v62 = vld [vmem:[%s1 + $0x78] sm:$0xff]
  %v63 = vld [vmem:[%s1 + $0x80] sm:$0xf]
  %v64 = vld [vmem:[%s1 + $0x84] sm:$0xff]
  %v65 = vld [vmem:[%s1 + $0x8c] sm:$0xf]
  %v66 = vld [vmem:[%s1 + $0x90] sm:$0xff]
  %v67 = vld [vmem:[%s1 + $0x98] sm:$0xf]
  %v68 = vld [vmem:[%s1 + $0x9c] sm:$0xff]
  %v69 = vld [vmem:[%s1 + $0xa4] sm:$0xf]
  %v70 = vld [vmem:[%s1 + $0xa8] sm:$0xff]
  %v71 = vld [vmem:[%s1 + $0xb0] sm:$0xf]
  %v72 = vld [vmem:[%s1 + $0xb4] sm:$0xff]
  %v73 = vld [vmem:[%s1 + $0xbc] sm:$0xf]
  %v74 = vld [vmem:[%s1 + $0xc0] sm:$0xff]
  %v75 = vld [vmem:[%s1 + $0xc8] sm:$0xf]
  %v76 = vld [vmem:[%s1 + $0xcc] sm:$0xff]
  %v77 = vld [vmem:[%s1 + $0xd4] sm:$0xf]
  %v78 = vld [vmem:[%s1 + $0xd8] sm:$0xff]
  %v79 = vld [vmem:[%s1 + $0xe0] sm:$0xf]
  %v80 = vld [vmem:[%s1 + $0xe4] sm:$0xff]
  %v81 = vld [vmem:[%s1 + $0xec] sm:$0xf]
  %v82 = vld [vmem:[%s1 + $0xf0] sm:$0xff]
  %v83 = vld [vmem:[%s1 + $0xf8] sm:$0xf]
  %v84 = vld [vmem:[%s1 + $0xfc] sm:$0xff]
  %v85 = vld [vmem:[%s1 + $0x104] sm:$0xf]
  %v86 = vld [vmem:[%s1 + $0x108] sm:$0xff]
  %v87 = vld [vmem:[%s1 + $0x110] sm:$0xf]
  %v88 = vld [vmem:[%s1 + $0x114] sm:$0xff]
  %v89 = vld [vmem:[%s1 + $0x11c] sm:$0xf]
  %v90 = vld [vmem:[%s1 + $0x120] sm:$0xff]
  %v91 = vld [vmem:[%s1 + $0x128] sm:$0xf]
  %v92 = vld [vmem:[%s1 + $0x12c] sm:$0xff]
  %v93 = vld [vmem:[%s1 + $0x134] sm:$0xf]
  %v94 = vld [vmem:[%s1 + $0x138] sm:$0xff]
  %v95 = vld [vmem:[%s1 + $0x140] sm:$0xf]
  %v96 = vld [vmem:[%s1 + $0x144] sm:$0xff]
  %v97 = vld [vmem:[%s1 + $0x14c] sm:$0xf]
  %v98 = vld [vmem:[%s1 + $0x150] sm:$0xff]
  %v99 = vld [vmem:[%s1 + $0x158] sm:$0xf]
  %v100 = vld [vmem:[%s1 + $0x15c] sm:$0xff]
  %v101 = vld [vmem:[%s1 + $0x164] sm:$0xf]
  %v102 = vld [vmem:[%s1 + $0x168] sm:$0xff]
  %v103 = vld [vmem:[%s1 + $0x170] sm:$0xf]
  %v104 = vld [vmem:[%s1 + $0x174] sm:$0xff]
  %v105 = vld [vmem:[%s1 + $0x17c] sm:$0xf]
  %v106 = vld [vmem:[%s1 + $0x180] sm:$0xff]
  %v107 = vld [vmem:[%s1 + $0x188] sm:$0xf]
  %v108 = vld [vmem:[%s1 + $0x18c] sm:$0xff]
  %v109 = vld [vmem:[%s1 + $0x194] sm:$0xf]
  %v110 = vld [vmem:[%s1 + $0x198] sm:$0xff]
  %v111 = vld [vmem:[%s1 + $0x1a0] sm:$0xf]
  %v112 = vld [vmem:[%s1 + $0x1a4] sm:$0xff]
  %v113 = vld [vmem:[%s1 + $0x1ac] sm:$0xf]
  %v114 = vld [vmem:[%s1 + $0x1b0] sm:$0xff]
  %v115 = vld [vmem:[%s1 + $0x1b8] sm:$0xf]
  %v116 = vld [vmem:[%s1 + $0x1bc] sm:$0xff]
  %v117 = vld [vmem:[%s1 + $0x1c4] sm:$0xf]
  %v118 = vld [vmem:[%s1 + $0x1c8] sm:$0xff]
  %v119 = vld [vmem:[%s1 + $0x1d0] sm:$0xf]
  %v120 = vld [vmem:[%s1 + $0x1d4] sm:$0xff]
  %v121 = vld [vmem:[%s1 + $0x1dc] sm:$0xf]
  %v122 = vld [vmem:[%s1 + $0x1e0] sm:$0xff]
  %v123 = vld [vmem:[%s1 + $0x1e8] sm:$0xf]
  %v124 = vld [vmem:[%s1 + $0x1ec] sm:$0xff]
  %v125 = vld [vmem:[%s1 + $0x1f4] sm:$0xf]
  %v126 = vld [vmem:[%s1 + $0x1f8] sm:$0xff]
  %v127 = vld [vmem:[%s1 + $0x200] sm:$0xf]
  %v128 = vld [vmem:[%s1 + $0x204] sm:$0xff]
  %v129 = vld [vmem:[%s1 + $0x20c] sm:$0xf]
  %v130 = vld [vmem:[%s1 + $0x210] sm:$0xff]
  %v131 = vld [vmem:[%s1 + $0x218] sm:$0xf]
  %v132 = vld [vmem:[%s1 + $0x21c] sm:$0xff]
  %v133 = vld [vmem:[%s1 + $0x224] sm:$0xf]
  %v134 = vld [vmem:[%s1 + $0x228] sm:$0xff]
  %v135 = vld [vmem:[%s1 + $0x230] sm:$0xf]
  %v136 = vld [vmem:[%s1 + $0x234] sm:$0xff]
  %v137 = vld [vmem:[%s1 + $0x23c] sm:$0xf]
  %v138 = vld [vmem:[%s1 + $0x240] sm:$0xff]
  %v139 = vld [vmem:[%s1 + $0x248] sm:$0xf]
  %v140 = vld [vmem:[%s1 + $0x24c] sm:$0xff]
  %v141 = vld [vmem:[%s1 + $0x254] sm:$0xf]
  %v142 = vld [vmem:[%s1 + $0x258] sm:$0xff]
  %v143 = vld [vmem:[%s1 + $0x260] sm:$0xf]
  %v144 = vld [vmem:[%s1 + $0x264] sm:$0xff]
  %v145 = vld [vmem:[%s1 + $0x26c] sm:$0xf]
  %v146 = vld [vmem:[%s1 + $0x270] sm:$0xff]
  %v147 = vld [vmem:[%s1 + $0x278] sm:$0xf]
  %v148 = vld [vmem:[%s1 + $0x27c] sm:$0xff]
  %v149 = vld [vmem:[%s1 + $0x284] sm:$0xf]
  %v150 = vld [vmem:[%s1 + $0x288] sm:$0xff]
  %v151 = vld [vmem:[%s1 + $0x290] sm:$0xf]
  %v152 = vld [vmem:[%s1 + $0x294] sm:$0xff]
  %v153 = vld [vmem:[%s1 + $0x29c] sm:$0xf]
  %v154 = vld [vmem:[%s1 + $0x2a0] sm:$0xff]
  %v155 = vld [vmem:[%s1 + $0x2a8] sm:$0xf]
  %v156 = vld [vmem:[%s1 + $0x2ac] sm:$0xff]
  %v157 = vld [vmem:[%s1 + $0x2b4] sm:$0xf]
  %v158 = vld [vmem:[%s1 + $0x2b8] sm:$0xff]
  %v159 = vld [vmem:[%s1 + $0x2c0] sm:$0xf]
  %v160 = vld [vmem:[%s1 + $0x2c4] sm:$0xff]
  %v161 = vld [vmem:[%s1 + $0x2cc] sm:$0xf]
  %v162 = vld [vmem:[%s1 + $0x2d0] sm:$0xff]
  %v163 = vld [vmem:[%s1 + $0x2d8] sm:$0xf]
  %v164 = vld [vmem:[%s1 + $0x2dc] sm:$0xff]
  %v165 = vld [vmem:[%s1 + $0x2e4] sm:$0xf]
  %v166 = vld [vmem:[%s1 + $0x2e8] sm:$0xff]
  %v167 = vld [vmem:[%s1 + $0x2f0] sm:$0xf]
  %v168 = vld [vmem:[%s1 + $0x2f4] sm:$0xff]
  %v169 = vld [vmem:[%s1 + $0x2fc] sm:$0xf]
  %v170 = vld [vmem:[%s1 + $0x300] sm:$0xff]
  %v171 = vld [vmem:[%s1 + $0x308] sm:$0xf]
  %v172 = vld [vmem:[%s1 + $0x30c] sm:$0xff]
  %v173 = vld [vmem:[%s1 + $0x314] sm:$0xf]
  %v174 = vld [vmem:[%s1 + $0x318] sm:$0xff]
  %v175 = vld [vmem:[%s1 + $0x320] sm:$0xf]
  %v176 = vld [vmem:[%s1 + $0x324] sm:$0xff]
  %v177 = vld [vmem:[%s1 + $0x32c] sm:$0xf]
  %v178 = vld [vmem:[%s1 + $0x330] sm:$0xff]
  %v179 = vld [vmem:[%s1 + $0x338] sm:$0xf]
  %v180 = vld [vmem:[%s1 + $0x33c] sm:$0xff]
  %v181 = vld [vmem:[%s1 + $0x344] sm:$0xf]
  %v182 = vld [vmem:[%s1 + $0x348] sm:$0xff]
  %v183 = vld [vmem:[%s1 + $0x350] sm:$0xf]
  %v184 = vld [vmem:[%s1 + $0x354] sm:$0xff]
  %v185 = vld [vmem:[%s1 + $0x35c] sm:$0xf]
  %v186 = vld [vmem:[%s1 + $0x360] sm:$0xff]
  %v187 = vld [vmem:[%s1 + $0x368] sm:$0xf]
  %v188 = vld [vmem:[%s1 + $0x36c] sm:$0xff]
  %v189 = vld [vmem:[%s1 + $0x374] sm:$0xf]
  %v190 = vld [vmem:[%s1 + $0x378] sm:$0xff]
  %v191 = vld [vmem:[%s1 + $0x380] sm:$0xf]
  %v192 = vld [vmem:[%s1 + $0x384] sm:$0xff]
  %v193 = vld [vmem:[%s1 + $0x38c] sm:$0xf]
  %v194 = vld [vmem:[%s1 + $0x390] sm:$0xff]
  %v195 = vld [vmem:[%s1 + $0x398] sm:$0xf]
  %v196 = vld [vmem:[%s1 + $0x39c] sm:$0xff]
  %v197 = vld [vmem:[%s1 + $0x3a4] sm:$0xf]
  %v198 = vld [vmem:[%s1 + $0x3a8] sm:$0xff]
  %v199 = vld [vmem:[%s1 + $0x3b0] sm:$0xf]
  %v200 = vld [vmem:[%s1 + $0x3b4] sm:$0xff]
  %v201 = vld [vmem:[%s1 + $0x3bc] sm:$0xf]
  %v202 = vld [vmem:[%s1 + $0x3c0] sm:$0xff]
  %v203 = vld [vmem:[%s1 + $0x3c8] sm:$0xf]
  %v204 = vld [vmem:[%s1 + $0x3cc] sm:$0xff]
  %v205 = vld [vmem:[%s1 + $0x3d4] sm:$0xf]
  %v206 = vld [vmem:[%s1 + $0x3d8] sm:$0xff]
  %v207 = vld [vmem:[%s1 + $0x3e0] sm:$0xf]
  %v208 = vld [vmem:[%s1 + $0x3e4] sm:$0xff]
  %v209 = vld [vmem:[%s1 + $0x3ec] sm:$0xf]
  %v210 = vld [vmem:[%s1 + $0x3f0] sm:$0xff]
  %v211 = vld [vmem:[%s1 + $0x3f8] sm:$0xf]
  %v212 = vld [vmem:[%s1 + $0x3fc] sm:$0xff]
  %v213 = vld [vmem:[%s1 + $0x404] sm:$0xf]
  %v214 = vld [vmem:[%s1 + $0x408] sm:$0xff]
  %v215 = vld [vmem:[%s1 + $0x410] sm:$0xf]
  %v216 = vld [vmem:[%s1 + $0x414] sm:$0xff]
  %v217 = vld [vmem:[%s1 + $0x41c] sm:$0xf]
  %v218 = vld [vmem:[%s1 + $0x420] sm:$0xff]
  %v219 = vld [vmem:[%s1 + $0x428] sm:$0xf]
  %v220 = vld [vmem:[%s1 + $0x42c] sm:$0xff]
  %v221 = vld [vmem:[%s1 + $0x434] sm:$0xf]
  %v222 = vld [vmem:[%s1 + $0x438] sm:$0xff]
  %v223 = vld [vmem:[%s1 + $0x440] sm:$0xf]
  %v224 = vld [vmem:[%s1 + $0x444] sm:$0xff]
  %v225 = vld [vmem:[%s1 + $0x44c] sm:$0xf]
  %v226 = vld [vmem:[%s1 + $0x450] sm:$0xff]
  %v227 = vld [vmem:[%s1 + $0x458] sm:$0xf]
  %v228 = vld [vmem:[%s1 + $0x45c] sm:$0xff]
  %v229 = vld [vmem:[%s1 + $0x464] sm:$0xf]
  %v230 = vld [vmem:[%s1 + $0x468] sm:$0xff]
  %v231 = vld [vmem:[%s1 + $0x470] sm:$0xf]
  %v232 = vld [vmem:[%s1 + $0x474] sm:$0xff]
  %v233 = vld [vmem:[%s1 + $0x47c] sm:$0xf]
  %v234 = vld [vmem:[%s1 + $0x480] sm:$0xff]
  %v235 = vld [vmem:[%s1 + $0x488] sm:$0xf]
  %v236 = vld [vmem:[%s1 + $0x48c] sm:$0xff]
  %v237 = vld [vmem:[%s1 + $0x494] sm:$0xf]
  %v238 = vld [vmem:[%s1 + $0x498] sm:$0xff]
  %v239 = vld [vmem:[%s1 + $0x4a0] sm:$0xf]
  %v240 = vld [vmem:[%s1 + $0x4a4] sm:$0xff]
  %v241 = vld [vmem:[%s1 + $0x4ac] sm:$0xf]
  %v242 = vld [vmem:[%s1 + $0x4b0] sm:$0xff]
  %v243 = vld [vmem:[%s1 + $0x4b8] sm:$0xf]
  %v244 = vld [vmem:[%s1 + $0x4bc] sm:$0xff]
  %v245 = vld [vmem:[%s1 + $0x4c4] sm:$0xf]
  %v246 = vld [vmem:[%s1 + $0x4c8] sm:$0xff]
  %v247 = vld [vmem:[%s1 + $0x4d0] sm:$0xf]
  %v248 = vld [vmem:[%s1 + $0x4d4] sm:$0xff]
  %v249 = vld [vmem:[%s1 + $0x4dc] sm:$0xf]
  %v250 = vld [vmem:[%s1 + $0x4e0] sm:$0xff]
  %v251 = vld [vmem:[%s1 + $0x4e8] sm:$0xf]
  %v252 = vld [vmem:[%s1 + $0x4ec] sm:$0xff]
  %v253 = vld [vmem:[%s1 + $0x4f4] sm:$0xf]
  %v254 = vld [vmem:[%s1 + $0x4f8] sm:$0xff]
  %v255 = vld [vmem:[%s1 + $0x500] sm:$0xf]
  %v256 = vld [vmem:[%s1 + $0x504] sm:$0xff]
  %v257 = vld [vmem:[%s1 + $0x50c] sm:$0xf]
  %v258 = vld [vmem:[%s1 + $0x510] sm:$0xff]
  %v259 = vld [vmem:[%s1 + $0x518] sm:$0xf]
  %v260 = vld [vmem:[%s1 + $0x51c] sm:$0xff]
  %v261 = vld [vmem:[%s1 + $0x524] sm:$0xf]
  %v262 = vld [vmem:[%s1 + $0x528] sm:$0xff]
  %v263 = vld [vmem:[%s1 + $0x530] sm:$0xf]
  %v264 = vld [vmem:[%s1 + $0x534] sm:$0xff]
  %v265 = vld [vmem:[%s1 + $0x53c] sm:$0xf]
  %v266 = vld [vmem:[%s1 + $0x540] sm:$0xff]
  %v267 = vld [vmem:[%s1 + $0x548] sm:$0xf]
  %v268 = vld [vmem:[%s1 + $0x54c] sm:$0xff]
  %v269 = vld [vmem:[%s1 + $0x554] sm:$0xf]
  %v270 = vld [vmem:[%s1 + $0x558] sm:$0xff]
  %v271 = vld [vmem:[%s1 + $0x560] sm:$0xf]
  %v272 = vld [vmem:[%s1 + $0x564] sm:$0xff]
  %v273 = vld [vmem:[%s1 + $0x56c] sm:$0xf]
  %v274 = vld [vmem:[%s1 + $0x570] sm:$0xff]
  %v275 = vld [vmem:[%s1 + $0x578] sm:$0xf]
  %v276 = vld [vmem:[%s1 + $0x57c] sm:$0xff]
  %v277 = vld [vmem:[%s1 + $0x584] sm:$0xf]
  %v278 = vld [vmem:[%s1 + $0x588] sm:$0xff]
  %v279 = vld [vmem:[%s1 + $0x590] sm:$0xf]
  %v280 = vld [vmem:[%s1 + $0x594] sm:$0xff]
  %v281 = vld [vmem:[%s1 + $0x59c] sm:$0xf]
  %v282 = vld [vmem:[%s1 + $0x5a0] sm:$0xff]
  %v283 = vld [vmem:[%s1 + $0x5a8] sm:$0xf]
  %v284 = vld [vmem:[%s1 + $0x5ac] sm:$0xff]
  %v285 = vld [vmem:[%s1 + $0x5b4] sm:$0xf]
  %v286 = vld [vmem:[%s1 + $0x5b8] sm:$0xff]
  %v287 = vld [vmem:[%s1 + $0x5c0] sm:$0xf]
  %v288 = vld [vmem:[%s1 + $0x5c4] sm:$0xff]
  %v289 = vld [vmem:[%s1 + $0x5cc] sm:$0xf]
  %v290 = vld [vmem:[%s1 + $0x5d0] sm:$0xff]
  %v291 = vld [vmem:[%s1 + $0x5d8] sm:$0xf]
  %v292 = vld [vmem:[%s1 + $0x5dc] sm:$0xff]
  %v293 = vld [vmem:[%s1 + $0x5e4] sm:$0xf]
  %v294 = vld [vmem:[%s1 + $0x5e8] sm:$0xff]
  %v295 = vld [vmem:[%s1 + $0x5f0] sm:$0xf]
  %v296 = vld [vmem:[%s1 + $0x5f4] sm:$0xff]
  %v297 = vld [vmem:[%s1 + $0x5fc] sm:$0xf]
  %v298 = vld [vmem:[%s1 + $0x600] sm:$0xff]
  %v299 = vld [vmem:[%s1 + $0x608] sm:$0xf]
  %v300 = vld [vmem:[%s1 + $0x60c] sm:$0xff]
  %v301 = vld [vmem:[%s1 + $0x614] sm:$0xf]
  %v302 = vld [vmem:[%s1 + $0x618] sm:$0xff]
  %v303 = vld [vmem:[%s1 + $0x620] sm:$0xf]
  %v304 = vld [vmem:[%s1 + $0x624] sm:$0xff]
  %v305 = vld [vmem:[%s1 + $0x62c] sm:$0xf]
  %v306 = vld [vmem:[%s1 + $0x630] sm:$0xff]
  %v307 = vld [vmem:[%s1 + $0x638] sm:$0xf]
  %v308 = vld [vmem:[%s1 + $0x63c] sm:$0xff]
  %v309 = vld [vmem:[%s1 + $0x644] sm:$0xf]
  %v310 = vld [vmem:[%s1 + $0x648] sm:$0xff]
  %v311 = vld [vmem:[%s1 + $0x650] sm:$0xf]
  %v312 = vld [vmem:[%s1 + $0x654] sm:$0xff]
  %v313 = vld [vmem:[%s1 + $0x65c] sm:$0xf]
  %v314 = vld [vmem:[%s1 + $0x660] sm:$0xff]
  %v315 = vld [vmem:[%s1 + $0x668] sm:$0xf]
  %v316 = vld [vmem:[%s1 + $0x66c] sm:$0xff]
  %v317 = vld [vmem:[%s1 + $0x674] sm:$0xf]
  %v318 = vld [vmem:[%s1 + $0x678] sm:$0xff]
  %v319 = vld [vmem:[%s1 + $0x680] sm:$0xf]
  %v320 = vld [vmem:[%s1 + $0x684] sm:$0xff]
  %v321 = vld [vmem:[%s1 + $0x68c] sm:$0xf]
  %v322 = vld [vmem:[%s1 + $0x690] sm:$0xff]
  %v323 = vld [vmem:[%s1 + $0x698] sm:$0xf]
  %v324 = vld [vmem:[%s1 + $0x69c] sm:$0xff]
  %v325 = vld [vmem:[%s1 + $0x6a4] sm:$0xf]
  %v326 = vld [vmem:[%s1 + $0x6a8] sm:$0xff]
  %v327 = vld [vmem:[%s1 + $0x6b0] sm:$0xf]
  %v328 = vld [vmem:[%s1 + $0x6b4] sm:$0xff]
  %v329 = vld [vmem:[%s1 + $0x6bc] sm:$0xf]
  %v330 = vld [vmem:[%s1 + $0x6c0] sm:$0xff]
  %v331 = vld [vmem:[%s1 + $0x6c8] sm:$0xf]
  %v332 = vld [vmem:[%s1 + $0x6cc] sm:$0xff]
  %v333 = vld [vmem:[%s1 + $0x6d4] sm:$0xf]
  %v334 = vld [vmem:[%s1 + $0x6d8] sm:$0xff]
  %v335 = vld [vmem:[%s1 + $0x6e0] sm:$0xf]
  %v336 = vld [vmem:[%s1 + $0x6e4] sm:$0xff]
  %v337 = vld [vmem:[%s1 + $0x6ec] sm:$0xf]
  %v338 = vld [vmem:[%s1 + $0x6f0] sm:$0xff]
  %v339 = vld [vmem:[%s1 + $0x6f8] sm:$0xf]
  %v340 = vld [vmem:[%s1 + $0x6fc] sm:$0xff]
  %v341 = vld [vmem:[%s1 + $0x704] sm:$0xf]
  %v342 = vld [vmem:[%s1 + $0x708] sm:$0xff]
  %v343 = vld [vmem:[%s1 + $0x710] sm:$0xf]
  %v344 = vld [vmem:[%s1 + $0x714] sm:$0xff]
  %v345 = vld [vmem:[%s1 + $0x71c] sm:$0xf]
  %v346 = vld [vmem:[%s1 + $0x720] sm:$0xff]
  %v347 = vld [vmem:[%s1 + $0x728] sm:$0xf]
  %v348 = vld [vmem:[%s1 + $0x72c] sm:$0xff]
  %v349 = vld [vmem:[%s1 + $0x734] sm:$0xf]
  %v350 = vld [vmem:[%s1 + $0x738] sm:$0xff]
  %v351 = vld [vmem:[%s1 + $0x740] sm:$0xf]
  %v352 = vld [vmem:[%s1 + $0x744] sm:$0xff]
  %v353 = vld [vmem:[%s1 + $0x74c] sm:$0xf]
  %v354 = vld [vmem:[%s1 + $0x750] sm:$0xff]
  %v355 = vld [vmem:[%s1 + $0x758] sm:$0xf]
  %v356 = vld [vmem:[%s1 + $0x75c] sm:$0xff]
  %v357 = vld [vmem:[%s1 + $0x764] sm:$0xf]
  %v358 = vld [vmem:[%s1 + $0x768] sm:$0xff]
  %v359 = vld [vmem:[%s1 + $0x770] sm:$0xf]
  %v360 = vld [vmem:[%s1 + $0x774] sm:$0xff]
  %v361 = vld [vmem:[%s1 + $0x77c] sm:$0xf]
  %v362 = vld [vmem:[%s1 + $0x780] sm:$0xff]
  %v363 = vld [vmem:[%s1 + $0x788] sm:$0xf]
  %v364 = vld [vmem:[%s1 + $0x78c] sm:$0xff]
  %v365 = vld [vmem:[%s1 + $0x794] sm:$0xf]
  %v366 = vld [vmem:[%s1 + $0x798] sm:$0xff]
  %v367 = vld [vmem:[%s1 + $0x7a0] sm:$0xf]
  %v368 = vld [vmem:[%s1 + $0x7a4] sm:$0xff]
  %v369 = vld [vmem:[%s1 + $0x7ac] sm:$0xf]
  %v370 = vld [vmem:[%s1 + $0x7b0] sm:$0xff]
  %v371 = vld [vmem:[%s1 + $0x7b8] sm:$0xf]
  %v372 = vld [vmem:[%s1 + $0x7bc] sm:$0xff]
  %v373 = vld [vmem:[%s1 + $0x7c4] sm:$0xf]
  %v374 = vld [vmem:[%s1 + $0x7c8] sm:$0xff]
  %v375 = vld [vmem:[%s1 + $0x7d0] sm:$0xf]
  %v376 = vld [vmem:[%s1 + $0x7d4] sm:$0xff]
  %v377 = vld [vmem:[%s1 + $0x7dc] sm:$0xf]
  %v378 = vld [vmem:[%s1 + $0x7e0] sm:$0xff]
  %v379 = vld [vmem:[%s1 + $0x7e8] sm:$0xf]
  %v380 = vld [vmem:[%s1 + $0x7ec] sm:$0xff]
  %v381 = vld [vmem:[%s1 + $0x7f4] sm:$0xf]
  %v382 = vld [vmem:[%s1 + $0x7f8] sm:$0xff]
  %v383 = vld [vmem:[%s1 + $0x800] sm:$0xf]
  %v384 = vld [vmem:[%s1 + $0x804] sm:$0xff]
  %v385 = vld [vmem:[%s1 + $0x80c] sm:$0xf]
  %v386 = vld [vmem:[%s1 + $0x810] sm:$0xff]
  %v387 = vld [vmem:[%s1 + $0x818] sm:$0xf]
  %v388 = vld [vmem:[%s1 + $0x81c] sm:$0xff]
  %v389 = vld [vmem:[%s1 + $0x824] sm:$0xf]
  %v390 = vld [vmem:[%s1 + $0x828] sm:$0xff]
  %v391 = vld [vmem:[%s1 + $0x830] sm:$0xf]
  %v392 = vld [vmem:[%s1 + $0x834] sm:$0xff]
  %v393 = vld [vmem:[%s1 + $0x83c] sm:$0xf]
  %v394 = vld [vmem:[%s1 + $0x840] sm:$0xff]
  %v395 = vld [vmem:[%s1 + $0x848] sm:$0xf]
  %v396 = vld [vmem:[%s1 + $0x84c] sm:$0xff]
  %v397 = vld [vmem:[%s1 + $0x854] sm:$0xf]
  %v398 = vld [vmem:[%s1 + $0x858] sm:$0xff]
  %v399 = vld [vmem:[%s1 + $0x860] sm:$0xf]
  %v400 = vld [vmem:[%s1 + $0x864] sm:$0xff]
  %v401 = vld [vmem:[%s1 + $0x86c] sm:$0xf]
  %v402 = vld [vmem:[%s1 + $0x870] sm:$0xff]
  %v403 = vld [vmem:[%s1 + $0x878] sm:$0xf]
  %v404 = vld [vmem:[%s1 + $0x87c] sm:$0xff]
  %v405 = vld [vmem:[%s1 + $0x884] sm:$0xf]
  %v406 = vld [vmem:[%s1 + $0x888] sm:$0xff]
  %v407 = vld [vmem:[%s1 + $0x890] sm:$0xf]
  %v408 = vld [vmem:[%s1 + $0x894] sm:$0xff]
  %v409 = vld [vmem:[%s1 + $0x89c] sm:$0xf]
  %v410 = vld [vmem:[%s1 + $0x8a0] sm:$0xff]
  %v411 = vld [vmem:[%s1 + $0x8a8] sm:$0xf]
  %v412 = vld [vmem:[%s1 + $0x8ac] sm:$0xff]
  %v413 = vld [vmem:[%s1 + $0x8b4] sm:$0xf]
  %v414 = vld [vmem:[%s1 + $0x8b8] sm:$0xff]
  %v415 = vld [vmem:[%s1 + $0x8c0] sm:$0xf]
  %v416 = vld [vmem:[%s1 + $0x8c4] sm:$0xff]
  %v417 = vld [vmem:[%s1 + $0x8cc] sm:$0xf]
  %v418 = vld [vmem:[%s1 + $0x8d0] sm:$0xff]
  %v419 = vld [vmem:[%s1 + $0x8d8] sm:$0xf]
  %v420 = vld [vmem:[%s1 + $0x8dc] sm:$0xff]
  %v421 = vld [vmem:[%s1 + $0x8e4] sm:$0xf]
  %v422 = vld [vmem:[%s1 + $0x8e8] sm:$0xff]
  %v423 = vld [vmem:[%s1 + $0x8f0] sm:$0xf]
  %v424 = vld [vmem:[%s1 + $0x8f4] sm:$0xff]
  %v425 = vld [vmem:[%s1 + $0x8fc] sm:$0xf]
  %v426 = vld [vmem:[%s1 + $0x900] sm:$0xff]
  %v427 = vld [vmem:[%s1 + $0x908] sm:$0xf]
  %v428 = vld [vmem:[%s1 + $0x90c] sm:$0xff]
  %v429 = vld [vmem:[%s1 + $0x914] sm:$0xf]
  %v430 = vld [vmem:[%s1 + $0x918] sm:$0xff]
  %v431 = vld [vmem:[%s1 + $0x920] sm:$0xf]
  %v432 = vld [vmem:[%s1 + $0x924] sm:$0xff]
  %v433 = vld [vmem:[%s1 + $0x92c] sm:$0xf]
  %v434 = vld [vmem:[%s1 + $0x930] sm:$0xff]
  %v435 = vld [vmem:[%s1 + $0x938] sm:$0xf]
  %v436 = vld [vmem:[%s1 + $0x93c] sm:$0xff]
  %v437 = vld [vmem:[%s1 + $0x944] sm:$0xf]
  %v438 = vld [vmem:[%s1 + $0x948] sm:$0xff]
  %v439 = vld [vmem:[%s1 + $0x950] sm:$0xf]
  %v440 = vld [vmem:[%s1 + $0x954] sm:$0xff]
  %v441 = vld [vmem:[%s1 + $0x95c] sm:$0xf]
  %v442 = vld [vmem:[%s1 + $0x960] sm:$0xff]
  %v443 = vld [vmem:[%s1 + $0x968] sm:$0xf]
  %v444 = vld [vmem:[%s1 + $0x96c] sm:$0xff]
  %v445 = vld [vmem:[%s1 + $0x974] sm:$0xf]
  %v446 = vld [vmem:[%s1 + $0x978] sm:$0xff]
  %v447 = vld [vmem:[%s1 + $0x980] sm:$0xf]
  %v448 = vld [vmem:[%s1 + $0x984] sm:$0xff]
  %v449 = vld [vmem:[%s1 + $0x98c] sm:$0xf]
  %v450 = vld [vmem:[%s1 + $0x990] sm:$0xff]
  %v451 = vld [vmem:[%s1 + $0x998] sm:$0xf]
  %v452 = vld [vmem:[%s1 + $0x99c] sm:$0xff]
  %v453 = vld [vmem:[%s1 + $0x9a4] sm:$0xf]
  %v454 = vld [vmem:[%s1 + $0x9a8] sm:$0xff]
  %v455 = vld [vmem:[%s1 + $0x9b0] sm:$0xf]
  %v456 = vld [vmem:[%s1 + $0x9b4] sm:$0xff]
  %v457 = vld [vmem:[%s1 + $0x9bc] sm:$0xf]
  %v458 = vld [vmem:[%s1 + $0x9c0] sm:$0xff]
  %v459 = vld [vmem:[%s1 + $0x9c8] sm:$0xf]
  %v460 = vld [vmem:[%s1 + $0x9cc] sm:$0xff]
  %v461 = vld [vmem:[%s1 + $0x9d4] sm:$0xf]
  %v462 = vld [vmem:[%s1 + $0x9d8] sm:$0xff]
  %v463 = vld [vmem:[%s1 + $0x9e0] sm:$0xf]
  %v464 = vld [vmem:[%s1 + $0x9e4] sm:$0xff]
  %v465 = vld [vmem:[%s1 + $0x9ec] sm:$0xf]
  %v466 = vld [vmem:[%s1 + $0x9f0] sm:$0xff]
  %v467 = vld [vmem:[%s1 + $0x9f8] sm:$0xf]
  %v468 = vld [vmem:[%s1 + $0x9fc] sm:$0xff]
  %v469 = vld [vmem:[%s1 + $0xa04] sm:$0xf]
  %v470 = vld [vmem:[%s1 + $0xa08] sm:$0xff]
  %v471 = vld [vmem:[%s1 + $0xa10] sm:$0xf]
  %v472 = vld [vmem:[%s1 + $0xa14] sm:$0xff]
  %v473 = vld [vmem:[%s1 + $0xa1c] sm:$0xf]
  %v502 = vunpack.c.l.b16 %v14
  %v503 = vunpack.c.h.b16 %v14
  %v504 = vunpack.c.l.b16 %v15
  %v505 = vunpack.c.h.b16 %v15
  %v506 = vunpack.c.l.b16 %v16
  %v507 = vunpack.c.h.b16 %v16
  %v508 = vunpack.c.l.b16 %v17
  %v509 = vunpack.c.h.b16 %v17
  %v510 = vunpack.c.l.b16 %v18
  %v511 = vunpack.c.h.b16 %v18
  %v512 = vunpack.c.l.b16 %v19
  %v513 = vunpack.c.h.b16 %v19
  %v514 = vunpack.c.l.b16 %v20
  %v515 = vunpack.c.h.b16 %v20
  %v516 = vunpack.c.l.b16 %v21
  %v517 = vunpack.c.h.b16 %v21
  %v518 = vunpack.c.l.b16 %v22
  %v519 = vunpack.c.h.b16 %v22
  %v520 = vunpack.c.l.b16 %v23
  %v521 = vunpack.c.h.b16 %v23
  %v522 = vunpack.c.l.b16 %v24
  %v523 = vunpack.c.h.b16 %v24
  %v524 = vunpack.c.l.b16 %v25
  %v525 = vunpack.c.h.b16 %v25
  %v526 = vunpack.c.l.b16 %v26
  %v527 = vunpack.c.h.b16 %v26
  %v528 = vunpack.c.l.b16 %v27
  %v529 = vunpack.c.h.b16 %v27
  %v530 = vunpack.c.l.b16 %v28
  %v531 = vunpack.c.h.b16 %v28
  %v532 = vunpack.c.l.b16 %v29
  %v533 = vunpack.c.h.b16 %v29
  %v534 = vunpack.c.l.b16 %v30
  %v535 = vunpack.c.h.b16 %v30
  %v536 = vunpack.c.l.b16 %v31
  %v537 = vunpack.c.h.b16 %v31
  %v538 = vunpack.c.l.b16 %v32
  %v539 = vunpack.c.h.b16 %v32
  %v540 = vunpack.c.l.b16 %v33
  %v541 = vunpack.c.h.b16 %v33
  %v542 = vunpack.c.l.b16 %v34
  %v543 = vunpack.c.h.b16 %v34
  %v544 = vunpack.c.l.b16 %v35
  %v545 = vunpack.c.h.b16 %v35
  %v546 = vunpack.c.l.b16 %v36
  %v547 = vunpack.c.h.b16 %v36
  %v548 = vunpack.c.l.b16 %v37
  %v549 = vunpack.c.h.b16 %v37
  %v550 = vunpack.c.l.b16 %v38
  %v551 = vunpack.c.h.b16 %v38
  %v552 = vunpack.c.l.b16 %v39
  %v553 = vunpack.c.h.b16 %v39
  %v554 = vunpack.c.l.b16 %v40
  %v555 = vunpack.c.h.b16 %v40
  %v556 = vunpack.c.l.b16 %v41
  %v557 = vunpack.c.h.b16 %v41
  %v558 = vpack.c.b16 %v516, %v502
  %v559 = vpack.c.b16 %v517, %v503
  %v560 = vpack.c.b16 %v518, %v504
  %v561 = vpack.c.b16 %v519, %v505
  %v562 = vpack.c.b16 %v520, %v506
  %v563 = vpack.c.b16 %v521, %v507
  %v564 = vpack.c.b16 %v522, %v508
  %v565 = vpack.c.b16 %v523, %v509
  %v566 = vpack.c.b16 %v524, %v510
  %v567 = vpack.c.b16 %v525, %v511
  %v568 = vpack.c.b16 %v526, %v512
  %v569 = vpack.c.b16 %v527, %v513
  %v570 = vpack.c.b16 %v528, %v514
  %v571 = vpack.c.b16 %v529, %v515
  %v572 = vpack.c.b16 %v544, %v530
  %v573 = vpack.c.b16 %v545, %v531
  %v574 = vpack.c.b16 %v546, %v532
  %v575 = vpack.c.b16 %v547, %v533
  %v576 = vpack.c.b16 %v548, %v534
  %v577 = vpack.c.b16 %v549, %v535
  %v578 = vpack.c.b16 %v550, %v536
  %v579 = vpack.c.b16 %v551, %v537
  %v580 = vpack.c.b16 %v552, %v538
  %v581 = vpack.c.b16 %v553, %v539
  %v582 = vpack.c.b16 %v554, %v540
  %v583 = vpack.c.b16 %v555, %v541
  %v584 = vpack.c.b16 %v556, %v542
  %v585 = vpack.c.b16 %v557, %v543
  %v1044 = vunpack.c.l.b16 %v42
  %v1045 = vunpack.c.h.b16 %v42
  %v1046 = vunpack.c.l.b16 %v43
  %v1047 = vunpack.c.l.b16 %v44
  %v1048 = vunpack.c.h.b16 %v44
  %v1049 = vunpack.c.l.b16 %v45
  %v1050 = vunpack.c.l.b16 %v46
  %v1051 = vunpack.c.h.b16 %v46
  %v1052 = vunpack.c.l.b16 %v47
  %v1053 = vunpack.c.l.b16 %v48
  %v1054 = vunpack.c.h.b16 %v48
  %v1055 = vunpack.c.l.b16 %v49
  %v1056 = vunpack.c.l.b16 %v50
  %v1057 = vunpack.c.h.b16 %v50
  %v1058 = vunpack.c.l.b16 %v51
  %v1059 = vunpack.c.l.b16 %v52
  %v1060 = vunpack.c.h.b16 %v52
  %v1061 = vunpack.c.l.b16 %v53
  %v1062 = vunpack.c.l.b16 %v54
  %v1063 = vunpack.c.h.b16 %v54
  %v1064 = vunpack.c.l.b16 %v55
  %v1065 = vunpack.c.l.b16 %v56
  %v1066 = vunpack.c.h.b16 %v56
  %v1067 = vunpack.c.l.b16 %v57
  %v1068 = vunpack.c.l.b16 %v58
  %v1069 = vunpack.c.h.b16 %v58
  %v1070 = vunpack.c.l.b16 %v59
  %v1071 = vunpack.c.l.b16 %v60
  %v1072 = vunpack.c.h.b16 %v60
  %v1073 = vunpack.c.l.b16 %v61
  %v1074 = vunpack.c.l.b16 %v62
  %v1075 = vunpack.c.h.b16 %v62
  %v1076 = vunpack.c.l.b16 %v63
  %v1077 = vunpack.c.l.b16 %v64
  %v1078 = vunpack.c.h.b16 %v64
  %v1079 = vunpack.c.l.b16 %v65
  %v1080 = vunpack.c.l.b16 %v66
  %v1081 = vunpack.c.h.b16 %v66
  %v1082 = vunpack.c.l.b16 %v67
  %v1083 = vunpack.c.l.b16 %v68
  %v1084 = vunpack.c.h.b16 %v68
  %v1085 = vunpack.c.l.b16 %v69
  %v1086 = vunpack.c.l.b16 %v70
  %v1087 = vunpack.c.h.b16 %v70
  %v1088 = vunpack.c.l.b16 %v71
  %v1089 = vunpack.c.l.b16 %v72
  %v1090 = vunpack.c.h.b16 %v72
  %v1091 = vunpack.c.l.b16 %v73
  %v1092 = vunpack.c.l.b16 %v74
  %v1093 = vunpack.c.h.b16 %v74
  %v1094 = vunpack.c.l.b16 %v75
  %v1095 = vunpack.c.l.b16 %v76
  %v1096 = vunpack.c.h.b16 %v76
  %v1097 = vunpack.c.l.b16 %v77
  %v1098 = vunpack.c.l.b16 %v78
  %v1099 = vunpack.c.h.b16 %v78
  %v1100 = vunpack.c.l.b16 %v79
  %v1101 = vunpack.c.l.b16 %v80
  %v1102 = vunpack.c.h.b16 %v80
  %v1103 = vunpack.c.l.b16 %v81
  %v1104 = vunpack.c.l.b16 %v82
  %v1105 = vunpack.c.h.b16 %v82
  %v1106 = vunpack.c.l.b16 %v83
  %v1107 = vunpack.c.l.b16 %v84
  %v1108 = vunpack.c.h.b16 %v84
  %v1109 = vunpack.c.l.b16 %v85
  %v1110 = vunpack.c.l.b16 %v86
  %v1111 = vunpack.c.h.b16 %v86
  %v1112 = vunpack.c.l.b16 %v87
  %v1113 = vunpack.c.l.b16 %v88
  %v1114 = vunpack.c.h.b16 %v88
  %v1115 = vunpack.c.l.b16 %v89
  %v1116 = vunpack.c.l.b16 %v90
  %v1117 = vunpack.c.h.b16 %v90
  %v1118 = vunpack.c.l.b16 %v91
  %v1119 = vunpack.c.l.b16 %v92
  %v1120 = vunpack.c.h.b16 %v92
  %v1121 = vunpack.c.l.b16 %v93
  %v1122 = vunpack.c.l.b16 %v94
  %v1123 = vunpack.c.h.b16 %v94
  %v1124 = vunpack.c.l.b16 %v95
  %v1125 = vunpack.c.l.b16 %v96
  %v1126 = vunpack.c.h.b16 %v96
  %v1127 = vunpack.c.l.b16 %v97
  %v1128 = vunpack.c.l.b16 %v98
  %v1129 = vunpack.c.h.b16 %v98
  %v1130 = vunpack.c.l.b16 %v99
  %v1131 = vunpack.c.l.b16 %v100
  %v1132 = vunpack.c.h.b16 %v100
  %v1133 = vunpack.c.l.b16 %v101
  %v1134 = vunpack.c.l.b16 %v102
  %v1135 = vunpack.c.h.b16 %v102
  %v1136 = vunpack.c.l.b16 %v103
  %v1137 = vunpack.c.l.b16 %v104
  %v1138 = vunpack.c.h.b16 %v104
  %v1139 = vunpack.c.l.b16 %v105
  %v1140 = vunpack.c.l.b16 %v106
  %v1141 = vunpack.c.h.b16 %v106
  %v1142 = vunpack.c.l.b16 %v107
  %v1143 = vunpack.c.l.b16 %v108
  %v1144 = vunpack.c.h.b16 %v108
  %v1145 = vunpack.c.l.b16 %v109
  %v1146 = vunpack.c.l.b16 %v110
  %v1147 = vunpack.c.h.b16 %v110
  %v1148 = vunpack.c.l.b16 %v111
  %v1149 = vunpack.c.l.b16 %v112
  %v1150 = vunpack.c.h.b16 %v112
  %v1151 = vunpack.c.l.b16 %v113
  %v1152 = vunpack.c.l.b16 %v114
  %v1153 = vunpack.c.h.b16 %v114
  %v1154 = vunpack.c.l.b16 %v115
  %v1155 = vunpack.c.l.b16 %v116
  %v1156 = vunpack.c.h.b16 %v116
  %v1157 = vunpack.c.l.b16 %v117
  %v1158 = vunpack.c.l.b16 %v118
  %v1159 = vunpack.c.h.b16 %v118
  %v1160 = vunpack.c.l.b16 %v119
  %v1161 = vunpack.c.l.b16 %v120
  %v1162 = vunpack.c.h.b16 %v120
  %v1163 = vunpack.c.l.b16 %v121
  %v1164 = vunpack.c.l.b16 %v122
  %v1165 = vunpack.c.h.b16 %v122
  %v1166 = vunpack.c.l.b16 %v123
  %v1167 = vunpack.c.l.b16 %v124
  %v1168 = vunpack.c.h.b16 %v124
  %v1169 = vunpack.c.l.b16 %v125
  %v1170 = vunpack.c.l.b16 %v126
  %v1171 = vunpack.c.h.b16 %v126
  %v1172 = vunpack.c.l.b16 %v127
  %v1173 = vunpack.c.l.b16 %v128
  %v1174 = vunpack.c.h.b16 %v128
  %v1175 = vunpack.c.l.b16 %v129
  %v1176 = vunpack.c.l.b16 %v130
  %v1177 = vunpack.c.h.b16 %v130
  %v1178 = vunpack.c.l.b16 %v131
  %v1179 = vunpack.c.l.b16 %v132
  %v1180 = vunpack.c.h.b16 %v132
  %v1181 = vunpack.c.l.b16 %v133
  %v1182 = vunpack.c.l.b16 %v134
  %v1183 = vunpack.c.h.b16 %v134
  %v1184 = vunpack.c.l.b16 %v135
  %v1185 = vunpack.c.l.b16 %v136
  %v1186 = vunpack.c.h.b16 %v136
  %v1187 = vunpack.c.l.b16 %v137
  %v1188 = vunpack.c.l.b16 %v138
  %v1189 = vunpack.c.h.b16 %v138
  %v1190 = vunpack.c.l.b16 %v139
  %v1191 = vunpack.c.l.b16 %v140
  %v1192 = vunpack.c.h.b16 %v140
  %v1193 = vunpack.c.l.b16 %v141
  %v1194 = vunpack.c.l.b16 %v142
  %v1195 = vunpack.c.h.b16 %v142
  %v1196 = vunpack.c.l.b16 %v143
  %v1197 = vunpack.c.l.b16 %v144
  %v1198 = vunpack.c.h.b16 %v144
  %v1199 = vunpack.c.l.b16 %v145
  %v1200 = vunpack.c.l.b16 %v146
  %v1201 = vunpack.c.h.b16 %v146
  %v1202 = vunpack.c.l.b16 %v147
  %v1203 = vunpack.c.l.b16 %v148
  %v1204 = vunpack.c.h.b16 %v148
  %v1205 = vunpack.c.l.b16 %v149
  %v1206 = vunpack.c.l.b16 %v150
  %v1207 = vunpack.c.h.b16 %v150
  %v1208 = vunpack.c.l.b16 %v151
  %v1209 = vunpack.c.l.b16 %v152
  %v1210 = vunpack.c.h.b16 %v152
  %v1211 = vunpack.c.l.b16 %v153
  %v1212 = vunpack.c.l.b16 %v154
  %v1213 = vunpack.c.h.b16 %v154
  %v1214 = vunpack.c.l.b16 %v155
  %v1215 = vunpack.c.l.b16 %v156
  %v1216 = vunpack.c.h.b16 %v156
  %v1217 = vunpack.c.l.b16 %v157
  %v1218 = vunpack.c.l.b16 %v158
  %v1219 = vunpack.c.h.b16 %v158
  %v1220 = vunpack.c.l.b16 %v159
  %v1221 = vunpack.c.l.b16 %v160
  %v1222 = vunpack.c.h.b16 %v160
  %v1223 = vunpack.c.l.b16 %v161
  %v1224 = vunpack.c.l.b16 %v162
  %v1225 = vunpack.c.h.b16 %v162
  %v1226 = vunpack.c.l.b16 %v163
  %v1227 = vunpack.c.l.b16 %v164
  %v1228 = vunpack.c.h.b16 %v164
  %v1229 = vunpack.c.l.b16 %v165
  %v1230 = vunpack.c.l.b16 %v166
  %v1231 = vunpack.c.h.b16 %v166
  %v1232 = vunpack.c.l.b16 %v167
  %v1233 = vunpack.c.l.b16 %v168
  %v1234 = vunpack.c.h.b16 %v168
  %v1235 = vunpack.c.l.b16 %v169
  %v1236 = vunpack.c.l.b16 %v170
  %v1237 = vunpack.c.h.b16 %v170
  %v1238 = vunpack.c.l.b16 %v171
  %v1239 = vunpack.c.l.b16 %v172
  %v1240 = vunpack.c.h.b16 %v172
  %v1241 = vunpack.c.l.b16 %v173
  %v1242 = vunpack.c.l.b16 %v174
  %v1243 = vunpack.c.h.b16 %v174
  %v1244 = vunpack.c.l.b16 %v175
  %v1245 = vunpack.c.l.b16 %v176
  %v1246 = vunpack.c.h.b16 %v176
  %v1247 = vunpack.c.l.b16 %v177
  %v1248 = vunpack.c.l.b16 %v178
  %v1249 = vunpack.c.h.b16 %v178
  %v1250 = vunpack.c.l.b16 %v179
  %v1251 = vunpack.c.l.b16 %v180
  %v1252 = vunpack.c.h.b16 %v180
  %v1253 = vunpack.c.l.b16 %v181
  %v1254 = vunpack.c.l.b16 %v182
  %v1255 = vunpack.c.h.b16 %v182
  %v1256 = vunpack.c.l.b16 %v183
  %v1257 = vunpack.c.l.b16 %v184
  %v1258 = vunpack.c.h.b16 %v184
  %v1259 = vunpack.c.l.b16 %v185
  %v1260 = vunpack.c.l.b16 %v186
  %v1261 = vunpack.c.h.b16 %v186
  %v1262 = vunpack.c.l.b16 %v187
  %v1263 = vunpack.c.l.b16 %v188
  %v1264 = vunpack.c.h.b16 %v188
  %v1265 = vunpack.c.l.b16 %v189
  %v1266 = vunpack.c.l.b16 %v190
  %v1267 = vunpack.c.h.b16 %v190
  %v1268 = vunpack.c.l.b16 %v191
  %v1269 = vunpack.c.l.b16 %v192
  %v1270 = vunpack.c.h.b16 %v192
  %v1271 = vunpack.c.l.b16 %v193
  %v1272 = vunpack.c.l.b16 %v194
  %v1273 = vunpack.c.h.b16 %v194
  %v1274 = vunpack.c.l.b16 %v195
  %v1275 = vunpack.c.l.b16 %v196
  %v1276 = vunpack.c.h.b16 %v196
  %v1277 = vunpack.c.l.b16 %v197
  %v1278 = vunpack.c.l.b16 %v198
  %v1279 = vunpack.c.h.b16 %v198
  %v1280 = vunpack.c.l.b16 %v199
  %v1281 = vunpack.c.l.b16 %v200
  %v1282 = vunpack.c.h.b16 %v200
  %v1283 = vunpack.c.l.b16 %v201
  %v1284 = vunpack.c.l.b16 %v202
  %v1285 = vunpack.c.h.b16 %v202
  %v1286 = vunpack.c.l.b16 %v203
  %v1287 = vunpack.c.l.b16 %v204
  %v1288 = vunpack.c.h.b16 %v204
  %v1289 = vunpack.c.l.b16 %v205
  %v1290 = vunpack.c.l.b16 %v206
  %v1291 = vunpack.c.h.b16 %v206
  %v1292 = vunpack.c.l.b16 %v207
  %v1293 = vunpack.c.l.b16 %v208
  %v1294 = vunpack.c.h.b16 %v208
  %v1295 = vunpack.c.l.b16 %v209
  %v1296 = vunpack.c.l.b16 %v210
  %v1297 = vunpack.c.h.b16 %v210
  %v1298 = vunpack.c.l.b16 %v211
  %v1299 = vunpack.c.l.b16 %v212
  %v1300 = vunpack.c.h.b16 %v212
  %v1301 = vunpack.c.l.b16 %v213
  %v1302 = vunpack.c.l.b16 %v214
  %v1303 = vunpack.c.h.b16 %v214
  %v1304 = vunpack.c.l.b16 %v215
  %v1305 = vunpack.c.l.b16 %v216
  %v1306 = vunpack.c.h.b16 %v216
  %v1307 = vunpack.c.l.b16 %v217
  %v1308 = vunpack.c.l.b16 %v218
  %v1309 = vunpack.c.h.b16 %v218
  %v1310 = vunpack.c.l.b16 %v219
  %v1311 = vunpack.c.l.b16 %v220
  %v1312 = vunpack.c.h.b16 %v220
  %v1313 = vunpack.c.l.b16 %v221
  %v1314 = vunpack.c.l.b16 %v222
  %v1315 = vunpack.c.h.b16 %v222
  %v1316 = vunpack.c.l.b16 %v223
  %v1317 = vunpack.c.l.b16 %v224
  %v1318 = vunpack.c.h.b16 %v224
  %v1319 = vunpack.c.l.b16 %v225
  %v1320 = vunpack.c.l.b16 %v226
  %v1321 = vunpack.c.h.b16 %v226
  %v1322 = vunpack.c.l.b16 %v227
  %v1323 = vunpack.c.l.b16 %v228
  %v1324 = vunpack.c.h.b16 %v228
  %v1325 = vunpack.c.l.b16 %v229
  %v1326 = vunpack.c.l.b16 %v230
  %v1327 = vunpack.c.h.b16 %v230
  %v1328 = vunpack.c.l.b16 %v231
  %v1329 = vunpack.c.l.b16 %v232
  %v1330 = vunpack.c.h.b16 %v232
  %v1331 = vunpack.c.l.b16 %v233
  %v1332 = vunpack.c.l.b16 %v234
  %v1333 = vunpack.c.h.b16 %v234
  %v1334 = vunpack.c.l.b16 %v235
  %v1335 = vunpack.c.l.b16 %v236
  %v1336 = vunpack.c.h.b16 %v236
  %v1337 = vunpack.c.l.b16 %v237
  %v1338 = vunpack.c.l.b16 %v238
  %v1339 = vunpack.c.h.b16 %v238
  %v1340 = vunpack.c.l.b16 %v239
  %v1341 = vunpack.c.l.b16 %v240
  %v1342 = vunpack.c.h.b16 %v240
  %v1343 = vunpack.c.l.b16 %v241
  %v1344 = vunpack.c.l.b16 %v242
  %v1345 = vunpack.c.h.b16 %v242
  %v1346 = vunpack.c.l.b16 %v243
  %v1347 = vunpack.c.l.b16 %v244
  %v1348 = vunpack.c.h.b16 %v244
  %v1349 = vunpack.c.l.b16 %v245
  %v1350 = vunpack.c.l.b16 %v246
  %v1351 = vunpack.c.h.b16 %v246
  %v1352 = vunpack.c.l.b16 %v247
  %v1353 = vunpack.c.l.b16 %v248
  %v1354 = vunpack.c.h.b16 %v248
  %v1355 = vunpack.c.l.b16 %v249
  %v1356 = vunpack.c.l.b16 %v250
  %v1357 = vunpack.c.h.b16 %v250
  %v1358 = vunpack.c.l.b16 %v251
  %v1359 = vunpack.c.l.b16 %v252
  %v1360 = vunpack.c.h.b16 %v252
  %v1361 = vunpack.c.l.b16 %v253
  %v1362 = vunpack.c.l.b16 %v254
  %v1363 = vunpack.c.h.b16 %v254
  %v1364 = vunpack.c.l.b16 %v255
  %v1365 = vunpack.c.l.b16 %v256
  %v1366 = vunpack.c.h.b16 %v256
  %v1367 = vunpack.c.l.b16 %v257
  %v1368 = vunpack.c.l.b16 %v258
  %v1369 = vunpack.c.h.b16 %v258
  %v1370 = vunpack.c.l.b16 %v259
  %v1371 = vunpack.c.l.b16 %v260
  %v1372 = vunpack.c.h.b16 %v260
  %v1373 = vunpack.c.l.b16 %v261
  %v1374 = vunpack.c.l.b16 %v262
  %v1375 = vunpack.c.h.b16 %v262
  %v1376 = vunpack.c.l.b16 %v263
  %v1377 = vunpack.c.l.b16 %v264
  %v1378 = vunpack.c.h.b16 %v264
  %v1379 = vunpack.c.l.b16 %v265
  %v1380 = vunpack.c.l.b16 %v266
  %v1381 = vunpack.c.h.b16 %v266
  %v1382 = vunpack.c.l.b16 %v267
  %v1383 = vunpack.c.l.b16 %v268
  %v1384 = vunpack.c.h.b16 %v268
  %v1385 = vunpack.c.l.b16 %v269
  %v1386 = vunpack.c.l.b16 %v270
  %v1387 = vunpack.c.h.b16 %v270
  %v1388 = vunpack.c.l.b16 %v271
  %v1389 = vunpack.c.l.b16 %v272
  %v1390 = vunpack.c.h.b16 %v272
  %v1391 = vunpack.c.l.b16 %v273
  %v1392 = vunpack.c.l.b16 %v274
  %v1393 = vunpack.c.h.b16 %v274
  %v1394 = vunpack.c.l.b16 %v275
  %v1395 = vunpack.c.l.b16 %v276
  %v1396 = vunpack.c.h.b16 %v276
  %v1397 = vunpack.c.l.b16 %v277
  %v1398 = vunpack.c.l.b16 %v278
  %v1399 = vunpack.c.h.b16 %v278
  %v1400 = vunpack.c.l.b16 %v279
  %v1401 = vunpack.c.l.b16 %v280
  %v1402 = vunpack.c.h.b16 %v280
  %v1403 = vunpack.c.l.b16 %v281
  %v1404 = vunpack.c.l.b16 %v282
  %v1405 = vunpack.c.h.b16 %v282
  %v1406 = vunpack.c.l.b16 %v283
  %v1407 = vunpack.c.l.b16 %v284
  %v1408 = vunpack.c.h.b16 %v284
  %v1409 = vunpack.c.l.b16 %v285
  %v1410 = vunpack.c.l.b16 %v286
  %v1411 = vunpack.c.h.b16 %v286
  %v1412 = vunpack.c.l.b16 %v287
  %v1413 = vunpack.c.l.b16 %v288
  %v1414 = vunpack.c.h.b16 %v288
  %v1415 = vunpack.c.l.b16 %v289
  %v1416 = vunpack.c.l.b16 %v290
  %v1417 = vunpack.c.h.b16 %v290
  %v1418 = vunpack.c.l.b16 %v291
  %v1419 = vunpack.c.l.b16 %v292
  %v1420 = vunpack.c.h.b16 %v292
  %v1421 = vunpack.c.l.b16 %v293
  %v1422 = vunpack.c.l.b16 %v294
  %v1423 = vunpack.c.h.b16 %v294
  %v1424 = vunpack.c.l.b16 %v295
  %v1425 = vunpack.c.l.b16 %v296
  %v1426 = vunpack.c.h.b16 %v296
  %v1427 = vunpack.c.l.b16 %v297
  %v1428 = vunpack.c.l.b16 %v298
  %v1429 = vunpack.c.h.b16 %v298
  %v1430 = vunpack.c.l.b16 %v299
  %v1431 = vunpack.c.l.b16 %v300
  %v1432 = vunpack.c.h.b16 %v300
  %v1433 = vunpack.c.l.b16 %v301
  %v1434 = vunpack.c.l.b16 %v302
  %v1435 = vunpack.c.h.b16 %v302
  %v1436 = vunpack.c.l.b16 %v303
  %v1437 = vunpack.c.l.b16 %v304
  %v1438 = vunpack.c.h.b16 %v304
  %v1439 = vunpack.c.l.b16 %v305
  %v1440 = vunpack.c.l.b16 %v306
  %v1441 = vunpack.c.h.b16 %v306
  %v1442 = vunpack.c.l.b16 %v307
  %v1443 = vunpack.c.l.b16 %v308
  %v1444 = vunpack.c.h.b16 %v308
  %v1445 = vunpack.c.l.b16 %v309
  %v1446 = vunpack.c.l.b16 %v310
  %v1447 = vunpack.c.h.b16 %v310
  %v1448 = vunpack.c.l.b16 %v311
  %v1449 = vunpack.c.l.b16 %v312
  %v1450 = vunpack.c.h.b16 %v312
  %v1451 = vunpack.c.l.b16 %v313
  %v1452 = vunpack.c.l.b16 %v314
  %v1453 = vunpack.c.h.b16 %v314
  %v1454 = vunpack.c.l.b16 %v315
  %v1455 = vunpack.c.l.b16 %v316
  %v1456 = vunpack.c.h.b16 %v316
  %v1457 = vunpack.c.l.b16 %v317
  %v1458 = vunpack.c.l.b16 %v318
  %v1459 = vunpack.c.h.b16 %v318
  %v1460 = vunpack.c.l.b16 %v319
  %v1461 = vunpack.c.l.b16 %v320
  %v1462 = vunpack.c.h.b16 %v320
  %v1463 = vunpack.c.l.b16 %v321
  %v1464 = vunpack.c.l.b16 %v322
  %v1465 = vunpack.c.h.b16 %v322
  %v1466 = vunpack.c.l.b16 %v323
  %v1467 = vunpack.c.l.b16 %v324
  %v1468 = vunpack.c.h.b16 %v324
  %v1469 = vunpack.c.l.b16 %v325
  %v1470 = vunpack.c.l.b16 %v326
  %v1471 = vunpack.c.h.b16 %v326
  %v1472 = vunpack.c.l.b16 %v327
  %v1473 = vunpack.c.l.b16 %v328
  %v1474 = vunpack.c.h.b16 %v328
  %v1475 = vunpack.c.l.b16 %v329
  %v1476 = vunpack.c.l.b16 %v330
  %v1477 = vunpack.c.h.b16 %v330
  %v1478 = vunpack.c.l.b16 %v331
  %v1479 = vunpack.c.l.b16 %v332
  %v1480 = vunpack.c.h.b16 %v332
  %v1481 = vunpack.c.l.b16 %v333
  %v1482 = vunpack.c.l.b16 %v334
  %v1483 = vunpack.c.h.b16 %v334
  %v1484 = vunpack.c.l.b16 %v335
  %v1485 = vunpack.c.l.b16 %v336
  %v1486 = vunpack.c.h.b16 %v336
  %v1487 = vunpack.c.l.b16 %v337
  %v1488 = vunpack.c.l.b16 %v338
  %v1489 = vunpack.c.h.b16 %v338
  %v1490 = vunpack.c.l.b16 %v339
  %v1491 = vunpack.c.l.b16 %v340
  %v1492 = vunpack.c.h.b16 %v340
  %v1493 = vunpack.c.l.b16 %v341
  %v1494 = vunpack.c.l.b16 %v342
  %v1495 = vunpack.c.h.b16 %v342
  %v1496 = vunpack.c.l.b16 %v343
  %v1497 = vunpack.c.l.b16 %v344
  %v1498 = vunpack.c.h.b16 %v344
  %v1499 = vunpack.c.l.b16 %v345
  %v1500 = vunpack.c.l.b16 %v346
  %v1501 = vunpack.c.h.b16 %v346
  %v1502 = vunpack.c.l.b16 %v347
  %v1503 = vunpack.c.l.b16 %v348
  %v1504 = vunpack.c.h.b16 %v348
  %v1505 = vunpack.c.l.b16 %v349
  %v1506 = vunpack.c.l.b16 %v350
  %v1507 = vunpack.c.h.b16 %v350
  %v1508 = vunpack.c.l.b16 %v351
  %v1509 = vunpack.c.l.b16 %v352
  %v1510 = vunpack.c.h.b16 %v352
  %v1511 = vunpack.c.l.b16 %v353
  %v1512 = vunpack.c.l.b16 %v354
  %v1513 = vunpack.c.h.b16 %v354
  %v1514 = vunpack.c.l.b16 %v355
  %v1515 = vunpack.c.l.b16 %v356
  %v1516 = vunpack.c.h.b16 %v356
  %v1517 = vunpack.c.l.b16 %v357
  %v1518 = vunpack.c.l.b16 %v358
  %v1519 = vunpack.c.h.b16 %v358
  %v1520 = vunpack.c.l.b16 %v359
  %v1521 = vunpack.c.l.b16 %v360
  %v1522 = vunpack.c.h.b16 %v360
  %v1523 = vunpack.c.l.b16 %v361
  %v1524 = vunpack.c.l.b16 %v362
  %v1525 = vunpack.c.h.b16 %v362
  %v1526 = vunpack.c.l.b16 %v363
  %v1527 = vunpack.c.l.b16 %v364
  %v1528 = vunpack.c.h.b16 %v364
  %v1529 = vunpack.c.l.b16 %v365
  %v1530 = vunpack.c.l.b16 %v366
  %v1531 = vunpack.c.h.b16 %v366
  %v1532 = vunpack.c.l.b16 %v367
  %v1533 = vunpack.c.l.b16 %v368
  %v1534 = vunpack.c.h.b16 %v368
  %v1535 = vunpack.c.l.b16 %v369
  %v1536 = vunpack.c.l.b16 %v370
  %v1537 = vunpack.c.h.b16 %v370
  %v1538 = vunpack.c.l.b16 %v371
  %v1539 = vunpack.c.l.b16 %v372
  %v1540 = vunpack.c.h.b16 %v372
  %v1541 = vunpack.c.l.b16 %v373
  %v1542 = vunpack.c.l.b16 %v374
  %v1543 = vunpack.c.h.b16 %v374
  %v1544 = vunpack.c.l.b16 %v375
  %v1545 = vunpack.c.l.b16 %v376
  %v1546 = vunpack.c.h.b16 %v376
  %v1547 = vunpack.c.l.b16 %v377
  %v1548 = vunpack.c.l.b16 %v378
  %v1549 = vunpack.c.h.b16 %v378
  %v1550 = vunpack.c.l.b16 %v379
  %v1551 = vunpack.c.l.b16 %v380
  %v1552 = vunpack.c.h.b16 %v380
  %v1553 = vunpack.c.l.b16 %v381
  %v1554 = vunpack.c.l.b16 %v382
  %v1555 = vunpack.c.h.b16 %v382
  %v1556 = vunpack.c.l.b16 %v383
  %v1557 = vunpack.c.l.b16 %v384
  %v1558 = vunpack.c.h.b16 %v384
  %v1559 = vunpack.c.l.b16 %v385
  %v1560 = vunpack.c.l.b16 %v386
  %v1561 = vunpack.c.h.b16 %v386
  %v1562 = vunpack.c.l.b16 %v387
  %v1563 = vunpack.c.l.b16 %v388
  %v1564 = vunpack.c.h.b16 %v388
  %v1565 = vunpack.c.l.b16 %v389
  %v1566 = vunpack.c.l.b16 %v390
  %v1567 = vunpack.c.h.b16 %v390
  %v1568 = vunpack.c.l.b16 %v391
  %v1569 = vunpack.c.l.b16 %v392
  %v1570 = vunpack.c.h.b16 %v392
  %v1571 = vunpack.c.l.b16 %v393
  %v1572 = vunpack.c.l.b16 %v394
  %v1573 = vunpack.c.h.b16 %v394
  %v1574 = vunpack.c.l.b16 %v395
  %v1575 = vunpack.c.l.b16 %v396
  %v1576 = vunpack.c.h.b16 %v396
  %v1577 = vunpack.c.l.b16 %v397
  %v1578 = vunpack.c.l.b16 %v398
  %v1579 = vunpack.c.h.b16 %v398
  %v1580 = vunpack.c.l.b16 %v399
  %v1581 = vunpack.c.l.b16 %v400
  %v1582 = vunpack.c.h.b16 %v400
  %v1583 = vunpack.c.l.b16 %v401
  %v1584 = vunpack.c.l.b16 %v402
  %v1585 = vunpack.c.h.b16 %v402
  %v1586 = vunpack.c.l.b16 %v403
  %v1587 = vunpack.c.l.b16 %v404
  %v1588 = vunpack.c.h.b16 %v404
  %v1589 = vunpack.c.l.b16 %v405
  %v1590 = vunpack.c.l.b16 %v406
  %v1591 = vunpack.c.h.b16 %v406
  %v1592 = vunpack.c.l.b16 %v407
  %v1593 = vunpack.c.l.b16 %v408
  %v1594 = vunpack.c.h.b16 %v408
  %v1595 = vunpack.c.l.b16 %v409
  %v1596 = vunpack.c.l.b16 %v410
  %v1597 = vunpack.c.h.b16 %v410
  %v1598 = vunpack.c.l.b16 %v411
  %v1599 = vunpack.c.l.b16 %v412
  %v1600 = vunpack.c.h.b16 %v412
  %v1601 = vunpack.c.l.b16 %v413
  %v1602 = vunpack.c.l.b16 %v414
  %v1603 = vunpack.c.h.b16 %v414
  %v1604 = vunpack.c.l.b16 %v415
  %v1605 = vunpack.c.l.b16 %v416
  %v1606 = vunpack.c.h.b16 %v416
  %v1607 = vunpack.c.l.b16 %v417
  %v1608 = vunpack.c.l.b16 %v418
  %v1609 = vunpack.c.h.b16 %v418
  %v1610 = vunpack.c.l.b16 %v419
  %v1611 = vunpack.c.l.b16 %v420
  %v1612 = vunpack.c.h.b16 %v420
  %v1613 = vunpack.c.l.b16 %v421
  %v1614 = vunpack.c.l.b16 %v422
  %v1615 = vunpack.c.h.b16 %v422
  %v1616 = vunpack.c.l.b16 %v423
  %v1617 = vunpack.c.l.b16 %v424
  %v1618 = vunpack.c.h.b16 %v424
  %v1619 = vunpack.c.l.b16 %v425
  %v1620 = vunpack.c.l.b16 %v426
  %v1621 = vunpack.c.h.b16 %v426
  %v1622 = vunpack.c.l.b16 %v427
  %v1623 = vunpack.c.l.b16 %v428
  %v1624 = vunpack.c.h.b16 %v428
  %v1625 = vunpack.c.l.b16 %v429
  %v1626 = vunpack.c.l.b16 %v430
  %v1627 = vunpack.c.h.b16 %v430
  %v1628 = vunpack.c.l.b16 %v431
  %v1629 = vunpack.c.l.b16 %v432
  %v1630 = vunpack.c.h.b16 %v432
  %v1631 = vunpack.c.l.b16 %v433
  %v1632 = vunpack.c.l.b16 %v434
  %v1633 = vunpack.c.h.b16 %v434
  %v1634 = vunpack.c.l.b16 %v435
  %v1635 = vunpack.c.l.b16 %v436
  %v1636 = vunpack.c.h.b16 %v436
  %v1637 = vunpack.c.l.b16 %v437
  %v1638 = vunpack.c.l.b16 %v438
  %v1639 = vunpack.c.h.b16 %v438
  %v1640 = vunpack.c.l.b16 %v439
  %v1641 = vunpack.c.l.b16 %v440
  %v1642 = vunpack.c.h.b16 %v440
  %v1643 = vunpack.c.l.b16 %v441
  %v1644 = vunpack.c.l.b16 %v442
  %v1645 = vunpack.c.h.b16 %v442
  %v1646 = vunpack.c.l.b16 %v443
  %v1647 = vunpack.c.l.b16 %v444
  %v1648 = vunpack.c.h.b16 %v444
  %v1649 = vunpack.c.l.b16 %v445
  %v1650 = vunpack.c.l.b16 %v446
  %v1651 = vunpack.c.h.b16 %v446
  %v1652 = vunpack.c.l.b16 %v447
  %v1653 = vunpack.c.l.b16 %v448
  %v1654 = vunpack.c.h.b16 %v448
  %v1655 = vunpack.c.l.b16 %v449
  %v1656 = vunpack.c.l.b16 %v450
  %v1657 = vunpack.c.h.b16 %v450
  %v1658 = vunpack.c.l.b16 %v451
  %v1659 = vunpack.c.l.b16 %v452
  %v1660 = vunpack.c.h.b16 %v452
  %v1661 = vunpack.c.l.b16 %v453
  %v1662 = vunpack.c.l.b16 %v454
  %v1663 = vunpack.c.h.b16 %v454
  %v1664 = vunpack.c.l.b16 %v455
  %v1665 = vunpack.c.l.b16 %v456
  %v1666 = vunpack.c.h.b16 %v456
  %v1667 = vunpack.c.l.b16 %v457
  %v1668 = vunpack.c.l.b16 %v458
  %v1669 = vunpack.c.h.b16 %v458
  %v1670 = vunpack.c.l.b16 %v459
  %v1671 = vunpack.c.l.b16 %v460
  %v1672 = vunpack.c.h.b16 %v460
  %v1673 = vunpack.c.l.b16 %v461
  %v1674 = vunpack.c.l.b16 %v462
  %v1675 = vunpack.c.h.b16 %v462
  %v1676 = vunpack.c.l.b16 %v463
  %v1677 = vunpack.c.l.b16 %v464
  %v1678 = vunpack.c.h.b16 %v464
  %v1679 = vunpack.c.l.b16 %v465
  %v1680 = vunpack.c.l.b16 %v466
  %v1681 = vunpack.c.h.b16 %v466
  %v1682 = vunpack.c.l.b16 %v467
  %v1683 = vunpack.c.l.b16 %v468
  %v1684 = vunpack.c.h.b16 %v468
  %v1685 = vunpack.c.l.b16 %v469
  %v1686 = vunpack.c.l.b16 %v470
  %v1687 = vunpack.c.h.b16 %v470
  %v1688 = vunpack.c.l.b16 %v471
  %v1689 = vunpack.c.l.b16 %v472
  %v1690 = vunpack.c.h.b16 %v472
  %v1691 = vunpack.c.l.b16 %v473
  %v1692 = vpack.c.b16 %v1047, %v1044
  %v1693 = vpack.c.b16 %v1048, %v1045
  %v1694 = vpack.c.b16 %v1049, %v1046
  %v1695 = vpack.c.b16 %v1053, %v1050
  %v1696 = vpack.c.b16 %v1054, %v1051
  %v1697 = vpack.c.b16 %v1055, %v1052
  %v1698 = vpack.c.b16 %v1059, %v1056
  %v1699 = vpack.c.b16 %v1060, %v1057
  %v1700 = vpack.c.b16 %v1061, %v1058
  %v1701 = vpack.c.b16 %v1065, %v1062
  %v1702 = vpack.c.b16 %v1066, %v1063
  %v1703 = vpack.c.b16 %v1067, %v1064
  %v1704 = vpack.c.b16 %v1071, %v1068
  %v1705 = vpack.c.b16 %v1072, %v1069
  %v1706 = vpack.c.b16 %v1073, %v1070
  %v1707 = vpack.c.b16 %v1077, %v1074
  %v1708 = vpack.c.b16 %v1078, %v1075
  %v1709 = vpack.c.b16 %v1079, %v1076
  %v1710 = vpack.c.b16 %v1083, %v1080
  %v1711 = vpack.c.b16 %v1084, %v1081
  %v1712 = vpack.c.b16 %v1085, %v1082
  %v1713 = vpack.c.b16 %v1089, %v1086
  %v1714 = vpack.c.b16 %v1090, %v1087
  %v1715 = vpack.c.b16 %v1091, %v1088
  %v1716 = vpack.c.b16 %v1095, %v1092
  %v1717 = vpack.c.b16 %v1096, %v1093
  %v1718 = vpack.c.b16 %v1097, %v1094
  %v1719 = vpack.c.b16 %v1101, %v1098
  %v1720 = vpack.c.b16 %v1102, %v1099
  %v1721 = vpack.c.b16 %v1103, %v1100
  %v1722 = vpack.c.b16 %v1107, %v1104
  %v1723 = vpack.c.b16 %v1108, %v1105
  %v1724 = vpack.c.b16 %v1109, %v1106
  %v1725 = vpack.c.b16 %v1113, %v1110
  %v1726 = vpack.c.b16 %v1114, %v1111
  %v1727 = vpack.c.b16 %v1115, %v1112
  %v1728 = vpack.c.b16 %v1119, %v1116
  %v1729 = vpack.c.b16 %v1120, %v1117
  %v1730 = vpack.c.b16 %v1121, %v1118
  %v1731 = vpack.c.b16 %v1125, %v1122
  %v1732 = vpack.c.b16 %v1126, %v1123
  %v1733 = vpack.c.b16 %v1127, %v1124
  %v1734 = vpack.c.b16 %v1131, %v1128
  %v1735 = vpack.c.b16 %v1132, %v1129
  %v1736 = vpack.c.b16 %v1133, %v1130
  %v1737 = vpack.c.b16 %v1137, %v1134
  %v1738 = vpack.c.b16 %v1138, %v1135
  %v1739 = vpack.c.b16 %v1139, %v1136
  %v1740 = vpack.c.b16 %v1143, %v1140
  %v1741 = vpack.c.b16 %v1144, %v1141
  %v1742 = vpack.c.b16 %v1145, %v1142
  %v1743 = vpack.c.b16 %v1149, %v1146
  %v1744 = vpack.c.b16 %v1150, %v1147
  %v1745 = vpack.c.b16 %v1151, %v1148
  %v1746 = vpack.c.b16 %v1155, %v1152
  %v1747 = vpack.c.b16 %v1156, %v1153
  %v1748 = vpack.c.b16 %v1157, %v1154
  %v1749 = vpack.c.b16 %v1161, %v1158
  %v1750 = vpack.c.b16 %v1162, %v1159
  %v1751 = vpack.c.b16 %v1163, %v1160
  %v1752 = vpack.c.b16 %v1167, %v1164
  %v1753 = vpack.c.b16 %v1168, %v1165
  %v1754 = vpack.c.b16 %v1169, %v1166
  %v1755 = vpack.c.b16 %v1173, %v1170
  %v1756 = vpack.c.b16 %v1174, %v1171
  %v1757 = vpack.c.b16 %v1175, %v1172
  %v1758 = vpack.c.b16 %v1179, %v1176
  %v1759 = vpack.c.b16 %v1180, %v1177
  %v1760 = vpack.c.b16 %v1181, %v1178
  %v1761 = vpack.c.b16 %v1185, %v1182
  %v1762 = vpack.c.b16 %v1186, %v1183
  %v1763 = vpack.c.b16 %v1187, %v1184
  %v1764 = vpack.c.b16 %v1191, %v1188
  %v1765 = vpack.c.b16 %v1192, %v1189
  %v1766 = vpack.c.b16 %v1193, %v1190
  %v1767 = vpack.c.b16 %v1197, %v1194
  %v1768 = vpack.c.b16 %v1198, %v1195
  %v1769 = vpack.c.b16 %v1199, %v1196
  %v1770 = vpack.c.b16 %v1203, %v1200
  %v1771 = vpack.c.b16 %v1204, %v1201
  %v1772 = vpack.c.b16 %v1205, %v1202
  %v1773 = vpack.c.b16 %v1209, %v1206
  %v1774 = vpack.c.b16 %v1210, %v1207
  %v1775 = vpack.c.b16 %v1211, %v1208
  %v1776 = vpack.c.b16 %v1215, %v1212
  %v1777 = vpack.c.b16 %v1216, %v1213
  %v1778 = vpack.c.b16 %v1217, %v1214
  %v1779 = vpack.c.b16 %v1221, %v1218
  %v1780 = vpack.c.b16 %v1222, %v1219
  %v1781 = vpack.c.b16 %v1223, %v1220
  %v1782 = vpack.c.b16 %v1227, %v1224
  %v1783 = vpack.c.b16 %v1228, %v1225
  %v1784 = vpack.c.b16 %v1229, %v1226
  %v1785 = vpack.c.b16 %v1233, %v1230
  %v1786 = vpack.c.b16 %v1234, %v1231
  %v1787 = vpack.c.b16 %v1235, %v1232
  %v1788 = vpack.c.b16 %v1239, %v1236
  %v1789 = vpack.c.b16 %v1240, %v1237
  %v1790 = vpack.c.b16 %v1241, %v1238
  %v1791 = vpack.c.b16 %v1245, %v1242
  %v1792 = vpack.c.b16 %v1246, %v1243
  %v1793 = vpack.c.b16 %v1247, %v1244
  %v1794 = vpack.c.b16 %v1251, %v1248
  %v1795 = vpack.c.b16 %v1252, %v1249
  %v1796 = vpack.c.b16 %v1253, %v1250
  %v1797 = vpack.c.b16 %v1257, %v1254
  %v1798 = vpack.c.b16 %v1258, %v1255
  %v1799 = vpack.c.b16 %v1259, %v1256
  %v1800 = vpack.c.b16 %v1263, %v1260
  %v1801 = vpack.c.b16 %v1264, %v1261
  %v1802 = vpack.c.b16 %v1265, %v1262
  %v1803 = vpack.c.b16 %v1269, %v1266
  %v1804 = vpack.c.b16 %v1270, %v1267
  %v1805 = vpack.c.b16 %v1271, %v1268
  %v1806 = vpack.c.b16 %v1275, %v1272
  %v1807 = vpack.c.b16 %v1276, %v1273
  %v1808 = vpack.c.b16 %v1277, %v1274
  %v1809 = vpack.c.b16 %v1281, %v1278
  %v1810 = vpack.c.b16 %v1282, %v1279
  %v1811 = vpack.c.b16 %v1283, %v1280
  %v1812 = vpack.c.b16 %v1287, %v1284
  %v1813 = vpack.c.b16 %v1288, %v1285
  %v1814 = vpack.c.b16 %v1289, %v1286
  %v1815 = vpack.c.b16 %v1293, %v1290
  %v1816 = vpack.c.b16 %v1294, %v1291
  %v1817 = vpack.c.b16 %v1295, %v1292
  %v1818 = vpack.c.b16 %v1299, %v1296
  %v1819 = vpack.c.b16 %v1300, %v1297
  %v1820 = vpack.c.b16 %v1301, %v1298
  %v1821 = vpack.c.b16 %v1305, %v1302
  %v1822 = vpack.c.b16 %v1306, %v1303
  %v1823 = vpack.c.b16 %v1307, %v1304
  %v1824 = vpack.c.b16 %v1311, %v1308
  %v1825 = vpack.c.b16 %v1312, %v1309
  %v1826 = vpack.c.b16 %v1313, %v1310
  %v1827 = vpack.c.b16 %v1317, %v1314
  %v1828 = vpack.c.b16 %v1318, %v1315
  %v1829 = vpack.c.b16 %v1319, %v1316
  %v1830 = vpack.c.b16 %v1323, %v1320
  %v1831 = vpack.c.b16 %v1324, %v1321
  %v1832 = vpack.c.b16 %v1325, %v1322
  %v1833 = vpack.c.b16 %v1329, %v1326
  %v1834 = vpack.c.b16 %v1330, %v1327
  %v1835 = vpack.c.b16 %v1331, %v1328
  %v1836 = vpack.c.b16 %v1335, %v1332
  %v1837 = vpack.c.b16 %v1336, %v1333
  %v1838 = vpack.c.b16 %v1337, %v1334
  %v1839 = vpack.c.b16 %v1341, %v1338
  %v1840 = vpack.c.b16 %v1342, %v1339
  %v1841 = vpack.c.b16 %v1343, %v1340
  %v1842 = vpack.c.b16 %v1347, %v1344
  %v1843 = vpack.c.b16 %v1348, %v1345
  %v1844 = vpack.c.b16 %v1349, %v1346
  %v1845 = vpack.c.b16 %v1353, %v1350
  %v1846 = vpack.c.b16 %v1354, %v1351
  %v1847 = vpack.c.b16 %v1355, %v1352
  %v1848 = vpack.c.b16 %v1359, %v1356
  %v1849 = vpack.c.b16 %v1360, %v1357
  %v1850 = vpack.c.b16 %v1361, %v1358
  %v1851 = vpack.c.b16 %v1365, %v1362
  %v1852 = vpack.c.b16 %v1366, %v1363
  %v1853 = vpack.c.b16 %v1367, %v1364
  %v1854 = vpack.c.b16 %v1371, %v1368
  %v1855 = vpack.c.b16 %v1372, %v1369
  %v1856 = vpack.c.b16 %v1373, %v1370
  %v1857 = vpack.c.b16 %v1377, %v1374
  %v1858 = vpack.c.b16 %v1378, %v1375
  %v1859 = vpack.c.b16 %v1379, %v1376
  %v1860 = vpack.c.b16 %v1383, %v1380
  %v1861 = vpack.c.b16 %v1384, %v1381
  %v1862 = vpack.c.b16 %v1385, %v1382
  %v1863 = vpack.c.b16 %v1389, %v1386
  %v1864 = vpack.c.b16 %v1390, %v1387
  %v1865 = vpack.c.b16 %v1391, %v1388
  %v1866 = vpack.c.b16 %v1395, %v1392
  %v1867 = vpack.c.b16 %v1396, %v1393
  %v1868 = vpack.c.b16 %v1397, %v1394
  %v1869 = vpack.c.b16 %v1401, %v1398
  %v1870 = vpack.c.b16 %v1402, %v1399
  %v1871 = vpack.c.b16 %v1403, %v1400
  %v1872 = vpack.c.b16 %v1407, %v1404
  %v1873 = vpack.c.b16 %v1408, %v1405
  %v1874 = vpack.c.b16 %v1409, %v1406
  %v1875 = vpack.c.b16 %v1413, %v1410
  %v1876 = vpack.c.b16 %v1414, %v1411
  %v1877 = vpack.c.b16 %v1415, %v1412
  %v1878 = vpack.c.b16 %v1419, %v1416
  %v1879 = vpack.c.b16 %v1420, %v1417
  %v1880 = vpack.c.b16 %v1421, %v1418
  %v1881 = vpack.c.b16 %v1425, %v1422
  %v1882 = vpack.c.b16 %v1426, %v1423
  %v1883 = vpack.c.b16 %v1427, %v1424
  %v1884 = vpack.c.b16 %v1431, %v1428
  %v1885 = vpack.c.b16 %v1432, %v1429
  %v1886 = vpack.c.b16 %v1433, %v1430
  %v1887 = vpack.c.b16 %v1437, %v1434
  %v1888 = vpack.c.b16 %v1438, %v1435
  %v1889 = vpack.c.b16 %v1439, %v1436
  %v1890 = vpack.c.b16 %v1443, %v1440
  %v1891 = vpack.c.b16 %v1444, %v1441
  %v1892 = vpack.c.b16 %v1445, %v1442
  %v1893 = vpack.c.b16 %v1449, %v1446
  %v1894 = vpack.c.b16 %v1450, %v1447
  %v1895 = vpack.c.b16 %v1451, %v1448
  %v1896 = vpack.c.b16 %v1455, %v1452
  %v1897 = vpack.c.b16 %v1456, %v1453
  %v1898 = vpack.c.b16 %v1457, %v1454
  %v1899 = vpack.c.b16 %v1461, %v1458
  %v1900 = vpack.c.b16 %v1462, %v1459
  %v1901 = vpack.c.b16 %v1463, %v1460
  %v1902 = vpack.c.b16 %v1467, %v1464
  %v1903 = vpack.c.b16 %v1468, %v1465
  %v1904 = vpack.c.b16 %v1469, %v1466
  %v1905 = vpack.c.b16 %v1473, %v1470
  %v1906 = vpack.c.b16 %v1474, %v1471
  %v1907 = vpack.c.b16 %v1475, %v1472
  %v1908 = vpack.c.b16 %v1479, %v1476
  %v1909 = vpack.c.b16 %v1480, %v1477
  %v1910 = vpack.c.b16 %v1481, %v1478
  %v1911 = vpack.c.b16 %v1485, %v1482
  %v1912 = vpack.c.b16 %v1486, %v1483
  %v1913 = vpack.c.b16 %v1487, %v1484
  %v1914 = vpack.c.b16 %v1491, %v1488
  %v1915 = vpack.c.b16 %v1492, %v1489
  %v1916 = vpack.c.b16 %v1493, %v1490
  %v1917 = vpack.c.b16 %v1497, %v1494
  %v1918 = vpack.c.b16 %v1498, %v1495
  %v1919 = vpack.c.b16 %v1499, %v1496
  %v1920 = vpack.c.b16 %v1503, %v1500
  %v1921 = vpack.c.b16 %v1504, %v1501
  %v1922 = vpack.c.b16 %v1505, %v1502
  %v1923 = vpack.c.b16 %v1509, %v1506
  %v1924 = vpack.c.b16 %v1510, %v1507
  %v1925 = vpack.c.b16 %v1511, %v1508
  %v1926 = vpack.c.b16 %v1515, %v1512
  %v1927 = vpack.c.b16 %v1516, %v1513
  %v1928 = vpack.c.b16 %v1517, %v1514
  %v1929 = vpack.c.b16 %v1521, %v1518
  %v1930 = vpack.c.b16 %v1522, %v1519
  %v1931 = vpack.c.b16 %v1523, %v1520
  %v1932 = vpack.c.b16 %v1527, %v1524
  %v1933 = vpack.c.b16 %v1528, %v1525
  %v1934 = vpack.c.b16 %v1529, %v1526
  %v1935 = vpack.c.b16 %v1533, %v1530
  %v1936 = vpack.c.b16 %v1534, %v1531
  %v1937 = vpack.c.b16 %v1535, %v1532
  %v1938 = vpack.c.b16 %v1539, %v1536
  %v1939 = vpack.c.b16 %v1540, %v1537
  %v1940 = vpack.c.b16 %v1541, %v1538
  %v1941 = vpack.c.b16 %v1545, %v1542
  %v1942 = vpack.c.b16 %v1546, %v1543
  %v1943 = vpack.c.b16 %v1547, %v1544
  %v1944 = vpack.c.b16 %v1551, %v1548
  %v1945 = vpack.c.b16 %v1552, %v1549
  %v1946 = vpack.c.b16 %v1553, %v1550
  %v1947 = vpack.c.b16 %v1557, %v1554
  %v1948 = vpack.c.b16 %v1558, %v1555
  %v1949 = vpack.c.b16 %v1559, %v1556
  %v1950 = vpack.c.b16 %v1563, %v1560
  %v1951 = vpack.c.b16 %v1564, %v1561
  %v1952 = vpack.c.b16 %v1565, %v1562
  %v1953 = vpack.c.b16 %v1569, %v1566
  %v1954 = vpack.c.b16 %v1570, %v1567
  %v1955 = vpack.c.b16 %v1571, %v1568
  %v1956 = vpack.c.b16 %v1575, %v1572
  %v1957 = vpack.c.b16 %v1576, %v1573
  %v1958 = vpack.c.b16 %v1577, %v1574
  %v1959 = vpack.c.b16 %v1581, %v1578
  %v1960 = vpack.c.b16 %v1582, %v1579
  %v1961 = vpack.c.b16 %v1583, %v1580
  %v1962 = vpack.c.b16 %v1587, %v1584
  %v1963 = vpack.c.b16 %v1588, %v1585
  %v1964 = vpack.c.b16 %v1589, %v1586
  %v1965 = vpack.c.b16 %v1593, %v1590
  %v1966 = vpack.c.b16 %v1594, %v1591
  %v1967 = vpack.c.b16 %v1595, %v1592
  %v1968 = vpack.c.b16 %v1599, %v1596
  %v1969 = vpack.c.b16 %v1600, %v1597
  %v1970 = vpack.c.b16 %v1601, %v1598
  %v1971 = vpack.c.b16 %v1605, %v1602
  %v1972 = vpack.c.b16 %v1606, %v1603
  %v1973 = vpack.c.b16 %v1607, %v1604
  %v1974 = vpack.c.b16 %v1611, %v1608
  %v1975 = vpack.c.b16 %v1612, %v1609
  %v1976 = vpack.c.b16 %v1613, %v1610
  %v1977 = vpack.c.b16 %v1617, %v1614
  %v1978 = vpack.c.b16 %v1618, %v1615
  %v1979 = vpack.c.b16 %v1619, %v1616
  %v1980 = vpack.c.b16 %v1623, %v1620
  %v1981 = vpack.c.b16 %v1624, %v1621
  %v1982 = vpack.c.b16 %v1625, %v1622
  %v1983 = vpack.c.b16 %v1629, %v1626
  %v1984 = vpack.c.b16 %v1630, %v1627
  %v1985 = vpack.c.b16 %v1631, %v1628
  %v1986 = vpack.c.b16 %v1635, %v1632
  %v1987 = vpack.c.b16 %v1636, %v1633
  %v1988 = vpack.c.b16 %v1637, %v1634
  %v1989 = vpack.c.b16 %v1641, %v1638
  %v1990 = vpack.c.b16 %v1642, %v1639
  %v1991 = vpack.c.b16 %v1643, %v1640
  %v1992 = vpack.c.b16 %v1647, %v1644
  %v1993 = vpack.c.b16 %v1648, %v1645
  %v1994 = vpack.c.b16 %v1649, %v1646
  %v1995 = vpack.c.b16 %v1653, %v1650
  %v1996 = vpack.c.b16 %v1654, %v1651
  %v1997 = vpack.c.b16 %v1655, %v1652
  %v1998 = vpack.c.b16 %v1659, %v1656
  %v1999 = vpack.c.b16 %v1660, %v1657
  %v2000 = vpack.c.b16 %v1661, %v1658
  %v2001 = vpack.c.b16 %v1665, %v1662
  %v2002 = vpack.c.b16 %v1666, %v1663
  %v2003 = vpack.c.b16 %v1667, %v1664
  %v2004 = vpack.c.b16 %v1671, %v1668
  %v2005 = vpack.c.b16 %v1672, %v1669
  %v2006 = vpack.c.b16 %v1673, %v1670
  %v2007 = vpack.c.b16 %v1677, %v1674
  %v2008 = vpack.c.b16 %v1678, %v1675
  %v2009 = vpack.c.b16 %v1679, %v1676
  %v2010 = vpack.c.b16 %v1683, %v1680
  %v2011 = vpack.c.b16 %v1684, %v1681
  %v2012 = vpack.c.b16 %v1685, %v1682
  %v2013 = vpack.c.b16 %v1689, %v1686
  %v2014 = vpack.c.b16 %v1690, %v1687
  %v2015 = vpack.c.b16 %v1691, %v1688
  %vm2340 = vcmask 523264
  %v2342 = vsel %vm2340, %v571, 0
  %v2345 = vsel %vm2340, %v585, 0
  %2347 = vmatprep.subr.bf16.mxu0 %v1693
  %2348 = vmatpush1.bf16.msra.mxu0 %v1692
  %2349 = vmatprep.subr.bf16.mxu0 %v1696
  %2350 = vmatpush1.bf16.msra.mxu0 %v1695
  %2351 = vmatprep.subr.bf16.mxu0 %v1699
  %2352 = vmatpush1.bf16.msra.mxu0 %v1698
  %2353 = vmatprep.subr.bf16.mxu0 %v1702
  %2354 = vmatpush1.bf16.msra.mxu0 %v1701
  %2355 = vmatprep.subr.bf16.mxu0 %v1705
  %2356 = vmatpush1.bf16.msra.mxu0 %v1704
  %2357 = vmatprep.subr.bf16.mxu0 %v1708
  %2358 = vmatpush1.bf16.msra.mxu0 %v1707
  %2359 = vmatprep.subr.bf16.mxu0 %v1711
  %2360 = vmatpush1.bf16.msra.mxu0 %v1710
  %2361 = vmatprep.subr.bf16.mxu0 %v1714
  %2362 = vmatpush1.bf16.msra.mxu0 %v1713
  %2363 = vmatprep.subr.bf16.mxu0 %v1717
  %2364 = vmatpush1.bf16.msra.mxu0 %v1716
  %2365 = vmatprep.subr.bf16.mxu0 %v1720
  %2366 = vmatpush1.bf16.msra.mxu0 %v1719
  %2367 = vmatprep.subr.bf16.mxu0 %v1723
  %2368 = vmatpush1.bf16.msra.mxu0 %v1722
  %2369 = vmatprep.subr.bf16.mxu0 %v1726
  %2370 = vmatpush1.bf16.msra.mxu0 %v1725
  %2371 = vmatprep.subr.bf16.mxu0 %v1729
  %2372 = vmatpush1.bf16.msra.mxu0 %v1728
  %2373 = vmatprep.subr.bf16.mxu0 %v1732
  %2374 = vmatpush1.bf16.msra.mxu0 %v1731
  %2375 = vmatprep.subr.bf16.mxu0 %v1735
  %2376 = vmatpush1.bf16.msra.mxu0 %v1734
  %2377 = vmatprep.subr.bf16.mxu0 %v1738
  %2378 = vmatpush1.bf16.msra.mxu0 %v1737
  %2379 = vmatprep.mubr.bf16.mxu0 %v559
  %2380 = vmatmul.mubr.bf16.gmra.mrb[0].mxu0 %v558
  %v2381 = vpop.f32.mrb[0].mxu0
  %v2382 = vadd.f32 0.0, %v2381
  %v2383 = vpop.f32.mrb[0].mxu0
  %v2384 = vadd.f32 0.0, %v2383
  %v2385 = vpop.f32.mrb[0].mxu0
  %v2386 = vadd.f32 0.0, %v2385
  %v2387 = vpop.f32.mrb[0].mxu0
  %v2388 = vadd.f32 0.0, %v2387
  %2389 = vmatprep.mubr.bf16.mxu0 %v573
  %2390 = vmatmul.mubr.bf16.gmra.mrb[0].mxu0 %v572
  %v2391 = vpop.f32.mrb[0].mxu0
  %v2392 = vadd.f32 0.0, %v2391
  %v2393 = vpop.f32.mrb[0].mxu0
  %v2394 = vadd.f32 0.0, %v2393
  %v2395 = vpop.f32.mrb[0].mxu0
  %v2396 = vadd.f32 0.0, %v2395
  %v2397 = vpop.f32.mrb[0].mxu0
  %v2398 = vadd.f32 0.0, %v2397
  %2399 = vdwg.mxu0
  %2400 = vmatprep.subr.bf16.mxu0 %v1741
  %2401 = vmatpush1.bf16.msra.mxu0 %v1740
  %2402 = vmatprep.subr.bf16.mxu0 %v1744
  %2403 = vmatpush1.bf16.msra.mxu0 %v1743
  %2404 = vmatprep.subr.bf16.mxu0 %v1747
  %2405 = vmatpush1.bf16.msra.mxu0 %v1746
  %2406 = vmatprep.subr.bf16.mxu0 %v1750
  %2407 = vmatpush1.bf16.msra.mxu0 %v1749
  %2408 = vmatprep.subr.bf16.mxu0 %v1753
  %2409 = vmatpush1.bf16.msra.mxu0 %v1752
  %2410 = vmatprep.subr.bf16.mxu0 %v1756
  %2411 = vmatpush1.bf16.msra.mxu0 %v1755
  %2412 = vmatprep.subr.bf16.mxu0 %v1759
  %2413 = vmatpush1.bf16.msra.mxu0 %v1758
  %2414 = vmatprep.subr.bf16.mxu0 %v1762
  %2415 = vmatpush1.bf16.msra.mxu0 %v1761
  %2416 = vmatprep.subr.bf16.mxu0 %v1765
  %2417 = vmatpush1.bf16.msra.mxu0 %v1764
  %2418 = vmatprep.subr.bf16.mxu0 %v1768
  %2419 = vmatpush1.bf16.msra.mxu0 %v1767
  %2420 = vmatprep.subr.bf16.mxu0 %v1771
  %2421 = vmatpush1.bf16.msra.mxu0 %v1770
  %2422 = vmatprep.subr.bf16.mxu0 %v1774
  %2423 = vmatpush1.bf16.msra.mxu0 %v1773
  %2424 = vmatprep.subr.bf16.mxu0 %v1777
  %2425 = vmatpush1.bf16.msra.mxu0 %v1776
  %2426 = vmatprep.subr.bf16.mxu0 %v1780
  %2427 = vmatpush1.bf16.msra.mxu0 %v1779
  %2428 = vmatprep.subr.bf16.mxu0 %v1783
  %2429 = vmatpush1.bf16.msra.mxu0 %v1782
  %2430 = vmatprep.subr.bf16.mxu0 %v1786
  %2431 = vmatpush1.bf16.msra.mxu0 %v1785
  %2432 = vmatprep.mubr.bf16.mxu0 %v561
  %2433 = vmatmul.mubr.bf16.gmra.mrb[0].mxu0 %v560
  %v2434 = vpop.f32.mrb[0].mxu0
  %v2435 = vadd.f32 %v2382, %v2434
  %v2436 = vpop.f32.mrb[0].mxu0
  %v2437 = vadd.f32 %v2384, %v2436
  %v2438 = vpop.f32.mrb[0].mxu0
  %v2439 = vadd.f32 %v2386, %v2438
  %v2440 = vpop.f32.mrb[0].mxu0
  %v2441 = vadd.f32 %v2388, %v2440
  %2442 = vmatprep.mubr.bf16.mxu0 %v575
  %2443 = vmatmul.mubr.bf16.gmra.mrb[0].mxu0 %v574
  %v2444 = vpop.f32.mrb[0].mxu0
  %v2445 = vadd.f32 %v2392, %v2444
  %v2446 = vpop.f32.mrb[0].mxu0
  %v2447 = vadd.f32 %v2394, %v2446
  %v2448 = vpop.f32.mrb[0].mxu0
  %v2449 = vadd.f32 %v2396, %v2448
  %v2450 = vpop.f32.mrb[0].mxu0
  %v2451 = vadd.f32 %v2398, %v2450
  %2452 = vdwg.mxu0
  %2453 = vmatprep.subr.bf16.mxu0 %v1789
  %2454 = vmatpush1.bf16.msra.mxu0 %v1788
  %2455 = vmatprep.subr.bf16.mxu0 %v1792
  %2456 = vmatpush1.bf16.msra.mxu0 %v1791
  %2457 = vmatprep.subr.bf16.mxu0 %v1795
  %2458 = vmatpush1.bf16.msra.mxu0 %v1794
  %2459 = vmatprep.subr.bf16.mxu0 %v1798
  %2460 = vmatpush1.bf16.msra.mxu0 %v1797
  %2461 = vmatprep.subr.bf16.mxu0 %v1801
  %2462 = vmatpush1.bf16.msra.mxu0 %v1800
  %2463 = vmatprep.subr.bf16.mxu0 %v1804
  %2464 = vmatpush1.bf16.msra.mxu0 %v1803
  %2465 = vmatprep.subr.bf16.mxu0 %v1807
  %2466 = vmatpush1.bf16.msra.mxu0 %v1806
  %2467 = vmatprep.subr.bf16.mxu0 %v1810
  %2468 = vmatpush1.bf16.msra.mxu0 %v1809
  %2469 = vmatprep.subr.bf16.mxu0 %v1813
  %2470 = vmatpush1.bf16.msra.mxu0 %v1812
  %2471 = vmatprep.subr.bf16.mxu0 %v1816
  %2472 = vmatpush1.bf16.msra.mxu0 %v1815
  %2473 = vmatprep.subr.bf16.mxu0 %v1819
  %2474 = vmatpush1.bf16.msra.mxu0 %v1818
  %2475 = vmatprep.subr.bf16.mxu0 %v1822
  %2476 = vmatpush1.bf16.msra.mxu0 %v1821
  %2477 = vmatprep.subr.bf16.mxu0 %v1825
  %2478 = vmatpush1.bf16.msra.mxu0 %v1824
  %2479 = vmatprep.subr.bf16.mxu0 %v1828
  %2480 = vmatpush1.bf16.msra.mxu0 %v1827
  %2481 = vmatprep.subr.bf16.mxu0 %v1831
  %2482 = vmatpush1.bf16.msra.mxu0 %v1830
  %2483 = vmatprep.subr.bf16.mxu0 %v1834
  %2484 = vmatpush1.bf16.msra.mxu0 %v1833
  %2485 = vmatprep.mubr.bf16.mxu0 %v563
  %2486 = vmatmul.mubr.bf16.gmra.mrb[0].mxu0 %v562
  %v2487 = vpop.f32.mrb[0].mxu0
  %v2488 = vadd.f32 %v2435, %v2487
  %v2489 = vpop.f32.mrb[0].mxu0
  %v2490 = vadd.f32 %v2437, %v2489
  %v2491 = vpop.f32.mrb[0].mxu0
  %v2492 = vadd.f32 %v2439, %v2491
  %v2493 = vpop.f32.mrb[0].mxu0
  %v2494 = vadd.f32 %v2441, %v2493
  %2495 = vmatprep.mubr.bf16.mxu0 %v577
  %2496 = vmatmul.mubr.bf16.gmra.mrb[0].mxu0 %v576
  %v2497 = vpop.f32.mrb[0].mxu0
  %v2498 = vadd.f32 %v2445, %v2497
  %v2499 = vpop.f32.mrb[0].mxu0
  %v2500 = vadd.f32 %v2447, %v2499
  %v2501 = vpop.f32.mrb[0].mxu0
  %v2502 = vadd.f32 %v2449, %v2501
  %v2503 = vpop.f32.mrb[0].mxu0
  %v2504 = vadd.f32 %v2451, %v2503
  %2505 = vdwg.mxu0
  %2506 = vmatprep.subr.bf16.mxu0 %v1837
  %2507 = vmatpush1.bf16.msra.mxu0 %v1836
  %2508 = vmatprep.subr.bf16.mxu0 %v1840
  %2509 = vmatpush1.bf16.msra.mxu0 %v1839
  %2510 = vmatprep.subr.bf16.mxu0 %v1843
  %2511 = vmatpush1.bf16.msra.mxu0 %v1842
  %2512 = vmatprep.subr.bf16.mxu0 %v1846
  %2513 = vmatpush1.bf16.msra.mxu0 %v1845
  %2514 = vmatprep.subr.bf16.mxu0 %v1849
  %2515 = vmatpush1.bf16.msra.mxu0 %v1848
  %2516 = vmatprep.subr.bf16.mxu0 %v1852
  %2517 = vmatpush1.bf16.msra.mxu0 %v1851
  %2518 = vmatprep.subr.bf16.mxu0 %v1855
  %2519 = vmatpush1.bf16.msra.mxu0 %v1854
  %2520 = vmatprep.subr.bf16.mxu0 %v1858
  %2521 = vmatpush1.bf16.msra.mxu0 %v1857
  %2522 = vmatprep.subr.bf16.mxu0 %v1861
  %2523 = vmatpush1.bf16.msra.mxu0 %v1860
  %2524 = vmatprep.subr.bf16.mxu0 %v1864
  %2525 = vmatpush1.bf16.msra.mxu0 %v1863
  %2526 = vmatprep.subr.bf16.mxu0 %v1867
  %2527 = vmatpush1.bf16.msra.mxu0 %v1866
  %2528 = vmatprep.subr.bf16.mxu0 %v1870
  %2529 = vmatpush1.bf16.msra.mxu0 %v1869
  %2530 = vmatprep.subr.bf16.mxu0 %v1873
  %2531 = vmatpush1.bf16.msra.mxu0 %v1872
  %2532 = vmatprep.subr.bf16.mxu0 %v1876
  %2533 = vmatpush1.bf16.msra.mxu0 %v1875
  %2534 = vmatprep.subr.bf16.mxu0 %v1879
  %2535 = vmatpush1.bf16.msra.mxu0 %v1878
  %2536 = vmatprep.subr.bf16.mxu0 %v1882
  %2537 = vmatpush1.bf16.msra.mxu0 %v1881
  %2538 = vmatprep.mubr.bf16.mxu0 %v565
  %2539 = vmatmul.mubr.bf16.gmra.mrb[0].mxu0 %v564
  %v2540 = vpop.f32.mrb[0].mxu0
  %v2541 = vadd.f32 %v2488, %v2540
  %v2542 = vpop.f32.mrb[0].mxu0
  %v2543 = vadd.f32 %v2490, %v2542
  %v2544 = vpop.f32.mrb[0].mxu0
  %v2545 = vadd.f32 %v2492, %v2544
  %v2546 = vpop.f32.mrb[0].mxu0
  %v2547 = vadd.f32 %v2494, %v2546
  %2548 = vmatprep.mubr.bf16.mxu0 %v579
  %2549 = vmatmul.mubr.bf16.gmra.mrb[0].mxu0 %v578
  %v2550 = vpop.f32.mrb[0].mxu0
  %v2551 = vadd.f32 %v2498, %v2550
  %v2552 = vpop.f32.mrb[0].mxu0
  %v2553 = vadd.f32 %v2500, %v2552
  %v2554 = vpop.f32.mrb[0].mxu0
  %v2555 = vadd.f32 %v2502, %v2554
  %v2556 = vpop.f32.mrb[0].mxu0
  %v2557 = vadd.f32 %v2504, %v2556
  %2558 = vdwg.mxu0
  %2559 = vmatprep.subr.bf16.mxu0 %v1885
  %2560 = vmatpush1.bf16.msra.mxu0 %v1884
  %2561 = vmatprep.subr.bf16.mxu0 %v1888
  %2562 = vmatpush1.bf16.msra.mxu0 %v1887
  %2563 = vmatprep.subr.bf16.mxu0 %v1891
  %2564 = vmatpush1.bf16.msra.mxu0 %v1890
  %2565 = vmatprep.subr.bf16.mxu0 %v1894
  %2566 = vmatpush1.bf16.msra.mxu0 %v1893
  %2567 = vmatprep.subr.bf16.mxu0 %v1897
  %2568 = vmatpush1.bf16.msra.mxu0 %v1896
  %2569 = vmatprep.subr.bf16.mxu0 %v1900
  %2570 = vmatpush1.bf16.msra.mxu0 %v1899
  %2571 = vmatprep.subr.bf16.mxu0 %v1903
  %2572 = vmatpush1.bf16.msra.mxu0 %v1902
  %2573 = vmatprep.subr.bf16.mxu0 %v1906
  %2574 = vmatpush1.bf16.msra.mxu0 %v1905
  %2575 = vmatprep.subr.bf16.mxu0 %v1909
  %2576 = vmatpush1.bf16.msra.mxu0 %v1908
  %2577 = vmatprep.subr.bf16.mxu0 %v1912
  %2578 = vmatpush1.bf16.msra.mxu0 %v1911
  %2579 = vmatprep.subr.bf16.mxu0 %v1915
  %2580 = vmatpush1.bf16.msra.mxu0 %v1914
  %2581 = vmatprep.subr.bf16.mxu0 %v1918
  %2582 = vmatpush1.bf16.msra.mxu0 %v1917
  %2583 = vmatprep.subr.bf16.mxu0 %v1921
  %2584 = vmatpush1.bf16.msra.mxu0 %v1920
  %2585 = vmatprep.subr.bf16.mxu0 %v1924
  %2586 = vmatpush1.bf16.msra.mxu0 %v1923
  %2587 = vmatprep.subr.bf16.mxu0 %v1927
  %2588 = vmatpush1.bf16.msra.mxu0 %v1926
  %2589 = vmatprep.subr.bf16.mxu0 %v1930
  %2590 = vmatpush1.bf16.msra.mxu0 %v1929
  %2591 = vmatprep.mubr.bf16.mxu0 %v567
  %2592 = vmatmul.mubr.bf16.gmra.mrb[0].mxu0 %v566
  %v2593 = vpop.f32.mrb[0].mxu0
  %v2594 = vadd.f32 %v2541, %v2593
  %v2595 = vpop.f32.mrb[0].mxu0
  %v2596 = vadd.f32 %v2543, %v2595
  %v2597 = vpop.f32.mrb[0].mxu0
  %v2598 = vadd.f32 %v2545, %v2597
  %v2599 = vpop.f32.mrb[0].mxu0
  %v2600 = vadd.f32 %v2547, %v2599
  %2601 = vmatprep.mubr.bf16.mxu0 %v581
  %2602 = vmatmul.mubr.bf16.gmra.mrb[0].mxu0 %v580
  %v2603 = vpop.f32.mrb[0].mxu0
  %v2604 = vadd.f32 %v2551, %v2603
  %v2605 = vpop.f32.mrb[0].mxu0
  %v2606 = vadd.f32 %v2553, %v2605
  %v2607 = vpop.f32.mrb[0].mxu0
  %v2608 = vadd.f32 %v2555, %v2607
  %v2609 = vpop.f32.mrb[0].mxu0
  %v2610 = vadd.f32 %v2557, %v2609
  %2611 = vdwg.mxu0
  %2612 = vmatprep.subr.bf16.mxu0 %v1933
  %2613 = vmatpush1.bf16.msra.mxu0 %v1932
  %2614 = vmatprep.subr.bf16.mxu0 %v1936
  %2615 = vmatpush1.bf16.msra.mxu0 %v1935
  %2616 = vmatprep.subr.bf16.mxu0 %v1939
  %2617 = vmatpush1.bf16.msra.mxu0 %v1938
  %2618 = vmatprep.subr.bf16.mxu0 %v1942
  %2619 = vmatpush1.bf16.msra.mxu0 %v1941
  %2620 = vmatprep.subr.bf16.mxu0 %v1945
  %2621 = vmatpush1.bf16.msra.mxu0 %v1944
  %2622 = vmatprep.subr.bf16.mxu0 %v1948
  %2623 = vmatpush1.bf16.msra.mxu0 %v1947
  %2624 = vmatprep.subr.bf16.mxu0 %v1951
  %2625 = vmatpush1.bf16.msra.mxu0 %v1950
  %2626 = vmatprep.subr.bf16.mxu0 %v1954
  %2627 = vmatpush1.bf16.msra.mxu0 %v1953
  %2628 = vmatprep.subr.bf16.mxu0 %v1957
  %2629 = vmatpush1.bf16.msra.mxu0 %v1956
  %2630 = vmatprep.subr.bf16.mxu0 %v1960
  %2631 = vmatpush1.bf16.msra.mxu0 %v1959
  %2632 = vmatprep.subr.bf16.mxu0 %v1963
  %2633 = vmatpush1.bf16.msra.mxu0 %v1962
  %2634 = vmatprep.subr.bf16.mxu0 %v1966
  %2635 = vmatpush1.bf16.msra.mxu0 %v1965
  %2636 = vmatprep.subr.bf16.mxu0 %v1969
  %2637 = vmatpush1.bf16.msra.mxu0 %v1968
  %2638 = vmatprep.subr.bf16.mxu0 %v1972
  %2639 = vmatpush1.bf16.msra.mxu0 %v1971
  %2640 = vmatprep.subr.bf16.mxu0 %v1975
  %2641 = vmatpush1.bf16.msra.mxu0 %v1974
  %2642 = vmatprep.subr.bf16.mxu0 %v1978
  %2643 = vmatpush1.bf16.msra.mxu0 %v1977
  %2644 = vmatprep.mubr.bf16.mxu0 %v569
  %2645 = vmatmul.mubr.bf16.gmra.mrb[0].mxu0 %v568
  %v2646 = vpop.f32.mrb[0].mxu0
  %v2647 = vadd.f32 %v2594, %v2646
  %v2648 = vpop.f32.mrb[0].mxu0
  %v2649 = vadd.f32 %v2596, %v2648
  %v2650 = vpop.f32.mrb[0].mxu0
  %v2651 = vadd.f32 %v2598, %v2650
  %v2652 = vpop.f32.mrb[0].mxu0
  %v2653 = vadd.f32 %v2600, %v2652
  %2654 = vmatprep.mubr.bf16.mxu0 %v583
  %2655 = vmatmul.mubr.bf16.gmra.mrb[0].mxu0 %v582
  %v2656 = vpop.f32.mrb[0].mxu0
  %v2657 = vadd.f32 %v2604, %v2656
  %v2658 = vpop.f32.mrb[0].mxu0
  %v2659 = vadd.f32 %v2606, %v2658
  %v2660 = vpop.f32.mrb[0].mxu0
  %v2661 = vadd.f32 %v2608, %v2660
  %v2662 = vpop.f32.mrb[0].mxu0
  %v2663 = vadd.f32 %v2610, %v2662
  %2664 = vdwg.mxu0
  %2665 = vmatprep.subr.bf16.mxu0 %v1981
  %2666 = vmatpush1.bf16.msra.mxu0 %v1980
  %2667 = vmatprep.subr.bf16.mxu0 %v1984
  %2668 = vmatpush1.bf16.msra.mxu0 %v1983
  %2669 = vmatprep.subr.bf16.mxu0 %v1987
  %2670 = vmatpush1.bf16.msra.mxu0 %v1986
  %2671 = vmatprep.subr.bf16.mxu0 %v1990
  %2672 = vmatpush1.bf16.msra.mxu0 %v1989
  %2673 = vmatprep.subr.bf16.mxu0 %v1993
  %2674 = vmatpush1.bf16.msra.mxu0 %v1992
  %2675 = vmatprep.subr.bf16.mxu0 %v1996
  %2676 = vmatpush1.bf16.msra.mxu0 %v1995
  %2677 = vmatprep.subr.bf16.mxu0 %v1999
  %2678 = vmatpush1.bf16.msra.mxu0 %v1998
  %2679 = vmatprep.subr.bf16.mxu0 %v2002
  %2680 = vmatpush1.bf16.msra.mxu0 %v2001
  %2681 = vmatprep.subr.bf16.mxu0 %v2005
  %2682 = vmatpush1.bf16.msra.mxu0 %v2004
  %2683 = vmatprep.subr.bf16.mxu0 %v2008
  %2684 = vmatpush1.bf16.msra.mxu0 %v2007
  %2685 = vmatprep.subr.bf16.mxu0 %v2011
  %2686 = vmatpush1.bf16.msra.mxu0 %v2010
  %2687 = vmatprep.subr.bf16.mxu0 %v2014
  %2688 = vmatpush1.bf16.msra.mxu0 %v2013
  %2689 = vmatprep.subr.bf16.mxu0 0
  %2690 = vmatpush1.bf16.msra.mxu0 0
  %2691 = vmatprep.subr.bf16.mxu0 0
  %2692 = vmatpush1.bf16.msra.mxu0 0
  %2693 = vmatprep.subr.bf16.mxu0 0
  %2694 = vmatpush1.bf16.msra.mxu0 0
  %2695 = vmatprep.subr.bf16.mxu0 0
  %2696 = vmatpush1.bf16.msra.mxu0 0
  %2697 = vmatprep.mubr.bf16.mxu0 %v2342
  %2698 = vmatmul.mubr.bf16.gmra.mrb[0].mxu0 %v570
  %v2699 = vpop.f32.mrb[0].mxu0
  %v2700 = vadd.f32 %v2647, %v2699
  %v2701 = vpop.f32.mrb[0].mxu0
  %v2702 = vadd.f32 %v2649, %v2701
  %v2703 = vpop.f32.mrb[0].mxu0
  %v2704 = vadd.f32 %v2651, %v2703
  %v2705 = vpop.f32.mrb[0].mxu0
  %v2706 = vadd.f32 %v2653, %v2705
  %2707 = vmatprep.mubr.bf16.mxu0 %v2345
  %2708 = vmatmul.mubr.bf16.gmra.mrb[0].mxu0 %v584
  %v2709 = vpop.f32.mrb[0].mxu0
  %v2710 = vadd.f32 %v2657, %v2709
  %v2711 = vpop.f32.mrb[0].mxu0
  %v2712 = vadd.f32 %v2659, %v2711
  %v2713 = vpop.f32.mrb[0].mxu0
  %v2714 = vadd.f32 %v2661, %v2713
  %v2715 = vpop.f32.mrb[0].mxu0
  %v2716 = vadd.f32 %v2663, %v2715
  %2717 = vdwg.mxu0
  %2718 = vmatprep.subr.bf16.mxu0 0
  %2719 = vmatpush1.bf16.msra.mxu0 %v1694
  %2720 = vmatprep.subr.bf16.mxu0 0
  %2721 = vmatpush1.bf16.msra.mxu0 %v1697
  %2722 = vmatprep.subr.bf16.mxu0 0
  %2723 = vmatpush1.bf16.msra.mxu0 %v1700
  %2724 = vmatprep.subr.bf16.mxu0 0
  %2725 = vmatpush1.bf16.msra.mxu0 %v1703
  %2726 = vmatprep.subr.bf16.mxu0 0
  %2727 = vmatpush1.bf16.msra.mxu0 %v1706
  %2728 = vmatprep.subr.bf16.mxu0 0
  %2729 = vmatpush1.bf16.msra.mxu0 %v1709
  %2730 = vmatprep.subr.bf16.mxu0 0
  %2731 = vmatpush1.bf16.msra.mxu0 %v1712
  %2732 = vmatprep.subr.bf16.mxu0 0
  %2733 = vmatpush1.bf16.msra.mxu0 %v1715
  %2734 = vmatprep.subr.bf16.mxu0 0
  %2735 = vmatpush1.bf16.msra.mxu0 %v1718
  %2736 = vmatprep.subr.bf16.mxu0 0
  %2737 = vmatpush1.bf16.msra.mxu0 %v1721
  %2738 = vmatprep.subr.bf16.mxu0 0
  %2739 = vmatpush1.bf16.msra.mxu0 %v1724
  %2740 = vmatprep.subr.bf16.mxu0 0
  %2741 = vmatpush1.bf16.msra.mxu0 %v1727
  %2742 = vmatprep.subr.bf16.mxu0 0
  %2743 = vmatpush1.bf16.msra.mxu0 %v1730
  %2744 = vmatprep.subr.bf16.mxu0 0
  %2745 = vmatpush1.bf16.msra.mxu0 %v1733
  %2746 = vmatprep.subr.bf16.mxu0 0
  %2747 = vmatpush1.bf16.msra.mxu0 %v1736
  %2748 = vmatprep.subr.bf16.mxu0 0
  %2749 = vmatpush1.bf16.msra.mxu0 %v1739
  %2750 = vmatprep.mubr.bf16.mxu0 %v559
  %2751 = vmatmul.mubr.bf16.gmra.mrb[0].mxu0 %v558
  %v2752 = vpop.f32.mrb[0].mxu0
  %v2753 = vadd.f32 0.0, %v2752
  %v2754 = vpop.f32.mrb[0].mxu0
  %v2755 = vpop.f32.mrb[0].mxu0
  %v2756 = vadd.f32 0.0, %v2755
  %v2757 = vpop.f32.mrb[0].mxu0
  %2758 = vmatprep.mubr.bf16.mxu0 %v573
  %2759 = vmatmul.mubr.bf16.gmra.mrb[0].mxu0 %v572
  %v2760 = vpop.f32.mrb[0].mxu0
  %v2761 = vadd.f32 0.0, %v2760
  %v2762 = vpop.f32.mrb[0].mxu0
  %v2763 = vpop.f32.mrb[0].mxu0
  %v2764 = vadd.f32 0.0, %v2763
  %v2765 = vpop.f32.mrb[0].mxu0
  %2766 = vdwg.mxu0
  %2767 = vmatprep.subr.bf16.mxu0 0
  %2768 = vmatpush1.bf16.msra.mxu0 %v1742
  %2769 = vmatprep.subr.bf16.mxu0 0
  %2770 = vmatpush1.bf16.msra.mxu0 %v1745
  %2771 = vmatprep.subr.bf16.mxu0 0
  %2772 = vmatpush1.bf16.msra.mxu0 %v1748
  %2773 = vmatprep.subr.bf16.mxu0 0
  %2774 = vmatpush1.bf16.msra.mxu0 %v1751
  %2775 = vmatprep.subr.bf16.mxu0 0
  %2776 = vmatpush1.bf16.msra.mxu0 %v1754
  %2777 = vmatprep.subr.bf16.mxu0 0
  %2778 = vmatpush1.bf16.msra.mxu0 %v1757
  %2779 = vmatprep.subr.bf16.mxu0 0
  %2780 = vmatpush1.bf16.msra.mxu0 %v1760
  %2781 = vmatprep.subr.bf16.mxu0 0
  %2782 = vmatpush1.bf16.msra.mxu0 %v1763
  %2783 = vmatprep.subr.bf16.mxu0 0
  %2784 = vmatpush1.bf16.msra.mxu0 %v1766
  %2785 = vmatprep.subr.bf16.mxu0 0
  %2786 = vmatpush1.bf16.msra.mxu0 %v1769
  %2787 = vmatprep.subr.bf16.mxu0 0
  %2788 = vmatpush1.bf16.msra.mxu0 %v1772
  %2789 = vmatprep.subr.bf16.mxu0 0
  %2790 = vmatpush1.bf16.msra.mxu0 %v1775
  %2791 = vmatprep.subr.bf16.mxu0 0
  %2792 = vmatpush1.bf16.msra.mxu0 %v1778
  %2793 = vmatprep.subr.bf16.mxu0 0
  %2794 = vmatpush1.bf16.msra.mxu0 %v1781
  %2795 = vmatprep.subr.bf16.mxu0 0
  %2796 = vmatpush1.bf16.msra.mxu0 %v1784
  %2797 = vmatprep.subr.bf16.mxu0 0
  %2798 = vmatpush1.bf16.msra.mxu0 %v1787
  %2799 = vmatprep.mubr.bf16.mxu0 %v561
  %2800 = vmatmul.mubr.bf16.gmra.mrb[0].mxu0 %v560
  %v2801 = vpop.f32.mrb[0].mxu0
  %v2802 = vadd.f32 %v2753, %v2801
  %v2803 = vpop.f32.mrb[0].mxu0
  %v2804 = vpop.f32.mrb[0].mxu0
  %v2805 = vadd.f32 %v2756, %v2804
  %v2806 = vpop.f32.mrb[0].mxu0
  %2807 = vmatprep.mubr.bf16.mxu0 %v575
  %2808 = vmatmul.mubr.bf16.gmra.mrb[0].mxu0 %v574
  %v2809 = vpop.f32.mrb[0].mxu0
  %v2810 = vadd.f32 %v2761, %v2809
  %v2811 = vpop.f32.mrb[0].mxu0
  %v2812 = vpop.f32.mrb[0].mxu0
  %v2813 = vadd.f32 %v2764, %v2812
  %v2814 = vpop.f32.mrb[0].mxu0
  %2815 = vdwg.mxu0
  %2816 = vmatprep.subr.bf16.mxu0 0
  %2817 = vmatpush1.bf16.msra.mxu0 %v1790
  %2818 = vmatprep.subr.bf16.mxu0 0
  %2819 = vmatpush1.bf16.msra.mxu0 %v1793
  %2820 = vmatprep.subr.bf16.mxu0 0
  %2821 = vmatpush1.bf16.msra.mxu0 %v1796
  %2822 = vmatprep.subr.bf16.mxu0 0
  %2823 = vmatpush1.bf16.msra.mxu0 %v1799
  %2824 = vmatprep.subr.bf16.mxu0 0
  %2825 = vmatpush1.bf16.msra.mxu0 %v1802
  %2826 = vmatprep.subr.bf16.mxu0 0
  %2827 = vmatpush1.bf16.msra.mxu0 %v1805
  %2828 = vmatprep.subr.bf16.mxu0 0
  %2829 = vmatpush1.bf16.msra.mxu0 %v1808
  %2830 = vmatprep.subr.bf16.mxu0 0
  %2831 = vmatpush1.bf16.msra.mxu0 %v1811
  %2832 = vmatprep.subr.bf16.mxu0 0
  %2833 = vmatpush1.bf16.msra.mxu0 %v1814
  %2834 = vmatprep.subr.bf16.mxu0 0
  %2835 = vmatpush1.bf16.msra.mxu0 %v1817
  %2836 = vmatprep.subr.bf16.mxu0 0
  %2837 = vmatpush1.bf16.msra.mxu0 %v1820
  %2838 = vmatprep.subr.bf16.mxu0 0
  %2839 = vmatpush1.bf16.msra.mxu0 %v1823
  %2840 = vmatprep.subr.bf16.mxu0 0
  %2841 = vmatpush1.bf16.msra.mxu0 %v1826
  %2842 = vmatprep.subr.bf16.mxu0 0
  %2843 = vmatpush1.bf16.msra.mxu0 %v1829
  %2844 = vmatprep.subr.bf16.mxu0 0
  %2845 = vmatpush1.bf16.msra.mxu0 %v1832
  %2846 = vmatprep.subr.bf16.mxu0 0
  %2847 = vmatpush1.bf16.msra.mxu0 %v1835
  %2848 = vmatprep.mubr.bf16.mxu0 %v563
  %2849 = vmatmul.mubr.bf16.gmra.mrb[0].mxu0 %v562
  %v2850 = vpop.f32.mrb[0].mxu0
  %v2851 = vadd.f32 %v2802, %v2850
  %v2852 = vpop.f32.mrb[0].mxu0
  %v2853 = vpop.f32.mrb[0].mxu0
  %v2854 = vadd.f32 %v2805, %v2853
  %v2855 = vpop.f32.mrb[0].mxu0
  %2856 = vmatprep.mubr.bf16.mxu0 %v577
  %2857 = vmatmul.mubr.bf16.gmra.mrb[0].mxu0 %v576
  %v2858 = vpop.f32.mrb[0].mxu0
  %v2859 = vadd.f32 %v2810, %v2858
  %v2860 = vpop.f32.mrb[0].mxu0
  %v2861 = vpop.f32.mrb[0].mxu0
  %v2862 = vadd.f32 %v2813, %v2861
  %v2863 = vpop.f32.mrb[0].mxu0
  %2864 = vdwg.mxu0
  %2865 = vmatprep.subr.bf16.mxu0 0
  %2866 = vmatpush1.bf16.msra.mxu0 %v1838
  %2867 = vmatprep.subr.bf16.mxu0 0
  %2868 = vmatpush1.bf16.msra.mxu0 %v1841
  %2869 = vmatprep.subr.bf16.mxu0 0
  %2870 = vmatpush1.bf16.msra.mxu0 %v1844
  %2871 = vmatprep.subr.bf16.mxu0 0
  %2872 = vmatpush1.bf16.msra.mxu0 %v1847
  %2873 = vmatprep.subr.bf16.mxu0 0
  %2874 = vmatpush1.bf16.msra.mxu0 %v1850
  %2875 = vmatprep.subr.bf16.mxu0 0
  %2876 = vmatpush1.bf16.msra.mxu0 %v1853
  %2877 = vmatprep.subr.bf16.mxu0 0
  %2878 = vmatpush1.bf16.msra.mxu0 %v1856
  %2879 = vmatprep.subr.bf16.mxu0 0
  %2880 = vmatpush1.bf16.msra.mxu0 %v1859
  %2881 = vmatprep.subr.bf16.mxu0 0
  %2882 = vmatpush1.bf16.msra.mxu0 %v1862
  %2883 = vmatprep.subr.bf16.mxu0 0
  %2884 = vmatpush1.bf16.msra.mxu0 %v1865
  %2885 = vmatprep.subr.bf16.mxu0 0
  %2886 = vmatpush1.bf16.msra.mxu0 %v1868
  %2887 = vmatprep.subr.bf16.mxu0 0
  %2888 = vmatpush1.bf16.msra.mxu0 %v1871
  %2889 = vmatprep.subr.bf16.mxu0 0
  %2890 = vmatpush1.bf16.msra.mxu0 %v1874
  %2891 = vmatprep.subr.bf16.mxu0 0
  %2892 = vmatpush1.bf16.msra.mxu0 %v1877
  %2893 = vmatprep.subr.bf16.mxu0 0
  %2894 = vmatpush1.bf16.msra.mxu0 %v1880
  %2895 = vmatprep.subr.bf16.mxu0 0
  %2896 = vmatpush1.bf16.msra.mxu0 %v1883
  %2897 = vmatprep.mubr.bf16.mxu0 %v565
  %2898 = vmatmul.mubr.bf16.gmra.mrb[0].mxu0 %v564
  %v2899 = vpop.f32.mrb[0].mxu0
  %v2900 = vadd.f32 %v2851, %v2899
  %v2901 = vpop.f32.mrb[0].mxu0
  %v2902 = vpop.f32.mrb[0].mxu0
  %v2903 = vadd.f32 %v2854, %v2902
  %v2904 = vpop.f32.mrb[0].mxu0
  %2905 = vmatprep.mubr.bf16.mxu0 %v579
  %2906 = vmatmul.mubr.bf16.gmra.mrb[0].mxu0 %v578
  %v2907 = vpop.f32.mrb[0].mxu0
  %v2908 = vadd.f32 %v2859, %v2907
  %v2909 = vpop.f32.mrb[0].mxu0
  %v2910 = vpop.f32.mrb[0].mxu0
  %v2911 = vadd.f32 %v2862, %v2910
  %v2912 = vpop.f32.mrb[0].mxu0
  %2913 = vdwg.mxu0
  %2914 = vmatprep.subr.bf16.mxu0 0
  %2915 = vmatpush1.bf16.msra.mxu0 %v1886
  %2916 = vmatprep.subr.bf16.mxu0 0
  %2917 = vmatpush1.bf16.msra.mxu0 %v1889
  %2918 = vmatprep.subr.bf16.mxu0 0
  %2919 = vmatpush1.bf16.msra.mxu0 %v1892
  %2920 = vmatprep.subr.bf16.mxu0 0
  %2921 = vmatpush1.bf16.msra.mxu0 %v1895
  %2922 = vmatprep.subr.bf16.mxu0 0
  %2923 = vmatpush1.bf16.msra.mxu0 %v1898
  %2924 = vmatprep.subr.bf16.mxu0 0
  %2925 = vmatpush1.bf16.msra.mxu0 %v1901
  %2926 = vmatprep.subr.bf16.mxu0 0
  %2927 = vmatpush1.bf16.msra.mxu0 %v1904
  %2928 = vmatprep.subr.bf16.mxu0 0
  %2929 = vmatpush1.bf16.msra.mxu0 %v1907
  %2930 = vmatprep.subr.bf16.mxu0 0
  %2931 = vmatpush1.bf16.msra.mxu0 %v1910
  %2932 = vmatprep.subr.bf16.mxu0 0
  %2933 = vmatpush1.bf16.msra.mxu0 %v1913
  %2934 = vmatprep.subr.bf16.mxu0 0
  %2935 = vmatpush1.bf16.msra.mxu0 %v1916
  %2936 = vmatprep.subr.bf16.mxu0 0
  %2937 = vmatpush1.bf16.msra.mxu0 %v1919
  %2938 = vmatprep.subr.bf16.mxu0 0
  %2939 = vmatpush1.bf16.msra.mxu0 %v1922
  %2940 = vmatprep.subr.bf16.mxu0 0
  %2941 = vmatpush1.bf16.msra.mxu0 %v1925
  %2942 = vmatprep.subr.bf16.mxu0 0
  %2943 = vmatpush1.bf16.msra.mxu0 %v1928
  %2944 = vmatprep.subr.bf16.mxu0 0
  %2945 = vmatpush1.bf16.msra.mxu0 %v1931
  %2946 = vmatprep.mubr.bf16.mxu0 %v567
  %2947 = vmatmul.mubr.bf16.gmra.mrb[0].mxu0 %v566
  %v2948 = vpop.f32.mrb[0].mxu0
  %v2949 = vadd.f32 %v2900, %v2948
  %v2950 = vpop.f32.mrb[0].mxu0
  %v2951 = vpop.f32.mrb[0].mxu0
  %v2952 = vadd.f32 %v2903, %v2951
  %v2953 = vpop.f32.mrb[0].mxu0
  %2954 = vmatprep.mubr.bf16.mxu0 %v581
  %2955 = vmatmul.mubr.bf16.gmra.mrb[0].mxu0 %v580
  %v2956 = vpop.f32.mrb[0].mxu0
  %v2957 = vadd.f32 %v2908, %v2956
  %v2958 = vpop.f32.mrb[0].mxu0
  %v2959 = vpop.f32.mrb[0].mxu0
  %v2960 = vadd.f32 %v2911, %v2959
  %v2961 = vpop.f32.mrb[0].mxu0
  %2962 = vdwg.mxu0
  %2963 = vmatprep.subr.bf16.mxu0 0
  %2964 = vmatpush1.bf16.msra.mxu0 %v1934
  %2965 = vmatprep.subr.bf16.mxu0 0
  %2966 = vmatpush1.bf16.msra.mxu0 %v1937
  %2967 = vmatprep.subr.bf16.mxu0 0
  %2968 = vmatpush1.bf16.msra.mxu0 %v1940
  %2969 = vmatprep.subr.bf16.mxu0 0
  %2970 = vmatpush1.bf16.msra.mxu0 %v1943
  %2971 = vmatprep.subr.bf16.mxu0 0
  %2972 = vmatpush1.bf16.msra.mxu0 %v1946
  %2973 = vmatprep.subr.bf16.mxu0 0
  %2974 = vmatpush1.bf16.msra.mxu0 %v1949
  %2975 = vmatprep.subr.bf16.mxu0 0
  %2976 = vmatpush1.bf16.msra.mxu0 %v1952
  %2977 = vmatprep.subr.bf16.mxu0 0
  %2978 = vmatpush1.bf16.msra.mxu0 %v1955
  %2979 = vmatprep.subr.bf16.mxu0 0
  %2980 = vmatpush1.bf16.msra.mxu0 %v1958
  %2981 = vmatprep.subr.bf16.mxu0 0
  %2982 = vmatpush1.bf16.msra.mxu0 %v1961
  %2983 = vmatprep.subr.bf16.mxu0 0
  %2984 = vmatpush1.bf16.msra.mxu0 %v1964
  %2985 = vmatprep.subr.bf16.mxu0 0
  %2986 = vmatpush1.bf16.msra.mxu0 %v1967
  %2987 = vmatprep.subr.bf16.mxu0 0
  %2988 = vmatpush1.bf16.msra.mxu0 %v1970
  %2989 = vmatprep.subr.bf16.mxu0 0
  %2990 = vmatpush1.bf16.msra.mxu0 %v1973
  %2991 = vmatprep.subr.bf16.mxu0 0
  %2992 = vmatpush1.bf16.msra.mxu0 %v1976
  %2993 = vmatprep.subr.bf16.mxu0 0
  %2994 = vmatpush1.bf16.msra.mxu0 %v1979
  %2995 = vmatprep.mubr.bf16.mxu0 %v569
  %2996 = vmatmul.mubr.bf16.gmra.mrb[0].mxu0 %v568
  %v2997 = vpop.f32.mrb[0].mxu0
  %v2998 = vadd.f32 %v2949, %v2997
  %v2999 = vpop.f32.mrb[0].mxu0
  %v3000 = vpop.f32.mrb[0].mxu0
  %v3001 = vadd.f32 %v2952, %v3000
  %v3002 = vpop.f32.mrb[0].mxu0
  %3003 = vmatprep.mubr.bf16.mxu0 %v583
  %3004 = vmatmul.mubr.bf16.gmra.mrb[0].mxu0 %v582
  %v3005 = vpop.f32.mrb[0].mxu0
  %v3006 = vadd.f32 %v2957, %v3005
  %v3007 = vpop.f32.mrb[0].mxu0
  %v3008 = vpop.f32.mrb[0].mxu0
  %v3009 = vadd.f32 %v2960, %v3008
  %v3010 = vpop.f32.mrb[0].mxu0
  %3011 = vdwg.mxu0
  %3012 = vmatprep.subr.bf16.mxu0 0
  %3013 = vmatpush1.bf16.msra.mxu0 %v1982
  %3014 = vmatprep.subr.bf16.mxu0 0
  %3015 = vmatpush1.bf16.msra.mxu0 %v1985
  %3016 = vmatprep.subr.bf16.mxu0 0
  %3017 = vmatpush1.bf16.msra.mxu0 %v1988
  %3018 = vmatprep.subr.bf16.mxu0 0
  %3019 = vmatpush1.bf16.msra.mxu0 %v1991
  %3020 = vmatprep.subr.bf16.mxu0 0
  %3021 = vmatpush1.bf16.msra.mxu0 %v1994
  %3022 = vmatprep.subr.bf16.mxu0 0
  %3023 = vmatpush1.bf16.msra.mxu0 %v1997
  %3024 = vmatprep.subr.bf16.mxu0 0
  %3025 = vmatpush1.bf16.msra.mxu0 %v2000
  %3026 = vmatprep.subr.bf16.mxu0 0
  %3027 = vmatpush1.bf16.msra.mxu0 %v2003
  %3028 = vmatprep.subr.bf16.mxu0 0
  %3029 = vmatpush1.bf16.msra.mxu0 %v2006
  %3030 = vmatprep.subr.bf16.mxu0 0
  %3031 = vmatpush1.bf16.msra.mxu0 %v2009
  %3032 = vmatprep.subr.bf16.mxu0 0
  %3033 = vmatpush1.bf16.msra.mxu0 %v2012
  %3034 = vmatprep.subr.bf16.mxu0 0
  %3035 = vmatpush1.bf16.msra.mxu0 %v2015
  %3036 = vmatprep.subr.bf16.mxu0 0
  %3037 = vmatpush1.bf16.msra.mxu0 0
  %3038 = vmatprep.subr.bf16.mxu0 0
  %3039 = vmatpush1.bf16.msra.mxu0 0
  %3040 = vmatprep.subr.bf16.mxu0 0
  %3041 = vmatpush1.bf16.msra.mxu0 0
  %3042 = vmatprep.subr.bf16.mxu0 0
  %3043 = vmatpush1.bf16.msra.mxu0 0
  %3044 = vmatprep.mubr.bf16.mxu0 %v2342
  %3045 = vmatmul.mubr.bf16.gmra.mrb[0].mxu0 %v570
  %v3046 = vpop.f32.mrb[0].mxu0
  %v3047 = vadd.f32 %v2998, %v3046
  %v3048 = vpop.f32.mrb[0].mxu0
  %v3049 = vpop.f32.mrb[0].mxu0
  %v3050 = vadd.f32 %v3001, %v3049
  %v3051 = vpop.f32.mrb[0].mxu0
  %3052 = vmatprep.mubr.bf16.mxu0 %v2345
  %3053 = vmatmul.mubr.bf16.gmra.mrb[0].mxu0 %v584
  %v3054 = vpop.f32.mrb[0].mxu0
  %v3055 = vadd.f32 %v3006, %v3054
  %v3056 = vpop.f32.mrb[0].mxu0
  %v3057 = vpop.f32.mrb[0].mxu0
  %v3058 = vadd.f32 %v3009, %v3057
  %v3059 = vpop.f32.mrb[0].mxu0
  %3060 = vdwg.mxu0
  %3061 = vst [vmem:[%s2] sm:$0xff] %v2700
  %3062 = vst [vmem:[%s2 + $0x8] sm:$0xff] %v2702
  %3063 = vst [vmem:[%s2 + $0x10] sm:$0xff] %v3047
  %3064 = vst [vmem:[%s2 + $0x18] sm:$0xff] %v2704
  %3065 = vst [vmem:[%s2 + $0x20] sm:$0xff] %v2706
  %3066 = vst [vmem:[%s2 + $0x28] sm:$0xff] %v3050
  %3067 = vst [vmem:[%s2 + $0x30] sm:$0xff] %v2710
  %3068 = vst [vmem:[%s2 + $0x38] sm:$0xff] %v2712
  %3069 = vst [vmem:[%s2 + $0x40] sm:$0xff] %v3055
  %3070 = vst [vmem:[%s2 + $0x48] sm:$0xff] %v2714
  %3071 = vst [vmem:[%s2 + $0x50] sm:$0xff] %v2716
  %3072 = vst [vmem:[%s2 + $0x58] sm:$0xff] %v3058
  %v3073 = vadd.f32 %v2700, %v2704
  %v3074 = vadd.f32 %v3073, %v2710
  %v3075 = vadd.f32 %v3074, %v2714
  %v3076 = vrot.slane %v3075, 4
  %v3077 = vadd.f32 %v3075, %v3076
  %v3078 = vrot.slane %v3077, 2
  %v3079 = vadd.f32 %v3077, %v3078
  %v3080 = vrot.slane %v3079, 1
  %v3081 = vadd.f32 %v3079, %v3080
  %v3082 = vadd.f32 %v2702, %v2706
  %v3083 = vadd.f32 %v3082, %v2712
  %v3084 = vadd.f32 %v3083, %v2716
  %v3085 = vrot.slane %v3084, 4
  %v3086 = vadd.f32 %v3084, %v3085
  %v3087 = vrot.slane %v3086, 2
  %v3088 = vadd.f32 %v3086, %v3087
  %v3089 = vrot.slane %v3088, 1
  %v3090 = vadd.f32 %v3088, %v3089
  %v3091 = vadd.f32 %v3047, %v3050
  %v3092 = vadd.f32 %v3091, %v3055
  %v3093 = vadd.f32 %v3092, %v3058
  %v3094 = vrot.slane %v3093, 4
  %v3095 = vadd.f32 %v3093, %v3094
  %v3096 = vrot.slane %v3095, 2
  %v3097 = vadd.f32 %v3095, %v3096
  %v3098 = vrot.slane %v3097, 1
  %v3099 = vadd.f32 %v3097, %v3098
  %v3103 = vcombine.low %v3081, %v3090
  %v3105 = vunpack.c.l.s4 1966171168
  %v3106 = vunpack.c.0.s8 %v3105
  %v3107 = vlaneseq
  %v3108 = vshrl.u32 %v3107, 7
  %v3109 = vsub.s32 %v3106, %v3108
  %v3110 = vrot.slane %v3103, %v3109
  %v3112 = vunpack.c.l.s4 1966171168
  %v3113 = vunpack.c.0.s8 %v3112
  %v3114 = vlaneseq
  %v3115 = vshrl.u32 %v3114, 7
  %v3116 = vsub.s32 %v3113, %v3115
  %v3117 = vrot.slane %v3099, %v3116
  %v3118 = vcombine.low %v3110, %v3117
  %v3120 = vunpack.c.l.s4 1966171168
  %v3121 = vunpack.c.0.s8 %v3120
  %v3122 = vlaneseq
  %v3123 = vshrl.u32 %v3122, 7
  %v3124 = vsub.s32 %v3121, %v3123
  %v3125 = vrot.slane %v3118, %v3124
  %v3127 = vlaneseq
  %vm3128 = vcmp.ge.s32.totalorder %v3127, 0
  %vm3129 = vcmp.lt.s32.totalorder %v3127, 384
  %vm3130 = vmand %vm3128, %vm3129
  %3131 = vst.msk [vmem:[%s3] ss:$2 sm:$0x7] %vm3130, %v3125
  %v3132 = vmul.f32 %v2700, %v2700
  %v3133 = vmul.f32 %v2702, %v2702
  %v3134 = vmul.f32 %v3047, %v3047
  %v3135 = vmul.f32 %v2704, %v2704
  %v3136 = vmul.f32 %v2706, %v2706
  %v3137 = vmul.f32 %v3050, %v3050
  %v3138 = vmul.f32 %v2710, %v2710
  %v3139 = vmul.f32 %v2712, %v2712
  %v3140 = vmul.f32 %v3055, %v3055
  %v3141 = vmul.f32 %v2714, %v2714
  %v3142 = vmul.f32 %v2716, %v2716
  %v3143 = vmul.f32 %v3058, %v3058
  %v3144 = vadd.f32 %v3132, %v3135
  %v3145 = vadd.f32 %v3144, %v3138
  %v3146 = vadd.f32 %v3145, %v3141
  %v3147 = vrot.slane %v3146, 4
  %v3148 = vadd.f32 %v3146, %v3147
  %v3149 = vrot.slane %v3148, 2
  %v3150 = vadd.f32 %v3148, %v3149
  %v3151 = vrot.slane %v3150, 1
  %v3152 = vadd.f32 %v3150, %v3151
  %v3153 = vadd.f32 %v3133, %v3136
  %v3154 = vadd.f32 %v3153, %v3139
  %v3155 = vadd.f32 %v3154, %v3142
  %v3156 = vrot.slane %v3155, 4
  %v3157 = vadd.f32 %v3155, %v3156
  %v3158 = vrot.slane %v3157, 2
  %v3159 = vadd.f32 %v3157, %v3158
  %v3160 = vrot.slane %v3159, 1
  %v3161 = vadd.f32 %v3159, %v3160
  %v3162 = vadd.f32 %v3134, %v3137
  %v3163 = vadd.f32 %v3162, %v3140
  %v3164 = vadd.f32 %v3163, %v3143
  %v3165 = vrot.slane %v3164, 4
  %v3166 = vadd.f32 %v3164, %v3165
  %v3167 = vrot.slane %v3166, 2
  %v3168 = vadd.f32 %v3166, %v3167
  %v3169 = vrot.slane %v3168, 1
  %v3170 = vadd.f32 %v3168, %v3169
  %v3174 = vcombine.low %v3152, %v3161
  %v3176 = vunpack.c.l.s4 1966171168
  %v3177 = vunpack.c.0.s8 %v3176
  %v3178 = vlaneseq
  %v3179 = vshrl.u32 %v3178, 7
  %v3180 = vsub.s32 %v3177, %v3179
  %v3181 = vrot.slane %v3174, %v3180
  %v3183 = vunpack.c.l.s4 1966171168
  %v3184 = vunpack.c.0.s8 %v3183
  %v3185 = vlaneseq
  %v3186 = vshrl.u32 %v3185, 7
  %v3187 = vsub.s32 %v3184, %v3186
  %v3188 = vrot.slane %v3170, %v3187
  %v3189 = vcombine.low %v3181, %v3188
  %v3191 = vunpack.c.l.s4 1966171168
  %v3192 = vunpack.c.0.s8 %v3191
  %v3193 = vlaneseq
  %v3194 = vshrl.u32 %v3193, 7
  %v3195 = vsub.s32 %v3192, %v3194
  %v3196 = vrot.slane %v3189, %v3195
  %s3198 = scalar_lea.vmem %s3, 1
  %3199 = vst.msk [vmem:[%s3198] ss:$2 sm:$0x7] %vm3130, %v3196
  // Predicated region
  $region10: #{inception_d_forward.15} parent=0 // pred_check
    _
  $region11: #{inception_d_forward.15} parent=0 // pred_check_branch
    %3201 = sbr.rel (0) target = $region13
  $region12: #{inception_d_forward.15} parent=0 // pred_region
    _
  $region13: #{inception_d_forward.15} parent=0 // pred_fallthru
    _
  // Predicated region
  $region14: #{inception_d_forward.15} parent=0 // pred_check
    _
  $region15: #{inception_d_forward.15} parent=0 // pred_check_branch
    %3203 = sbr.rel (0) target = $region17
  $region16: #{inception_d_forward.15} parent=0 // pred_region
    _
  $region17: #{inception_d_forward.15} parent=0 // pred_fallthru
    _
  // Predicated region
  $region18: #{inception_d_forward.15} parent=0 // pred_check
    _
  $region19: #{inception_d_forward.15} parent=0 // pred_check_branch
    %3205 = sbr.rel (0) target = $region21
  $region20: #{inception_d_forward.15} parent=0 // pred_region
    _
  $region21: #{inception_d_forward.15} parent=0 // pred_fallthru
    _
  // Predicated region
  $region22: #{inception_d_forward.15} parent=0 // pred_check
    _
  $region23: #{inception_d_forward.15} parent=0 // pred_check_branch
    %3207 = sbr.rel (0) target = $region25
  $region24: #{inception_d_forward.15} parent=0 // pred_region
    _
  $region25: #{inception_d_forward.15} parent=0 // pred_fallthru
    _

// kernel: inception_d_forward.19
$region0: #{inception_d_forward.19}
  #allocation0 [shape = 'u32[]', space=smem, size = 0x4, offset = 0x4, fixed_abs, tag = 'smem constant byte address 0x4 - core index']
  #allocation1 [shape = 'u32[144,128]{1,0:T(1,128)}', space=vmem, size = 0x12000, scoped, tag = 'internal scratch']
  %s0 = inlined_call_operand.vmem [shape: bf16[168,1344], index: 0, kind: input, shape index: {}]
  %s1 = inlined_call_operand.vmem [shape: bf16[1344,256], index: 1, kind: input, shape index: {}]
  %s2 = inlined_call_operand.vmem [shape: f32[168,256], index: 2, kind: output, shape index: {0}]
  %s3 = inlined_call_operand.vmem [shape: f32[1,2,256], index: 3, kind: output, shape index: {1}]
  %4 = xla_tuple %s2, %s3
  %s5 = sld [smem:[#allocation0]]
  $region26: #{inception_d_forward.19} parent=0
    _
  %s7 = ssub.s32 1, %s5
  %s8 = scalar_select 0, %s7, %s5
  // Predicated region
  $region2: #{inception_d_forward.19} parent=0 // pred_check
    _
  $region3: #{inception_d_forward.19} parent=0 // pred_check_branch
    %10 = sbr.rel (0) target = $region5
  $region4: #{inception_d_forward.19} parent=0 // pred_region
    _
  $region5: #{inception_d_forward.19} parent=0 // pred_fallthru
    _
  // Predicated region
  $region6: #{inception_d_forward.19} parent=0 // pred_check
    _
  $region7: #{inception_d_forward.19} parent=0 // pred_check_branch
    %12 = sbr.rel (0) target = $region9
  $region8: #{inception_d_forward.19} parent=0 // pred_region
    _
  $region9: #{inception_d_forward.19} parent=0 // pred_fallthru
    _
  %v14 = vld [vmem:[%s0] sm:$0xff]
  %v15 = vld [vmem:[%s0 + $0x8] sm:$0xff]
  %v16 = vld [vmem:[%s0 + $0x10] sm:$0xff]
  %v17 = vld [vmem:[%s0 + $0x18] sm:$0xff]
  %v18 = vld [vmem:[%s0 + $0x20] sm:$0xff]
  %v19 = vld [vmem:[%s0 + $0x28] sm:$0xf]
  %v20 = vld [vmem:[%s0 + $0x2c] sm:$0xff]
  %v21 = vld [vmem:[%s0 + $0x34] sm:$0xff]
  %v22 = vld [vmem:[%s0 + $0x3c] sm:$0xff]
  %v23 = vld [vmem:[%s0 + $0x44] sm:$0xff]
  %v24 = vld [vmem:[%s0 + $0x4c] sm:$0xff]
  %v25 = vld [vmem:[%s0 + $0x54] sm:$0xf]
  %v26 = vld [vmem:[%s0 + $0x58] sm:$0xff]
  %v27 = vld [vmem:[%s0 + $0x60] sm:$0xff]
  %v28 = vld [vmem:[%s0 + $0x68] sm:$0xff]
  %v29 = vld [vmem:[%s0 + $0x70] sm:$0xff]
  %v30 = vld [vmem:[%s0 + $0x78] sm:$0xff]
  %v31 = vld [vmem:[%s0 + $0x80] sm:$0xf]
  %v32 = vld [vmem:[%s0 + $0x84] sm:$0xff]
  %v33 = vld [vmem:[%s0 + $0x8c] sm:$0xff]
  %v34 = vld [vmem:[%s0 + $0x94] sm:$0xff]
  %v35 = vld [vmem:[%s0 + $0x9c] sm:$0xff]
  %v36 = vld [vmem:[%s0 + $0xa4] sm:$0xff]
  %v37 = vld [vmem:[%s0 + $0xac] sm:$0xf]
  %v38 = vld [vmem:[%s0 + $0xb0] sm:$0xff]
  %v39 = vld [vmem:[%s0 + $0xb8] sm:$0xff]
  %v40 = vld [vmem:[%s0 + $0xc0] sm:$0xff]
  %v41 = vld [vmem:[%s0 + $0xc8] sm:$0xff]
  %v42 = vld [vmem:[%s0 + $0xd0] sm:$0xff]
  %v43 = vld [vmem:[%s0 + $0xd8] sm:$0xf]
  %v44 = vld [vmem:[%s0 + $0xdc] sm:$0xff]
  %v45 = vld [vmem:[%s0 + $0xe4] sm:$0xff]
  %v46 = vld [vmem:[%s0 + $0xec] sm:$0xff]
  %v47 = vld [vmem:[%s0 + $0xf4] sm:$0xff]
  %v48 = vld [vmem:[%s0 + $0xfc] sm:$0xff]
  %v49 = vld [vmem:[%s0 + $0x104] sm:$0xf]
  %v50 = vld [vmem:[%s0 + $0x108] sm:$0xff]
  %v51 = vld [vmem:[%s0 + $0x110] sm:$0xff]
  %v52 = vld [vmem:[%s0 + $0x118] sm:$0xff]
  %v53 = vld [vmem:[%s0 + $0x120] sm:$0xff]
  %v54 = vld [vmem:[%s0 + $0x128] sm:$0xff]
  %v55 = vld [vmem:[%s0 + $0x130] sm:$0xf]
  %v56 = vld [vmem:[%s0 + $0x134] sm:$0xff]
  %v57 = vld [vmem:[%s0 + $0x13c] sm:$0xff]
  %v58 = vld [vmem:[%s0 + $0x144] sm:$0xff]
  %v59 = vld [vmem:[%s0 + $0x14c] sm:$0xff]
  %v60 = vld [vmem:[%s0 + $0x154] sm:$0xff]
  %v61 = vld [vmem:[%s0 + $0x15c] sm:$0xf]
  %v62 = vld [vmem:[%s0 + $0x160] sm:$0xff]
  %v63 = vld [vmem:[%s0 + $0x168] sm:$0xff]
  %v64 = vld [vmem:[%s0 + $0x170] sm:$0xff]
  %v65 = vld [vmem:[%s0 + $0x178] sm:$0xff]
  %v66 = vld [vmem:[%s0 + $0x180] sm:$0xff]
  %v67 = vld [vmem:[%s0 + $0x188] sm:$0xf]
  %v68 = vld [vmem:[%s0 + $0x18c] sm:$0xff]
  %v69 = vld [vmem:[%s0 + $0x194] sm:$0xff]
  %v70 = vld [vmem:[%s0 + $0x19c] sm:$0xff]
  %v71 = vld [vmem:[%s0 + $0x1a4] sm:$0xff]
  %v72 = vld [vmem:[%s0 + $0x1ac] sm:$0xff]
  %v73 = vld [vmem:[%s0 + $0x1b4] sm:$0xf]
  %v74 = vld [vmem:[%s0 + $0x1b8] sm:$0xff]
  %v75 = vld [vmem:[%s0 + $0x1c0] sm:$0xff]
  %v76 = vld [vmem:[%s0 + $0x1c8] sm:$0xff]
  %v77 = vld [vmem:[%s0 + $0x1d0] sm:$0xff]
  %v78 = vld [vmem:[%s0 + $0x1d8] sm:$0xff]
  %v79 = vld [vmem:[%s0 + $0x1e0] sm:$0xf]
  %v80 = vld [vmem:[%s0 + $0x1e4] sm:$0xff]
  %v81 = vld [vmem:[%s0 + $0x1ec] sm:$0xff]
  %v82 = vld [vmem:[%s0 + $0x1f4] sm:$0xff]
  %v83 = vld [vmem:[%s0 + $0x1fc] sm:$0xff]
  %v84 = vld [vmem:[%s0 + $0x204] sm:$0xff]
  %v85 = vld [vmem:[%s0 + $0x20c] sm:$0xf]
  %v86 = vld [vmem:[%s0 + $0x210] sm:$0xff]
  %v87 = vld [vmem:[%s0 + $0x218] sm:$0xff]
  %v88 = vld [vmem:[%s0 + $0x220] sm:$0xff]
  %v89 = vld [vmem:[%s0 + $0x228] sm:$0xff]
  %v90 = vld [vmem:[%s0 + $0x230] sm:$0xff]
  %v91 = vld [vmem:[%s0 + $0x238] sm:$0xf]
  %v92 = vld [vmem:[%s0 + $0x23c] sm:$0xff]
  %v93 = vld [vmem:[%s0 + $0x244] sm:$0xff]
  %v94 = vld [vmem:[%s0 + $0x24c] sm:$0xff]
  %v95 = vld [vmem:[%s0 + $0x254] sm:$0xff]
  %v96 = vld [vmem:[%s0 + $0x25c] sm:$0xff]
  %v97 = vld [vmem:[%s0 + $0x264] sm:$0xf]
  %v98 = vld [vmem:[%s0 + $0x268] sm:$0xff]
  %v99 = vld [vmem:[%s0 + $0x270] sm:$0xff]
  %v100 = vld [vmem:[%s0 + $0x278] sm:$0xff]
  %v101 = vld [vmem:[%s0 + $0x280] sm:$0xff]
  %v102 = vld [vmem:[%s0 + $0x288] sm:$0xff]
  %v103 = vld [vmem:[%s0 + $0x290] sm:$0xf]
  %v104 = vld [vmem:[%s0 + $0x294] sm:$0xff]
  %v105 = vld [vmem:[%s0 + $0x29c] sm:$0xff]
  %v106 = vld [vmem:[%s0 + $0x2a4] sm:$0xff]
  %v107 = vld [vmem:[%s0 + $0x2ac] sm:$0xff]
  %v108 = vld [vmem:[%s0 + $0x2b4] sm:$0xff]
  %v109 = vld [vmem:[%s0 + $0x2bc] sm:$0xf]
  %v110 = vld [vmem:[%s0 + $0x2c0] sm:$0xff]
  %v111 = vld [vmem:[%s0 + $0x2c8] sm:$0xff]
  %v112 = vld [vmem:[%s0 + $0x2d0] sm:$0xff]
  %v113 = vld [vmem:[%s0 + $0x2d8] sm:$0xff]
  %v114 = vld [vmem:[%s0 + $0x2e0] sm:$0xff]
  %v115 = vld [vmem:[%s0 + $0x2e8] sm:$0xf]
  %v116 = vld [vmem:[%s0 + $0x2ec] sm:$0xff]
  %v117 = vld [vmem:[%s0 + $0x2f4] sm:$0xff]
  %v118 = vld [vmem:[%s0 + $0x2fc] sm:$0xff]
  %v119 = vld [vmem:[%s0 + $0x304] sm:$0xff]
  %v120 = vld [vmem:[%s0 + $0x30c] sm:$0xff]
  %v121 = vld [vmem:[%s0 + $0x314] sm:$0xf]
  %v122 = vld [vmem:[%s0 + $0x318] sm:$0xff]
  %v123 = vld [vmem:[%s0 + $0x320] sm:$0xff]
  %v124 = vld [vmem:[%s0 + $0x328] sm:$0xff]
  %v125 = vld [vmem:[%s0 + $0x330] sm:$0xff]
  %v126 = vld [vmem:[%s0 + $0x338] sm:$0xff]
  %v127 = vld [vmem:[%s0 + $0x340] sm:$0xf]
  %v128 = vld [vmem:[%s0 + $0x344] sm:$0xff]
  %v129 = vld [vmem:[%s0 + $0x34c] sm:$0xff]
  %v130 = vld [vmem:[%s0 + $0x354] sm:$0xff]
  %v131 = vld [vmem:[%s0 + $0x35c] sm:$0xff]
  %v132 = vld [vmem:[%s0 + $0x364] sm:$0xff]
  %v133 = vld [vmem:[%s0 + $0x36c] sm:$0xf]
  %v134 = vld [vmem:[%s0 + $0x370] sm:$0xff]
  %v135 = vld [vmem:[%s0 + $0x378] sm:$0xff]
  %v136 = vld [vmem:[%s0 + $0x380] sm:$0xff]
  %v137 = vld [vmem:[%s0 + $0x388] sm:$0xff]
  %v138 = vld [vmem:[%s0 + $0x390] sm:$0xff]
  %v139 = vld [vmem:[%s0 + $0x398] sm:$0xf]
  %v140 = vld [vmem:[%s1] sm:$0xff]
  %v141 = vld [vmem:[%s1 + $0x8] sm:$0xff]
  %v142 = vld [vmem:[%s1 + $0x10] sm:$0xff]
  %v143 = vld [vmem:[%s1 + $0x18] sm:$0xff]
  %v144 = vld [vmem:[%s1 + $0x20] sm:$0xff]
  %v145 = vld [vmem:[%s1 + $0x28] sm:$0xff]
  %v146 = vld [vmem:[%s1 + $0x30] sm:$0xff]
  %v147 = vld [vmem:[%s1 + $0x38] sm:$0xff]
  %v148 = vld [vmem:[%s1 + $0x40] sm:$0xff]
  %v149 = vld [vmem:[%s1 + $0x48] sm:$0xff]
  %v150 = vld [vmem:[%s1 + $0x50] sm:$0xff]
  %v151 = vld [vmem:[%s1 + $0x58] sm:$0xff]
  %v152 = vld [vmem:[%s1 + $0x60] sm:$0xff]
  %v153 = vld [vmem:[%s1 + $0x68] sm:$0xff]
  %v154 = vld [vmem:[%s1 + $0x70] sm:$0xff]
  %v155 = vld [vmem:[%s1 + $0x78] sm:$0xff]
  %v156 = vld [vmem:[%s1 + $0x80] sm:$0xff]
  %v157 = vld [vmem:[%s1 + $0x88] sm:$0xff]
  %v158 = vld [vmem:[%s1 + $0x90] sm:$0xff]
  %v159 = vld [vmem:[%s1 + $0x98] sm:$0xff]
  %v160 = vld [vmem:[%s1 + $0xa0] sm:$0xff]
  %v161 = vld [vmem:[%s1 + $0xa8] sm:$0xff]
  %v162 = vld [vmem:[%s1 + $0xb0] sm:$0xff]
  %v163 = vld [vmem:[%s1 + $0xb8] sm:$0xff]
  %v164 = vld [vmem:[%s1 + $0xc0] sm:$0xff]
  %v165 = vld [vmem:[%s1 + $0xc8] sm:$0xff]
  %v166 = vld [vmem:[%s1 + $0xd0] sm:$0xff]
  %v167 = vld [vmem:[%s1 + $0xd8] sm:$0xff]
  %v168 = vld [vmem:[%s1 + $0xe0] sm:$0xff]
  %v169 = vld [vmem:[%s1 + $0xe8] sm:$0xff]
  %v170 = vld [vmem:[%s1 + $0xf0] sm:$0xff]
  %v171 = vld [vmem:[%s1 + $0xf8] sm:$0xff]
  %v172 = vld [vmem:[%s1 + $0x100] sm:$0xff]
  %v173 = vld [vmem:[%s1 + $0x108] sm:$0xff]
  %v174 = vld [vmem:[%s1 + $0x110] sm:$0xff]
  %v175 = vld [vmem:[%s1 + $0x118] sm:$0xff]
  %v176 = vld [vmem:[%s1 + $0x120] sm:$0xff]
  %v177 = vld [vmem:[%s1 + $0x128] sm:$0xff]
  %v178 = vld [vmem:[%s1 + $0x130] sm:$0xff]
  %v179 = vld [vmem:[%s1 + $0x138] sm:$0xff]
  %v180 = vld [vmem:[%s1 + $0x140] sm:$0xff]
  %v181 = vld [vmem:[%s1 + $0x148] sm:$0xff]
  %v182 = vld [vmem:[%s1 + $0x150] sm:$0xff]
  %v183 = vld [vmem:[%s1 + $0x158] sm:$0xff]
  %v184 = vld [vmem:[%s1 + $0x160] sm:$0xff]
  %v185 = vld [vmem:[%s1 + $0x168] sm:$0xff]
  %v186 = vld [vmem:[%s1 + $0x170] sm:$0xff]
  %v187 = vld [vmem:[%s1 + $0x178] sm:$0xff]
  %v188 = vld [vmem:[%s1 + $0x180] sm:$0xff]
  %v189 = vld [vmem:[%s1 + $0x188] sm:$0xff]
  %v190 = vld [vmem:[%s1 + $0x190] sm:$0xff]
  %v191 = vld [vmem:[%s1 + $0x198] sm:$0xff]
  %v192 = vld [vmem:[%s1 + $0x1a0] sm:$0xff]
  %v193 = vld [vmem:[%s1 + $0x1a8] sm:$0xff]
  %v194 = vld [vmem:[%s1 + $0x1b0] sm:$0xff]
  %v195 = vld [vmem:[%s1 + $0x1b8] sm:$0xff]
  %v196 = vld [vmem:[%s1 + $0x1c0] sm:$0xff]
  %v197 = vld [vmem:[%s1 + $0x1c8] sm:$0xff]
  %v198 = vld [vmem:[%s1 + $0x1d0] sm:$0xff]
  %v199 = vld [vmem:[%s1 + $0x1d8] sm:$0xff]
  %v200 = vld [vmem:[%s1 + $0x1e0] sm:$0xff]
  %v201 = vld [vmem:[%s1 + $0x1e8] sm:$0xff]
  %v202 = vld [vmem:[%s1 + $0x1f0] sm:$0xff]
  %v203 = vld [vmem:[%s1 + $0x1f8] sm:$0xff]
  %v204 = vld [vmem:[%s1 + $0x200] sm:$0xff]
  %v205 = vld [vmem:[%s1 + $0x208] sm:$0xff]
  %v206 = vld [vmem:[%s1 + $0x210] sm:$0xff]
  %v207 = vld [vmem:[%s1 + $0x218] sm:$0xff]
  %v208 = vld [vmem:[%s1 + $0x220] sm:$0xff]
  %v209 = vld [vmem:[%s1 + $0x228] sm:$0xff]
  %v210 = vld [vmem:[%s1 + $0x230] sm:$0xff]
  %v211 = vld [vmem:[%s1 + $0x238] sm:$0xff]
  %v212 = vld [vmem:[%s1 + $0x240] sm:$0xff]
  %v213 = vld [vmem:[%s1 + $0x248] sm:$0xff]
  %v214 = vld [vmem:[%s1 + $0x250] sm:$0xff]
  %v215 = vld [vmem:[%s1 + $0x258] sm:$0xff]
  %v216 = vld [vmem:[%s1 + $0x260] sm:$0xff]
  %v217 = vld [vmem:[%s1 + $0x268] sm:$0xff]
  %v218 = vld [vmem:[%s1 + $0x270] sm:$0xff]
  %v219 = vld [vmem:[%s1 + $0x278] sm:$0xff]
  %v220 = vld [vmem:[%s1 + $0x280] sm:$0xff]
  %v221 = vld [vmem:[%s1 + $0x288] sm:$0xff]
  %v222 = vld [vmem:[%s1 + $0x290] sm:$0xff]
  %v223 = vld [vmem:[%s1 + $0x298] sm:$0xff]
  %v224 = vld [vmem:[%s1 + $0x2a0] sm:$0xff]
  %v225 = vld [vmem:[%s1 + $0x2a8] sm:$0xff]
  %v226 = vld [vmem:[%s1 + $0x2b0] sm:$0xff]
  %v227 = vld [vmem:[%s1 + $0x2b8] sm:$0xff]
  %v228 = vld [vmem:[%s1 + $0x2c0] sm:$0xff]
  %v229 = vld [vmem:[%s1 + $0x2c8] sm:$0xff]
  %v230 = vld [vmem:[%s1 + $0x2d0] sm:$0xff]
  %v231 = vld [vmem:[%s1 + $0x2d8] sm:$0xff]
  %v232 = vld [vmem:[%s1 + $0x2e0] sm:$0xff]
  %v233 = vld [vmem:[%s1 + $0x2e8] sm:$0xff]
  %v234 = vld [vmem:[%s1 + $0x2f0] sm:$0xff]
  %v235 = vld [vmem:[%s1 + $0x2f8] sm:$0xff]
  %v236 = vld [vmem:[%s1 + $0x300] sm:$0xff]
  %v237 = vld [vmem:[%s1 + $0x308] sm:$0xff]
  %v238 = vld [vmem:[%s1 + $0x310] sm:$0xff]
  %v239 = vld [vmem:[%s1 + $0x318] sm:$0xff]
  %v240 = vld [vmem:[%s1 + $0x320] sm:$0xff]
  %v241 = vld [vmem:[%s1 + $0x328] sm:$0xff]
  %v242 = vld [vmem:[%s1 + $0x330] sm:$0xff]
  %v243 = vld [vmem:[%s1 + $0x338] sm:$0xff]
  %v244 = vld [vmem:[%s1 + $0x340] sm:$0xff]
  %v245 = vld [vmem:[%s1 + $0x348] sm:$0xff]
  %v246 = vld [vmem:[%s1 + $0x350] sm:$0xff]
  %v247 = vld [vmem:[%s1 + $0x358] sm:$0xff]
  %v248 = vld [vmem:[%s1 + $0x360] sm:$0xff]
  %v249 = vld [vmem:[%s1 + $0x368] sm:$0xff]
  %v250 = vld [vmem:[%s1 + $0x370] sm:$0xff]
  %v251 = vld [vmem:[%s1 + $0x378] sm:$0xff]
  %v252 = vld [vmem:[%s1 + $0x380] sm:$0xff]
  %v253 = vld [vmem:[%s1 + $0x388] sm:$0xff]
  %v254 = vld [vmem:[%s1 + $0x390] sm:$0xff]
  %v255 = vld [vmem:[%s1 + $0x398] sm:$0xff]
  %v256 = vld [vmem:[%s1 + $0x3a0] sm:$0xff]
  %v257 = vld [vmem:[%s1 + $0x3a8] sm:$0xff]
  %v258 = vld [vmem:[%s1 + $0x3b0] sm:$0xff]
  %v259 = vld [vmem:[%s1 + $0x3b8] sm:$0xff]
  %v260 = vld [vmem:[%s1 + $0x3c0] sm:$0xff]
  %v261 = vld [vmem:[%s1 + $0x3c8] sm:$0xff]
  %v262 = vld [vmem:[%s1 + $0x3d0] sm:$0xff]
  %v263 = vld [vmem:[%s1 + $0x3d8] sm:$0xff]
  %v264 = vld [vmem:[%s1 + $0x3e0] sm:$0xff]
  %v265 = vld [vmem:[%s1 + $0x3e8] sm:$0xff]
  %v266 = vld [vmem:[%s1 + $0x3f0] sm:$0xff]
  %v267 = vld [vmem:[%s1 + $0x3f8] sm:$0xff]
  %v268 = vld [vmem:[%s1 + $0x400] sm:$0xff]
  %v269 = vld [vmem:[%s1 + $0x408] sm:$0xff]
  %v270 = vld [vmem:[%s1 + $0x410] sm:$0xff]
  %v271 = vld [vmem:[%s1 + $0x418] sm:$0xff]
  %v272 = vld [vmem:[%s1 + $0x420] sm:$0xff]
  %v273 = vld [vmem:[%s1 + $0x428] sm:$0xff]
  %v274 = vld [vmem:[%s1 + $0x430] sm:$0xff]
  %v275 = vld [vmem:[%s1 + $0x438] sm:$0xff]
  %v276 = vld [vmem:[%s1 + $0x440] sm:$0xff]
  %v277 = vld [vmem:[%s1 + $0x448] sm:$0xff]
  %v278 = vld [vmem:[%s1 + $0x450] sm:$0xff]
  %v279 = vld [vmem:[%s1 + $0x458] sm:$0xff]
  %v280 = vld [vmem:[%s1 + $0x460] sm:$0xff]
  %v281 = vld [vmem:[%s1 + $0x468] sm:$0xff]
  %v282 = vld [vmem:[%s1 + $0x470] sm:$0xff]
  %v283 = vld [vmem:[%s1 + $0x478] sm:$0xff]
  %v284 = vld [vmem:[%s1 + $0x480] sm:$0xff]
  %v285 = vld [vmem:[%s1 + $0x488] sm:$0xff]
  %v286 = vld [vmem:[%s1 + $0x490] sm:$0xff]
  %v287 = vld [vmem:[%s1 + $0x498] sm:$0xff]
  %v288 = vld [vmem:[%s1 + $0x4a0] sm:$0xff]
  %v289 = vld [vmem:[%s1 + $0x4a8] sm:$0xff]
  %v290 = vld [vmem:[%s1 + $0x4b0] sm:$0xff]
  %v291 = vld [vmem:[%s1 + $0x4b8] sm:$0xff]
  %v292 = vld [vmem:[%s1 + $0x4c0] sm:$0xff]
  %v293 = vld [vmem:[%s1 + $0x4c8] sm:$0xff]
  %v294 = vld [vmem:[%s1 + $0x4d0] sm:$0xff]
  %v295 = vld [vmem:[%s1 + $0x4d8] sm:$0xff]
  %v296 = vld [vmem:[%s1 + $0x4e0] sm:$0xff]
  %v297 = vld [vmem:[%s1 + $0x4e8] sm:$0xff]
  %v298 = vld [vmem:[%s1 + $0x4f0] sm:$0xff]
  %v299 = vld [vmem:[%s1 + $0x4f8] sm:$0xff]
  %v300 = vld [vmem:[%s1 + $0x500] sm:$0xff]
  %v301 = vld [vmem:[%s1 + $0x508] sm:$0xff]
  %v302 = vld [vmem:[%s1 + $0x510] sm:$0xff]
  %v303 = vld [vmem:[%s1 + $0x518] sm:$0xff]
  %v304 = vld [vmem:[%s1 + $0x520] sm:$0xff]
  %v305 = vld [vmem:[%s1 + $0x528] sm:$0xff]
  %v306 = vld [vmem:[%s1 + $0x530] sm:$0xff]
  %v307 = vld [vmem:[%s1 + $0x538] sm:$0xff]
  %v434 = vunpack.c.l.b16 %v14
  %v435 = vunpack.c.h.b16 %v14
  %v436 = vunpack.c.l.b16 %v15
  %v437 = vunpack.c.h.b16 %v15
  %v438 = vunpack.c.l.b16 %v16
  %v439 = vunpack.c.h.b16 %v16
  %v440 = vunpack.c.l.b16 %v17
  %v441 = vunpack.c.h.b16 %v17
  %v442 = vunpack.c.l.b16 %v18
  %v443 = vunpack.c.h.b16 %v18
  %v444 = vunpack.c.l.b16 %v19
  %v445 = vunpack.c.l.b16 %v20
  %v446 = vunpack.c.h.b16 %v20
  %v447 = vunpack.c.l.b16 %v21
  %v448 = vunpack.c.h.b16 %v21
  %v449 = vunpack.c.l.b16 %v22
  %v450 = vunpack.c.h.b16 %v22
  %v451 = vunpack.c.l.b16 %v23
  %v452 = vunpack.c.h.b16 %v23
  %v453 = vunpack.c.l.b16 %v24
  %v454 = vunpack.c.h.b16 %v24
  %v455 = vunpack.c.l.b16 %v25
  %v456 = vunpack.c.l.b16 %v26
  %v457 = vunpack.c.h.b16 %v26
  %v458 = vunpack.c.l.b16 %v27
  %v459 = vunpack.c.h.b16 %v27
  %v460 = vunpack.c.l.b16 %v28
  %v461 = vunpack.c.h.b16 %v28
  %v462 = vunpack.c.l.b16 %v29
  %v463 = vunpack.c.h.b16 %v29
  %v464 = vunpack.c.l.b16 %v30
  %v465 = vunpack.c.h.b16 %v30
  %v466 = vunpack.c.l.b16 %v31
  %v467 = vunpack.c.l.b16 %v32
  %v468 = vunpack.c.h.b16 %v32
  %v469 = vunpack.c.l.b16 %v33
  %v470 = vunpack.c.h.b16 %v33
  %v471 = vunpack.c.l.b16 %v34
  %v472 = vunpack.c.h.b16 %v34
  %v473 = vunpack.c.l.b16 %v35
  %v474 = vunpack.c.h.b16 %v35
  %v475 = vunpack.c.l.b16 %v36
  %v476 = vunpack.c.h.b16 %v36
  %v477 = vunpack.c.l.b16 %v37
  %v478 = vunpack.c.l.b16 %v38
  %v479 = vunpack.c.h.b16 %v38
  %v480 = vunpack.c.l.b16 %v39
  %v481 = vunpack.c.h.b16 %v39
  %v482 = vunpack.c.l.b16 %v40
  %v483 = vunpack.c.h.b16 %v40
  %v484 = vunpack.c.l.b16 %v41
  %v485 = vunpack.c.h.b16 %v41
  %v486 = vunpack.c.l.b16 %v42
  %v487 = vunpack.c.h.b16 %v42
  %v488 = vunpack.c.l.b16 %v43
  %v489 = vunpack.c.l.b16 %v44
  %v490 = vunpack.c.h.b16 %v44
  %v491 = vunpack.c.l.b16 %v45
  %v492 = vunpack.c.h.b16 %v45
  %v493 = vunpack.c.l.b16 %v46
  %v494 = vunpack.c.h.b16 %v46
  %v495 = vunpack.c.l.b16 %v47
  %v496 = vunpack.c.h.b16 %v47
  %v497 = vunpack.c.l.b16 %v48
  %v498 = vunpack.c.h.b16 %v48
  %v499 = vunpack.c.l.b16 %v49
  %v500 = vunpack.c.l.b16 %v50
  %v501 = vunpack.c.h.b16 %v50
  %v502 = vunpack.c.l.b16 %v51
  %v503 = vunpack.c.h.b16 %v51
  %v504 = vunpack.c.l.b16 %v52
  %v505 = vunpack.c.h.b16 %v52
  %v506 = vunpack.c.l.b16 %v53
  %v507 = vunpack.c.h.b16 %v53
  %v508 = vunpack.c.l.b16 %v54
  %v509 = vunpack.c.h.b16 %v54
  %v510 = vunpack.c.l.b16 %v55
  %v511 = vunpack.c.l.b16 %v56
  %v512 = vunpack.c.h.b16 %v56
  %v513 = vunpack.c.l.b16 %v57
  %v514 = vunpack.c.h.b16 %v57
  %v515 = vunpack.c.l.b16 %v58
  %v516 = vunpack.c.h.b16 %v58
  %v517 = vunpack.c.l.b16 %v59
  %v518 = vunpack.c.h.b16 %v59
  %v519 = vunpack.c.l.b16 %v60
  %v520 = vunpack.c.h.b16 %v60
  %v521 = vunpack.c.l.b16 %v61
  %v522 = vunpack.c.l.b16 %v62
  %v523 = vunpack.c.h.b16 %v62
  %v524 = vunpack.c.l.b16 %v63
  %v525 = vunpack.c.h.b16 %v63
  %v526 = vunpack.c.l.b16 %v64
  %v527 = vunpack.c.h.b16 %v64
  %v528 = vunpack.c.l.b16 %v65
  %v529 = vunpack.c.h.b16 %v65
  %v530 = vunpack.c.l.b16 %v66
  %v531 = vunpack.c.h.b16 %v66
  %v532 = vunpack.c.l.b16 %v67
  %v533 = vunpack.c.l.b16 %v68
  %v534 = vunpack.c.h.b16 %v68
  %v535 = vunpack.c.l.b16 %v69
  %v536 = vunpack.c.h.b16 %v69
  %v537 = vunpack.c.l.b16 %v70
  %v538 = vunpack.c.h.b16 %v70
  %v539 = vunpack.c.l.b16 %v71
  %v540 = vunpack.c.h.b16 %v71
  %v541 = vunpack.c.l.b16 %v72
  %v542 = vunpack.c.h.b16 %v72
  %v543 = vunpack.c.l.b16 %v73
  %v544 = vunpack.c.l.b16 %v74
  %v545 = vunpack.c.h.b16 %v74
  %v546 = vunpack.c.l.b16 %v75
  %v547 = vunpack.c.h.b16 %v75
  %v548 = vunpack.c.l.b16 %v76
  %v549 = vunpack.c.h.b16 %v76
  %v550 = vunpack.c.l.b16 %v77
  %v551 = vunpack.c.h.b16 %v77
  %v552 = vunpack.c.l.b16 %v78
  %v553 = vunpack.c.h.b16 %v78
  %v554 = vunpack.c.l.b16 %v79
  %v555 = vunpack.c.l.b16 %v80
  %v556 = vunpack.c.h.b16 %v80
  %v557 = vunpack.c.l.b16 %v81
  %v558 = vunpack.c.h.b16 %v81
  %v559 = vunpack.c.l.b16 %v82
  %v560 = vunpack.c.h.b16 %v82
  %v561 = vunpack.c.l.b16 %v83
  %v562 = vunpack.c.h.b16 %v83
  %v563 = vunpack.c.l.b16 %v84
  %v564 = vunpack.c.h.b16 %v84
  %v565 = vunpack.c.l.b16 %v85
  %v566 = vunpack.c.l.b16 %v86
  %v567 = vunpack.c.h.b16 %v86
  %v568 = vunpack.c.l.b16 %v87
  %v569 = vunpack.c.h.b16 %v87
  %v570 = vunpack.c.l.b16 %v88
  %v571 = vunpack.c.h.b16 %v88
  %v572 = vunpack.c.l.b16 %v89
  %v573 = vunpack.c.h.b16 %v89
  %v574 = vunpack.c.l.b16 %v90
  %v575 = vunpack.c.h.b16 %v90
  %v576 = vunpack.c.l.b16 %v91
  %v577 = vunpack.c.l.b16 %v92
  %v578 = vunpack.c.h.b16 %v92
  %v579 = vunpack.c.l.b16 %v93
  %v580 = vunpack.c.h.b16 %v93
  %v581 = vunpack.c.l.b16 %v94
  %v582 = vunpack.c.h.b16 %v94
  %v583 = vunpack.c.l.b16 %v95
  %v584 = vunpack.c.h.b16 %v95
  %v585 = vunpack.c.l.b16 %v96
  %v586 = vunpack.c.h.b16 %v96
  %v587 = vunpack.c.l.b16 %v97
  %v588 = vunpack.c.l.b16 %v98
  %v589 = vunpack.c.h.b16 %v98
  %v590 = vunpack.c.l.b16 %v99
  %v591 = vunpack.c.h.b16 %v99
  %v592 = vunpack.c.l.b16 %v100
  %v593 = vunpack.c.h.b16 %v100
  %v594 = vunpack.c.l.b16 %v101
  %v595 = vunpack.c.h.b16 %v101
  %v596 = vunpack.c.l.b16 %v102
  %v597 = vunpack.c.h.b16 %v102
  %v598 = vunpack.c.l.b16 %v103
  %v599 = vunpack.c.l.b16 %v104
  %v600 = vunpack.c.h.b16 %v104
  %v601 = vunpack.c.l.b16 %v105
  %v602 = vunpack.c.h.b16 %v105
  %v603 = vunpack.c.l.b16 %v106
  %v604 = vunpack.c.h.b16 %v106
  %v605 = vunpack.c.l.b16 %v107
  %v606 = vunpack.c.h.b16 %v107
  %v607 = vunpack.c.l.b16 %v108
  %v608 = vunpack.c.h.b16 %v108
  %v609 = vunpack.c.l.b16 %v109
  %v610 = vunpack.c.l.b16 %v110
  %v611 = vunpack.c.h.b16 %v110
  %v612 = vunpack.c.l.b16 %v111
  %v613 = vunpack.c.h.b16 %v111
  %v614 = vunpack.c.l.b16 %v112
  %v615 = vunpack.c.h.b16 %v112
  %v616 = vunpack.c.l.b16 %v113
  %v617 = vunpack.c.h.b16 %v113
  %v618 = vunpack.c.l.b16 %v114
  %v619 = vunpack.c.h.b16 %v114
  %v620 = vunpack.c.l.b16 %v115
  %v621 = vunpack.c.l.b16 %v116
  %v622 = vunpack.c.h.b16 %v116
  %v623 = vunpack.c.l.b16 %v117
  %v624 = vunpack.c.h.b16 %v117
  %v625 = vunpack.c.l.b16 %v118
  %v626 = vunpack.c.h.b16 %v118
  %v627 = vunpack.c.l.b16 %v119
  %v628 = vunpack.c.h.b16 %v119
  %v629 = vunpack.c.l.b16 %v120
  %v630 = vunpack.c.h.b16 %v120
  %v631 = vunpack.c.l.b16 %v121
  %v632 = vunpack.c.l.b16 %v122
  %v633 = vunpack.c.h.b16 %v122
  %v634 = vunpack.c.l.b16 %v123
  %v635 = vunpack.c.h.b16 %v123
  %v636 = vunpack.c.l.b16 %v124
  %v637 = vunpack.c.h.b16 %v124
  %v638 = vunpack.c.l.b16 %v125
  %v639 = vunpack.c.h.b16 %v125
  %v640 = vunpack.c.l.b16 %v126
  %v641 = vunpack.c.h.b16 %v126
  %v642 = vunpack.c.l.b16 %v127
  %v643 = vunpack.c.l.b16 %v128
  %v644 = vunpack.c.h.b16 %v128
  %v645 = vunpack.c.l.b16 %v129
  %v646 = vunpack.c.h.b16 %v129
  %v647 = vunpack.c.l.b16 %v130
  %v648 = vunpack.c.h.b16 %v130
  %v649 = vunpack.c.l.b16 %v131
  %v650 = vunpack.c.h.b16 %v131
  %v651 = vunpack.c.l.b16 %v132
  %v652 = vunpack.c.h.b16 %v132
  %v653 = vunpack.c.l.b16 %v133
  %v654 = vunpack.c.l.b16 %v134
  %v655 = vunpack.c.h.b16 %v134
  %v656 = vunpack.c.l.b16 %v135
  %v657 = vunpack.c.h.b16 %v135
  %v658 = vunpack.c.l.b16 %v136
  %v659 = vunpack.c.h.b16 %v136
  %v660 = vunpack.c.l.b16 %v137
  %v661 = vunpack.c.h.b16 %v137
  %v662 = vunpack.c.l.b16 %v138
  %v663 = vunpack.c.h.b16 %v138
  %v664 = vunpack.c.l.b16 %v139
  %v665 = vpack.c.b16 %v445, %v434
  %v666 = vpack.c.b16 %v446, %v435
  %v667 = vpack.c.b16 %v447, %v436
  %v668 = vpack.c.b16 %v448, %v437
  %v669 = vpack.c.b16 %v449, %v438
  %v670 = vpack.c.b16 %v450, %v439
  %v671 = vpack.c.b16 %v451, %v440
  %v672 = vpack.c.b16 %v452, %v441
  %v673 = vpack.c.b16 %v453, %v442
  %v674 = vpack.c.b16 %v454, %v443
  %v675 = vpack.c.b16 %v455, %v444
  %v676 = vpack.c.b16 %v467, %v456
  %v677 = vpack.c.b16 %v468, %v457
  %v678 = vpack.c.b16 %v469, %v458
  %v679 = vpack.c.b16 %v470, %v459
  %v680 = vpack.c.b16 %v471, %v460
  %v681 = vpack.c.b16 %v472, %v461
  %v682 = vpack.c.b16 %v473, %v462
  %v683 = vpack.c.b16 %v474, %v463
  %v684 = vpack.c.b16 %v475, %v464
  %v685 = vpack.c.b16 %v476, %v465
  %v686 = vpack.c.b16 %v477, %v466
  %v687 = vpack.c.b16 %v489, %v478
  %v688 = vpack.c.b16 %v490, %v479
  %v689 = vpack.c.b16 %v491, %v480
  %v690 = vpack.c.b16 %v492, %v481
  %v691 = vpack.c.b16 %v493, %v482
  %v692 = vpack.c.b16 %v494, %v483
  %v693 = vpack.c.b16 %v495, %v484
  %v694 = vpack.c.b16 %v496, %v485
  %v695 = vpack.c.b16 %v497, %v486
  %v696 = vpack.c.b16 %v498, %v487
  %v697 = vpack.c.b16 %v499, %v488
  %v698 = vpack.c.b16 %v511, %v500
  %v699 = vpack.c.b16 %v512, %v501
  %v700 = vpack.c.b16 %v513, %v502
  %v701 = vpack.c.b16 %v514, %v503
  %v702 = vpack.c.b16 %v515, %v504
  %v703 = vpack.c.b16 %v516, %v505
  %v704 = vpack.c.b16 %v517, %v506
  %v705 = vpack.c.b16 %v518, %v507
  %v706 = vpack.c.b16 %v519, %v508
  %v707 = vpack.c.b16 %v520, %v509
  %v708 = vpack.c.b16 %v521, %v510
  %v709 = vpack.c.b16 %v533, %v522
  %v710 = vpack.c.b16 %v534, %v523
  %v711 = vpack.c.b16 %v535, %v524
  %v712 = vpack.c.b16 %v536, %v525
  %v713 = vpack.c.b16 %v537, %v526
  %v714 = vpack.c.b16 %v538, %v527
  %v715 = vpack.c.b16 %v539, %v528
  %v716 = vpack.c.b16 %v540, %v529
  %v717 = vpack.c.b16 %v541, %v530
  %v718 = vpack.c.b16 %v542, %v531
  %v719 = vpack.c.b16 %v543, %v532
  %v720 = vpack.c.b16 %v555, %v544
  %v721 = vpack.c.b16 %v556, %v545
  %v722 = vpack.c.b16 %v557, %v546
  %v723 = vpack.c.b16 %v558, %v547
  %v724 = vpack.c.b16 %v559, %v548
  %v725 = vpack.c.b16 %v560, %v549
  %v726 = vpack.c.b16 %v561, %v550
  %v727 = vpack.c.b16 %v562, %v551
  %v728 = vpack.c.b16 %v563, %v552
  %v729 = vpack.c.b16 %v564, %v553
  %v730 = vpack.c.b16 %v565, %v554
  %v731 = vpack.c.b16 %v577, %v566
  %v732 = vpack.c.b16 %v578, %v567
  %v733 = vpack.c.b16 %v579, %v568
  %v734 = vpack.c.b16 %v580, %v569
  %v735 = vpack.c.b16 %v581, %v570
  %v736 = vpack.c.b16 %v582, %v571
  %v737 = vpack.c.b16 %v583, %v572
  %v738 = vpack.c.b16 %v584, %v573
  %v739 = vpack.c.b16 %v585, %v574
  %v740 = vpack.c.b16 %v586, %v575
  %v741 = vpack.c.b16 %v587, %v576
  %v742 = vpack.c.b16 %v599, %v588
  %v743 = vpack.c.b16 %v600, %v589
  %v744 = vpack.c.b16 %v601, %v590
  %v745 = vpack.c.b16 %v602, %v591
  %v746 = vpack.c.b16 %v603, %v592
  %v747 = vpack.c.b16 %v604, %v593
  %v748 = vpack.c.b16 %v605, %v594
  %v749 = vpack.c.b16 %v606, %v595
  %v750 = vpack.c.b16 %v607, %v596
  %v751 = vpack.c.b16 %v608, %v597
  %v752 = vpack.c.b16 %v609, %v598
  %v753 = vpack.c.b16 %v621, %v610
  %v754 = vpack.c.b16 %v622, %v611
  %v755 = vpack.c.b16 %v623, %v612
  %v756 = vpack.c.b16 %v624, %v613
  %v757 = vpack.c.b16 %v625, %v614
  %v758 = vpack.c.b16 %v626, %v615
  %v759 = vpack.c.b16 %v627, %v616
  %v760 = vpack.c.b16 %v628, %v617
  %v761 = vpack.c.b16 %v629, %v618
  %v762 = vpack.c.b16 %v630, %v619
  %v763 = vpack.c.b16 %v631, %v620
  %v764 = vpack.c.b16 %v643, %v632
  %v765 = vpack.c.b16 %v644, %v633
  %v766 = vpack.c.b16 %v645, %v634
  %v767 = vpack.c.b16 %v646, %v635
  %v768 = vpack.c.b16 %v647, %v636
  %v769 = vpack.c.b16 %v648, %v637
  %v770 = vpack.c.b16 %v649, %v638
  %v771 = vpack.c.b16 %v650, %v639
  %v772 = vpack.c.b16 %v651, %v640
  %v773 = vpack.c.b16 %v652, %v641
  %v774 = vpack.c.b16 %v653, %v642
  %v775 = vpack.c.b16 %v654, %v654
  %v776 = vpack.c.b16 %v655, %v655
  %v777 = vpack.c.b16 %v656, %v656
  %v778 = vpack.c.b16 %v657, %v657
  %v779 = vpack.c.b16 %v658, %v658
  %v780 = vpack.c.b16 %v659, %v659
  %v781 = vpack.c.b16 %v660, %v660
  %v782 = vpack.c.b16 %v661, %v661
  %v783 = vpack.c.b16 %v662, %v662
  %v784 = vpack.c.b16 %v663, %v663
  %v785 = vpack.c.b16 %v664, %v664
  %v1064 = vunpack.c.l.b16 %v140
  %v1065 = vunpack.c.h.b16 %v140
  %v1066 = vunpack.c.l.b16 %v141
  %v1067 = vunpack.c.h.b16 %v141
  %v1068 = vunpack.c.l.b16 %v142
  %v1069 = vunpack.c.h.b16 %v142
  %v1070 = vunpack.c.l.b16 %v143
  %v1071 = vunpack.c.h.b16 %v143
  %v1072 = vunpack.c.l.b16 %v144
  %v1073 = vunpack.c.h.b16 %v144
  %v1074 = vunpack.c.l.b16 %v145
  %v1075 = vunpack.c.h.b16 %v145
  %v1076 = vunpack.c.l.b16 %v146
  %v1077 = vunpack.c.h.b16 %v146
  %v1078 = vunpack.c.l.b16 %v147
  %v1079 = vunpack.c.h.b16 %v147
  %v1080 = vunpack.c.l.b16 %v148
  %v1081 = vunpack.c.h.b16 %v148
  %v1082 = vunpack.c.l.b16 %v149
  %v1083 = vunpack.c.h.b16 %v149
  %v1084 = vunpack.c.l.b16 %v150
  %v1085 = vunpack.c.h.b16 %v150
  %v1086 = vunpack.c.l.b16 %v151
  %v1087 = vunpack.c.h.b16 %v151
  %v1088 = vunpack.c.l.b16 %v152
  %v1089 = vunpack.c.h.b16 %v152
  %v1090 = vunpack.c.l.b16 %v153
  %v1091 = vunpack.c.h.b16 %v153
  %v1092 = vunpack.c.l.b16 %v154
  %v1093 = vunpack.c.h.b16 %v154
  %v1094 = vunpack.c.l.b16 %v155
  %v1095 = vunpack.c.h.b16 %v155
  %v1096 = vunpack.c.l.b16 %v156
  %v1097 = vunpack.c.h.b16 %v156
  %v1098 = vunpack.c.l.b16 %v157
  %v1099 = vunpack.c.h.b16 %v157
  %v1100 = vunpack.c.l.b16 %v158
  %v1101 = vunpack.c.h.b16 %v158
  %v1102 = vunpack.c.l.b16 %v159
  %v1103 = vunpack.c.h.b16 %v159
  %v1104 = vunpack.c.l.b16 %v160
  %v1105 = vunpack.c.h.b16 %v160
  %v1106 = vunpack.c.l.b16 %v161
  %v1107 = vunpack.c.h.b16 %v161
  %v1108 = vunpack.c.l.b16 %v162
  %v1109 = vunpack.c.h.b16 %v162
  %v1110 = vunpack.c.l.b16 %v163
  %v1111 = vunpack.c.h.b16 %v163
  %v1112 = vunpack.c.l.b16 %v164
  %v1113 = vunpack.c.h.b16 %v164
  %v1114 = vunpack.c.l.b16 %v165
  %v1115 = vunpack.c.h.b16 %v165
  %v1116 = vunpack.c.l.b16 %v166
  %v1117 = vunpack.c.h.b16 %v166
  %v1118 = vunpack.c.l.b16 %v167
  %v1119 = vunpack.c.h.b16 %v167
  %v1120 = vunpack.c.l.b16 %v168
  %v1121 = vunpack.c.h.b16 %v168
  %v1122 = vunpack.c.l.b16 %v169
  %v1123 = vunpack.c.h.b16 %v169
  %v1124 = vunpack.c.l.b16 %v170
  %v1125 = vunpack.c.h.b16 %v170
  %v1126 = vunpack.c.l.b16 %v171
  %v1127 = vunpack.c.h.b16 %v171
  %v1128 = vunpack.c.l.b16 %v172
  %v1129 = vunpack.c.h.b16 %v172
  %v1130 = vunpack.c.l.b16 %v173
  %v1131 = vunpack.c.h.b16 %v173
  %v1132 = vunpack.c.l.b16 %v174
  %v1133 = vunpack.c.h.b16 %v174
  %v1134 = vunpack.c.l.b16 %v175
  %v1135 = vunpack.c.h.b16 %v175
  %v1136 = vunpack.c.l.b16 %v176
  %v1137 = vunpack.c.h.b16 %v176
  %v1138 = vunpack.c.l.b16 %v177
  %v1139 = vunpack.c.h.b16 %v177
  %v1140 = vunpack.c.l.b16 %v178
  %v1141 = vunpack.c.h.b16 %v178
  %v1142 = vunpack.c.l.b16 %v179
  %v1143 = vunpack.c.h.b16 %v179
  %v1144 = vunpack.c.l.b16 %v180
  %v1145 = vunpack.c.h.b16 %v180
  %v1146 = vunpack.c.l.b16 %v181
  %v1147 = vunpack.c.h.b16 %v181
  %v1148 = vunpack.c.l.b16 %v182
  %v1149 = vunpack.c.h.b16 %v182
  %v1150 = vunpack.c.l.b16 %v183
  %v1151 = vunpack.c.h.b16 %v183
  %v1152 = vunpack.c.l.b16 %v184
  %v1153 = vunpack.c.h.b16 %v184
  %v1154 = vunpack.c.l.b16 %v185
  %v1155 = vunpack.c.h.b16 %v185
  %v1156 = vunpack.c.l.b16 %v186
  %v1157 = vunpack.c.h.b16 %v186
  %v1158 = vunpack.c.l.b16 %v187
  %v1159 = vunpack.c.h.b16 %v187
  %v1160 = vunpack.c.l.b16 %v188
  %v1161 = vunpack.c.h.b16 %v188
  %v1162 = vunpack.c.l.b16 %v189
  %v1163 = vunpack.c.h.b16 %v189
  %v1164 = vunpack.c.l.b16 %v190
  %v1165 = vunpack.c.h.b16 %v190
  %v1166 = vunpack.c.l.b16 %v191
  %v1167 = vunpack.c.h.b16 %v191
  %v1168 = vunpack.c.l.b16 %v192
  %v1169 = vunpack.c.h.b16 %v192
  %v1170 = vunpack.c.l.b16 %v193
  %v1171 = vunpack.c.h.b16 %v193
  %v1172 = vunpack.c.l.b16 %v194
  %v1173 = vunpack.c.h.b16 %v194
  %v1174 = vunpack.c.l.b16 %v195
  %v1175 = vunpack.c.h.b16 %v195
  %v1176 = vunpack.c.l.b16 %v196
  %v1177 = vunpack.c.h.b16 %v196
  %v1178 = vunpack.c.l.b16 %v197
  %v1179 = vunpack.c.h.b16 %v197
  %v1180 = vunpack.c.l.b16 %v198
  %v1181 = vunpack.c.h.b16 %v198
  %v1182 = vunpack.c.l.b16 %v199
  %v1183 = vunpack.c.h.b16 %v199
  %v1184 = vunpack.c.l.b16 %v200
  %v1185 = vunpack.c.h.b16 %v200
  %v1186 = vunpack.c.l.b16 %v201
  %v1187 = vunpack.c.h.b16 %v201
  %v1188 = vunpack.c.l.b16 %v202
  %v1189 = vunpack.c.h.b16 %v202
  %v1190 = vunpack.c.l.b16 %v203
  %v1191 = vunpack.c.h.b16 %v203
  %v1192 = vunpack.c.l.b16 %v204
  %v1193 = vunpack.c.h.b16 %v204
  %v1194 = vunpack.c.l.b16 %v205
  %v1195 = vunpack.c.h.b16 %v205
  %v1196 = vunpack.c.l.b16 %v206
  %v1197 = vunpack.c.h.b16 %v206
  %v1198 = vunpack.c.l.b16 %v207
  %v1199 = vunpack.c.h.b16 %v207
  %v1200 = vunpack.c.l.b16 %v208
  %v1201 = vunpack.c.h.b16 %v208
  %v1202 = vunpack.c.l.b16 %v209
  %v1203 = vunpack.c.h.b16 %v209
  %v1204 = vunpack.c.l.b16 %v210
  %v1205 = vunpack.c.h.b16 %v210
  %v1206 = vunpack.c.l.b16 %v211
  %v1207 = vunpack.c.h.b16 %v211
  %v1208 = vunpack.c.l.b16 %v212
  %v1209 = vunpack.c.h.b16 %v212
  %v1210 = vunpack.c.l.b16 %v213
  %v1211 = vunpack.c.h.b16 %v213
  %v1212 = vunpack.c.l.b16 %v214
  %v1213 = vunpack.c.h.b16 %v214
  %v1214 = vunpack.c.l.b16 %v215
  %v1215 = vunpack.c.h.b16 %v215
  %v1216 = vunpack.c.l.b16 %v216
  %v1217 = vunpack.c.h.b16 %v216
  %v1218 = vunpack.c.l.b16 %v217
  %v1219 = vunpack.c.h.b16 %v217
  %v1220 = vunpack.c.l.b16 %v218
  %v1221 = vunpack.c.h.b16 %v218
  %v1222 = vunpack.c.l.b16 %v219
  %v1223 = vunpack.c.h.b16 %v219
  %v1224 = vunpack.c.l.b16 %v220
  %v1225 = vunpack.c.h.b16 %v220
  %v1226 = vunpack.c.l.b16 %v221
  %v1227 = vunpack.c.h.b16 %v221
  %v1228 = vunpack.c.l.b16 %v222
  %v1229 = vunpack.c.h.b16 %v222
  %v1230 = vunpack.c.l.b16 %v223
  %v1231 = vunpack.c.h.b16 %v223
  %v1232 = vunpack.c.l.b16 %v224
  %v1233 = vunpack.c.h.b16 %v224
  %v1234 = vunpack.c.l.b16 %v225
  %v1235 = vunpack.c.h.b16 %v225
  %v1236 = vunpack.c.l.b16 %v226
  %v1237 = vunpack.c.h.b16 %v226
  %v1238 = vunpack.c.l.b16 %v227
  %v1239 = vunpack.c.h.b16 %v227
  %v1240 = vunpack.c.l.b16 %v228
  %v1241 = vunpack.c.h.b16 %v228
  %v1242 = vunpack.c.l.b16 %v229
  %v1243 = vunpack.c.h.b16 %v229
  %v1244 = vunpack.c.l.b16 %v230
  %v1245 = vunpack.c.h.b16 %v230
  %v1246 = vunpack.c.l.b16 %v231
  %v1247 = vunpack.c.h.b16 %v231
  %v1248 = vunpack.c.l.b16 %v232
  %v1249 = vunpack.c.h.b16 %v232
  %v1250 = vunpack.c.l.b16 %v233
  %v1251 = vunpack.c.h.b16 %v233
  %v1252 = vunpack.c.l.b16 %v234
  %v1253 = vunpack.c.h.b16 %v234
  %v1254 = vunpack.c.l.b16 %v235
  %v1255 = vunpack.c.h.b16 %v235
  %v1256 = vunpack.c.l.b16 %v236
  %v1257 = vunpack.c.h.b16 %v236
  %v1258 = vunpack.c.l.b16 %v237
  %v1259 = vunpack.c.h.b16 %v237
  %v1260 = vunpack.c.l.b16 %v238
  %v1261 = vunpack.c.h.b16 %v238
  %v1262 = vunpack.c.l.b16 %v239
  %v1263 = vunpack.c.h.b16 %v239
  %v1264 = vunpack.c.l.b16 %v240
  %v1265 = vunpack.c.h.b16 %v240
  %v1266 = vunpack.c.l.b16 %v241
  %v1267 = vunpack.c.h.b16 %v241
  %v1268 = vunpack.c.l.b16 %v242
  %v1269 = vunpack.c.h.b16 %v242
  %v1270 = vunpack.c.l.b16 %v243
  %v1271 = vunpack.c.h.b16 %v243
  %v1272 = vunpack.c.l.b16 %v244
  %v1273 = vunpack.c.h.b16 %v244
  %v1274 = vunpack.c.l.b16 %v245
  %v1275 = vunpack.c.h.b16 %v245
  %v1276 = vunpack.c.l.b16 %v246
  %v1277 = vunpack.c.h.b16 %v246
  %v1278 = vunpack.c.l.b16 %v247
  %v1279 = vunpack.c.h.b16 %v247
  %v1280 = vunpack.c.l.b16 %v248
  %v1281 = vunpack.c.h.b16 %v248
  %v1282 = vunpack.c.l.b16 %v249
  %v1283 = vunpack.c.h.b16 %v249
  %v1284 = vunpack.c.l.b16 %v250
  %v1285 = vunpack.c.h.b16 %v250
  %v1286 = vunpack.c.l.b16 %v251
  %v1287 = vunpack.c.h.b16 %v251
  %v1288 = vunpack.c.l.b16 %v252
  %v1289 = vunpack.c.h.b16 %v252
  %v1290 = vunpack.c.l.b16 %v253
  %v1291 = vunpack.c.h.b16 %v253
  %v1292 = vunpack.c.l.b16 %v254
  %v1293 = vunpack.c.h.b16 %v254
  %v1294 = vunpack.c.l.b16 %v255
  %v1295 = vunpack.c.h.b16 %v255
  %v1296 = vunpack.c.l.b16 %v256
  %v1297 = vunpack.c.h.b16 %v256
  %v1298 = vunpack.c.l.b16 %v257
  %v1299 = vunpack.c.h.b16 %v257
  %v1300 = vunpack.c.l.b16 %v258
  %v1301 = vunpack.c.h.b16 %v258
  %v1302 = vunpack.c.l.b16 %v259
  %v1303 = vunpack.c.h.b16 %v259
  %v1304 = vunpack.c.l.b16 %v260
  %v1305 = vunpack.c.h.b16 %v260
  %v1306 = vunpack.c.l.b16 %v261
  %v1307 = vunpack.c.h.b16 %v261
  %v1308 = vunpack.c.l.b16 %v262
  %v1309 = vunpack.c.h.b16 %v262
  %v1310 = vunpack.c.l.b16 %v263
  %v1311 = vunpack.c.h.b16 %v263
  %v1312 = vunpack.c.l.b16 %v264
  %v1313 = vunpack.c.h.b16 %v264
  %v1314 = vunpack.c.l.b16 %v265
  %v1315 = vunpack.c.h.b16 %v265
  %v1316 = vunpack.c.l.b16 %v266
  %v1317 = vunpack.c.h.b16 %v266
  %v1318 = vunpack.c.l.b16 %v267
  %v1319 = vunpack.c.h.b16 %v267
  %v1320 = vunpack.c.l.b16 %v268
  %v1321 = vunpack.c.h.b16 %v268
  %v1322 = vunpack.c.l.b16 %v269
  %v1323 = vunpack.c.h.b16 %v269
  %v1324 = vunpack.c.l.b16 %v270
  %v1325 = vunpack.c.h.b16 %v270
  %v1326 = vunpack.c.l.b16 %v271
  %v1327 = vunpack.c.h.b16 %v271
  %v1328 = vunpack.c.l.b16 %v272
  %v1329 = vunpack.c.h.b16 %v272
  %v1330 = vunpack.c.l.b16 %v273
  %v1331 = vunpack.c.h.b16 %v273
  %v1332 = vunpack.c.l.b16 %v274
  %v1333 = vunpack.c.h.b16 %v274
  %v1334 = vunpack.c.l.b16 %v275
  %v1335 = vunpack.c.h.b16 %v275
  %v1336 = vunpack.c.l.b16 %v276
  %v1337 = vunpack.c.h.b16 %v276
  %v1338 = vunpack.c.l.b16 %v277
  %v1339 = vunpack.c.h.b16 %v277
  %v1340 = vunpack.c.l.b16 %v278
  %v1341 = vunpack.c.h.b16 %v278
  %v1342 = vunpack.c.l.b16 %v279
  %v1343 = vunpack.c.h.b16 %v279
  %v1344 = vunpack.c.l.b16 %v280
  %v1345 = vunpack.c.h.b16 %v280
  %v1346 = vunpack.c.l.b16 %v281
  %v1347 = vunpack.c.h.b16 %v281
  %v1348 = vunpack.c.l.b16 %v282
  %v1349 = vunpack.c.h.b16 %v282
  %v1350 = vunpack.c.l.b16 %v283
  %v1351 = vunpack.c.h.b16 %v283
  %v1352 = vunpack.c.l.b16 %v284
  %v1353 = vunpack.c.h.b16 %v284
  %v1354 = vunpack.c.l.b16 %v285
  %v1355 = vunpack.c.h.b16 %v285
  %v1356 = vunpack.c.l.b16 %v286
  %v1357 = vunpack.c.h.b16 %v286
  %v1358 = vunpack.c.l.b16 %v287
  %v1359 = vunpack.c.h.b16 %v287
  %v1360 = vunpack.c.l.b16 %v288
  %v1361 = vunpack.c.h.b16 %v288
  %v1362 = vunpack.c.l.b16 %v289
  %v1363 = vunpack.c.h.b16 %v289
  %v1364 = vunpack.c.l.b16 %v290
  %v1365 = vunpack.c.h.b16 %v290
  %v1366 = vunpack.c.l.b16 %v291
  %v1367 = vunpack.c.h.b16 %v291
  %v1368 = vunpack.c.l.b16 %v292
  %v1369 = vunpack.c.h.b16 %v292
  %v1370 = vunpack.c.l.b16 %v293
  %v1371 = vunpack.c.h.b16 %v293
  %v1372 = vunpack.c.l.b16 %v294
  %v1373 = vunpack.c.h.b16 %v294
  %v1374 = vunpack.c.l.b16 %v295
  %v1375 = vunpack.c.h.b16 %v295
  %v1376 = vunpack.c.l.b16 %v296
  %v1377 = vunpack.c.h.b16 %v296
  %v1378 = vunpack.c.l.b16 %v297
  %v1379 = vunpack.c.h.b16 %v297
  %v1380 = vunpack.c.l.b16 %v298
  %v1381 = vunpack.c.h.b16 %v298
  %v1382 = vunpack.c.l.b16 %v299
  %v1383 = vunpack.c.h.b16 %v299
  %v1384 = vunpack.c.l.b16 %v300
  %v1385 = vunpack.c.h.b16 %v300
  %v1386 = vunpack.c.l.b16 %v301
  %v1387 = vunpack.c.h.b16 %v301
  %v1388 = vunpack.c.l.b16 %v302
  %v1389 = vunpack.c.h.b16 %v302
  %v1390 = vunpack.c.l.b16 %v303
  %v1391 = vunpack.c.h.b16 %v303
  %v1392 = vunpack.c.l.b16 %v304
  %v1393 = vunpack.c.h.b16 %v304
  %v1394 = vunpack.c.l.b16 %v305
  %v1395 = vunpack.c.h.b16 %v305
  %v1396 = vunpack.c.l.b16 %v306
  %v1397 = vunpack.c.h.b16 %v306
  %v1398 = vunpack.c.l.b16 %v307
  %v1399 = vunpack.c.h.b16 %v307
  %v1400 = vpack.c.b16 %v1066, %v1064
  %v1401 = vpack.c.b16 %v1067, %v1065
  %v1402 = vpack.c.b16 %v1070, %v1068
  %v1403 = vpack.c.b16 %v1071, %v1069
  %v1404 = vpack.c.b16 %v1074, %v1072
  %v1405 = vpack.c.b16 %v1075, %v1073
  %v1406 = vpack.c.b16 %v1078, %v1076
  %v1407 = vpack.c.b16 %v1079, %v1077
  %v1408 = vpack.c.b16 %v1082, %v1080
  %v1409 = vpack.c.b16 %v1083, %v1081
  %v1410 = vpack.c.b16 %v1086, %v1084
  %v1411 = vpack.c.b16 %v1087, %v1085
  %v1412 = vpack.c.b16 %v1090, %v1088
  %v1413 = vpack.c.b16 %v1091, %v1089
  %v1414 = vpack.c.b16 %v1094, %v1092
  %v1415 = vpack.c.b16 %v1095, %v1093
  %v1416 = vpack.c.b16 %v1098, %v1096
  %v1417 = vpack.c.b16 %v1099, %v1097
  %v1418 = vpack.c.b16 %v1102, %v1100
  %v1419 = vpack.c.b16 %v1103, %v1101
  %v1420 = vpack.c.b16 %v1106, %v1104
  %v1421 = vpack.c.b16 %v1107, %v1105
  %v1422 = vpack.c.b16 %v1110, %v1108
  %v1423 = vpack.c.b16 %v1111, %v1109
  %v1424 = vpack.c.b16 %v1114, %v1112
  %v1425 = vpack.c.b16 %v1115, %v1113
  %v1426 = vpack.c.b16 %v1118, %v1116
  %v1427 = vpack.c.b16 %v1119, %v1117
  %v1428 = vpack.c.b16 %v1122, %v1120
  %v1429 = vpack.c.b16 %v1123, %v1121
  %v1430 = vpack.c.b16 %v1126, %v1124
  %v1431 = vpack.c.b16 %v1127, %v1125
  %v1432 = vpack.c.b16 %v1130, %v1128
  %v1433 = vpack.c.b16 %v1131, %v1129
  %v1434 = vpack.c.b16 %v1134, %v1132
  %v1435 = vpack.c.b16 %v1135, %v1133
  %v1436 = vpack.c.b16 %v1138, %v1136
  %v1437 = vpack.c.b16 %v1139, %v1137
  %v1438 = vpack.c.b16 %v1142, %v1140
  %v1439 = vpack.c.b16 %v1143, %v1141
  %v1440 = vpack.c.b16 %v1146, %v1144
  %v1441 = vpack.c.b16 %v1147, %v1145
  %v1442 = vpack.c.b16 %v1150, %v1148
  %v1443 = vpack.c.b16 %v1151, %v1149
  %v1444 = vpack.c.b16 %v1154, %v1152
  %v1445 = vpack.c.b16 %v1155, %v1153
  %v1446 = vpack.c.b16 %v1158, %v1156
  %v1447 = vpack.c.b16 %v1159, %v1157
  %v1448 = vpack.c.b16 %v1162, %v1160
  %v1449 = vpack.c.b16 %v1163, %v1161
  %v1450 = vpack.c.b16 %v1166, %v1164
  %v1451 = vpack.c.b16 %v1167, %v1165
  %v1452 = vpack.c.b16 %v1170, %v1168
  %v1453 = vpack.c.b16 %v1171, %v1169
  %v1454 = vpack.c.b16 %v1174, %v1172
  %v1455 = vpack.c.b16 %v1175, %v1173
  %v1456 = vpack.c.b16 %v1178, %v1176
  %v1457 = vpack.c.b16 %v1179, %v1177
  %v1458 = vpack.c.b16 %v1182, %v1180
  %v1459 = vpack.c.b16 %v1183, %v1181
  %v1460 = vpack.c.b16 %v1186, %v1184
  %v1461 = vpack.c.b16 %v1187, %v1185
  %v1462 = vpack.c.b16 %v1190, %v1188
  %v1463 = vpack.c.b16 %v1191, %v1189
  %v1464 = vpack.c.b16 %v1194, %v1192
  %v1465 = vpack.c.b16 %v1195, %v1193
  %v1466 = vpack.c.b16 %v1198, %v1196
  %v1467 = vpack.c.b16 %v1199, %v1197
  %v1468 = vpack.c.b16 %v1202, %v1200
  %v1469 = vpack.c.b16 %v1203, %v1201
  %v1470 = vpack.c.b16 %v1206, %v1204
  %v1471 = vpack.c.b16 %v1207, %v1205
  %v1472 = vpack.c.b16 %v1210, %v1208
  %v1473 = vpack.c.b16 %v1211, %v1209
  %v1474 = vpack.c.b16 %v1214, %v1212
  %v1475 = vpack.c.b16 %v1215, %v1213
  %v1476 = vpack.c.b16 %v1218, %v1216
  %v1477 = vpack.c.b16 %v1219, %v1217
  %v1478 = vpack.c.b16 %v1222, %v1220
  %v1479 = vpack.c.b16 %v1223, %v1221
  %v1480 = vpack.c.b16 %v1226, %v1224
  %v1481 = vpack.c.b16 %v1227, %v1225
  %v1482 = vpack.c.b16 %v1230, %v1228
  %v1483 = vpack.c.b16 %v1231, %v1229
  %v1484 = vpack.c.b16 %v1234, %v1232
  %v1485 = vpack.c.b16 %v1235, %v1233
  %v1486 = vpack.c.b16 %v1238, %v1236
  %v1487 = vpack.c.b16 %v1239, %v1237
  %v1488 = vpack.c.b16 %v1242, %v1240
  %v1489 = vpack.c.b16 %v1243, %v1241
  %v1490 = vpack.c.b16 %v1246, %v1244
  %v1491 = vpack.c.b16 %v1247, %v1245
  %v1492 = vpack.c.b16 %v1250, %v1248
  %v1493 = vpack.c.b16 %v1251, %v1249
  %v1494 = vpack.c.b16 %v1254, %v1252
  %v1495 = vpack.c.b16 %v1255, %v1253
  %v1496 = vpack.c.b16 %v1258, %v1256
  %v1497 = vpack.c.b16 %v1259, %v1257
  %v1498 = vpack.c.b16 %v1262, %v1260
  %v1499 = vpack.c.b16 %v1263, %v1261
  %v1500 = vpack.c.b16 %v1266, %v1264
  %v1501 = vpack.c.b16 %v1267, %v1265
  %v1502 = vpack.c.b16 %v1270, %v1268
  %v1503 = vpack.c.b16 %v1271, %v1269
  %v1504 = vpack.c.b16 %v1274, %v1272
  %v1505 = vpack.c.b16 %v1275, %v1273
  %v1506 = vpack.c.b16 %v1278, %v1276
  %v1507 = vpack.c.b16 %v1279, %v1277
  %v1508 = vpack.c.b16 %v1282, %v1280
  %v1509 = vpack.c.b16 %v1283, %v1281
  %v1510 = vpack.c.b16 %v1286, %v1284
  %v1511 = vpack.c.b16 %v1287, %v1285
  %v1512 = vpack.c.b16 %v1290, %v1288
  %v1513 = vpack.c.b16 %v1291, %v1289
  %v1514 = vpack.c.b16 %v1294, %v1292
  %v1515 = vpack.c.b16 %v1295, %v1293
  %v1516 = vpack.c.b16 %v1298, %v1296
  %v1517 = vpack.c.b16 %v1299, %v1297
  %v1518 = vpack.c.b16 %v1302, %v1300
  %v1519 = vpack.c.b16 %v1303, %v1301
  %v1520 = vpack.c.b16 %v1306, %v1304
  %v1521 = vpack.c.b16 %v1307, %v1305
  %v1522 = vpack.c.b16 %v1310, %v1308
  %v1523 = vpack.c.b16 %v1311, %v1309
  %v1524 = vpack.c.b16 %v1314, %v1312
  %v1525 = vpack.c.b16 %v1315, %v1313
  %v1526 = vpack.c.b16 %v1318, %v1316
  %v1527 = vpack.c.b16 %v1319, %v1317
  %v1528 = vpack.c.b16 %v1322, %v1320
  %v1529 = vpack.c.b16 %v1323, %v1321
  %v1530 = vpack.c.b16 %v1326, %v1324
  %v1531 = vpack.c.b16 %v1327, %v1325
  %v1532 = vpack.c.b16 %v1330, %v1328
  %v1533 = vpack.c.b16 %v1331, %v1329
  %v1534 = vpack.c.b16 %v1334, %v1332
  %v1535 = vpack.c.b16 %v1335, %v1333
  %v1536 = vpack.c.b16 %v1338, %v1336
  %v1537 = vpack.c.b16 %v1339, %v1337
  %v1538 = vpack.c.b16 %v1342, %v1340
  %v1539 = vpack.c.b16 %v1343, %v1341
  %v1540 = vpack.c.b16 %v1346, %v1344
  %v1541 = vpack.c.b16 %v1347, %v1345
  %v1542 = vpack.c.b16 %v1350, %v1348
  %v1543 = vpack.c.b16 %v1351, %v1349
  %v1544 = vpack.c.b16 %v1354, %v1352
  %v1545 = vpack.c.b16 %v1355, %v1353
  %v1546 = vpack.c.b16 %v1358, %v1356
  %v1547 = vpack.c.b16 %v1359, %v1357
  %v1548 = vpack.c.b16 %v1362, %v1360
  %v1549 = vpack.c.b16 %v1363, %v1361
  %v1550 = vpack.c.b16 %v1366, %v1364
  %v1551 = vpack.c.b16 %v1367, %v1365
  %v1552 = vpack.c.b16 %v1370, %v1368
  %v1553 = vpack.c.b16 %v1371, %v1369
  %v1554 = vpack.c.b16 %v1374, %v1372
  %v1555 = vpack.c.b16 %v1375, %v1373
  %v1556 = vpack.c.b16 %v1378, %v1376
  %v1557 = vpack.c.b16 %v1379, %v1377
  %v1558 = vpack.c.b16 %v1382, %v1380
  %v1559 = vpack.c.b16 %v1383, %v1381
  %v1560 = vpack.c.b16 %v1386, %v1384
  %v1561 = vpack.c.b16 %v1387, %v1385
  %v1562 = vpack.c.b16 %v1390, %v1388
  %v1563 = vpack.c.b16 %v1391, %v1389
  %v1564 = vpack.c.b16 %v1394, %v1392
  %v1565 = vpack.c.b16 %v1395, %v1393
  %v1566 = vpack.c.b16 %v1398, %v1396
  %v1567 = vpack.c.b16 %v1399, %v1397
  %vm1736 = vcmask 523264
  %v1738 = vsel %vm1736, %v675, 0
  %v1741 = vsel %vm1736, %v686, 0
  %v1744 = vsel %vm1736, %v697, 0
  %v1747 = vsel %vm1736, %v708, 0
  %v1750 = vsel %vm1736, %v719, 0
  %v1753 = vsel %vm1736, %v730, 0
  %v1756 = vsel %vm1736, %v741, 0
  %v1759 = vsel %vm1736, %v752, 0
  %v1762 = vsel %vm1736, %v763, 0
  %v1765 = vsel %vm1736, %v774, 0
  %v1768 = vsel %vm1736, %v785, 0
  %1770 = vmatprep.subr.bf16.mxu0 %v1401
  %1771 = vmatpush1.bf16.msra.mxu0 %v1400
  %1772 = vmatprep.subr.bf16.mxu0 %v1403
  %1773 = vmatpush1.bf16.msra.mxu0 %v1402
  %1774 = vmatprep.subr.bf16.mxu0 %v1405
  %1775 = vmatpush1.bf16.msra.mxu0 %v1404
  %1776 = vmatprep.subr.bf16.mxu0 %v1407
  %1777 = vmatpush1.bf16.msra.mxu0 %v1406
  %1778 = vmatprep.subr.bf16.mxu0 %v1409
  %1779 = vmatpush1.bf16.msra.mxu0 %v1408
  %1780 = vmatprep.subr.bf16.mxu0 %v1411
  %1781 = vmatpush1.bf16.msra.mxu0 %v1410
  %1782 = vmatprep.subr.bf16.mxu0 %v1413
  %1783 = vmatpush1.bf16.msra.mxu0 %v1412
  %1784 = vmatprep.subr.bf16.mxu0 %v1415
  %1785 = vmatpush1.bf16.msra.mxu0 %v1414
  %1786 = vmatprep.subr.bf16.mxu0 %v1417
  %1787 = vmatpush1.bf16.msra.mxu0 %v1416
  %1788 = vmatprep.subr.bf16.mxu0 %v1419
  %1789 = vmatpush1.bf16.msra.mxu0 %v1418
  %1790 = vmatprep.subr.bf16.mxu0 %v1421
  %1791 = vmatpush1.bf16.msra.mxu0 %v1420
  %1792 = vmatprep.subr.bf16.mxu0 %v1423
  %1793 = vmatpush1.bf16.msra.mxu0 %v1422
  %1794 = vmatprep.subr.bf16.mxu0 %v1425
  %1795 = vmatpush1.bf16.msra.mxu0 %v1424
  %1796 = vmatprep.subr.bf16.mxu0 %v1427
  %1797 = vmatpush1.bf16.msra.mxu0 %v1426
  %1798 = vmatprep.subr.bf16.mxu0 %v1429
  %1799 = vmatpush1.bf16.msra.mxu0 %v1428
  %1800 = vmatprep.subr.bf16.mxu0 %v1431
  %1801 = vmatpush1.bf16.msra.mxu0 %v1430
  %1802 = vmatprep.mubr.bf16.mxu0 %v666
  %1803 = vmatmul.mubr.bf16.gmra.mrb[0].mxu0 %v665
  %v1804 = vpop.f32.mrb[0].mxu0
  %v1805 = vadd.f32 0.0, %v1804
  %v1806 = vpop.f32.mrb[0].mxu0
  %v1807 = vadd.f32 0.0, %v1806
  %v1808 = vpop.f32.mrb[0].mxu0
  %v1809 = vadd.f32 0.0, %v1808
  %v1810 = vpop.f32.mrb[0].mxu0
  %v1811 = vadd.f32 0.0, %v1810
  %1812 = vmatprep.mubr.bf16.mxu0 %v677
  %1813 = vmatmul.mubr.bf16.gmra.mrb[0].mxu0 %v676
  %v1814 = vpop.f32.mrb[0].mxu0
  %v1815 = vadd.f32 0.0, %v1814
  %v1816 = vpop.f32.mrb[0].mxu0
  %v1817 = vadd.f32 0.0, %v1816
  %v1818 = vpop.f32.mrb[0].mxu0
  %v1819 = vadd.f32 0.0, %v1818
  %v1820 = vpop.f32.mrb[0].mxu0
  %v1821 = vadd.f32 0.0, %v1820
  %1822 = vmatprep.mubr.bf16.mxu0 %v688
  %1823 = vmatmul.mubr.bf16.gmra.mrb[0].mxu0 %v687
  %v1824 = vpop.f32.mrb[0].mxu0
  %v1825 = vadd.f32 0.0, %v1824
  %v1826 = vpop.f32.mrb[0].mxu0
  %v1827 = vadd.f32 0.0, %v1826
  %v1828 = vpop.f32.mrb[0].mxu0
  %v1829 = vadd.f32 0.0, %v1828
  %v1830 = vpop.f32.mrb[0].mxu0
  %v1831 = vadd.f32 0.0, %v1830
  %1832 = vmatprep.mubr.bf16.mxu0 %v699
  %1833 = vmatmul.mubr.bf16.gmra.mrb[0].mxu0 %v698
  %v1834 = vpop.f32.mrb[0].mxu0
  %v1835 = vadd.f32 0.0, %v1834
  %v1836 = vpop.f32.mrb[0].mxu0
  %v1837 = vadd.f32 0.0, %v1836
  %v1838 = vpop.f32.mrb[0].mxu0
  %v1839 = vadd.f32 0.0, %v1838
  %v1840 = vpop.f32.mrb[0].mxu0
  %v1841 = vadd.f32 0.0, %v1840
  %1842 = vmatprep.mubr.bf16.mxu0 %v710
  %1843 = vmatmul.mubr.bf16.gmra.mrb[0].mxu0 %v709
  %v1844 = vpop.f32.mrb[0].mxu0
  %v1845 = vadd.f32 0.0, %v1844
  %v1846 = vpop.f32.mrb[0].mxu0
  %v1847 = vadd.f32 0.0, %v1846
  %v1848 = vpop.f32.mrb[0].mxu0
  %v1849 = vadd.f32 0.0, %v1848
  %v1850 = vpop.f32.mrb[0].mxu0
  %v1851 = vadd.f32 0.0, %v1850
  %1852 = vmatprep.mubr.bf16.mxu0 %v721
  %1853 = vmatmul.mubr.bf16.gmra.mrb[0].mxu0 %v720
  %v1854 = vpop.f32.mrb[0].mxu0
  %v1855 = vadd.f32 0.0, %v1854
  %v1856 = vpop.f32.mrb[0].mxu0
  %v1857 = vadd.f32 0.0, %v1856
  %v1858 = vpop.f32.mrb[0].mxu0
  %v1859 = vadd.f32 0.0, %v1858
  %v1860 = vpop.f32.mrb[0].mxu0
  %v1861 = vadd.f32 0.0, %v1860
  %1862 = vmatprep.mubr.bf16.mxu0 %v732
  %1863 = vmatmul.mubr.bf16.gmra.mrb[0].mxu0 %v731
  %v1864 = vpop.f32.mrb[0].mxu0
  %v1865 = vadd.f32 0.0, %v1864
  %v1866 = vpop.f32.mrb[0].mxu0
  %v1867 = vadd.f32 0.0, %v1866
  %v1868 = vpop.f32.mrb[0].mxu0
  %v1869 = vadd.f32 0.0, %v1868
  %v1870 = vpop.f32.mrb[0].mxu0
  %v1871 = vadd.f32 0.0, %v1870
  %1872 = vmatprep.mubr.bf16.mxu0 %v743
  %1873 = vmatmul.mubr.bf16.gmra.mrb[0].mxu0 %v742
  %v1874 = vpop.f32.mrb[0].mxu0
  %v1875 = vadd.f32 0.0, %v1874
  %v1876 = vpop.f32.mrb[0].mxu0
  %v1877 = vadd.f32 0.0, %v1876
  %v1878 = vpop.f32.mrb[0].mxu0
  %v1879 = vadd.f32 0.0, %v1878
  %v1880 = vpop.f32.mrb[0].mxu0
  %v1881 = vadd.f32 0.0, %v1880
  %1882 = vmatprep.mubr.bf16.mxu0 %v754
  %1883 = vmatmul.mubr.bf16.gmra.mrb[0].mxu0 %v753
  %v1884 = vpop.f32.mrb[0].mxu0
  %v1885 = vadd.f32 0.0, %v1884
  %v1886 = vpop.f32.mrb[0].mxu0
  %v1887 = vadd.f32 0.0, %v1886
  %v1888 = vpop.f32.mrb[0].mxu0
  %v1889 = vadd.f32 0.0, %v1888
  %v1890 = vpop.f32.mrb[0].mxu0
  %v1891 = vadd.f32 0.0, %v1890
  %1892 = vmatprep.mubr.bf16.mxu0 %v765
  %1893 = vmatmul.mubr.bf16.gmra.mrb[0].mxu0 %v764
  %v1894 = vpop.f32.mrb[0].mxu0
  %v1895 = vadd.f32 0.0, %v1894
  %v1896 = vpop.f32.mrb[0].mxu0
  %v1897 = vadd.f32 0.0, %v1896
  %v1898 = vpop.f32.mrb[0].mxu0
  %v1899 = vadd.f32 0.0, %v1898
  %v1900 = vpop.f32.mrb[0].mxu0
  %v1901 = vadd.f32 0.0, %v1900
  %1902 = vmatprep.mubr.bf16.mxu0 %v776
  %1903 = vmatmul.mubr.bf16.gmra.mrb[0].mxu0 %v775
  %v1904 = vpop.f32.mrb[0].mxu0
  %v1905 = vadd.f32 0.0, %v1904
  %v1906 = vpop.f32.mrb[0].mxu0
  %v1907 = vadd.f32 0.0, %v1906
  %v1908 = vpop.f32.mrb[0].mxu0
  %v1909 = vpop.f32.mrb[0].mxu0
  %1910 = vdwg.mxu0
  %1911 = vmatprep.subr.bf16.mxu0 %v1433
  %1912 = vmatpush1.bf16.msra.mxu0 %v1432
  %1913 = vmatprep.subr.bf16.mxu0 %v1435
  %1914 = vmatpush1.bf16.msra.mxu0 %v1434
  %1915 = vmatprep.subr.bf16.mxu0 %v1437
  %1916 = vmatpush1.bf16.msra.mxu0 %v1436
  %1917 = vmatprep.subr.bf16.mxu0 %v1439
  %1918 = vmatpush1.bf16.msra.mxu0 %v1438
  %1919 = vmatprep.subr.bf16.mxu0 %v1441
  %1920 = vmatpush1.bf16.msra.mxu0 %v1440
  %1921 = vmatprep.subr.bf16.mxu0 %v1443
  %1922 = vmatpush1.bf16.msra.mxu0 %v1442
  %1923 = vmatprep.subr.bf16.mxu0 %v1445
  %1924 = vmatpush1.bf16.msra.mxu0 %v1444
  %1925 = vmatprep.subr.bf16.mxu0 %v1447
  %1926 = vmatpush1.bf16.msra.mxu0 %v1446
  %1927 = vmatprep.subr.bf16.mxu0 %v1449
  %1928 = vmatpush1.bf16.msra.mxu0 %v1448
  %1929 = vmatprep.subr.bf16.mxu0 %v1451
  %1930 = vmatpush1.bf16.msra.mxu0 %v1450
  %1931 = vmatprep.subr.bf16.mxu0 %v1453
  %1932 = vmatpush1.bf16.msra.mxu0 %v1452
  %1933 = vmatprep.subr.bf16.mxu0 %v1455
  %1934 = vmatpush1.bf16.msra.mxu0 %v1454
  %1935 = vmatprep.subr.bf16.mxu0 %v1457
  %1936 = vmatpush1.bf16.msra.mxu0 %v1456
  %1937 = vmatprep.subr.bf16.mxu0 %v1459
  %1938 = vmatpush1.bf16.msra.mxu0 %v1458
  %1939 = vmatprep.subr.bf16.mxu0 %v1461
  %1940 = vmatpush1.bf16.msra.mxu0 %v1460
  %1941 = vmatprep.subr.bf16.mxu0 %v1463
  %1942 = vmatpush1.bf16.msra.mxu0 %v1462
  %1943 = vmatprep.mubr.bf16.mxu0 %v668
  %1944 = vmatmul.mubr.bf16.gmra.mrb[0].mxu0 %v667
  %v1945 = vpop.f32.mrb[0].mxu0
  %v1946 = vadd.f32 %v1805, %v1945
  %v1947 = vpop.f32.mrb[0].mxu0
  %v1948 = vadd.f32 %v1807, %v1947
  %v1949 = vpop.f32.mrb[0].mxu0
  %v1950 = vadd.f32 %v1809, %v1949
  %v1951 = vpop.f32.mrb[0].mxu0
  %v1952 = vadd.f32 %v1811, %v1951
  %1953 = vmatprep.mubr.bf16.mxu0 %v679
  %1954 = vmatmul.mubr.bf16.gmra.mrb[0].mxu0 %v678
  %v1955 = vpop.f32.mrb[0].mxu0
  %v1956 = vadd.f32 %v1815, %v1955
  %v1957 = vpop.f32.mrb[0].mxu0
  %v1958 = vadd.f32 %v1817, %v1957
  %v1959 = vpop.f32.mrb[0].mxu0
  %v1960 = vadd.f32 %v1819, %v1959
  %v1961 = vpop.f32.mrb[0].mxu0
  %v1962 = vadd.f32 %v1821, %v1961
  %1963 = vmatprep.mubr.bf16.mxu0 %v690
  %1964 = vmatmul.mubr.bf16.gmra.mrb[0].mxu0 %v689
  %v1965 = vpop.f32.mrb[0].mxu0
  %v1966 = vadd.f32 %v1825, %v1965
  %v1967 = vpop.f32.mrb[0].mxu0
  %v1968 = vadd.f32 %v1827, %v1967
  %v1969 = vpop.f32.mrb[0].mxu0
  %v1970 = vadd.f32 %v1829, %v1969
  %v1971 = vpop.f32.mrb[0].mxu0
  %v1972 = vadd.f32 %v1831, %v1971
  %1973 = vmatprep.mubr.bf16.mxu0 %v701
  %1974 = vmatmul.mubr.bf16.gmra.mrb[0].mxu0 %v700
  %v1975 = vpop.f32.mrb[0].mxu0
  %v1976 = vadd.f32 %v1835, %v1975
  %v1977 = vpop.f32.mrb[0].mxu0
  %v1978 = vadd.f32 %v1837, %v1977
  %v1979 = vpop.f32.mrb[0].mxu0
  %v1980 = vadd.f32 %v1839, %v1979
  %v1981 = vpop.f32.mrb[0].mxu0
  %v1982 = vadd.f32 %v1841, %v1981
  %1983 = vmatprep.mubr.bf16.mxu0 %v712
  %1984 = vmatmul.mubr.bf16.gmra.mrb[0].mxu0 %v711
  %v1985 = vpop.f32.mrb[0].mxu0
  %v1986 = vadd.f32 %v1845, %v1985
  %v1987 = vpop.f32.mrb[0].mxu0
  %v1988 = vadd.f32 %v1847, %v1987
  %v1989 = vpop.f32.mrb[0].mxu0
  %v1990 = vadd.f32 %v1849, %v1989
  %v1991 = vpop.f32.mrb[0].mxu0
  %v1992 = vadd.f32 %v1851, %v1991
  %1993 = vmatprep.mubr.bf16.mxu0 %v723
  %1994 = vmatmul.mubr.bf16.gmra.mrb[0].mxu0 %v722
  %v1995 = vpop.f32.mrb[0].mxu0
  %v1996 = vadd.f32 %v1855, %v1995
  %v1997 = vpop.f32.mrb[0].mxu0
  %v1998 = vadd.f32 %v1857, %v1997
  %v1999 = vpop.f32.mrb[0].mxu0
  %v2000 = vadd.f32 %v1859, %v1999
  %v2001 = vpop.f32.mrb[0].mxu0
  %v2002 = vadd.f32 %v1861, %v2001
  %2003 = vmatprep.mubr.bf16.mxu0 %v734
  %2004 = vmatmul.mubr.bf16.gmra.mrb[0].mxu0 %v733
  %v2005 = vpop.f32.mrb[0].mxu0
  %v2006 = vadd.f32 %v1865, %v2005
  %v2007 = vpop.f32.mrb[0].mxu0
  %v2008 = vadd.f32 %v1867, %v2007
  %v2009 = vpop.f32.mrb[0].mxu0
  %v2010 = vadd.f32 %v1869, %v2009
  %v2011 = vpop.f32.mrb[0].mxu0
  %v2012 = vadd.f32 %v1871, %v2011
  %2013 = vmatprep.mubr.bf16.mxu0 %v745
  %2014 = vmatmul.mubr.bf16.gmra.mrb[0].mxu0 %v744
  %v2015 = vpop.f32.mrb[0].mxu0
  %v2016 = vadd.f32 %v1875, %v2015
  %v2017 = vpop.f32.mrb[0].mxu0
  %v2018 = vadd.f32 %v1877, %v2017
  %v2019 = vpop.f32.mrb[0].mxu0
  %v2020 = vadd.f32 %v1879, %v2019
  %v2021 = vpop.f32.mrb[0].mxu0
  %v2022 = vadd.f32 %v1881, %v2021
  %2023 = vmatprep.mubr.bf16.mxu0 %v756
  %2024 = vmatmul.mubr.bf16.gmra.mrb[0].mxu0 %v755
  %v2025 = vpop.f32.mrb[0].mxu0
  %v2026 = vadd.f32 %v1885, %v2025
  %v2027 = vpop.f32.mrb[0].mxu0
  %v2028 = vadd.f32 %v1887, %v2027
  %v2029 = vpop.f32.mrb[0].mxu0
  %v2030 = vadd.f32 %v1889, %v2029
  %v2031 = vpop.f32.mrb[0].mxu0
  %v2032 = vadd.f32 %v1891, %v2031
  %2033 = vmatprep.mubr.bf16.mxu0 %v767
  %2034 = vmatmul.mubr.bf16.gmra.mrb[0].mxu0 %v766
  %v2035 = vpop.f32.mrb[0].mxu0
  %v2036 = vadd.f32 %v1895, %v2035
  %v2037 = vpop.f32.mrb[0].mxu0
  %v2038 = vadd.f32 %v1897, %v2037
  %v2039 = vpop.f32.mrb[0].mxu0
  %v2040 = vadd.f32 %v1899, %v2039
  %v2041 = vpop.f32.mrb[0].mxu0
  %v2042 = vadd.f32 %v1901, %v2041
  %2043 = vmatprep.mubr.bf16.mxu0 %v778
  %2044 = vmatmul.mubr.bf16.gmra.mrb[0].mxu0 %v777
  %v2045 = vpop.f32.mrb[0].mxu0
  %v2046 = vadd.f32 %v1905, %v2045
  %v2047 = vpop.f32.mrb[0].mxu0
  %v2048 = vadd.f32 %v1907, %v2047
  %v2049 = vpop.f32.mrb[0].mxu0
  %v2050 = vpop.f32.mrb[0].mxu0
  %2051 = vdwg.mxu0
  %2052 = vmatprep.subr.bf16.mxu0 %v1465
  %2053 = vmatpush1.bf16.msra.mxu0 %v1464
  %2054 = vmatprep.subr.bf16.mxu0 %v1467
  %2055 = vmatpush1.bf16.msra.mxu0 %v1466
  %2056 = vmatprep.subr.bf16.mxu0 %v1469
  %2057 = vmatpush1.bf16.msra.mxu0 %v1468
  %2058 = vmatprep.subr.bf16.mxu0 %v1471
  %2059 = vmatpush1.bf16.msra.mxu0 %v1470
  %2060 = vmatprep.subr.bf16.mxu0 %v1473
  %2061 = vmatpush1.bf16.msra.mxu0 %v1472
  %2062 = vmatprep.subr.bf16.mxu0 %v1475
  %2063 = vmatpush1.bf16.msra.mxu0 %v1474
  %2064 = vmatprep.subr.bf16.mxu0 %v1477
  %2065 = vmatpush1.bf16.msra.mxu0 %v1476
  %2066 = vmatprep.subr.bf16.mxu0 %v1479
  %2067 = vmatpush1.bf16.msra.mxu0 %v1478
  %2068 = vmatprep.subr.bf16.mxu0 %v1481
  %2069 = vmatpush1.bf16.msra.mxu0 %v1480
  %2070 = vmatprep.subr.bf16.mxu0 %v1483
  %2071 = vmatpush1.bf16.msra.mxu0 %v1482
  %2072 = vmatprep.subr.bf16.mxu0 %v1485
  %2073 = vmatpush1.bf16.msra.mxu0 %v1484
  %2074 = vmatprep.subr.bf16.mxu0 %v1487
  %2075 = vmatpush1.bf16.msra.mxu0 %v1486
  %2076 = vmatprep.subr.bf16.mxu0 %v1489
  %2077 = vmatpush1.bf16.msra.mxu0 %v1488
  %2078 = vmatprep.subr.bf16.mxu0 %v1491
  %2079 = vmatpush1.bf16.msra.mxu0 %v1490
  %2080 = vmatprep.subr.bf16.mxu0 %v1493
  %2081 = vmatpush1.bf16.msra.mxu0 %v1492
  %2082 = vmatprep.subr.bf16.mxu0 %v1495
  %2083 = vmatpush1.bf16.msra.mxu0 %v1494
  %2084 = vmatprep.mubr.bf16.mxu0 %v670
  %2085 = vmatmul.mubr.bf16.gmra.mrb[0].mxu0 %v669
  %v2086 = vpop.f32.mrb[0].mxu0
  %v2087 = vadd.f32 %v1946, %v2086
  %v2088 = vpop.f32.mrb[0].mxu0
  %v2089 = vadd.f32 %v1948, %v2088
  %v2090 = vpop.f32.mrb[0].mxu0
  %v2091 = vadd.f32 %v1950, %v2090
  %v2092 = vpop.f32.mrb[0].mxu0
  %v2093 = vadd.f32 %v1952, %v2092
  %2094 = vmatprep.mubr.bf16.mxu0 %v681
  %2095 = vmatmul.mubr.bf16.gmra.mrb[0].mxu0 %v680
  %v2096 = vpop.f32.mrb[0].mxu0
  %v2097 = vadd.f32 %v1956, %v2096
  %v2098 = vpop.f32.mrb[0].mxu0
  %v2099 = vadd.f32 %v1958, %v2098
  %v2100 = vpop.f32.mrb[0].mxu0
  %v2101 = vadd.f32 %v1960, %v2100
  %v2102 = vpop.f32.mrb[0].mxu0
  %v2103 = vadd.f32 %v1962, %v2102
  %2104 = vmatprep.mubr.bf16.mxu0 %v692
  %2105 = vmatmul.mubr.bf16.gmra.mrb[0].mxu0 %v691
  %v2106 = vpop.f32.mrb[0].mxu0
  %v2107 = vadd.f32 %v1966, %v2106
  %v2108 = vpop.f32.mrb[0].mxu0
  %v2109 = vadd.f32 %v1968, %v2108
  %v2110 = vpop.f32.mrb[0].mxu0
  %v2111 = vadd.f32 %v1970, %v2110
  %v2112 = vpop.f32.mrb[0].mxu0
  %v2113 = vadd.f32 %v1972, %v2112
  %2114 = vmatprep.mubr.bf16.mxu0 %v703
  %2115 = vmatmul.mubr.bf16.gmra.mrb[0].mxu0 %v702
  %v2116 = vpop.f32.mrb[0].mxu0
  %v2117 = vadd.f32 %v1976, %v2116
  %v2118 = vpop.f32.mrb[0].mxu0
  %v2119 = vadd.f32 %v1978, %v2118
  %v2120 = vpop.f32.mrb[0].mxu0
  %v2121 = vadd.f32 %v1980, %v2120
  %v2122 = vpop.f32.mrb[0].mxu0
  %v2123 = vadd.f32 %v1982, %v2122
  %2124 = vmatprep.mubr.bf16.mxu0 %v714
  %2125 = vmatmul.mubr.bf16.gmra.mrb[0].mxu0 %v713
  %v2126 = vpop.f32.mrb[0].mxu0
  %v2127 = vadd.f32 %v1986, %v2126
  %v2128 = vpop.f32.mrb[0].mxu0
  %v2129 = vadd.f32 %v1988, %v2128
  %v2130 = vpop.f32.mrb[0].mxu0
  %v2131 = vadd.f32 %v1990, %v2130
  %v2132 = vpop.f32.mrb[0].mxu0
  %v2133 = vadd.f32 %v1992, %v2132
  %2134 = vmatprep.mubr.bf16.mxu0 %v725
  %2135 = vmatmul.mubr.bf16.gmra.mrb[0].mxu0 %v724
  %v2136 = vpop.f32.mrb[0].mxu0
  %v2137 = vadd.f32 %v1996, %v2136
  %v2138 = vpop.f32.mrb[0].mxu0
  %v2139 = vadd.f32 %v1998, %v2138
  %v2140 = vpop.f32.mrb[0].mxu0
  %v2141 = vadd.f32 %v2000, %v2140
  %v2142 = vpop.f32.mrb[0].mxu0
  %v2143 = vadd.f32 %v2002, %v2142
  %2144 = vmatprep.mubr.bf16.mxu0 %v736
  %2145 = vmatmul.mubr.bf16.gmra.mrb[0].mxu0 %v735
  %v2146 = vpop.f32.mrb[0].mxu0
  %v2147 = vadd.f32 %v2006, %v2146
  %v2148 = vpop.f32.mrb[0].mxu0
  %v2149 = vadd.f32 %v2008, %v2148
  %v2150 = vpop.f32.mrb[0].mxu0
  %v2151 = vadd.f32 %v2010, %v2150
  %v2152 = vpop.f32.mrb[0].mxu0
  %v2153 = vadd.f32 %v2012, %v2152
  %2154 = vmatprep.mubr.bf16.mxu0 %v747
  %2155 = vmatmul.mubr.bf16.gmra.mrb[0].mxu0 %v746
  %v2156 = vpop.f32.mrb[0].mxu0
  %v2157 = vadd.f32 %v2016, %v2156
  %v2158 = vpop.f32.mrb[0].mxu0
  %v2159 = vadd.f32 %v2018, %v2158
  %v2160 = vpop.f32.mrb[0].mxu0
  %v2161 = vadd.f32 %v2020, %v2160
  %v2162 = vpop.f32.mrb[0].mxu0
  %v2163 = vadd.f32 %v2022, %v2162
  %2164 = vmatprep.mubr.bf16.mxu0 %v758
  %2165 = vmatmul.mubr.bf16.gmra.mrb[0].mxu0 %v757
  %v2166 = vpop.f32.mrb[0].mxu0
  %v2167 = vadd.f32 %v2026, %v2166
  %v2168 = vpop.f32.mrb[0].mxu0
  %v2169 = vadd.f32 %v2028, %v2168
  %v2170 = vpop.f32.mrb[0].mxu0
  %v2171 = vadd.f32 %v2030, %v2170
  %v2172 = vpop.f32.mrb[0].mxu0
  %v2173 = vadd.f32 %v2032, %v2172
  %2174 = vmatprep.mubr.bf16.mxu0 %v769
  %2175 = vmatmul.mubr.bf16.gmra.mrb[0].mxu0 %v768
  %v2176 = vpop.f32.mrb[0].mxu0
  %v2177 = vadd.f32 %v2036, %v2176
  %v2178 = vpop.f32.mrb[0].mxu0
  %v2179 = vadd.f32 %v2038, %v2178
  %v2180 = vpop.f32.mrb[0].mxu0
  %v2181 = vadd.f32 %v2040, %v2180
  %v2182 = vpop.f32.mrb[0].mxu0
  %v2183 = vadd.f32 %v2042, %v2182
  %2184 = vmatprep.mubr.bf16.mxu0 %v780
  %2185 = vmatmul.mubr.bf16.gmra.mrb[0].mxu0 %v779
  %v2186 = vpop.f32.mrb[0].mxu0
  %v2187 = vadd.f32 %v2046, %v2186
  %v2188 = vpop.f32.mrb[0].mxu0
  %v2189 = vadd.f32 %v2048, %v2188
  %v2190 = vpop.f32.mrb[0].mxu0
  %v2191 = vpop.f32.mrb[0].mxu0
  %2192 = vdwg.mxu0
  %2193 = vmatprep.subr.bf16.mxu0 %v1497
  %2194 = vmatpush1.bf16.msra.mxu0 %v1496
  %2195 = vmatprep.subr.bf16.mxu0 %v1499
  %2196 = vmatpush1.bf16.msra.mxu0 %v1498
  %2197 = vmatprep.subr.bf16.mxu0 %v1501
  %2198 = vmatpush1.bf16.msra.mxu0 %v1500
  %2199 = vmatprep.subr.bf16.mxu0 %v1503
  %2200 = vmatpush1.bf16.msra.mxu0 %v1502
  %2201 = vmatprep.subr.bf16.mxu0 %v1505
  %2202 = vmatpush1.bf16.msra.mxu0 %v1504
  %2203 = vmatprep.subr.bf16.mxu0 %v1507
  %2204 = vmatpush1.bf16.msra.mxu0 %v1506
  %2205 = vmatprep.subr.bf16.mxu0 %v1509
  %2206 = vmatpush1.bf16.msra.mxu0 %v1508
  %2207 = vmatprep.subr.bf16.mxu0 %v1511
  %2208 = vmatpush1.bf16.msra.mxu0 %v1510
  %2209 = vmatprep.subr.bf16.mxu0 %v1513
  %2210 = vmatpush1.bf16.msra.mxu0 %v1512
  %2211 = vmatprep.subr.bf16.mxu0 %v1515
  %2212 = vmatpush1.bf16.msra.mxu0 %v1514
  %2213 = vmatprep.subr.bf16.mxu0 %v1517
  %2214 = vmatpush1.bf16.msra.mxu0 %v1516
  %2215 = vmatprep.subr.bf16.mxu0 %v1519
  %2216 = vmatpush1.bf16.msra.mxu0 %v1518
  %2217 = vmatprep.subr.bf16.mxu0 %v1521
  %2218 = vmatpush1.bf16.msra.mxu0 %v1520
  %2219 = vmatprep.subr.bf16.mxu0 %v1523
  %2220 = vmatpush1.bf16.msra.mxu0 %v1522
  %2221 = vmatprep.subr.bf16.mxu0 %v1525
  %2222 = vmatpush1.bf16.msra.mxu0 %v1524
  %2223 = vmatprep.subr.bf16.mxu0 %v1527
  %2224 = vmatpush1.bf16.msra.mxu0 %v1526
  %2225 = vmatprep.mubr.bf16.mxu0 %v672
  %2226 = vmatmul.mubr.bf16.gmra.mrb[0].mxu0 %v671
  %v2227 = vpop.f32.mrb[0].mxu0
  %v2228 = vadd.f32 %v2087, %v2227
  %v2229 = vpop.f32.mrb[0].mxu0
  %v2230 = vadd.f32 %v2089, %v2229
  %v2231 = vpop.f32.mrb[0].mxu0
  %v2232 = vadd.f32 %v2091, %v2231
  %v2233 = vpop.f32.mrb[0].mxu0
  %v2234 = vadd.f32 %v2093, %v2233
  %2235 = vmatprep.mubr.bf16.mxu0 %v683
  %2236 = vmatmul.mubr.bf16.gmra.mrb[0].mxu0 %v682
  %v2237 = vpop.f32.mrb[0].mxu0
  %v2238 = vadd.f32 %v2097, %v2237
  %v2239 = vpop.f32.mrb[0].mxu0
  %v2240 = vadd.f32 %v2099, %v2239
  %v2241 = vpop.f32.mrb[0].mxu0
  %v2242 = vadd.f32 %v2101, %v2241
  %v2243 = vpop.f32.mrb[0].mxu0
  %v2244 = vadd.f32 %v2103, %v2243
  %2245 = vmatprep.mubr.bf16.mxu0 %v694
  %2246 = vmatmul.mubr.bf16.gmra.mrb[0].mxu0 %v693
  %v2247 = vpop.f32.mrb[0].mxu0
  %v2248 = vadd.f32 %v2107, %v2247
  %v2249 = vpop.f32.mrb[0].mxu0
  %v2250 = vadd.f32 %v2109, %v2249
  %v2251 = vpop.f32.mrb[0].mxu0
  %v2252 = vadd.f32 %v2111, %v2251
  %v2253 = vpop.f32.mrb[0].mxu0
  %v2254 = vadd.f32 %v2113, %v2253
  %2255 = vmatprep.mubr.bf16.mxu0 %v705
  %2256 = vmatmul.mubr.bf16.gmra.mrb[0].mxu0 %v704
  %v2257 = vpop.f32.mrb[0].mxu0
  %v2258 = vadd.f32 %v2117, %v2257
  %v2259 = vpop.f32.mrb[0].mxu0
  %v2260 = vadd.f32 %v2119, %v2259
  %v2261 = vpop.f32.mrb[0].mxu0
  %v2262 = vadd.f32 %v2121, %v2261
  %v2263 = vpop.f32.mrb[0].mxu0
  %v2264 = vadd.f32 %v2123, %v2263
  %2265 = vmatprep.mubr.bf16.mxu0 %v716
  %2266 = vmatmul.mubr.bf16.gmra.mrb[0].mxu0 %v715
  %v2267 = vpop.f32.mrb[0].mxu0
  %v2268 = vadd.f32 %v2127, %v2267
  %v2269 = vpop.f32.mrb[0].mxu0
  %v2270 = vadd.f32 %v2129, %v2269
  %v2271 = vpop.f32.mrb[0].mxu0
  %v2272 = vadd.f32 %v2131, %v2271
  %v2273 = vpop.f32.mrb[0].mxu0
  %v2274 = vadd.f32 %v2133, %v2273
  %2275 = vmatprep.mubr.bf16.mxu0 %v727
  %2276 = vmatmul.mubr.bf16.gmra.mrb[0].mxu0 %v726
  %v2277 = vpop.f32.mrb[0].mxu0
  %v2278 = vadd.f32 %v2137, %v2277
  %v2279 = vpop.f32.mrb[0].mxu0
  %v2280 = vadd.f32 %v2139, %v2279
  %v2281 = vpop.f32.mrb[0].mxu0
  %v2282 = vadd.f32 %v2141, %v2281
  %v2283 = vpop.f32.mrb[0].mxu0
  %v2284 = vadd.f32 %v2143, %v2283
  %2285 = vmatprep.mubr.bf16.mxu0 %v738
  %2286 = vmatmul.mubr.bf16.gmra.mrb[0].mxu0 %v737
  %v2287 = vpop.f32.mrb[0].mxu0
  %v2288 = vadd.f32 %v2147, %v2287
  %v2289 = vpop.f32.mrb[0].mxu0
  %v2290 = vadd.f32 %v2149, %v2289
  %v2291 = vpop.f32.mrb[0].mxu0
  %v2292 = vadd.f32 %v2151, %v2291
  %v2293 = vpop.f32.mrb[0].mxu0
  %v2294 = vadd.f32 %v2153, %v2293
  %2295 = vmatprep.mubr.bf16.mxu0 %v749
  %2296 = vmatmul.mubr.bf16.gmra.mrb[0].mxu0 %v748
  %v2297 = vpop.f32.mrb[0].mxu0
  %v2298 = vadd.f32 %v2157, %v2297
  %v2299 = vpop.f32.mrb[0].mxu0
  %v2300 = vadd.f32 %v2159, %v2299
  %v2301 = vpop.f32.mrb[0].mxu0
  %v2302 = vadd.f32 %v2161, %v2301
  %v2303 = vpop.f32.mrb[0].mxu0
  %v2304 = vadd.f32 %v2163, %v2303
  %2305 = vmatprep.mubr.bf16.mxu0 %v760
  %2306 = vmatmul.mubr.bf16.gmra.mrb[0].mxu0 %v759
  %v2307 = vpop.f32.mrb[0].mxu0
  %v2308 = vadd.f32 %v2167, %v2307
  %v2309 = vpop.f32.mrb[0].mxu0
  %v2310 = vadd.f32 %v2169, %v2309
  %v2311 = vpop.f32.mrb[0].mxu0
  %v2312 = vadd.f32 %v2171, %v2311
  %v2313 = vpop.f32.mrb[0].mxu0
  %v2314 = vadd.f32 %v2173, %v2313
  %2315 = vmatprep.mubr.bf16.mxu0 %v771
  %2316 = vmatmul.mubr.bf16.gmra.mrb[0].mxu0 %v770
  %v2317 = vpop.f32.mrb[0].mxu0
  %v2318 = vadd.f32 %v2177, %v2317
  %v2319 = vpop.f32.mrb[0].mxu0
  %v2320 = vadd.f32 %v2179, %v2319
  %v2321 = vpop.f32.mrb[0].mxu0
  %v2322 = vadd.f32 %v2181, %v2321
  %v2323 = vpop.f32.mrb[0].mxu0
  %v2324 = vadd.f32 %v2183, %v2323
  %2325 = vmatprep.mubr.bf16.mxu0 %v782
  %2326 = vmatmul.mubr.bf16.gmra.mrb[0].mxu0 %v781
  %v2327 = vpop.f32.mrb[0].mxu0
  %v2328 = vadd.f32 %v2187, %v2327
  %v2329 = vpop.f32.mrb[0].mxu0
  %v2330 = vadd.f32 %v2189, %v2329
  %v2331 = vpop.f32.mrb[0].mxu0
  %v2332 = vpop.f32.mrb[0].mxu0
  %2333 = vdwg.mxu0
  %2334 = vmatprep.subr.bf16.mxu0 %v1529
  %2335 = vmatpush1.bf16.msra.mxu0 %v1528
  %2336 = vmatprep.subr.bf16.mxu0 %v1531
  %2337 = vmatpush1.bf16.msra.mxu0 %v1530
  %2338 = vmatprep.subr.bf16.mxu0 %v1533
  %2339 = vmatpush1.bf16.msra.mxu0 %v1532
  %2340 = vmatprep.subr.bf16.mxu0 %v1535
  %2341 = vmatpush1.bf16.msra.mxu0 %v1534
  %2342 = vmatprep.subr.bf16.mxu0 %v1537
  %2343 = vmatpush1.bf16.msra.mxu0 %v1536
  %2344 = vmatprep.subr.bf16.mxu0 %v1539
  %2345 = vmatpush1.bf16.msra.mxu0 %v1538
  %2346 = vmatprep.subr.bf16.mxu0 %v1541
  %2347 = vmatpush1.bf16.msra.mxu0 %v1540
  %2348 = vmatprep.subr.bf16.mxu0 %v1543
  %2349 = vmatpush1.bf16.msra.mxu0 %v1542
  %2350 = vmatprep.subr.bf16.mxu0 %v1545
  %2351 = vmatpush1.bf16.msra.mxu0 %v1544
  %2352 = vmatprep.subr.bf16.mxu0 %v1547
  %2353 = vmatpush1.bf16.msra.mxu0 %v1546
  %2354 = vmatprep.subr.bf16.mxu0 %v1549
  %2355 = vmatpush1.bf16.msra.mxu0 %v1548
  %2356 = vmatprep.subr.bf16.mxu0 %v1551
  %2357 = vmatpush1.bf16.msra.mxu0 %v1550
  %2358 = vmatprep.subr.bf16.mxu0 %v1553
  %2359 = vmatpush1.bf16.msra.mxu0 %v1552
  %2360 = vmatprep.subr.bf16.mxu0 %v1555
  %2361 = vmatpush1.bf16.msra.mxu0 %v1554
  %2362 = vmatprep.subr.bf16.mxu0 %v1557
  %2363 = vmatpush1.bf16.msra.mxu0 %v1556
  %2364 = vmatprep.subr.bf16.mxu0 %v1559
  %2365 = vmatpush1.bf16.msra.mxu0 %v1558
  %2366 = vmatprep.mubr.bf16.mxu0 %v674
  %2367 = vmatmul.mubr.bf16.gmra.mrb[0].mxu0 %v673
  %v2368 = vpop.f32.mrb[0].mxu0
  %v2369 = vadd.f32 %v2228, %v2368
  %v2370 = vpop.f32.mrb[0].mxu0
  %v2371 = vadd.f32 %v2230, %v2370
  %v2372 = vpop.f32.mrb[0].mxu0
  %v2373 = vadd.f32 %v2232, %v2372
  %v2374 = vpop.f32.mrb[0].mxu0
  %v2375 = vadd.f32 %v2234, %v2374
  %2376 = vmatprep.mubr.bf16.mxu0 %v685
  %2377 = vmatmul.mubr.bf16.gmra.mrb[0].mxu0 %v684
  %v2378 = vpop.f32.mrb[0].mxu0
  %v2379 = vadd.f32 %v2238, %v2378
  %v2380 = vpop.f32.mrb[0].mxu0
  %v2381 = vadd.f32 %v2240, %v2380
  %v2382 = vpop.f32.mrb[0].mxu0
  %v2383 = vadd.f32 %v2242, %v2382
  %v2384 = vpop.f32.mrb[0].mxu0
  %v2385 = vadd.f32 %v2244, %v2384
  %2386 = vmatprep.mubr.bf16.mxu0 %v696
  %2387 = vmatmul.mubr.bf16.gmra.mrb[0].mxu0 %v695
  %v2388 = vpop.f32.mrb[0].mxu0
  %v2389 = vadd.f32 %v2248, %v2388
  %v2390 = vpop.f32.mrb[0].mxu0
  %v2391 = vadd.f32 %v2250, %v2390
  %v2392 = vpop.f32.mrb[0].mxu0
  %v2393 = vadd.f32 %v2252, %v2392
  %v2394 = vpop.f32.mrb[0].mxu0
  %v2395 = vadd.f32 %v2254, %v2394
  %2396 = vmatprep.mubr.bf16.mxu0 %v707
  %2397 = vmatmul.mubr.bf16.gmra.mrb[0].mxu0 %v706
  %v2398 = vpop.f32.mrb[0].mxu0
  %v2399 = vadd.f32 %v2258, %v2398
  %v2400 = vpop.f32.mrb[0].mxu0
  %v2401 = vadd.f32 %v2260, %v2400
  %v2402 = vpop.f32.mrb[0].mxu0
  %v2403 = vadd.f32 %v2262, %v2402
  %v2404 = vpop.f32.mrb[0].mxu0
  %v2405 = vadd.f32 %v2264, %v2404
  %2406 = vmatprep.mubr.bf16.mxu0 %v718
  %2407 = vmatmul.mubr.bf16.gmra.mrb[0].mxu0 %v717
  %v2408 = vpop.f32.mrb[0].mxu0
  %v2409 = vadd.f32 %v2268, %v2408
  %v2410 = vpop.f32.mrb[0].mxu0
  %v2411 = vadd.f32 %v2270, %v2410
  %v2412 = vpop.f32.mrb[0].mxu0
  %v2413 = vadd.f32 %v2272, %v2412
  %v2414 = vpop.f32.mrb[0].mxu0
  %v2415 = vadd.f32 %v2274, %v2414
  %2416 = vmatprep.mubr.bf16.mxu0 %v729
  %2417 = vmatmul.mubr.bf16.gmra.mrb[0].mxu0 %v728
  %v2418 = vpop.f32.mrb[0].mxu0
  %v2419 = vadd.f32 %v2278, %v2418
  %v2420 = vpop.f32.mrb[0].mxu0
  %v2421 = vadd.f32 %v2280, %v2420
  %v2422 = vpop.f32.mrb[0].mxu0
  %v2423 = vadd.f32 %v2282, %v2422
  %v2424 = vpop.f32.mrb[0].mxu0
  %v2425 = vadd.f32 %v2284, %v2424
  %2426 = vmatprep.mubr.bf16.mxu0 %v740
  %2427 = vmatmul.mubr.bf16.gmra.mrb[0].mxu0 %v739
  %v2428 = vpop.f32.mrb[0].mxu0
  %v2429 = vadd.f32 %v2288, %v2428
  %v2430 = vpop.f32.mrb[0].mxu0
  %v2431 = vadd.f32 %v2290, %v2430
  %v2432 = vpop.f32.mrb[0].mxu0
  %v2433 = vadd.f32 %v2292, %v2432
  %v2434 = vpop.f32.mrb[0].mxu0
  %v2435 = vadd.f32 %v2294, %v2434
  %2436 = vmatprep.mubr.bf16.mxu0 %v751
  %2437 = vmatmul.mubr.bf16.gmra.mrb[0].mxu0 %v750
  %v2438 = vpop.f32.mrb[0].mxu0
  %v2439 = vadd.f32 %v2298, %v2438
  %v2440 = vpop.f32.mrb[0].mxu0
  %v2441 = vadd.f32 %v2300, %v2440
  %v2442 = vpop.f32.mrb[0].mxu0
  %v2443 = vadd.f32 %v2302, %v2442
  %v2444 = vpop.f32.mrb[0].mxu0
  %v2445 = vadd.f32 %v2304, %v2444
  %2446 = vmatprep.mubr.bf16.mxu0 %v762
  %2447 = vmatmul.mubr.bf16.gmra.mrb[0].mxu0 %v761
  %v2448 = vpop.f32.mrb[0].mxu0
  %v2449 = vadd.f32 %v2308, %v2448
  %v2450 = vpop.f32.mrb[0].mxu0
  %v2451 = vadd.f32 %v2310, %v2450
  %v2452 = vpop.f32.mrb[0].mxu0
  %v2453 = vadd.f32 %v2312, %v2452
  %v2454 = vpop.f32.mrb[0].mxu0
  %v2455 = vadd.f32 %v2314, %v2454
  %2456 = vmatprep.mubr.bf16.mxu0 %v773
  %2457 = vmatmul.mubr.bf16.gmra.mrb[0].mxu0 %v772
  %v2458 = vpop.f32.mrb[0].mxu0
  %v2459 = vadd.f32 %v2318, %v2458
  %v2460 = vpop.f32.mrb[0].mxu0
  %v2461 = vadd.f32 %v2320, %v2460
  %v2462 = vpop.f32.mrb[0].mxu0
  %v2463 = vadd.f32 %v2322, %v2462
  %v2464 = vpop.f32.mrb[0].mxu0
  %v2465 = vadd.f32 %v2324, %v2464
  %2466 = vmatprep.mubr.bf16.mxu0 %v784
  %2467 = vmatmul.mubr.bf16.gmra.mrb[0].mxu0 %v783
  %v2468 = vpop.f32.mrb[0].mxu0
  %v2469 = vadd.f32 %v2328, %v2468
  %v2470 = vpop.f32.mrb[0].mxu0
  %v2471 = vadd.f32 %v2330, %v2470
  %v2472 = vpop.f32.mrb[0].mxu0
  %v2473 = vpop.f32.mrb[0].mxu0
  %2474 = vdwg.mxu0
  %2475 = vmatprep.subr.bf16.mxu0 %v1561
  %2476 = vmatpush1.bf16.msra.mxu0 %v1560
  %2477 = vmatprep.subr.bf16.mxu0 %v1563
  %2478 = vmatpush1.bf16.msra.mxu0 %v1562
  %2479 = vmatprep.subr.bf16.mxu0 %v1565
  %2480 = vmatpush1.bf16.msra.mxu0 %v1564
  %2481 = vmatprep.subr.bf16.mxu0 %v1567
  %2482 = vmatpush1.bf16.msra.mxu0 %v1566
  %2483 = vmatprep.subr.bf16.mxu0 0
  %2484 = vmatpush1.bf16.msra.mxu0 0
  %2485 = vmatprep.subr.bf16.mxu0 0
  %2486 = vmatpush1.bf16.msra.mxu0 0
  %2487 = vmatprep.subr.bf16.mxu0 0
  %2488 = vmatpush1.bf16.msra.mxu0 0
  %2489 = vmatprep.subr.bf16.mxu0 0
  %2490 = vmatpush1.bf16.msra.mxu0 0
  %2491 = vmatprep.subr.bf16.mxu0 0
  %2492 = vmatpush1.bf16.msra.mxu0 0
  %2493 = vmatprep.subr.bf16.mxu0 0
  %2494 = vmatpush1.bf16.msra.mxu0 0
  %2495 = vmatprep.subr.bf16.mxu0 0
  %2496 = vmatpush1.bf16.msra.mxu0 0
  %2497 = vmatprep.subr.bf16.mxu0 0
  %2498 = vmatpush1.bf16.msra.mxu0 0
  %2499 = vmatprep.subr.bf16.mxu0 0
  %2500 = vmatpush1.bf16.msra.mxu0 0
  %2501 = vmatprep.subr.bf16.mxu0 0
  %2502 = vmatpush1.bf16.msra.mxu0 0
  %2503 = vmatprep.subr.bf16.mxu0 0
  %2504 = vmatpush1.bf16.msra.mxu0 0
  %2505 = vmatprep.subr.bf16.mxu0 0
  %2506 = vmatpush1.bf16.msra.mxu0 0
  %2507 = vmatprep.mubr.bf16.mxu0 0
  %2508 = vmatmul.mubr.bf16.gmra.mrb[0].mxu0 %v1738
  %v2509 = vpop.f32.mrb[0].mxu0
  %v2510 = vadd.f32 %v2369, %v2509
  %v2511 = vpop.f32.mrb[0].mxu0
  %v2512 = vadd.f32 %v2371, %v2511
  %v2513 = vpop.f32.mrb[0].mxu0
  %v2514 = vadd.f32 %v2373, %v2513
  %v2515 = vpop.f32.mrb[0].mxu0
  %v2516 = vadd.f32 %v2375, %v2515
  %2517 = vmatprep.mubr.bf16.mxu0 0
  %2518 = vmatmul.mubr.bf16.gmra.mrb[0].mxu0 %v1741
  %v2519 = vpop.f32.mrb[0].mxu0
  %v2520 = vadd.f32 %v2379, %v2519
  %v2521 = vpop.f32.mrb[0].mxu0
  %v2522 = vadd.f32 %v2381, %v2521
  %v2523 = vpop.f32.mrb[0].mxu0
  %v2524 = vadd.f32 %v2383, %v2523
  %v2525 = vpop.f32.mrb[0].mxu0
  %v2526 = vadd.f32 %v2385, %v2525
  %2527 = vmatprep.mubr.bf16.mxu0 0
  %2528 = vmatmul.mubr.bf16.gmra.mrb[0].mxu0 %v1744
  %v2529 = vpop.f32.mrb[0].mxu0
  %v2530 = vadd.f32 %v2389, %v2529
  %v2531 = vpop.f32.mrb[0].mxu0
  %v2532 = vadd.f32 %v2391, %v2531
  %v2533 = vpop.f32.mrb[0].mxu0
  %v2534 = vadd.f32 %v2393, %v2533
  %v2535 = vpop.f32.mrb[0].mxu0
  %v2536 = vadd.f32 %v2395, %v2535
  %2537 = vmatprep.mubr.bf16.mxu0 0
  %2538 = vmatmul.mubr.bf16.gmra.mrb[0].mxu0 %v1747
  %v2539 = vpop.f32.mrb[0].mxu0
  %v2540 = vadd.f32 %v2399, %v2539
  %v2541 = vpop.f32.mrb[0].mxu0
  %v2542 = vadd.f32 %v2401, %v2541
  %v2543 = vpop.f32.mrb[0].mxu0
  %v2544 = vadd.f32 %v2403, %v2543
  %v2545 = vpop.f32.mrb[0].mxu0
  %v2546 = vadd.f32 %v2405, %v2545
  %2547 = vmatprep.mubr.bf16.mxu0 0
  %2548 = vmatmul.mubr.bf16.gmra.mrb[0].mxu0 %v1750
  %v2549 = vpop.f32.mrb[0].mxu0
  %v2550 = vadd.f32 %v2409, %v2549
  %v2551 = vpop.f32.mrb[0].mxu0
  %v2552 = vadd.f32 %v2411, %v2551
  %v2553 = vpop.f32.mrb[0].mxu0
  %v2554 = vadd.f32 %v2413, %v2553
  %v2555 = vpop.f32.mrb[0].mxu0
  %v2556 = vadd.f32 %v2415, %v2555
  %2557 = vmatprep.mubr.bf16.mxu0 0
  %2558 = vmatmul.mubr.bf16.gmra.mrb[0].mxu0 %v1753
  %v2559 = vpop.f32.mrb[0].mxu0
  %v2560 = vadd.f32 %v2419, %v2559
  %v2561 = vpop.f32.mrb[0].mxu0
  %v2562 = vadd.f32 %v2421, %v2561
  %v2563 = vpop.f32.mrb[0].mxu0
  %v2564 = vadd.f32 %v2423, %v2563
  %v2565 = vpop.f32.mrb[0].mxu0
  %v2566 = vadd.f32 %v2425, %v2565
  %2567 = vmatprep.mubr.bf16.mxu0 0
  %2568 = vmatmul.mubr.bf16.gmra.mrb[0].mxu0 %v1756
  %v2569 = vpop.f32.mrb[0].mxu0
  %v2570 = vadd.f32 %v2429, %v2569
  %v2571 = vpop.f32.mrb[0].mxu0
  %v2572 = vadd.f32 %v2431, %v2571
  %v2573 = vpop.f32.mrb[0].mxu0
  %v2574 = vadd.f32 %v2433, %v2573
  %v2575 = vpop.f32.mrb[0].mxu0
  %v2576 = vadd.f32 %v2435, %v2575
  %2577 = vmatprep.mubr.bf16.mxu0 0
  %2578 = vmatmul.mubr.bf16.gmra.mrb[0].mxu0 %v1759
  %v2579 = vpop.f32.mrb[0].mxu0
  %v2580 = vadd.f32 %v2439, %v2579
  %v2581 = vpop.f32.mrb[0].mxu0
  %v2582 = vadd.f32 %v2441, %v2581
  %v2583 = vpop.f32.mrb[0].mxu0
  %v2584 = vadd.f32 %v2443, %v2583
  %v2585 = vpop.f32.mrb[0].mxu0
  %v2586 = vadd.f32 %v2445, %v2585
  %2587 = vmatprep.mubr.bf16.mxu0 0
  %2588 = vmatmul.mubr.bf16.gmra.mrb[0].mxu0 %v1762
  %v2589 = vpop.f32.mrb[0].mxu0
  %v2590 = vadd.f32 %v2449, %v2589
  %v2591 = vpop.f32.mrb[0].mxu0
  %v2592 = vadd.f32 %v2451, %v2591
  %v2593 = vpop.f32.mrb[0].mxu0
  %v2594 = vadd.f32 %v2453, %v2593
  %v2595 = vpop.f32.mrb[0].mxu0
  %v2596 = vadd.f32 %v2455, %v2595
  %2597 = vmatprep.mubr.bf16.mxu0 0
  %2598 = vmatmul.mubr.bf16.gmra.mrb[0].mxu0 %v1765
  %v2599 = vpop.f32.mrb[0].mxu0
  %v2600 = vadd.f32 %v2459, %v2599
  %v2601 = vpop.f32.mrb[0].mxu0
  %v2602 = vadd.f32 %v2461, %v2601
  %v2603 = vpop.f32.mrb[0].mxu0
  %v2604 = vadd.f32 %v2463, %v2603
  %v2605 = vpop.f32.mrb[0].mxu0
  %v2606 = vadd.f32 %v2465, %v2605
  %2607 = vmatprep.mubr.bf16.mxu0 0
  %2608 = vmatmul.mubr.bf16.gmra.mrb[0].mxu0 %v1768
  %v2609 = vpop.f32.mrb[0].mxu0
  %v2610 = vadd.f32 %v2469, %v2609
  %v2611 = vpop.f32.mrb[0].mxu0
  %v2612 = vadd.f32 %v2471, %v2611
  %v2613 = vpop.f32.mrb[0].mxu0
  %v2614 = vpop.f32.mrb[0].mxu0
  %2615 = vdwg.mxu0
  %2616 = vst [vmem:[%s2] sm:$0xff] %v2510
  %2617 = vst [vmem:[%s2 + $0x8] sm:$0xff] %v2512
  %2618 = vst [vmem:[%s2 + $0x10] sm:$0xff] %v2514
  %2619 = vst [vmem:[%s2 + $0x18] sm:$0xff] %v2516
  %2620 = vst [vmem:[%s2 + $0x20] sm:$0xff] %v2520
  %2621 = vst [vmem:[%s2 + $0x28] sm:$0xff] %v2522
  %2622 = vst [vmem:[%s2 + $0x30] sm:$0xff] %v2524
  %2623 = vst [vmem:[%s2 + $0x38] sm:$0xff] %v2526
  %2624 = vst [vmem:[%s2 + $0x40] sm:$0xff] %v2530
  %2625 = vst [vmem:[%s2 + $0x48] sm:$0xff] %v2532
  %2626 = vst [vmem:[%s2 + $0x50] sm:$0xff] %v2534
  %2627 = vst [vmem:[%s2 + $0x58] sm:$0xff] %v2536
  %2628 = vst [vmem:[%s2 + $0x60] sm:$0xff] %v2540
  %2629 = vst [vmem:[%s2 + $0x68] sm:$0xff] %v2542
  %2630 = vst [vmem:[%s2 + $0x70] sm:$0xff] %v2544
  %2631 = vst [vmem:[%s2 + $0x78] sm:$0xff] %v2546
  %2632 = vst [vmem:[%s2 + $0x80] sm:$0xff] %v2550
  %2633 = vst [vmem:[%s2 + $0x88] sm:$0xff] %v2552
  %2634 = vst [vmem:[%s2 + $0x90] sm:$0xff] %v2554
  %2635 = vst [vmem:[%s2 + $0x98] sm:$0xff] %v2556
  %2636 = vst [vmem:[%s2 + $0xa0] sm:$0xff] %v2560
  %2637 = vst [vmem:[%s2 + $0xa8] sm:$0xff] %v2562
  %2638 = vst [vmem:[%s2 + $0xb0] sm:$0xff] %v2564
  %2639 = vst [vmem:[%s2 + $0xb8] sm:$0xff] %v2566
  %2640 = vst [vmem:[%s2 + $0xc0] sm:$0xff] %v2570
  %2641 = vst [vmem:[%s2 + $0xc8] sm:$0xff] %v2572
  %2642 = vst [vmem:[%s2 + $0xd0] sm:$0xff] %v2574
  %2643 = vst [vmem:[%s2 + $0xd8] sm:$0xff] %v2576
  %2644 = vst [vmem:[%s2 + $0xe0] sm:$0xff] %v2580
  %2645 = vst [vmem:[%s2 + $0xe8] sm:$0xff] %v2582
  %2646 = vst [vmem:[%s2 + $0xf0] sm:$0xff] %v2584
  %2647 = vst [vmem:[%s2 + $0xf8] sm:$0xff] %v2586
  %2648 = vst [vmem:[%s2 + $0x100] sm:$0xff] %v2590
  %2649 = vst [vmem:[%s2 + $0x108] sm:$0xff] %v2592
  %2650 = vst [vmem:[%s2 + $0x110] sm:$0xff] %v2594
  %2651 = vst [vmem:[%s2 + $0x118] sm:$0xff] %v2596
  %2652 = vst [vmem:[%s2 + $0x120] sm:$0xff] %v2600
  %2653 = vst [vmem:[%s2 + $0x128] sm:$0xff] %v2602
  %2654 = vst [vmem:[%s2 + $0x130] sm:$0xff] %v2604
  %2655 = vst [vmem:[%s2 + $0x138] sm:$0xff] %v2606
  %2656 = vst [vmem:[%s2 + $0x140] sm:$0xff] %v2610
  %2657 = vst [vmem:[%s2 + $0x148] sm:$0xff] %v2612
  %v2658 = vadd.f32 %v2510, %v2514
  %v2659 = vadd.f32 %v2658, %v2520
  %v2660 = vadd.f32 %v2659, %v2524
  %v2661 = vadd.f32 %v2660, %v2530
  %v2662 = vadd.f32 %v2661, %v2534
  %v2663 = vadd.f32 %v2662, %v2540
  %v2664 = vadd.f32 %v2663, %v2544
  %v2665 = vadd.f32 %v2664, %v2550
  %v2666 = vadd.f32 %v2665, %v2554
  %v2667 = vadd.f32 %v2666, %v2560
  %v2668 = vadd.f32 %v2667, %v2564
  %v2669 = vadd.f32 %v2668, %v2570
  %v2670 = vadd.f32 %v2669, %v2574
  %v2671 = vadd.f32 %v2670, %v2580
  %v2672 = vadd.f32 %v2671, %v2584
  %v2673 = vadd.f32 %v2672, %v2590
  %v2674 = vadd.f32 %v2673, %v2594
  %v2675 = vadd.f32 %v2674, %v2600
  %v2676 = vadd.f32 %v2675, %v2604
  %v2677 = vadd.f32 %v2676, %v2610
  %v2678 = vrot.slane %v2677, 4
  %v2679 = vadd.f32 %v2677, %v2678
  %v2680 = vrot.slane %v2679, 2
  %v2681 = vadd.f32 %v2679, %v2680
  %v2682 = vrot.slane %v2681, 1
  %v2683 = vadd.f32 %v2681, %v2682
  %v2684 = vadd.f32 %v2512, %v2516
  %v2685 = vadd.f32 %v2684, %v2522
  %v2686 = vadd.f32 %v2685, %v2526
  %v2687 = vadd.f32 %v2686, %v2532
  %v2688 = vadd.f32 %v2687, %v2536
  %v2689 = vadd.f32 %v2688, %v2542
  %v2690 = vadd.f32 %v2689, %v2546
  %v2691 = vadd.f32 %v2690, %v2552
  %v2692 = vadd.f32 %v2691, %v2556
  %v2693 = vadd.f32 %v2692, %v2562
  %v2694 = vadd.f32 %v2693, %v2566
  %v2695 = vadd.f32 %v2694, %v2572
  %v2696 = vadd.f32 %v2695, %v2576
  %v2697 = vadd.f32 %v2696, %v2582
  %v2698 = vadd.f32 %v2697, %v2586
  %v2699 = vadd.f32 %v2698, %v2592
  %v2700 = vadd.f32 %v2699, %v2596
  %v2701 = vadd.f32 %v2700, %v2602
  %v2702 = vadd.f32 %v2701, %v2606
  %v2703 = vadd.f32 %v2702, %v2612
  %v2704 = vrot.slane %v2703, 4
  %v2705 = vadd.f32 %v2703, %v2704
  %v2706 = vrot.slane %v2705, 2
  %v2707 = vadd.f32 %v2705, %v2706
  %v2708 = vrot.slane %v2707, 1
  %v2709 = vadd.f32 %v2707, %v2708
  %v2712 = vcombine.low %v2683, %v2709
  %v2714 = vunpack.c.l.s4 1966171168
  %v2715 = vunpack.c.0.s8 %v2714
  %v2716 = vlaneseq
  %v2717 = vshrl.u32 %v2716, 7
  %v2718 = vsub.s32 %v2715, %v2717
  %v2719 = vrot.slane %v2712, %v2718
  %v2721 = vunpack.c.l.s4 1966171168
  %v2722 = vunpack.c.0.s8 %v2721
  %v2723 = vlaneseq
  %v2724 = vshrl.u32 %v2723, 7
  %v2725 = vsub.s32 %v2722, %v2724
  %v2726 = vrot.slane %v2719, %v2725
  %v2728 = vlaneseq
  %vm2729 = vcmp.ge.s32.totalorder %v2728, 0
  %vm2730 = vcmp.lt.s32.totalorder %v2728, 256
  %vm2731 = vmand %vm2729, %vm2730
  %2732 = vst.msk [vmem:[%s3] ss:$2 sm:$0x3] %vm2731, %v2726
  %v2733 = vmul.f32 %v2510, %v2510
  %v2734 = vmul.f32 %v2512, %v2512
  %v2735 = vmul.f32 %v2514, %v2514
  %v2736 = vmul.f32 %v2516, %v2516
  %v2737 = vmul.f32 %v2520, %v2520
  %v2738 = vmul.f32 %v2522, %v2522
  %v2739 = vmul.f32 %v2524, %v2524
  %v2740 = vmul.f32 %v2526, %v2526
  %v2741 = vmul.f32 %v2530, %v2530
  %v2742 = vmul.f32 %v2532, %v2532
  %v2743 = vmul.f32 %v2534, %v2534
  %v2744 = vmul.f32 %v2536, %v2536
  %v2745 = vmul.f32 %v2540, %v2540
  %v2746 = vmul.f32 %v2542, %v2542
  %v2747 = vmul.f32 %v2544, %v2544
  %v2748 = vmul.f32 %v2546, %v2546
  %v2749 = vmul.f32 %v2550, %v2550
  %v2750 = vmul.f32 %v2552, %v2552
  %v2751 = vmul.f32 %v2554, %v2554
  %v2752 = vmul.f32 %v2556, %v2556
  %v2753 = vmul.f32 %v2560, %v2560
  %v2754 = vmul.f32 %v2562, %v2562
  %v2755 = vmul.f32 %v2564, %v2564
  %v2756 = vmul.f32 %v2566, %v2566
  %v2757 = vmul.f32 %v2570, %v2570
  %v2758 = vmul.f32 %v2572, %v2572
  %v2759 = vmul.f32 %v2574, %v2574
  %v2760 = vmul.f32 %v2576, %v2576
  %v2761 = vmul.f32 %v2580, %v2580
  %v2762 = vmul.f32 %v2582, %v2582
  %v2763 = vmul.f32 %v2584, %v2584
  %v2764 = vmul.f32 %v2586, %v2586
  %v2765 = vmul.f32 %v2590, %v2590
  %v2766 = vmul.f32 %v2592, %v2592
  %v2767 = vmul.f32 %v2594, %v2594
  %v2768 = vmul.f32 %v2596, %v2596
  %v2769 = vmul.f32 %v2600, %v2600
  %v2770 = vmul.f32 %v2602, %v2602
  %v2771 = vmul.f32 %v2604, %v2604
  %v2772 = vmul.f32 %v2606, %v2606
  %v2773 = vmul.f32 %v2610, %v2610
  %v2774 = vmul.f32 %v2612, %v2612
  %v2775 = vadd.f32 %v2733, %v2735
  %v2776 = vadd.f32 %v2775, %v2737
  %v2777 = vadd.f32 %v2776, %v2739
  %v2778 = vadd.f32 %v2777, %v2741
  %v2779 = vadd.f32 %v2778, %v2743
  %v2780 = vadd.f32 %v2779, %v2745
  %v2781 = vadd.f32 %v2780, %v2747
  %v2782 = vadd.f32 %v2781, %v2749
  %v2783 = vadd.f32 %v2782, %v2751
  %v2784 = vadd.f32 %v2783, %v2753
  %v2785 = vadd.f32 %v2784, %v2755
  %v2786 = vadd.f32 %v2785, %v2757
  %v2787 = vadd.f32 %v2786, %v2759
  %v2788 = vadd.f32 %v2787, %v2761
  %v2789 = vadd.f32 %v2788, %v2763
  %v2790 = vadd.f32 %v2789, %v2765
  %v2791 = vadd.f32 %v2790, %v2767
  %v2792 = vadd.f32 %v2791, %v2769
  %v2793 = vadd.f32 %v2792, %v2771
  %v2794 = vadd.f32 %v2793, %v2773
  %v2795 = vrot.slane %v2794, 4
  %v2796 = vadd.f32 %v2794, %v2795
  %v2797 = vrot.slane %v2796, 2
  %v2798 = vadd.f32 %v2796, %v2797
  %v2799 = vrot.slane %v2798, 1
  %v2800 = vadd.f32 %v2798, %v2799
  %v2801 = vadd.f32 %v2734, %v2736
  %v2802 = vadd.f32 %v2801, %v2738
  %v2803 = vadd.f32 %v2802, %v2740
  %v2804 = vadd.f32 %v2803, %v2742
  %v2805 = vadd.f32 %v2804, %v2744
  %v2806 = vadd.f32 %v2805, %v2746
  %v2807 = vadd.f32 %v2806, %v2748
  %v2808 = vadd.f32 %v2807, %v2750
  %v2809 = vadd.f32 %v2808, %v2752
  %v2810 = vadd.f32 %v2809, %v2754
  %v2811 = vadd.f32 %v2810, %v2756
  %v2812 = vadd.f32 %v2811, %v2758
  %v2813 = vadd.f32 %v2812, %v2760
  %v2814 = vadd.f32 %v2813, %v2762
  %v2815 = vadd.f32 %v2814, %v2764
  %v2816 = vadd.f32 %v2815, %v2766
  %v2817 = vadd.f32 %v2816, %v2768
  %v2818 = vadd.f32 %v2817, %v2770
  %v2819 = vadd.f32 %v2818, %v2772
  %v2820 = vadd.f32 %v2819, %v2774
  %v2821 = vrot.slane %v2820, 4
  %v2822 = vadd.f32 %v2820, %v2821
  %v2823 = vrot.slane %v2822, 2
  %v2824 = vadd.f32 %v2822, %v2823
  %v2825 = vrot.slane %v2824, 1
  %v2826 = vadd.f32 %v2824, %v2825
  %v2829 = vcombine.low %v2800, %v2826
  %v2831 = vunpack.c.l.s4 1966171168
  %v2832 = vunpack.c.0.s8 %v2831
  %v2833 = vlaneseq
  %v2834 = vshrl.u32 %v2833, 7
  %v2835 = vsub.s32 %v2832, %v2834
  %v2836 = vrot.slane %v2829, %v2835
  %v2838 = vunpack.c.l.s4 1966171168
  %v2839 = vunpack.c.0.s8 %v2838
  %v2840 = vlaneseq
  %v2841 = vshrl.u32 %v2840, 7
  %v2842 = vsub.s32 %v2839, %v2841
  %v2843 = vrot.slane %v2836, %v2842
  %s2845 = scalar_lea.vmem %s3, 1
  %2846 = vst.msk [vmem:[%s2845] ss:$2 sm:$0x3] %vm2731, %v2843
  // Predicated region
  $region10: #{inception_d_forward.19} parent=0 // pred_check
    _
  $region11: #{inception_d_forward.19} parent=0 // pred_check_branch
    %2848 = sbr.rel (0) target = $region13
  $region12: #{inception_d_forward.19} parent=0 // pred_region
    _
  $region13: #{inception_d_forward.19} parent=0 // pred_fallthru
    _
  // Predicated region
  $region14: #{inception_d_forward.19} parent=0 // pred_check
    _
  $region15: #{inception_d_forward.19} parent=0 // pred_check_branch
    %2850 = sbr.rel (0) target = $region17
  $region16: #{inception_d_forward.19} parent=0 // pred_region
    _
  $region17: #{inception_d_forward.19} parent=0 // pred_fallthru
    _
  // Predicated region
  $region18: #{inception_d_forward.19} parent=0 // pred_check
    _
  $region19: #{inception_d_forward.19} parent=0 // pred_check_branch
    %2852 = sbr.rel (0) target = $region21
  $region20: #{inception_d_forward.19} parent=0 // pred_region
    _
  $region21: #{inception_d_forward.19} parent=0 // pred_fallthru
    _
  // Predicated region
  $region22: #{inception_d_forward.19} parent=0 // pred_check
    _
  $region23: #{inception_d_forward.19} parent=0 // pred_check_branch
    %2854 = sbr.rel (0) target = $region25
  $region24: #{inception_d_forward.19} parent=0 // pred_region
    _
  $region25: #{inception_d_forward.19} parent=0 // pred_fallthru
    _

// kernel: inception_d_forward.24
$region0: #{inception_d_forward.24}
  #allocation0 [shape = 'u32[]', space=smem, size = 0x4, offset = 0x4, fixed_abs, tag = 'smem constant byte address 0x4 - core index']
  #allocation1 [shape = 'u32[144,128]{1,0:T(1,128)}', space=vmem, size = 0x12000, scoped, tag = 'internal scratch']
  %s0 = inlined_call_operand.vmem [shape: f32[32,256], index: 0, kind: input, shape index: {}]
  %s1 = inlined_call_operand.vmem [shape: f32[1,256], index: 1, kind: input, shape index: {}]
  %s2 = inlined_call_operand.vmem [shape: f32[1,256], index: 2, kind: input, shape index: {}]
  %s3 = inlined_call_operand.vmem [shape: f32[32,256], index: 3, kind: output, shape index: {}]
  %s4 = sld [smem:[#allocation0]]
  $region22: #{inception_d_forward.24} parent=0
    _
  %s6 = ssub.s32 1, %s4
  %s7 = scalar_select 0, %s6, %s4
  // Predicated region
  $region2: #{inception_d_forward.24} parent=0 // pred_check
    _
  $region3: #{inception_d_forward.24} parent=0 // pred_check_branch
    %9 = sbr.rel (0) target = $region5
  $region4: #{inception_d_forward.24} parent=0 // pred_region
    _
  $region5: #{inception_d_forward.24} parent=0 // pred_fallthru
    _
  // Predicated region
  $region6: #{inception_d_forward.24} parent=0 // pred_check
    _
  $region7: #{inception_d_forward.24} parent=0 // pred_check_branch
    %11 = sbr.rel (0) target = $region9
  $region8: #{inception_d_forward.24} parent=0 // pred_region
    _
  $region9: #{inception_d_forward.24} parent=0 // pred_fallthru
    _
  // Predicated region
  $region10: #{inception_d_forward.24} parent=0 // pred_check
    _
  $region11: #{inception_d_forward.24} parent=0 // pred_check_branch
    %13 = sbr.rel (0) target = $region13
  $region12: #{inception_d_forward.24} parent=0 // pred_region
    _
  $region13: #{inception_d_forward.24} parent=0 // pred_fallthru
    _
  %v14 = vld [vmem:[%s0] sm:$0xff]
  %v15 = vld [vmem:[%s0 + $0x8] sm:$0xff]
  %v16 = vld [vmem:[%s0 + $0x10] sm:$0xff]
  %v17 = vld [vmem:[%s0 + $0x18] sm:$0xff]
  %v18 = vld [vmem:[%s0 + $0x20] sm:$0xff]
  %v19 = vld [vmem:[%s0 + $0x28] sm:$0xff]
  %v20 = vld [vmem:[%s0 + $0x30] sm:$0xff]
  %v21 = vld [vmem:[%s0 + $0x38] sm:$0xff]
  %v22 = vld [vmem:[%s1] sm:$0x3]
  %v24 = vlaneseq
  %v25 = vshrl.u32 %v24, 7
  %v26 = vsub.s32 0, %v25
  %v27 = vrot.slane %v22, %v26
  %v28 = vlaneseq
  %v29 = vshrl.u32 %v28, 7
  %v30 = vsub.s32 1, %v29
  %v31 = vrot.slane %v22, %v30
  %v34 = vmul.f32 %v14, %v27
  %v35 = vmul.f32 %v15, %v31
  %v36 = vmul.f32 %v16, %v27
  %v37 = vmul.f32 %v17, %v31
  %v38 = vmul.f32 %v18, %v27
  %v39 = vmul.f32 %v19, %v31
  %v40 = vmul.f32 %v20, %v27
  %v41 = vmul.f32 %v21, %v31
  %v42 = vld [vmem:[%s2] sm:$0x3]
  %v44 = vlaneseq
  %v45 = vshrl.u32 %v44, 7
  %v46 = vsub.s32 0, %v45
  %v47 = vrot.slane %v42, %v46
  %v48 = vlaneseq
  %v49 = vshrl.u32 %v48, 7
  %v50 = vsub.s32 1, %v49
  %v51 = vrot.slane %v42, %v50
  %v54 = vadd.f32 %v34, %v47
  %v55 = vadd.f32 %v35, %v51
  %v56 = vadd.f32 %v36, %v47
  %v57 = vadd.f32 %v37, %v51
  %v58 = vadd.f32 %v38, %v47
  %v59 = vadd.f32 %v39, %v51
  %v60 = vadd.f32 %v40, %v47
  %v61 = vadd.f32 %v41, %v51
  %v62 = vmax.f32 %v54, 0.0
  %v63 = vmax.f32 %v55, 0.0
  %v64 = vmax.f32 %v56, 0.0
  %v65 = vmax.f32 %v57, 0.0
  %v66 = vmax.f32 %v58, 0.0
  %v67 = vmax.f32 %v59, 0.0
  %v68 = vmax.f32 %v60, 0.0
  %v69 = vmax.f32 %v61, 0.0
  %70 = vst [vmem:[%s3] sm:$0xff] %v62
  %71 = vst [vmem:[%s3 + $0x8] sm:$0xff] %v63
  %72 = vst [vmem:[%s3 + $0x10] sm:$0xff] %v64
  %73 = vst [vmem:[%s3 + $0x18] sm:$0xff] %v65
  %74 = vst [vmem:[%s3 + $0x20] sm:$0xff] %v66
  %75 = vst [vmem:[%s3 + $0x28] sm:$0xff] %v67
  %76 = vst [vmem:[%s3 + $0x30] sm:$0xff] %v68
  %77 = vst [vmem:[%s3 + $0x38] sm:$0xff] %v69
  // Predicated region
  $region14: #{inception_d_forward.24} parent=0 // pred_check
    _
  $region15: #{inception_d_forward.24} parent=0 // pred_check_branch
    %79 = sbr.rel (0) target = $region17
  $region16: #{inception_d_forward.24} parent=0 // pred_region
    _
  $region17: #{inception_d_forward.24} parent=0 // pred_fallthru
    _
  // Predicated region
  $region18: #{inception_d_forward.24} parent=0 // pred_check
    _
  $region19: #{inception_d_forward.24} parent=0 // pred_check_branch
    %81 = sbr.rel (0) target = $region21
  $region20: #{inception_d_forward.24} parent=0 // pred_region
    _
  $region21: #{inception_d_forward.24} parent=0 // pred_fallthru
    _

// kernel: inception_d_forward.25
$region0: #{inception_d_forward.25}
  #allocation0 [shape = 'u32[]', space=smem, size = 0x4, offset = 0x4, fixed_abs, tag = 'smem constant byte address 0x4 - core index']
  #allocation1 [shape = 'u32[144,128]{1,0:T(1,128)}', space=vmem, size = 0x12000, scoped, tag = 'internal scratch']
  %s0 = inlined_call_operand.vmem [shape: f32[2,5,5,16], index: 0, kind: input, shape index: {}]
  %s1 = inlined_call_operand.vmem [shape: f32[2,5,4,16], index: 1, kind: input, shape index: {}]
  %s2 = inlined_call_operand.vmem [shape: f32[2,4,5,16], index: 2, kind: input, shape index: {}]
  %s3 = inlined_call_operand.vmem [shape: f32[2,4,4,16], index: 3, kind: input, shape index: {}]
  %s4 = inlined_call_operand.vmem [shape: f32[2,4,4,16], index: 4, kind: output, shape index: {}]
  %s5 = sld [smem:[#allocation0]]
  $region49: #{inception_d_forward.25} parent=0
    _
  %s7 = ssub.s32 1, %s5
  %s8 = scalar_select 0, %s7, %s5
  loop: start=0, step=1, limit=4
  $region2: #{inception_d_forward.25} parent=0 // loop_pre_header
    _
  $region3: #{inception_d_forward.25} parent=0 // loop_header
    %s10 = sphi 0, %s14
    %p11 = scmp.ge.s32.totalorder %s10, 4
    %s20 = sphi 0, %s22
    %s23 = sphi 0, %s20
    %s24 = sphi 0, %s23
    %s40 = sphi 0, %s24
    %s46 = sphi 0, %s48
    %s49 = sphi 0, %s46
    %s50 = sphi 0, %s49
    %s66 = sphi 0, %s50
    %s72 = sphi 0, %s74
    %s75 = sphi 0, %s72
    %s76 = sphi 0, %s75
    %s92 = sphi 0, %s76
    %s98 = sphi 0, %s100
    %s101 = sphi 0, %s98
    %s102 = sphi 0, %s101
    %s118 = sphi 0, %s102
    %s124 = sphi 0, %s126
    %s127 = sphi 0, %s124
    %s128 = sphi 0, %s127
    %s144 = sphi 0, %s128
  $region4: #{inception_d_forward.25} parent=0 // loop_header_branch
    %13 = sbr.rel (%p11) target = $region8
  $region5: #{inception_d_forward.25} parent=0 // loop_body
    %s15 = ssub.s32 %s10, 1
    %s16 = ssub.s32 %s10, 2
    %s17 = sadd.s32 %s10, 1
    %s18 = ssub.s32 %s10, %s17
    %p19 = scmp.eq.s32.totalorder %s18, 0
    %s21 = sadd.s32 %s20, 1
    %s22 = scalar_select %p19, %s20, %s21
    %p25 = pneg %p19
    %p26 = scmp.eq.s32.totalorder %s10, 1
    %p27 = por %p25, %p26
    %p28 = scmp.ne.s32.totalorder %s20, %s23
    %p29 = scmp.eq.s32.totalorder %s10, 0
    %p30 = por %p28, %p29
    %p31 = scmp.ne.s32.totalorder %s20, %s23
    %p32 = scmp.eq.s32.totalorder %s15, 1
    %p33 = por %p31, %p32
    %p34 = scmp.ne.s32.totalorder %s23, %s24
    %p35 = scmp.eq.s32.totalorder %s15, 0
    %p36 = por %p34, %p35
    %p37 = scmp.ne.s32.totalorder %s23, %s24
    %p38 = scmp.eq.s32.totalorder %s16, 1
    %p39 = por %p37, %p38
    %p41 = scmp.ne.s32.totalorder %s24, %s40
    %p42 = scmp.eq.s32.totalorder %s16, 0
    %p43 = por %p41, %p42
    %s44 = ssub.s32 %s10, %s17
    %p45 = scmp.eq.s32.totalorder %s44, 0
    %s47 = sadd.s32 %s46, 1
    %s48 = scalar_select %p45, %s46, %s47
    %p51 = pneg %p45
    %p52 = scmp.eq.s32.totalorder %s10, 1
    %p53 = por %p51, %p52
    %p54 = scmp.ne.s32.totalorder %s46, %s49
    %p55 = scmp.eq.s32.totalorder %s10, 0
    %p56 = por %p54, %p55
    %p57 = scmp.ne.s32.totalorder %s46, %s49
    %p58 = scmp.eq.s32.totalorder %s15, 1
    %p59 = por %p57, %p58
    %p60 = scmp.ne.s32.totalorder %s49, %s50
    %p61 = scmp.eq.s32.totalorder %s15, 0
    %p62 = por %p60, %p61
    %p63 = scmp.ne.s32.totalorder %s49, %s50
    %p64 = scmp.eq.s32.totalorder %s16, 1
    %p65 = por %p63, %p64
    %p67 = scmp.ne.s32.totalorder %s50, %s66
    %p68 = scmp.eq.s32.totalorder %s16, 0
    %p69 = por %p67, %p68
    %s70 = ssub.s32 %s10, %s17
    %p71 = scmp.eq.s32.totalorder %s70, 0
    %s73 = sadd.s32 %s72, 1
    %s74 = scalar_select %p71, %s72, %s73
    %p77 = pneg %p71
    %p78 = scmp.eq.s32.totalorder %s10, 1
    %p79 = por %p77, %p78
    %p80 = scmp.ne.s32.totalorder %s72, %s75
    %p81 = scmp.eq.s32.totalorder %s10, 0
    %p82 = por %p80, %p81
    %p83 = scmp.ne.s32.totalorder %s72, %s75
    %p84 = scmp.eq.s32.totalorder %s15, 1
    %p85 = por %p83, %p84
    %p86 = scmp.ne.s32.totalorder %s75, %s76
    %p87 = scmp.eq.s32.totalorder %s15, 0
    %p88 = por %p86, %p87
    %p89 = scmp.ne.s32.totalorder %s75, %s76
    %p90 = scmp.eq.s32.totalorder %s16, 1
    %p91 = por %p89, %p90
    %p93 = scmp.ne.s32.totalorder %s76, %s92
    %p94 = scmp.eq.s32.totalorder %s16, 0
    %p95 = por %p93, %p94
    %s96 = ssub.s32 %s10, %s17
    %p97 = scmp.eq.s32.totalorder %s96, 0
    %s99 = sadd.s32 %s98, 1
    %s100 = scalar_select %p97, %s98, %s99
    %p103 = pneg %p97
    %p104 = scmp.eq.s32.totalorder %s10, 1
    %p105 = por %p103, %p104
    %p106 = scmp.ne.s32.totalorder %s98, %s101
    %p107 = scmp.eq.s32.totalorder %s10, 0
    %p108 = por %p106, %p107
    %p109 = scmp.ne.s32.totalorder %s98, %s101
    %p110 = scmp.eq.s32.totalorder %s15, 1
    %p111 = por %p109, %p110
    %p112 = scmp.ne.s32.totalorder %s101, %s102
    %p113 = scmp.eq.s32.totalorder %s15, 0
    %p114 = por %p112, %p113
    %p115 = scmp.ne.s32.totalorder %s101, %s102
    %p116 = scmp.eq.s32.totalorder %s16, 1
    %p117 = por %p115, %p116
    %p119 = scmp.ne.s32.totalorder %s102, %s118
    %p120 = scmp.eq.s32.totalorder %s16, 0
    %p121 = por %p119, %p120
    %s122 = ssub.s32 %s10, %s17
    %p123 = scmp.eq.s32.totalorder %s122, 0
    %s125 = sadd.s32 %s124, 1
    %s126 = scalar_select %p123, %s124, %s125
    %p129 = pneg %p123
    %p130 = scmp.eq.s32.totalorder %s10, 1
    %p131 = por %p129, %p130
    %p132 = scmp.ne.s32.totalorder %s124, %s127
    %p133 = scmp.eq.s32.totalorder %s10, 0
    %p134 = por %p132, %p133
    %p135 = scmp.ne.s32.totalorder %s124, %s127
    %p136 = scmp.eq.s32.totalorder %s15, 1
    %p137 = por %p135, %p136
    %p138 = scmp.ne.s32.totalorder %s127, %s128
    %p139 = scmp.eq.s32.totalorder %s15, 0
    %p140 = por %p138, %p139
    %p141 = scmp.ne.s32.totalorder %s127, %s128
    %p142 = scmp.eq.s32.totalorder %s16, 1
    %p143 = por %p141, %p142
    %p145 = scmp.ne.s32.totalorder %s128, %s144
    %p146 = scmp.eq.s32.totalorder %s16, 0
    %p147 = por %p145, %p146
    %p148 = scmp.le.s32.totalorder 1, %s10
    %p149 = scmp.lt.s32.totalorder %s10, 3
    %p150 = pnand %p148, %p149
    %p151 = pneg %p150
    // Predicated region
    $region9: #{inception_d_forward.25} parent=5 // pred_check
      _
    $region10: #{inception_d_forward.25} parent=5 // pred_check_branch
      %153 = sbr.rel (%p150) target = $region12
    $region11: #{inception_d_forward.25} parent=5 // pred_region
      %s154 = ssub.s32 %s10, 1
    $region12: #{inception_d_forward.25} parent=5 // pred_fallthru
      _
    %p155 = scmp.lt.s32.totalorder %s10, 2
    // Predicated region
    $region13: #{inception_d_forward.25} parent=5 // pred_check
      %p156 = pneg %p155
    $region14: #{inception_d_forward.25} parent=5 // pred_check_branch
      %158 = sbr.rel (%p156) target = $region16
    $region15: #{inception_d_forward.25} parent=5 // pred_region
      // Predicated region
      $region17: #{inception_d_forward.25} parent=15 // pred_check
        %p159 = pneg %p30
      $region18: #{inception_d_forward.25} parent=15 // pred_check_branch
        %161 = sbr.rel (%p159) target = $region20
      $region19: #{inception_d_forward.25} parent=15 // pred_region
        %p162 = scmp.lt.s32.totalorder %s10, 1
        %s163 = scalar_select %p162, %s10, 1
        %s164 = smul.addr %s163, 5
        %s165 = smul.addr %s164, 8
        %s166 = scalar_lea.vmem %s0, %s165
      $region20: #{inception_d_forward.25} parent=15 // pred_fallthru
        _
      // Predicated region
      $region21: #{inception_d_forward.25} parent=15 // pred_check
        %p167 = pneg %p56
      $region22: #{inception_d_forward.25} parent=15 // pred_check_branch
        %169 = sbr.rel (%p167) target = $region24
      $region23: #{inception_d_forward.25} parent=15 // pred_region
        %p170 = scmp.lt.s32.totalorder %s10, 1
        %s171 = scalar_select %p170, %s10, 1
        %s172 = smul.addr %s171, 5
        %s173 = smul.addr %s172, 4
        %s174 = scalar_lea.vmem %s1, %s173
      $region24: #{inception_d_forward.25} parent=15 // pred_fallthru
        _
      // Predicated region
      $region25: #{inception_d_forward.25} parent=15 // pred_check
        %p175 = pneg %p82
      $region26: #{inception_d_forward.25} parent=15 // pred_check_branch
        %177 = sbr.rel (%p175) target = $region28
      $region27: #{inception_d_forward.25} parent=15 // pred_region
        %p178 = scmp.lt.s32.totalorder %s10, 1
        %s179 = scalar_select %p178, %s10, 1
        %s180 = smul.addr %s179, 4
        %s181 = smul.addr %s180, 8
        %s182 = scalar_lea.vmem %s2, %s181
      $region28: #{inception_d_forward.25} parent=15 // pred_fallthru
        _
      // Predicated region
      $region29: #{inception_d_forward.25} parent=15 // pred_check
        %p183 = pneg %p108
      $region30: #{inception_d_forward.25} parent=15 // pred_check_branch
        %185 = sbr.rel (%p183) target = $region32
      $region31: #{inception_d_forward.25} parent=15 // pred_region
        %p186 = scmp.lt.s32.totalorder %s10, 1
        %s187 = scalar_select %p186, %s10, 1
        %s188 = smul.addr %s187, 4
        %s189 = smul.addr %s188, 4
        %s190 = scalar_lea.vmem %s3, %s189
      $region32: #{inception_d_forward.25} parent=15 // pred_fallthru
        _
    $region16: #{inception_d_forward.25} parent=5 // pred_fallthru
      _
    %p191 = scmp.le.s32.totalorder 1, %s10
    %p192 = scmp.lt.s32.totalorder %s10, 3
    %p193 = pnand %p191, %p192
    %p194 = pneg %p193
    // Predicated region
    $region33: #{inception_d_forward.25} parent=5 // pred_check
      _
    $region34: #{inception_d_forward.25} parent=5 // pred_check_branch
      %196 = sbr.rel (%p193) target = $region36
    $region35: #{inception_d_forward.25} parent=5 // pred_region
      %s197 = ssub.s32 %s10, 1
      %p198 = scmp.lt.s32.totalorder %s15, 1
      %s199 = scalar_select %p198, %s15, 1
      %s200 = smul.addr %s199, 5
      %s201 = smul.addr %s200, 8
      %s202 = scalar_lea.vmem %s0, %s201
      %p203 = pneg %p36
      %p204 = pneg %p33
      %p205 = scmp.lt.s32.totalorder %s15, 1
      %s206 = scalar_select %p205, %s15, 1
      %s207 = smul.addr %s206, 5
      %s208 = smul.addr %s207, 4
      %s209 = scalar_lea.vmem %s1, %s208
      %p210 = pneg %p62
      %p211 = pneg %p59
      %p212 = scmp.lt.s32.totalorder %s15, 1
      %s213 = scalar_select %p212, %s15, 1
      %s214 = smul.addr %s213, 4
      %s215 = smul.addr %s214, 8
      %s216 = scalar_lea.vmem %s2, %s215
      %p217 = pneg %p88
      %p218 = pneg %p85
      %p219 = scmp.lt.s32.totalorder %s15, 1
      %s220 = scalar_select %p219, %s15, 1
      %s221 = smul.addr %s220, 4
      %s222 = smul.addr %s221, 4
      %s223 = scalar_lea.vmem %s3, %s222
      %p224 = pneg %p114
      %p225 = pneg %p111
      %p226 = pneg %p140
      %p227 = pneg %p137
      %p228 = scmp.lt.s32.totalorder %s15, 1
      %s229 = scalar_select %p228, %s15, 1
      %s230 = smul.addr %s229, 4
      %s231 = smul.addr %s230, 4
      %s232 = scalar_lea.vmem %s4, %s231
      %p233 = scmp.lt.s32.totalorder %s15, 1
      %s234 = scalar_select %p233, %s15, 1
      %s235 = smul.addr %s234, 5
      %s236 = smul.addr %s235, 8
      %s237 = scalar_lea.vmem %s0, %s236
      %p238 = scmp.lt.s32.totalorder %s15, 1
      %s239 = scalar_select %p238, %s15, 1
      %s240 = smul.addr %s239, 5
      %s241 = smul.addr %s240, 4
      %s242 = scalar_lea.vmem %s1, %s241
      %p243 = scmp.lt.s32.totalorder %s15, 1
      %s244 = scalar_select %p243, %s15, 1
      %s245 = smul.addr %s244, 4
      %s246 = smul.addr %s245, 8
      %s247 = scalar_lea.vmem %s2, %s246
      %p248 = scmp.lt.s32.totalorder %s15, 1
      %s249 = scalar_select %p248, %s15, 1
      %s250 = smul.addr %s249, 4
      %s251 = smul.addr %s250, 4
      %s252 = scalar_lea.vmem %s3, %s251
      %p253 = scmp.lt.s32.totalorder %s15, 1
      %s254 = scalar_select %p253, %s15, 1
      %s255 = smul.addr %s254, 4
      %s256 = smul.addr %s255, 4
      %s257 = scalar_lea.vmem %s4, %s256
      %v258 = vld [vmem:[%s237] sm:$0xf]
      %v259 = vld [vmem:[%s237 + $0x8] sm:$0xf]
      %v260 = vld [vmem:[%s237 + $0x10] sm:$0xf]
      %v261 = vld [vmem:[%s237 + $0x18] sm:$0xf]
      %v262 = vld [vmem:[%s242] sm:$0xf]
      %v263 = vld [vmem:[%s242 + $0x4] sm:$0xf]
      %v264 = vld [vmem:[%s242 + $0x8] sm:$0xf]
      %v265 = vld [vmem:[%s242 + $0xc] sm:$0xf]
      %v266 = vmax.f32 %v258, %v262
      %v267 = vmax.f32 %v259, %v263
      %v268 = vmax.f32 %v260, %v264
      %v269 = vmax.f32 %v261, %v265
      %v270 = vld [vmem:[%s237 + $0x1] sm:$0xf]
      %v271 = vld [vmem:[%s237 + $0x9] sm:$0xf]
      %v272 = vld [vmem:[%s237 + $0x11] sm:$0xf]
      %v273 = vld [vmem:[%s237 + $0x19] sm:$0xf]
      %v274 = vmax.f32 %v266, %v270
      %v275 = vmax.f32 %v267, %v271
      %v276 = vmax.f32 %v268, %v272
      %v277 = vmax.f32 %v269, %v273
      %v278 = vld [vmem:[%s247] sm:$0xf]
      %v279 = vld [vmem:[%s247 + $0x8] sm:$0xf]
      %v280 = vld [vmem:[%s247 + $0x10] sm:$0xf]
      %v281 = vld [vmem:[%s247 + $0x18] sm:$0xf]
      %v282 = vmax.f32 %v274, %v278
      %v283 = vmax.f32 %v275, %v279
      %v284 = vmax.f32 %v276, %v280
      %v285 = vmax.f32 %v277, %v281
      %v286 = vld [vmem:[%s252] sm:$0xf]
      %v287 = vld [vmem:[%s252 + $0x4] sm:$0xf]
      %v288 = vld [vmem:[%s252 + $0x8] sm:$0xf]
      %v289 = vld [vmem:[%s252 + $0xc] sm:$0xf]
      %v290 = vmax.f32 %v282, %v286
      %v291 = vmax.f32 %v283, %v287
      %v292 = vmax.f32 %v284, %v288
      %v293 = vmax.f32 %v285, %v289
      %v294 = vld [vmem:[%s247 + $0x1] sm:$0xf]
      %v295 = vld [vmem:[%s247 + $0x9] sm:$0xf]
      %v296 = vld [vmem:[%s247 + $0x11] sm:$0xf]
      %v297 = vld [vmem:[%s247 + $0x19] sm:$0xf]
      %v298 = vmax.f32 %v290, %v294
      %v299 = vmax.f32 %v291, %v295
      %v300 = vmax.f32 %v292, %v296
      %v301 = vmax.f32 %v293, %v297
      %s302 = scalar_lea.vmem %s237, 8
      %v303 = vld [vmem:[%s302] sm:$0xf]
      %v304 = vld [vmem:[%s302 + $0x8] sm:$0xf]
      %v305 = vld [vmem:[%s302 + $0x10] sm:$0xf]
      %v306 = vld [vmem:[%s302 + $0x18] sm:$0xf]
      %v307 = vmax.f32 %v298, %v303
      %v308 = vmax.f32 %v299, %v304
      %v309 = vmax.f32 %v300, %v305
      %v310 = vmax.f32 %v301, %v306
      %s311 = scalar_lea.vmem %s242, 4
      %v312 = vld [vmem:[%s311] sm:$0xf]
      %v313 = vld [vmem:[%s311 + $0x4] sm:$0xf]
      %v314 = vld [vmem:[%s311 + $0x8] sm:$0xf]
      %v315 = vld [vmem:[%s311 + $0xc] sm:$0xf]
      %v316 = vmax.f32 %v307, %v312
      %v317 = vmax.f32 %v308, %v313
      %v318 = vmax.f32 %v309, %v314
      %v319 = vmax.f32 %v310, %v315
      %v320 = vld [vmem:[%s302 + $0x1] sm:$0xf]
      %v321 = vld [vmem:[%s302 + $0x9] sm:$0xf]
      %v322 = vld [vmem:[%s302 + $0x11] sm:$0xf]
      %v323 = vld [vmem:[%s302 + $0x19] sm:$0xf]
      %v324 = vmax.f32 %v316, %v320
      %v325 = vmax.f32 %v317, %v321
      %v326 = vmax.f32 %v318, %v322
      %v327 = vmax.f32 %v319, %v323
      %vm328 = vcmask 125952
      %329 = vst.msk [vmem:[%s257] sm:$0xf] %vm328, %v324
      %330 = vst.msk [vmem:[%s257 + $0x4] sm:$0xf] %vm328, %v325
      %331 = vst.msk [vmem:[%s257 + $0x8] sm:$0xf] %vm328, %v326
      %332 = vst.msk [vmem:[%s257 + $0xc] sm:$0xf] %vm328, %v327
      %p333 = scmp.lt.s32.totalorder %s15, 1
      %s334 = scalar_select %p333, %s15, 1
      %s335 = smul.addr %s334, 4
      %s336 = smul.addr %s335, 4
      %s337 = scalar_lea.vmem %s4, %s336
      // Predicated region
      $region37: #{inception_d_forward.25} parent=35 // pred_check
        %p338 = pneg %p137
      $region38: #{inception_d_forward.25} parent=35 // pred_check_branch
        %340 = sbr.rel (%p338) target = $region40
      $region39: #{inception_d_forward.25} parent=35 // pred_region
        _
      $region40: #{inception_d_forward.25} parent=35 // pred_fallthru
        _
    $region36: #{inception_d_forward.25} parent=5 // pred_fallthru
      _
    %p341 = scmp.le.s32.totalorder 2, %s10
    // Predicated region
    $region41: #{inception_d_forward.25} parent=5 // pred_check
      %p342 = pneg %p341
    $region42: #{inception_d_forward.25} parent=5 // pred_check_branch
      %344 = sbr.rel (%p342) target = $region44
    $region43: #{inception_d_forward.25} parent=5 // pred_region
      %s345 = ssub.s32 %s10, 2
      // Predicated region
      $region45: #{inception_d_forward.25} parent=43 // pred_check
        %p346 = pneg %p143
      $region46: #{inception_d_forward.25} parent=43 // pred_check_branch
        %348 = sbr.rel (%p346) target = $region48
      $region47: #{inception_d_forward.25} parent=43 // pred_region
        %p349 = scmp.lt.s32.totalorder %s16, 1
        %s350 = scalar_select %p349, %s16, 1
        %s351 = smul.addr %s350, 4
        %s352 = smul.addr %s351, 4
        %s353 = scalar_lea.vmem %s4, %s352
      $region48: #{inception_d_forward.25} parent=43 // pred_fallthru
        _
    $region44: #{inception_d_forward.25} parent=5 // pred_fallthru
      _
  $region6: #{inception_d_forward.25} parent=0 // loop_footer
    %s14 = sadd.s32 1, %s10
  $region7: #{inception_d_forward.25} parent=0 // loop_footer_branch
    %9 = sbr.rel target = $region3
  $region8: #{inception_d_forward.25} parent=0 // loop_exit
    _

// kernel: inception_d_forward.23
$region0: #{inception_d_forward.23}
  #allocation0 [shape = 'u32[]', space=smem, size = 0x4, offset = 0x4, fixed_abs, tag = 'smem constant byte address 0x4 - core index']
  #allocation1 [shape = 'u32[144,128]{1,0:T(1,128)}', space=vmem, size = 0x12000, scoped, tag = 'internal scratch']
  %s0 = inlined_call_operand.vmem [shape: bf16[32,1728], index: 0, kind: input, shape index: {}]
  %s1 = inlined_call_operand.vmem [shape: bf16[1728,256], index: 1, kind: input, shape index: {}]
  %s2 = inlined_call_operand.vmem [shape: f32[32,256], index: 2, kind: output, shape index: {0}]
  %s3 = inlined_call_operand.vmem [shape: f32[1,2,256], index: 3, kind: output, shape index: {1}]
  %4 = xla_tuple %s2, %s3
  %s5 = sld [smem:[#allocation0]]
  $region26: #{inception_d_forward.23} parent=0
    _
  %s7 = ssub.s32 1, %s5
  %s8 = scalar_select 0, %s7, %s5
  // Predicated region
  $region2: #{inception_d_forward.23} parent=0 // pred_check
    _
  $region3: #{inception_d_forward.23} parent=0 // pred_check_branch
    %10 = sbr.rel (0) target = $region5
  $region4: #{inception_d_forward.23} parent=0 // pred_region
    _
  $region5: #{inception_d_forward.23} parent=0 // pred_fallthru
    _
  // Predicated region
  $region6: #{inception_d_forward.23} parent=0 // pred_check
    _
  $region7: #{inception_d_forward.23} parent=0 // pred_check_branch
    %12 = sbr.rel (0) target = $region9
  $region8: #{inception_d_forward.23} parent=0 // pred_region
    _
  $region9: #{inception_d_forward.23} parent=0 // pred_fallthru
    _
  %v14 = vld [vmem:[%s0] sm:$0xff]
  %v15 = vld [vmem:[%s0 + $0x8] sm:$0xff]
  %v16 = vld [vmem:[%s0 + $0x10] sm:$0xff]
  %v17 = vld [vmem:[%s0 + $0x18] sm:$0xff]
  %v18 = vld [vmem:[%s0 + $0x20] sm:$0xff]
  %v19 = vld [vmem:[%s0 + $0x28] sm:$0xff]
  %v20 = vld [vmem:[%s0 + $0x30] sm:$0xff]
  %v21 = vld [vmem:[%s0 + $0x38] sm:$0xff]
  %v22 = vld [vmem:[%s0 + $0x40] sm:$0xff]
  %v23 = vld [vmem:[%s0 + $0x48] sm:$0xff]
  %v24 = vld [vmem:[%s0 + $0x50] sm:$0xff]
  %v25 = vld [vmem:[%s0 + $0x58] sm:$0xff]
  %v26 = vld [vmem:[%s0 + $0x60] sm:$0xff]
  %v27 = vld [vmem:[%s0 + $0x68] sm:$0xff]
  %v28 = vld [vmem:[%s0 + $0x70] sm:$0xff]
  %v29 = vld [vmem:[%s0 + $0x78] sm:$0xff]
  %v30 = vld [vmem:[%s0 + $0x80] sm:$0xff]
  %v31 = vld [vmem:[%s0 + $0x88] sm:$0xff]
  %v32 = vld [vmem:[%s0 + $0x90] sm:$0xff]
  %v33 = vld [vmem:[%s0 + $0x98] sm:$0xff]
  %v34 = vld [vmem:[%s0 + $0xa0] sm:$0xff]
  %v35 = vld [vmem:[%s0 + $0xa8] sm:$0xff]
  %v36 = vld [vmem:[%s0 + $0xb0] sm:$0xff]
  %v37 = vld [vmem:[%s0 + $0xb8] sm:$0xff]
  %v38 = vld [vmem:[%s0 + $0xc0] sm:$0xff]
  %v39 = vld [vmem:[%s0 + $0xc8] sm:$0xff]
  %v40 = vld [vmem:[%s0 + $0xd0] sm:$0xff]
  %v41 = vld [vmem:[%s0 + $0xd8] sm:$0xff]
  %v42 = vld [vmem:[%s1] sm:$0xff]
  %v43 = vld [vmem:[%s1 + $0x8] sm:$0xff]
  %v44 = vld [vmem:[%s1 + $0x10] sm:$0xff]
  %v45 = vld [vmem:[%s1 + $0x18] sm:$0xff]
  %v46 = vld [vmem:[%s1 + $0x20] sm:$0xff]
  %v47 = vld [vmem:[%s1 + $0x28] sm:$0xff]
  %v48 = vld [vmem:[%s1 + $0x30] sm:$0xff]
  %v49 = vld [vmem:[%s1 + $0x38] sm:$0xff]
  %v50 = vld [vmem:[%s1 + $0x40] sm:$0xff]
  %v51 = vld [vmem:[%s1 + $0x48] sm:$0xff]
  %v52 = vld [vmem:[%s1 + $0x50] sm:$0xff]
  %v53 = vld [vmem:[%s1 + $0x58] sm:$0xff]
  %v54 = vld [vmem:[%s1 + $0x60] sm:$0xff]
  %v55 = vld [vmem:[%s1 + $0x68] sm:$0xff]
  %v56 = vld [vmem:[%s1 + $0x70] sm:$0xff]
  %v57 = vld [vmem:[%s1 + $0x78] sm:$0xff]
  %v58 = vld [vmem:[%s1 + $0x80] sm:$0xff]
  %v59 = vld [vmem:[%s1 + $0x88] sm:$0xff]
  %v60 = vld [vmem:[%s1 + $0x90] sm:$0xff]
  %v61 = vld [vmem:[%s1 + $0x98] sm:$0xff]
  %v62 = vld [vmem:[%s1 + $0xa0] sm:$0xff]
  %v63 = vld [vmem:[%s1 + $0xa8] sm:$0xff]
  %v64 = vld [vmem:[%s1 + $0xb0] sm:$0xff]
  %v65 = vld [vmem:[%s1 + $0xb8] sm:$0xff]
  %v66 = vld [vmem:[%s1 + $0xc0] sm:$0xff]
  %v67 = vld [vmem:[%s1 + $0xc8] sm:$0xff]
  %v68 = vld [vmem:[%s1 + $0xd0] sm:$0xff]
  %v69 = vld [vmem:[%s1 + $0xd8] sm:$0xff]
  %v70 = vld [vmem:[%s1 + $0xe0] sm:$0xff]
  %v71 = vld [vmem:[%s1 + $0xe8] sm:$0xff]
  %v72 = vld [vmem:[%s1 + $0xf0] sm:$0xff]
  %v73 = vld [vmem:[%s1 + $0xf8] sm:$0xff]
  %v74 = vld [vmem:[%s1 + $0x100] sm:$0xff]
  %v75 = vld [vmem:[%s1 + $0x108] sm:$0xff]
  %v76 = vld [vmem:[%s1 + $0x110] sm:$0xff]
  %v77 = vld [vmem:[%s1 + $0x118] sm:$0xff]
  %v78 = vld [vmem:[%s1 + $0x120] sm:$0xff]
  %v79 = vld [vmem:[%s1 + $0x128] sm:$0xff]
  %v80 = vld [vmem:[%s1 + $0x130] sm:$0xff]
  %v81 = vld [vmem:[%s1 + $0x138] sm:$0xff]
  %v82 = vld [vmem:[%s1 + $0x140] sm:$0xff]
  %v83 = vld [vmem:[%s1 + $0x148] sm:$0xff]
  %v84 = vld [vmem:[%s1 + $0x150] sm:$0xff]
  %v85 = vld [vmem:[%s1 + $0x158] sm:$0xff]
  %v86 = vld [vmem:[%s1 + $0x160] sm:$0xff]
  %v87 = vld [vmem:[%s1 + $0x168] sm:$0xff]
  %v88 = vld [vmem:[%s1 + $0x170] sm:$0xff]
  %v89 = vld [vmem:[%s1 + $0x178] sm:$0xff]
  %v90 = vld [vmem:[%s1 + $0x180] sm:$0xff]
  %v91 = vld [vmem:[%s1 + $0x188] sm:$0xff]
  %v92 = vld [vmem:[%s1 + $0x190] sm:$0xff]
  %v93 = vld [vmem:[%s1 + $0x198] sm:$0xff]
  %v94 = vld [vmem:[%s1 + $0x1a0] sm:$0xff]
  %v95 = vld [vmem:[%s1 + $0x1a8] sm:$0xff]
  %v96 = vld [vmem:[%s1 + $0x1b0] sm:$0xff]
  %v97 = vld [vmem:[%s1 + $0x1b8] sm:$0xff]
  %v98 = vld [vmem:[%s1 + $0x1c0] sm:$0xff]
  %v99 = vld [vmem:[%s1 + $0x1c8] sm:$0xff]
  %v100 = vld [vmem:[%s1 + $0x1d0] sm:$0xff]
  %v101 = vld [vmem:[%s1 + $0x1d8] sm:$0xff]
  %v102 = vld [vmem:[%s1 + $0x1e0] sm:$0xff]
  %v103 = vld [vmem:[%s1 + $0x1e8] sm:$0xff]
  %v104 = vld [vmem:[%s1 + $0x1f0] sm:$0xff]
  %v105 = vld [vmem:[%s1 + $0x1f8] sm:$0xff]
  %v106 = vld [vmem:[%s1 + $0x200] sm:$0xff]
  %v107 = vld [vmem:[%s1 + $0x208] sm:$0xff]
  %v108 = vld [vmem:[%s1 + $0x210] sm:$0xff]
  %v109 = vld [vmem:[%s1 + $0x218] sm:$0xff]
  %v110 = vld [vmem:[%s1 + $0x220] sm:$0xff]
  %v111 = vld [vmem:[%s1 + $0x228] sm:$0xff]
  %v112 = vld [vmem:[%s1 + $0x230] sm:$0xff]
  %v113 = vld [vmem:[%s1 + $0x238] sm:$0xff]
  %v114 = vld [vmem:[%s1 + $0x240] sm:$0xff]
  %v115 = vld [vmem:[%s1 + $0x248] sm:$0xff]
  %v116 = vld [vmem:[%s1 + $0x250] sm:$0xff]
  %v117 = vld [vmem:[%s1 + $0x258] sm:$0xff]
  %v118 = vld [vmem:[%s1 + $0x260] sm:$0xff]
  %v119 = vld [vmem:[%s1 + $0x268] sm:$0xff]
  %v120 = vld [vmem:[%s1 + $0x270] sm:$0xff]
  %v121 = vld [vmem:[%s1 + $0x278] sm:$0xff]
  %v122 = vld [vmem:[%s1 + $0x280] sm:$0xff]
  %v123 = vld [vmem:[%s1 + $0x288] sm:$0xff]
  %v124 = vld [vmem:[%s1 + $0x290] sm:$0xff]
  %v125 = vld [vmem:[%s1 + $0x298] sm:$0xff]
  %v126 = vld [vmem:[%s1 + $0x2a0] sm:$0xff]
  %v127 = vld [vmem:[%s1 + $0x2a8] sm:$0xff]
  %v128 = vld [vmem:[%s1 + $0x2b0] sm:$0xff]
  %v129 = vld [vmem:[%s1 + $0x2b8] sm:$0xff]
  %v130 = vld [vmem:[%s1 + $0x2c0] sm:$0xff]
  %v131 = vld [vmem:[%s1 + $0x2c8] sm:$0xff]
  %v132 = vld [vmem:[%s1 + $0x2d0] sm:$0xff]
  %v133 = vld [vmem:[%s1 + $0x2d8] sm:$0xff]
  %v134 = vld [vmem:[%s1 + $0x2e0] sm:$0xff]
  %v135 = vld [vmem:[%s1 + $0x2e8] sm:$0xff]
  %v136 = vld [vmem:[%s1 + $0x2f0] sm:$0xff]
  %v137 = vld [vmem:[%s1 + $0x2f8] sm:$0xff]
  %v138 = vld [vmem:[%s1 + $0x300] sm:$0xff]
  %v139 = vld [vmem:[%s1 + $0x308] sm:$0xff]
  %v140 = vld [vmem:[%s1 + $0x310] sm:$0xff]
  %v141 = vld [vmem:[%s1 + $0x318] sm:$0xff]
  %v142 = vld [vmem:[%s1 + $0x320] sm:$0xff]
  %v143 = vld [vmem:[%s1 + $0x328] sm:$0xff]
  %v144 = vld [vmem:[%s1 + $0x330] sm:$0xff]
  %v145 = vld [vmem:[%s1 + $0x338] sm:$0xff]
  %v146 = vld [vmem:[%s1 + $0x340] sm:$0xff]
  %v147 = vld [vmem:[%s1 + $0x348] sm:$0xff]
  %v148 = vld [vmem:[%s1 + $0x350] sm:$0xff]
  %v149 = vld [vmem:[%s1 + $0x358] sm:$0xff]
  %v150 = vld [vmem:[%s1 + $0x360] sm:$0xff]
  %v151 = vld [vmem:[%s1 + $0x368] sm:$0xff]
  %v152 = vld [vmem:[%s1 + $0x370] sm:$0xff]
  %v153 = vld [vmem:[%s1 + $0x378] sm:$0xff]
  %v154 = vld [vmem:[%s1 + $0x380] sm:$0xff]
  %v155 = vld [vmem:[%s1 + $0x388] sm:$0xff]
  %v156 = vld [vmem:[%s1 + $0x390] sm:$0xff]
  %v157 = vld [vmem:[%s1 + $0x398] sm:$0xff]
  %v158 = vld [vmem:[%s1 + $0x3a0] sm:$0xff]
  %v159 = vld [vmem:[%s1 + $0x3a8] sm:$0xff]
  %v160 = vld [vmem:[%s1 + $0x3b0] sm:$0xff]
  %v161 = vld [vmem:[%s1 + $0x3b8] sm:$0xff]
  %v162 = vld [vmem:[%s1 + $0x3c0] sm:$0xff]
  %v163 = vld [vmem:[%s1 + $0x3c8] sm:$0xff]
  %v164 = vld [vmem:[%s1 + $0x3d0] sm:$0xff]
  %v165 = vld [vmem:[%s1 + $0x3d8] sm:$0xff]
  %v166 = vld [vmem:[%s1 + $0x3e0] sm:$0xff]
  %v167 = vld [vmem:[%s1 + $0x3e8] sm:$0xff]
  %v168 = vld [vmem:[%s1 + $0x3f0] sm:$0xff]
  %v169 = vld [vmem:[%s1 + $0x3f8] sm:$0xff]
  %v170 = vld [vmem:[%s1 + $0x400] sm:$0xff]
  %v171 = vld [vmem:[%s1 + $0x408] sm:$0xff]
  %v172 = vld [vmem:[%s1 + $0x410] sm:$0xff]
  %v173 = vld [vmem:[%s1 + $0x418] sm:$0xff]
  %v174 = vld [vmem:[%s1 + $0x420] sm:$0xff]
  %v175 = vld [vmem:[%s1 + $0x428] sm:$0xff]
  %v176 = vld [vmem:[%s1 + $0x430] sm:$0xff]
  %v177 = vld [vmem:[%s1 + $0x438] sm:$0xff]
  %v178 = vld [vmem:[%s1 + $0x440] sm:$0xff]
  %v179 = vld [vmem:[%s1 + $0x448] sm:$0xff]
  %v180 = vld [vmem:[%s1 + $0x450] sm:$0xff]
  %v181 = vld [vmem:[%s1 + $0x458] sm:$0xff]
  %v182 = vld [vmem:[%s1 + $0x460] sm:$0xff]
  %v183 = vld [vmem:[%s1 + $0x468] sm:$0xff]
  %v184 = vld [vmem:[%s1 + $0x470] sm:$0xff]
  %v185 = vld [vmem:[%s1 + $0x478] sm:$0xff]
  %v186 = vld [vmem:[%s1 + $0x480] sm:$0xff]
  %v187 = vld [vmem:[%s1 + $0x488] sm:$0xff]
  %v188 = vld [vmem:[%s1 + $0x490] sm:$0xff]
  %v189 = vld [vmem:[%s1 + $0x498] sm:$0xff]
  %v190 = vld [vmem:[%s1 + $0x4a0] sm:$0xff]
  %v191 = vld [vmem:[%s1 + $0x4a8] sm:$0xff]
  %v192 = vld [vmem:[%s1 + $0x4b0] sm:$0xff]
  %v193 = vld [vmem:[%s1 + $0x4b8] sm:$0xff]
  %v194 = vld [vmem:[%s1 + $0x4c0] sm:$0xff]
  %v195 = vld [vmem:[%s1 + $0x4c8] sm:$0xff]
  %v196 = vld [vmem:[%s1 + $0x4d0] sm:$0xff]
  %v197 = vld [vmem:[%s1 + $0x4d8] sm:$0xff]
  %v198 = vld [vmem:[%s1 + $0x4e0] sm:$0xff]
  %v199 = vld [vmem:[%s1 + $0x4e8] sm:$0xff]
  %v200 = vld [vmem:[%s1 + $0x4f0] sm:$0xff]
  %v201 = vld [vmem:[%s1 + $0x4f8] sm:$0xff]
  %v202 = vld [vmem:[%s1 + $0x500] sm:$0xff]
  %v203 = vld [vmem:[%s1 + $0x508] sm:$0xff]
  %v204 = vld [vmem:[%s1 + $0x510] sm:$0xff]
  %v205 = vld [vmem:[%s1 + $0x518] sm:$0xff]
  %v206 = vld [vmem:[%s1 + $0x520] sm:$0xff]
  %v207 = vld [vmem:[%s1 + $0x528] sm:$0xff]
  %v208 = vld [vmem:[%s1 + $0x530] sm:$0xff]
  %v209 = vld [vmem:[%s1 + $0x538] sm:$0xff]
  %v210 = vld [vmem:[%s1 + $0x540] sm:$0xff]
  %v211 = vld [vmem:[%s1 + $0x548] sm:$0xff]
  %v212 = vld [vmem:[%s1 + $0x550] sm:$0xff]
  %v213 = vld [vmem:[%s1 + $0x558] sm:$0xff]
  %v214 = vld [vmem:[%s1 + $0x560] sm:$0xff]
  %v215 = vld [vmem:[%s1 + $0x568] sm:$0xff]
  %v216 = vld [vmem:[%s1 + $0x570] sm:$0xff]
  %v217 = vld [vmem:[%s1 + $0x578] sm:$0xff]
  %v218 = vld [vmem:[%s1 + $0x580] sm:$0xff]
  %v219 = vld [vmem:[%s1 + $0x588] sm:$0xff]
  %v220 = vld [vmem:[%s1 + $0x590] sm:$0xff]
  %v221 = vld [vmem:[%s1 + $0x598] sm:$0xff]
  %v222 = vld [vmem:[%s1 + $0x5a0] sm:$0xff]
  %v223 = vld [vmem:[%s1 + $0x5a8] sm:$0xff]
  %v224 = vld [vmem:[%s1 + $0x5b0] sm:$0xff]
  %v225 = vld [vmem:[%s1 + $0x5b8] sm:$0xff]
  %v226 = vld [vmem:[%s1 + $0x5c0] sm:$0xff]
  %v227 = vld [vmem:[%s1 + $0x5c8] sm:$0xff]
  %v228 = vld [vmem:[%s1 + $0x5d0] sm:$0xff]
  %v229 = vld [vmem:[%s1 + $0x5d8] sm:$0xff]
  %v230 = vld [vmem:[%s1 + $0x5e0] sm:$0xff]
  %v231 = vld [vmem:[%s1 + $0x5e8] sm:$0xff]
  %v232 = vld [vmem:[%s1 + $0x5f0] sm:$0xff]
  %v233 = vld [vmem:[%s1 + $0x5f8] sm:$0xff]
  %v234 = vld [vmem:[%s1 + $0x600] sm:$0xff]
  %v235 = vld [vmem:[%s1 + $0x608] sm:$0xff]
  %v236 = vld [vmem:[%s1 + $0x610] sm:$0xff]
  %v237 = vld [vmem:[%s1 + $0x618] sm:$0xff]
  %v238 = vld [vmem:[%s1 + $0x620] sm:$0xff]
  %v239 = vld [vmem:[%s1 + $0x628] sm:$0xff]
  %v240 = vld [vmem:[%s1 + $0x630] sm:$0xff]
  %v241 = vld [vmem:[%s1 + $0x638] sm:$0xff]
  %v242 = vld [vmem:[%s1 + $0x640] sm:$0xff]
  %v243 = vld [vmem:[%s1 + $0x648] sm:$0xff]
  %v244 = vld [vmem:[%s1 + $0x650] sm:$0xff]
  %v245 = vld [vmem:[%s1 + $0x658] sm:$0xff]
  %v246 = vld [vmem:[%s1 + $0x660] sm:$0xff]
  %v247 = vld [vmem:[%s1 + $0x668] sm:$0xff]
  %v248 = vld [vmem:[%s1 + $0x670] sm:$0xff]
  %v249 = vld [vmem:[%s1 + $0x678] sm:$0xff]
  %v250 = vld [vmem:[%s1 + $0x680] sm:$0xff]
  %v251 = vld [vmem:[%s1 + $0x688] sm:$0xff]
  %v252 = vld [vmem:[%s1 + $0x690] sm:$0xff]
  %v253 = vld [vmem:[%s1 + $0x698] sm:$0xff]
  %v254 = vld [vmem:[%s1 + $0x6a0] sm:$0xff]
  %v255 = vld [vmem:[%s1 + $0x6a8] sm:$0xff]
  %v256 = vld [vmem:[%s1 + $0x6b0] sm:$0xff]
  %v257 = vld [vmem:[%s1 + $0x6b8] sm:$0xff]
  %v286 = vunpack.c.l.b16 %v14
  %v287 = vunpack.c.h.b16 %v14
  %v288 = vunpack.c.l.b16 %v15
  %v289 = vunpack.c.h.b16 %v15
  %v290 = vunpack.c.l.b16 %v16
  %v291 = vunpack.c.h.b16 %v16
  %v292 = vunpack.c.l.b16 %v17
  %v293 = vunpack.c.h.b16 %v17
  %v294 = vunpack.c.l.b16 %v18
  %v295 = vunpack.c.h.b16 %v18
  %v296 = vunpack.c.l.b16 %v19
  %v297 = vunpack.c.h.b16 %v19
  %v298 = vunpack.c.l.b16 %v20
  %v299 = vunpack.c.h.b16 %v20
  %v300 = vunpack.c.l.b16 %v21
  %v301 = vunpack.c.h.b16 %v21
  %v302 = vunpack.c.l.b16 %v22
  %v303 = vunpack.c.h.b16 %v22
  %v304 = vunpack.c.l.b16 %v23
  %v305 = vunpack.c.h.b16 %v23
  %v306 = vunpack.c.l.b16 %v24
  %v307 = vunpack.c.h.b16 %v24
  %v308 = vunpack.c.l.b16 %v25
  %v309 = vunpack.c.h.b16 %v25
  %v310 = vunpack.c.l.b16 %v26
  %v311 = vunpack.c.h.b16 %v26
  %v312 = vunpack.c.l.b16 %v27
  %v313 = vunpack.c.h.b16 %v27
  %v314 = vunpack.c.l.b16 %v28
  %v315 = vunpack.c.h.b16 %v28
  %v316 = vunpack.c.l.b16 %v29
  %v317 = vunpack.c.h.b16 %v29
  %v318 = vunpack.c.l.b16 %v30
  %v319 = vunpack.c.h.b16 %v30
  %v320 = vunpack.c.l.b16 %v31
  %v321 = vunpack.c.h.b16 %v31
  %v322 = vunpack.c.l.b16 %v32
  %v323 = vunpack.c.h.b16 %v32
  %v324 = vunpack.c.l.b16 %v33
  %v325 = vunpack.c.h.b16 %v33
  %v326 = vunpack.c.l.b16 %v34
  %v327 = vunpack.c.h.b16 %v34
  %v328 = vunpack.c.l.b16 %v35
  %v329 = vunpack.c.h.b16 %v35
  %v330 = vunpack.c.l.b16 %v36
  %v331 = vunpack.c.h.b16 %v36
  %v332 = vunpack.c.l.b16 %v37
  %v333 = vunpack.c.h.b16 %v37
  %v334 = vunpack.c.l.b16 %v38
  %v335 = vunpack.c.h.b16 %v38
  %v336 = vunpack.c.l.b16 %v39
  %v337 = vunpack.c.h.b16 %v39
  %v338 = vunpack.c.l.b16 %v40
  %v339 = vunpack.c.h.b16 %v40
  %v340 = vunpack.c.l.b16 %v41
  %v341 = vunpack.c.h.b16 %v41
  %v342 = vpack.c.b16 %v300, %v286
  %v343 = vpack.c.b16 %v301, %v287
  %v344 = vpack.c.b16 %v302, %v288
  %v345 = vpack.c.b16 %v303, %v289
  %v346 = vpack.c.b16 %v304, %v290
  %v347 = vpack.c.b16 %v305, %v291
  %v348 = vpack.c.b16 %v306, %v292
  %v349 = vpack.c.b16 %v307, %v293
  %v350 = vpack.c.b16 %v308, %v294
  %v351 = vpack.c.b16 %v309, %v295
  %v352 = vpack.c.b16 %v310, %v296
  %v353 = vpack.c.b16 %v311, %v297
  %v354 = vpack.c.b16 %v312, %v298
  %v355 = vpack.c.b16 %v313, %v299
  %v356 = vpack.c.b16 %v328, %v314
  %v357 = vpack.c.b16 %v329, %v315
  %v358 = vpack.c.b16 %v330, %v316
  %v359 = vpack.c.b16 %v331, %v317
  %v360 = vpack.c.b16 %v332, %v318
  %v361 = vpack.c.b16 %v333, %v319
  %v362 = vpack.c.b16 %v334, %v320
  %v363 = vpack.c.b16 %v335, %v321
  %v364 = vpack.c.b16 %v336, %v322
  %v365 = vpack.c.b16 %v337, %v323
  %v366 = vpack.c.b16 %v338, %v324
  %v367 = vpack.c.b16 %v339, %v325
  %v368 = vpack.c.b16 %v340, %v326
  %v369 = vpack.c.b16 %v341, %v327
  %v612 = vunpack.c.l.b16 %v42
  %v613 = vunpack.c.h.b16 %v42
  %v614 = vunpack.c.l.b16 %v43
  %v615 = vunpack.c.h.b16 %v43
  %v616 = vunpack.c.l.b16 %v44
  %v617 = vunpack.c.h.b16 %v44
  %v618 = vunpack.c.l.b16 %v45
  %v619 = vunpack.c.h.b16 %v45
  %v620 = vunpack.c.l.b16 %v46
  %v621 = vunpack.c.h.b16 %v46
  %v622 = vunpack.c.l.b16 %v47
  %v623 = vunpack.c.h.b16 %v47
  %v624 = vunpack.c.l.b16 %v48
  %v625 = vunpack.c.h.b16 %v48
  %v626 = vunpack.c.l.b16 %v49
  %v627 = vunpack.c.h.b16 %v49
  %v628 = vunpack.c.l.b16 %v50
  %v629 = vunpack.c.h.b16 %v50
  %v630 = vunpack.c.l.b16 %v51
  %v631 = vunpack.c.h.b16 %v51
  %v632 = vunpack.c.l.b16 %v52
  %v633 = vunpack.c.h.b16 %v52
  %v634 = vunpack.c.l.b16 %v53
  %v635 = vunpack.c.h.b16 %v53
  %v636 = vunpack.c.l.b16 %v54
  %v637 = vunpack.c.h.b16 %v54
  %v638 = vunpack.c.l.b16 %v55
  %v639 = vunpack.c.h.b16 %v55
  %v640 = vunpack.c.l.b16 %v56
  %v641 = vunpack.c.h.b16 %v56
  %v642 = vunpack.c.l.b16 %v57
  %v643 = vunpack.c.h.b16 %v57
  %v644 = vunpack.c.l.b16 %v58
  %v645 = vunpack.c.h.b16 %v58
  %v646 = vunpack.c.l.b16 %v59
  %v647 = vunpack.c.h.b16 %v59
  %v648 = vunpack.c.l.b16 %v60
  %v649 = vunpack.c.h.b16 %v60
  %v650 = vunpack.c.l.b16 %v61
  %v651 = vunpack.c.h.b16 %v61
  %v652 = vunpack.c.l.b16 %v62
  %v653 = vunpack.c.h.b16 %v62
  %v654 = vunpack.c.l.b16 %v63
  %v655 = vunpack.c.h.b16 %v63
  %v656 = vunpack.c.l.b16 %v64
  %v657 = vunpack.c.h.b16 %v64
  %v658 = vunpack.c.l.b16 %v65
  %v659 = vunpack.c.h.b16 %v65
  %v660 = vunpack.c.l.b16 %v66
  %v661 = vunpack.c.h.b16 %v66
  %v662 = vunpack.c.l.b16 %v67
  %v663 = vunpack.c.h.b16 %v67
  %v664 = vunpack.c.l.b16 %v68
  %v665 = vunpack.c.h.b16 %v68
  %v666 = vunpack.c.l.b16 %v69
  %v667 = vunpack.c.h.b16 %v69
  %v668 = vunpack.c.l.b16 %v70
  %v669 = vunpack.c.h.b16 %v70
  %v670 = vunpack.c.l.b16 %v71
  %v671 = vunpack.c.h.b16 %v71
  %v672 = vunpack.c.l.b16 %v72
  %v673 = vunpack.c.h.b16 %v72
  %v674 = vunpack.c.l.b16 %v73
  %v675 = vunpack.c.h.b16 %v73
  %v676 = vunpack.c.l.b16 %v74
  %v677 = vunpack.c.h.b16 %v74
  %v678 = vunpack.c.l.b16 %v75
  %v679 = vunpack.c.h.b16 %v75
  %v680 = vunpack.c.l.b16 %v76
  %v681 = vunpack.c.h.b16 %v76
  %v682 = vunpack.c.l.b16 %v77
  %v683 = vunpack.c.h.b16 %v77
  %v684 = vunpack.c.l.b16 %v78
  %v685 = vunpack.c.h.b16 %v78
  %v686 = vunpack.c.l.b16 %v79
  %v687 = vunpack.c.h.b16 %v79
  %v688 = vunpack.c.l.b16 %v80
  %v689 = vunpack.c.h.b16 %v80
  %v690 = vunpack.c.l.b16 %v81
  %v691 = vunpack.c.h.b16 %v81
  %v692 = vunpack.c.l.b16 %v82
  %v693 = vunpack.c.h.b16 %v82
  %v694 = vunpack.c.l.b16 %v83
  %v695 = vunpack.c.h.b16 %v83
  %v696 = vunpack.c.l.b16 %v84
  %v697 = vunpack.c.h.b16 %v84
  %v698 = vunpack.c.l.b16 %v85
  %v699 = vunpack.c.h.b16 %v85
  %v700 = vunpack.c.l.b16 %v86
  %v701 = vunpack.c.h.b16 %v86
  %v702 = vunpack.c.l.b16 %v87
  %v703 = vunpack.c.h.b16 %v87
  %v704 = vunpack.c.l.b16 %v88
  %v705 = vunpack.c.h.b16 %v88
  %v706 = vunpack.c.l.b16 %v89
  %v707 = vunpack.c.h.b16 %v89
  %v708 = vunpack.c.l.b16 %v90
  %v709 = vunpack.c.h.b16 %v90
  %v710 = vunpack.c.l.b16 %v91
  %v711 = vunpack.c.h.b16 %v91
  %v712 = vunpack.c.l.b16 %v92
  %v713 = vunpack.c.h.b16 %v92
  %v714 = vunpack.c.l.b16 %v93
  %v715 = vunpack.c.h.b16 %v93
  %v716 = vunpack.c.l.b16 %v94
  %v717 = vunpack.c.h.b16 %v94
  %v718 = vunpack.c.l.b16 %v95
  %v719 = vunpack.c.h.b16 %v95
  %v720 = vunpack.c.l.b16 %v96
  %v721 = vunpack.c.h.b16 %v96
  %v722 = vunpack.c.l.b16 %v97
  %v723 = vunpack.c.h.b16 %v97
  %v724 = vunpack.c.l.b16 %v98
  %v725 = vunpack.c.h.b16 %v98
  %v726 = vunpack.c.l.b16 %v99
  %v727 = vunpack.c.h.b16 %v99
  %v728 = vunpack.c.l.b16 %v100
  %v729 = vunpack.c.h.b16 %v100
  %v730 = vunpack.c.l.b16 %v101
  %v731 = vunpack.c.h.b16 %v101
  %v732 = vunpack.c.l.b16 %v102
  %v733 = vunpack.c.h.b16 %v102
  %v734 = vunpack.c.l.b16 %v103
  %v735 = vunpack.c.h.b16 %v103
  %v736 = vunpack.c.l.b16 %v104
  %v737 = vunpack.c.h.b16 %v104
  %v738 = vunpack.c.l.b16 %v105
  %v739 = vunpack.c.h.b16 %v105
  %v740 = vunpack.c.l.b16 %v106
  %v741 = vunpack.c.h.b16 %v106
  %v742 = vunpack.c.l.b16 %v107
  %v743 = vunpack.c.h.b16 %v107
  %v744 = vunpack.c.l.b16 %v108
  %v745 = vunpack.c.h.b16 %v108
  %v746 = vunpack.c.l.b16 %v109
  %v747 = vunpack.c.h.b16 %v109
  %v748 = vunpack.c.l.b16 %v110
  %v749 = vunpack.c.h.b16 %v110
  %v750 = vunpack.c.l.b16 %v111
  %v751 = vunpack.c.h.b16 %v111
  %v752 = vunpack.c.l.b16 %v112
  %v753 = vunpack.c.h.b16 %v112
  %v754 = vunpack.c.l.b16 %v113
  %v755 = vunpack.c.h.b16 %v113
  %v756 = vunpack.c.l.b16 %v114
  %v757 = vunpack.c.h.b16 %v114
  %v758 = vunpack.c.l.b16 %v115
  %v759 = vunpack.c.h.b16 %v115
  %v760 = vunpack.c.l.b16 %v116
  %v761 = vunpack.c.h.b16 %v116
  %v762 = vunpack.c.l.b16 %v117
  %v763 = vunpack.c.h.b16 %v117
  %v764 = vunpack.c.l.b16 %v118
  %v765 = vunpack.c.h.b16 %v118
  %v766 = vunpack.c.l.b16 %v119
  %v767 = vunpack.c.h.b16 %v119
  %v768 = vunpack.c.l.b16 %v120
  %v769 = vunpack.c.h.b16 %v120
  %v770 = vunpack.c.l.b16 %v121
  %v771 = vunpack.c.h.b16 %v121
  %v772 = vunpack.c.l.b16 %v122
  %v773 = vunpack.c.h.b16 %v122
  %v774 = vunpack.c.l.b16 %v123
  %v775 = vunpack.c.h.b16 %v123
  %v776 = vunpack.c.l.b16 %v124
  %v777 = vunpack.c.h.b16 %v124
  %v778 = vunpack.c.l.b16 %v125
  %v779 = vunpack.c.h.b16 %v125
  %v780 = vunpack.c.l.b16 %v126
  %v781 = vunpack.c.h.b16 %v126
  %v782 = vunpack.c.l.b16 %v127
  %v783 = vunpack.c.h.b16 %v127
  %v784 = vunpack.c.l.b16 %v128
  %v785 = vunpack.c.h.b16 %v128
  %v786 = vunpack.c.l.b16 %v129
  %v787 = vunpack.c.h.b16 %v129
  %v788 = vunpack.c.l.b16 %v130
  %v789 = vunpack.c.h.b16 %v130
  %v790 = vunpack.c.l.b16 %v131
  %v791 = vunpack.c.h.b16 %v131
  %v792 = vunpack.c.l.b16 %v132
  %v793 = vunpack.c.h.b16 %v132
  %v794 = vunpack.c.l.b16 %v133
  %v795 = vunpack.c.h.b16 %v133
  %v796 = vunpack.c.l.b16 %v134
  %v797 = vunpack.c.h.b16 %v134
  %v798 = vunpack.c.l.b16 %v135
  %v799 = vunpack.c.h.b16 %v135
  %v800 = vunpack.c.l.b16 %v136
  %v801 = vunpack.c.h.b16 %v136
  %v802 = vunpack.c.l.b16 %v137
  %v803 = vunpack.c.h.b16 %v137
  %v804 = vunpack.c.l.b16 %v138
  %v805 = vunpack.c.h.b16 %v138
  %v806 = vunpack.c.l.b16 %v139
  %v807 = vunpack.c.h.b16 %v139
  %v808 = vunpack.c.l.b16 %v140
  %v809 = vunpack.c.h.b16 %v140
  %v810 = vunpack.c.l.b16 %v141
  %v811 = vunpack.c.h.b16 %v141
  %v812 = vunpack.c.l.b16 %v142
  %v813 = vunpack.c.h.b16 %v142
  %v814 = vunpack.c.l.b16 %v143
  %v815 = vunpack.c.h.b16 %v143
  %v816 = vunpack.c.l.b16 %v144
  %v817 = vunpack.c.h.b16 %v144
  %v818 = vunpack.c.l.b16 %v145
  %v819 = vunpack.c.h.b16 %v145
  %v820 = vunpack.c.l.b16 %v146
  %v821 = vunpack.c.h.b16 %v146
  %v822 = vunpack.c.l.b16 %v147
  %v823 = vunpack.c.h.b16 %v147
  %v824 = vunpack.c.l.b16 %v148
  %v825 = vunpack.c.h.b16 %v148
  %v826 = vunpack.c.l.b16 %v149
  %v827 = vunpack.c.h.b16 %v149
  %v828 = vunpack.c.l.b16 %v150
  %v829 = vunpack.c.h.b16 %v150
  %v830 = vunpack.c.l.b16 %v151
  %v831 = vunpack.c.h.b16 %v151
  %v832 = vunpack.c.l.b16 %v152
  %v833 = vunpack.c.h.b16 %v152
  %v834 = vunpack.c.l.b16 %v153
  %v835 = vunpack.c.h.b16 %v153
  %v836 = vunpack.c.l.b16 %v154
  %v837 = vunpack.c.h.b16 %v154
  %v838 = vunpack.c.l.b16 %v155
  %v839 = vunpack.c.h.b16 %v155
  %v840 = vunpack.c.l.b16 %v156
  %v841 = vunpack.c.h.b16 %v156
  %v842 = vunpack.c.l.b16 %v157
  %v843 = vunpack.c.h.b16 %v157
  %v844 = vunpack.c.l.b16 %v158
  %v845 = vunpack.c.h.b16 %v158
  %v846 = vunpack.c.l.b16 %v159
  %v847 = vunpack.c.h.b16 %v159
  %v848 = vunpack.c.l.b16 %v160
  %v849 = vunpack.c.h.b16 %v160
  %v850 = vunpack.c.l.b16 %v161
  %v851 = vunpack.c.h.b16 %v161
  %v852 = vunpack.c.l.b16 %v162
  %v853 = vunpack.c.h.b16 %v162
  %v854 = vunpack.c.l.b16 %v163
  %v855 = vunpack.c.h.b16 %v163
  %v856 = vunpack.c.l.b16 %v164
  %v857 = vunpack.c.h.b16 %v164
  %v858 = vunpack.c.l.b16 %v165
  %v859 = vunpack.c.h.b16 %v165
  %v860 = vunpack.c.l.b16 %v166
  %v861 = vunpack.c.h.b16 %v166
  %v862 = vunpack.c.l.b16 %v167
  %v863 = vunpack.c.h.b16 %v167
  %v864 = vunpack.c.l.b16 %v168
  %v865 = vunpack.c.h.b16 %v168
  %v866 = vunpack.c.l.b16 %v169
  %v867 = vunpack.c.h.b16 %v169
  %v868 = vunpack.c.l.b16 %v170
  %v869 = vunpack.c.h.b16 %v170
  %v870 = vunpack.c.l.b16 %v171
  %v871 = vunpack.c.h.b16 %v171
  %v872 = vunpack.c.l.b16 %v172
  %v873 = vunpack.c.h.b16 %v172
  %v874 = vunpack.c.l.b16 %v173
  %v875 = vunpack.c.h.b16 %v173
  %v876 = vunpack.c.l.b16 %v174
  %v877 = vunpack.c.h.b16 %v174
  %v878 = vunpack.c.l.b16 %v175
  %v879 = vunpack.c.h.b16 %v175
  %v880 = vunpack.c.l.b16 %v176
  %v881 = vunpack.c.h.b16 %v176
  %v882 = vunpack.c.l.b16 %v177
  %v883 = vunpack.c.h.b16 %v177
  %v884 = vunpack.c.l.b16 %v178
  %v885 = vunpack.c.h.b16 %v178
  %v886 = vunpack.c.l.b16 %v179
  %v887 = vunpack.c.h.b16 %v179
  %v888 = vunpack.c.l.b16 %v180
  %v889 = vunpack.c.h.b16 %v180
  %v890 = vunpack.c.l.b16 %v181
  %v891 = vunpack.c.h.b16 %v181
  %v892 = vunpack.c.l.b16 %v182
  %v893 = vunpack.c.h.b16 %v182
  %v894 = vunpack.c.l.b16 %v183
  %v895 = vunpack.c.h.b16 %v183
  %v896 = vunpack.c.l.b16 %v184
  %v897 = vunpack.c.h.b16 %v184
  %v898 = vunpack.c.l.b16 %v185
  %v899 = vunpack.c.h.b16 %v185
  %v900 = vunpack.c.l.b16 %v186
  %v901 = vunpack.c.h.b16 %v186
  %v902 = vunpack.c.l.b16 %v187
  %v903 = vunpack.c.h.b16 %v187
  %v904 = vunpack.c.l.b16 %v188
  %v905 = vunpack.c.h.b16 %v188
  %v906 = vunpack.c.l.b16 %v189
  %v907 = vunpack.c.h.b16 %v189
  %v908 = vunpack.c.l.b16 %v190
  %v909 = vunpack.c.h.b16 %v190
  %v910 = vunpack.c.l.b16 %v191
  %v911 = vunpack.c.h.b16 %v191
  %v912 = vunpack.c.l.b16 %v192
  %v913 = vunpack.c.h.b16 %v192
  %v914 = vunpack.c.l.b16 %v193
  %v915 = vunpack.c.h.b16 %v193
  %v916 = vunpack.c.l.b16 %v194
  %v917 = vunpack.c.h.b16 %v194
  %v918 = vunpack.c.l.b16 %v195
  %v919 = vunpack.c.h.b16 %v195
  %v920 = vunpack.c.l.b16 %v196
  %v921 = vunpack.c.h.b16 %v196
  %v922 = vunpack.c.l.b16 %v197
  %v923 = vunpack.c.h.b16 %v197
  %v924 = vunpack.c.l.b16 %v198
  %v925 = vunpack.c.h.b16 %v198
  %v926 = vunpack.c.l.b16 %v199
  %v927 = vunpack.c.h.b16 %v199
  %v928 = vunpack.c.l.b16 %v200
  %v929 = vunpack.c.h.b16 %v200
  %v930 = vunpack.c.l.b16 %v201
  %v931 = vunpack.c.h.b16 %v201
  %v932 = vunpack.c.l.b16 %v202
  %v933 = vunpack.c.h.b16 %v202
  %v934 = vunpack.c.l.b16 %v203
  %v935 = vunpack.c.h.b16 %v203
  %v936 = vunpack.c.l.b16 %v204
  %v937 = vunpack.c.h.b16 %v204
  %v938 = vunpack.c.l.b16 %v205
  %v939 = vunpack.c.h.b16 %v205
  %v940 = vunpack.c.l.b16 %v206
  %v941 = vunpack.c.h.b16 %v206
  %v942 = vunpack.c.l.b16 %v207
  %v943 = vunpack.c.h.b16 %v207
  %v944 = vunpack.c.l.b16 %v208
  %v945 = vunpack.c.h.b16 %v208
  %v946 = vunpack.c.l.b16 %v209
  %v947 = vunpack.c.h.b16 %v209
  %v948 = vunpack.c.l.b16 %v210
  %v949 = vunpack.c.h.b16 %v210
  %v950 = vunpack.c.l.b16 %v211
  %v951 = vunpack.c.h.b16 %v211
  %v952 = vunpack.c.l.b16 %v212
  %v953 = vunpack.c.h.b16 %v212
  %v954 = vunpack.c.l.b16 %v213
  %v955 = vunpack.c.h.b16 %v213
  %v956 = vunpack.c.l.b16 %v214
  %v957 = vunpack.c.h.b16 %v214
  %v958 = vunpack.c.l.b16 %v215
  %v959 = vunpack.c.h.b16 %v215
  %v960 = vunpack.c.l.b16 %v216
  %v961 = vunpack.c.h.b16 %v216
  %v962 = vunpack.c.l.b16 %v217
  %v963 = vunpack.c.h.b16 %v217
  %v964 = vunpack.c.l.b16 %v218
  %v965 = vunpack.c.h.b16 %v218
  %v966 = vunpack.c.l.b16 %v219
  %v967 = vunpack.c.h.b16 %v219
  %v968 = vunpack.c.l.b16 %v220
  %v969 = vunpack.c.h.b16 %v220
  %v970 = vunpack.c.l.b16 %v221
  %v971 = vunpack.c.h.b16 %v221
  %v972 = vunpack.c.l.b16 %v222
  %v973 = vunpack.c.h.b16 %v222
  %v974 = vunpack.c.l.b16 %v223
  %v975 = vunpack.c.h.b16 %v223
  %v976 = vunpack.c.l.b16 %v224
  %v977 = vunpack.c.h.b16 %v224
  %v978 = vunpack.c.l.b16 %v225
  %v979 = vunpack.c.h.b16 %v225
  %v980 = vunpack.c.l.b16 %v226
  %v981 = vunpack.c.h.b16 %v226
  %v982 = vunpack.c.l.b16 %v227
  %v983 = vunpack.c.h.b16 %v227
  %v984 = vunpack.c.l.b16 %v228
  %v985 = vunpack.c.h.b16 %v228
  %v986 = vunpack.c.l.b16 %v229
  %v987 = vunpack.c.h.b16 %v229
  %v988 = vunpack.c.l.b16 %v230
  %v989 = vunpack.c.h.b16 %v230
  %v990 = vunpack.c.l.b16 %v231
  %v991 = vunpack.c.h.b16 %v231
  %v992 = vunpack.c.l.b16 %v232
  %v993 = vunpack.c.h.b16 %v232
  %v994 = vunpack.c.l.b16 %v233
  %v995 = vunpack.c.h.b16 %v233
  %v996 = vunpack.c.l.b16 %v234
  %v997 = vunpack.c.h.b16 %v234
  %v998 = vunpack.c.l.b16 %v235
  %v999 = vunpack.c.h.b16 %v235
  %v1000 = vunpack.c.l.b16 %v236
  %v1001 = vunpack.c.h.b16 %v236
  %v1002 = vunpack.c.l.b16 %v237
  %v1003 = vunpack.c.h.b16 %v237
  %v1004 = vunpack.c.l.b16 %v238
  %v1005 = vunpack.c.h.b16 %v238
  %v1006 = vunpack.c.l.b16 %v239
  %v1007 = vunpack.c.h.b16 %v239
  %v1008 = vunpack.c.l.b16 %v240
  %v1009 = vunpack.c.h.b16 %v240
  %v1010 = vunpack.c.l.b16 %v241
  %v1011 = vunpack.c.h.b16 %v241
  %v1012 = vunpack.c.l.b16 %v242
  %v1013 = vunpack.c.h.b16 %v242
  %v1014 = vunpack.c.l.b16 %v243
  %v1015 = vunpack.c.h.b16 %v243
  %v1016 = vunpack.c.l.b16 %v244
  %v1017 = vunpack.c.h.b16 %v244
  %v1018 = vunpack.c.l.b16 %v245
  %v1019 = vunpack.c.h.b16 %v245
  %v1020 = vunpack.c.l.b16 %v246
  %v1021 = vunpack.c.h.b16 %v246
  %v1022 = vunpack.c.l.b16 %v247
  %v1023 = vunpack.c.h.b16 %v247
  %v1024 = vunpack.c.l.b16 %v248
  %v1025 = vunpack.c.h.b16 %v248
  %v1026 = vunpack.c.l.b16 %v249
  %v1027 = vunpack.c.h.b16 %v249
  %v1028 = vunpack.c.l.b16 %v250
  %v1029 = vunpack.c.h.b16 %v250
  %v1030 = vunpack.c.l.b16 %v251
  %v1031 = vunpack.c.h.b16 %v251
  %v1032 = vunpack.c.l.b16 %v252
  %v1033 = vunpack.c.h.b16 %v252
  %v1034 = vunpack.c.l.b16 %v253
  %v1035 = vunpack.c.h.b16 %v253
  %v1036 = vunpack.c.l.b16 %v254
  %v1037 = vunpack.c.h.b16 %v254
  %v1038 = vunpack.c.l.b16 %v255
  %v1039 = vunpack.c.h.b16 %v255
  %v1040 = vunpack.c.l.b16 %v256
  %v1041 = vunpack.c.h.b16 %v256
  %v1042 = vunpack.c.l.b16 %v257
  %v1043 = vunpack.c.h.b16 %v257
  %v1044 = vpack.c.b16 %v614, %v612
  %v1045 = vpack.c.b16 %v615, %v613
  %v1046 = vpack.c.b16 %v618, %v616
  %v1047 = vpack.c.b16 %v619, %v617
  %v1048 = vpack.c.b16 %v622, %v620
  %v1049 = vpack.c.b16 %v623, %v621
  %v1050 = vpack.c.b16 %v626, %v624
  %v1051 = vpack.c.b16 %v627, %v625
  %v1052 = vpack.c.b16 %v630, %v628
  %v1053 = vpack.c.b16 %v631, %v629
  %v1054 = vpack.c.b16 %v634, %v632
  %v1055 = vpack.c.b16 %v635, %v633
  %v1056 = vpack.c.b16 %v638, %v636
  %v1057 = vpack.c.b16 %v639, %v637
  %v1058 = vpack.c.b16 %v642, %v640
  %v1059 = vpack.c.b16 %v643, %v641
  %v1060 = vpack.c.b16 %v646, %v644
  %v1061 = vpack.c.b16 %v647, %v645
  %v1062 = vpack.c.b16 %v650, %v648
  %v1063 = vpack.c.b16 %v651, %v649
  %v1064 = vpack.c.b16 %v654, %v652
  %v1065 = vpack.c.b16 %v655, %v653
  %v1066 = vpack.c.b16 %v658, %v656
  %v1067 = vpack.c.b16 %v659, %v657
  %v1068 = vpack.c.b16 %v662, %v660
  %v1069 = vpack.c.b16 %v663, %v661
  %v1070 = vpack.c.b16 %v666, %v664
  %v1071 = vpack.c.b16 %v667, %v665
  %v1072 = vpack.c.b16 %v670, %v668
  %v1073 = vpack.c.b16 %v671, %v669
  %v1074 = vpack.c.b16 %v674, %v672
  %v1075 = vpack.c.b16 %v675, %v673
  %v1076 = vpack.c.b16 %v678, %v676
  %v1077 = vpack.c.b16 %v679, %v677
  %v1078 = vpack.c.b16 %v682, %v680
  %v1079 = vpack.c.b16 %v683, %v681
  %v1080 = vpack.c.b16 %v686, %v684
  %v1081 = vpack.c.b16 %v687, %v685
  %v1082 = vpack.c.b16 %v690, %v688
  %v1083 = vpack.c.b16 %v691, %v689
  %v1084 = vpack.c.b16 %v694, %v692
  %v1085 = vpack.c.b16 %v695, %v693
  %v1086 = vpack.c.b16 %v698, %v696
  %v1087 = vpack.c.b16 %v699, %v697
  %v1088 = vpack.c.b16 %v702, %v700
  %v1089 = vpack.c.b16 %v703, %v701
  %v1090 = vpack.c.b16 %v706, %v704
  %v1091 = vpack.c.b16 %v707, %v705
  %v1092 = vpack.c.b16 %v710, %v708
  %v1093 = vpack.c.b16 %v711, %v709
  %v1094 = vpack.c.b16 %v714, %v712
  %v1095 = vpack.c.b16 %v715, %v713
  %v1096 = vpack.c.b16 %v718, %v716
  %v1097 = vpack.c.b16 %v719, %v717
  %v1098 = vpack.c.b16 %v722, %v720
  %v1099 = vpack.c.b16 %v723, %v721
  %v1100 = vpack.c.b16 %v726, %v724
  %v1101 = vpack.c.b16 %v727, %v725
  %v1102 = vpack.c.b16 %v730, %v728
  %v1103 = vpack.c.b16 %v731, %v729
  %v1104 = vpack.c.b16 %v734, %v732
  %v1105 = vpack.c.b16 %v735, %v733
  %v1106 = vpack.c.b16 %v738, %v736
  %v1107 = vpack.c.b16 %v739, %v737
  %v1108 = vpack.c.b16 %v742, %v740
  %v1109 = vpack.c.b16 %v743, %v741
  %v1110 = vpack.c.b16 %v746, %v744
  %v1111 = vpack.c.b16 %v747, %v745
  %v1112 = vpack.c.b16 %v750, %v748
  %v1113 = vpack.c.b16 %v751, %v749
  %v1114 = vpack.c.b16 %v754, %v752
  %v1115 = vpack.c.b16 %v755, %v753
  %v1116 = vpack.c.b16 %v758, %v756
  %v1117 = vpack.c.b16 %v759, %v757
  %v1118 = vpack.c.b16 %v762, %v760
  %v1119 = vpack.c.b16 %v763, %v761
  %v1120 = vpack.c.b16 %v766, %v764
  %v1121 = vpack.c.b16 %v767, %v765
  %v1122 = vpack.c.b16 %v770, %v768
  %v1123 = vpack.c.b16 %v771, %v769
  %v1124 = vpack.c.b16 %v774, %v772
  %v1125 = vpack.c.b16 %v775, %v773
  %v1126 = vpack.c.b16 %v778, %v776
  %v1127 = vpack.c.b16 %v779, %v777
  %v1128 = vpack.c.b16 %v782, %v780
  %v1129 = vpack.c.b16 %v783, %v781
  %v1130 = vpack.c.b16 %v786, %v784
  %v1131 = vpack.c.b16 %v787, %v785
  %v1132 = vpack.c.b16 %v790, %v788
  %v1133 = vpack.c.b16 %v791, %v789
  %v1134 = vpack.c.b16 %v794, %v792
  %v1135 = vpack.c.b16 %v795, %v793
  %v1136 = vpack.c.b16 %v798, %v796
  %v1137 = vpack.c.b16 %v799, %v797
  %v1138 = vpack.c.b16 %v802, %v800
  %v1139 = vpack.c.b16 %v803, %v801
  %v1140 = vpack.c.b16 %v806, %v804
  %v1141 = vpack.c.b16 %v807, %v805
  %v1142 = vpack.c.b16 %v810, %v808
  %v1143 = vpack.c.b16 %v811, %v809
  %v1144 = vpack.c.b16 %v814, %v812
  %v1145 = vpack.c.b16 %v815, %v813
  %v1146 = vpack.c.b16 %v818, %v816
  %v1147 = vpack.c.b16 %v819, %v817
  %v1148 = vpack.c.b16 %v822, %v820
  %v1149 = vpack.c.b16 %v823, %v821
  %v1150 = vpack.c.b16 %v826, %v824
  %v1151 = vpack.c.b16 %v827, %v825
  %v1152 = vpack.c.b16 %v830, %v828
  %v1153 = vpack.c.b16 %v831, %v829
  %v1154 = vpack.c.b16 %v834, %v832
  %v1155 = vpack.c.b16 %v835, %v833
  %v1156 = vpack.c.b16 %v838, %v836
  %v1157 = vpack.c.b16 %v839, %v837
  %v1158 = vpack.c.b16 %v842, %v840
  %v1159 = vpack.c.b16 %v843, %v841
  %v1160 = vpack.c.b16 %v846, %v844
  %v1161 = vpack.c.b16 %v847, %v845
  %v1162 = vpack.c.b16 %v850, %v848
  %v1163 = vpack.c.b16 %v851, %v849
  %v1164 = vpack.c.b16 %v854, %v852
  %v1165 = vpack.c.b16 %v855, %v853
  %v1166 = vpack.c.b16 %v858, %v856
  %v1167 = vpack.c.b16 %v859, %v857
  %v1168 = vpack.c.b16 %v862, %v860
  %v1169 = vpack.c.b16 %v863, %v861
  %v1170 = vpack.c.b16 %v866, %v864
  %v1171 = vpack.c.b16 %v867, %v865
  %v1172 = vpack.c.b16 %v870, %v868
  %v1173 = vpack.c.b16 %v871, %v869
  %v1174 = vpack.c.b16 %v874, %v872
  %v1175 = vpack.c.b16 %v875, %v873
  %v1176 = vpack.c.b16 %v878, %v876
  %v1177 = vpack.c.b16 %v879, %v877
  %v1178 = vpack.c.b16 %v882, %v880
  %v1179 = vpack.c.b16 %v883, %v881
  %v1180 = vpack.c.b16 %v886, %v884
  %v1181 = vpack.c.b16 %v887, %v885
  %v1182 = vpack.c.b16 %v890, %v888
  %v1183 = vpack.c.b16 %v891, %v889
  %v1184 = vpack.c.b16 %v894, %v892
  %v1185 = vpack.c.b16 %v895, %v893
  %v1186 = vpack.c.b16 %v898, %v896
  %v1187 = vpack.c.b16 %v899, %v897
  %v1188 = vpack.c.b16 %v902, %v900
  %v1189 = vpack.c.b16 %v903, %v901
  %v1190 = vpack.c.b16 %v906, %v904
  %v1191 = vpack.c.b16 %v907, %v905
  %v1192 = vpack.c.b16 %v910, %v908
  %v1193 = vpack.c.b16 %v911, %v909
  %v1194 = vpack.c.b16 %v914, %v912
  %v1195 = vpack.c.b16 %v915, %v913
  %v1196 = vpack.c.b16 %v918, %v916
  %v1197 = vpack.c.b16 %v919, %v917
  %v1198 = vpack.c.b16 %v922, %v920
  %v1199 = vpack.c.b16 %v923, %v921
  %v1200 = vpack.c.b16 %v926, %v924
  %v1201 = vpack.c.b16 %v927, %v925
  %v1202 = vpack.c.b16 %v930, %v928
  %v1203 = vpack.c.b16 %v931, %v929
  %v1204 = vpack.c.b16 %v934, %v932
  %v1205 = vpack.c.b16 %v935, %v933
  %v1206 = vpack.c.b16 %v938, %v936
  %v1207 = vpack.c.b16 %v939, %v937
  %v1208 = vpack.c.b16 %v942, %v940
  %v1209 = vpack.c.b16 %v943, %v941
  %v1210 = vpack.c.b16 %v946, %v944
  %v1211 = vpack.c.b16 %v947, %v945
  %v1212 = vpack.c.b16 %v950, %v948
  %v1213 = vpack.c.b16 %v951, %v949
  %v1214 = vpack.c.b16 %v954, %v952
  %v1215 = vpack.c.b16 %v955, %v953
  %v1216 = vpack.c.b16 %v958, %v956
  %v1217 = vpack.c.b16 %v959, %v957
  %v1218 = vpack.c.b16 %v962, %v960
  %v1219 = vpack.c.b16 %v963, %v961
  %v1220 = vpack.c.b16 %v966, %v964
  %v1221 = vpack.c.b16 %v967, %v965
  %v1222 = vpack.c.b16 %v970, %v968
  %v1223 = vpack.c.b16 %v971, %v969
  %v1224 = vpack.c.b16 %v974, %v972
  %v1225 = vpack.c.b16 %v975, %v973
  %v1226 = vpack.c.b16 %v978, %v976
  %v1227 = vpack.c.b16 %v979, %v977
  %v1228 = vpack.c.b16 %v982, %v980
  %v1229 = vpack.c.b16 %v983, %v981
  %v1230 = vpack.c.b16 %v986, %v984
  %v1231 = vpack.c.b16 %v987, %v985
  %v1232 = vpack.c.b16 %v990, %v988
  %v1233 = vpack.c.b16 %v991, %v989
  %v1234 = vpack.c.b16 %v994, %v992
  %v1235 = vpack.c.b16 %v995, %v993
  %v1236 = vpack.c.b16 %v998, %v996
  %v1237 = vpack.c.b16 %v999, %v997
  %v1238 = vpack.c.b16 %v1002, %v1000
  %v1239 = vpack.c.b16 %v1003, %v1001
  %v1240 = vpack.c.b16 %v1006, %v1004
  %v1241 = vpack.c.b16 %v1007, %v1005
  %v1242 = vpack.c.b16 %v1010, %v1008
  %v1243 = vpack.c.b16 %v1011, %v1009
  %v1244 = vpack.c.b16 %v1014, %v1012
  %v1245 = vpack.c.b16 %v1015, %v1013
  %v1246 = vpack.c.b16 %v1018, %v1016
  %v1247 = vpack.c.b16 %v1019, %v1017
  %v1248 = vpack.c.b16 %v1022, %v1020
  %v1249 = vpack.c.b16 %v1023, %v1021
  %v1250 = vpack.c.b16 %v1026, %v1024
  %v1251 = vpack.c.b16 %v1027, %v1025
  %v1252 = vpack.c.b16 %v1030, %v1028
  %v1253 = vpack.c.b16 %v1031, %v1029
  %v1254 = vpack.c.b16 %v1034, %v1032
  %v1255 = vpack.c.b16 %v1035, %v1033
  %v1256 = vpack.c.b16 %v1038, %v1036
  %v1257 = vpack.c.b16 %v1039, %v1037
  %v1258 = vpack.c.b16 %v1042, %v1040
  %v1259 = vpack.c.b16 %v1043, %v1041
  %vm1476 = vcmask 523264
  %v1478 = vsel %vm1476, %v355, 0
  %v1481 = vsel %vm1476, %v369, 0
  %1483 = vmatprep.subr.bf16.mxu0 %v1045
  %1484 = vmatpush1.bf16.msra.mxu0 %v1044
  %1485 = vmatprep.subr.bf16.mxu0 %v1047
  %1486 = vmatpush1.bf16.msra.mxu0 %v1046
  %1487 = vmatprep.subr.bf16.mxu0 %v1049
  %1488 = vmatpush1.bf16.msra.mxu0 %v1048
  %1489 = vmatprep.subr.bf16.mxu0 %v1051
  %1490 = vmatpush1.bf16.msra.mxu0 %v1050
  %1491 = vmatprep.subr.bf16.mxu0 %v1053
  %1492 = vmatpush1.bf16.msra.mxu0 %v1052
  %1493 = vmatprep.subr.bf16.mxu0 %v1055
  %1494 = vmatpush1.bf16.msra.mxu0 %v1054
  %1495 = vmatprep.subr.bf16.mxu0 %v1057
  %1496 = vmatpush1.bf16.msra.mxu0 %v1056
  %1497 = vmatprep.subr.bf16.mxu0 %v1059
  %1498 = vmatpush1.bf16.msra.mxu0 %v1058
  %1499 = vmatprep.subr.bf16.mxu0 %v1061
  %1500 = vmatpush1.bf16.msra.mxu0 %v1060
  %1501 = vmatprep.subr.bf16.mxu0 %v1063
  %1502 = vmatpush1.bf16.msra.mxu0 %v1062
  %1503 = vmatprep.subr.bf16.mxu0 %v1065
  %1504 = vmatpush1.bf16.msra.mxu0 %v1064
  %1505 = vmatprep.subr.bf16.mxu0 %v1067
  %1506 = vmatpush1.bf16.msra.mxu0 %v1066
  %1507 = vmatprep.subr.bf16.mxu0 %v1069
  %1508 = vmatpush1.bf16.msra.mxu0 %v1068
  %1509 = vmatprep.subr.bf16.mxu0 %v1071
  %1510 = vmatpush1.bf16.msra.mxu0 %v1070
  %1511 = vmatprep.subr.bf16.mxu0 %v1073
  %1512 = vmatpush1.bf16.msra.mxu0 %v1072
  %1513 = vmatprep.subr.bf16.mxu0 %v1075
  %1514 = vmatpush1.bf16.msra.mxu0 %v1074
  %1515 = vmatprep.mubr.bf16.mxu0 %v343
  %1516 = vmatmul.mubr.bf16.gmra.mrb[0].mxu0 %v342
  %v1517 = vpop.f32.mrb[0].mxu0
  %v1518 = vadd.f32 0.0, %v1517
  %v1519 = vpop.f32.mrb[0].mxu0
  %v1520 = vadd.f32 0.0, %v1519
  %v1521 = vpop.f32.mrb[0].mxu0
  %v1522 = vadd.f32 0.0, %v1521
  %v1523 = vpop.f32.mrb[0].mxu0
  %v1524 = vadd.f32 0.0, %v1523
  %1525 = vmatprep.mubr.bf16.mxu0 %v357
  %1526 = vmatmul.mubr.bf16.gmra.mrb[0].mxu0 %v356
  %v1527 = vpop.f32.mrb[0].mxu0
  %v1528 = vadd.f32 0.0, %v1527
  %v1529 = vpop.f32.mrb[0].mxu0
  %v1530 = vadd.f32 0.0, %v1529
  %v1531 = vpop.f32.mrb[0].mxu0
  %v1532 = vadd.f32 0.0, %v1531
  %v1533 = vpop.f32.mrb[0].mxu0
  %v1534 = vadd.f32 0.0, %v1533
  %1535 = vdwg.mxu0
  %1536 = vmatprep.subr.bf16.mxu0 %v1077
  %1537 = vmatpush1.bf16.msra.mxu0 %v1076
  %1538 = vmatprep.subr.bf16.mxu0 %v1079
  %1539 = vmatpush1.bf16.msra.mxu0 %v1078
  %1540 = vmatprep.subr.bf16.mxu0 %v1081
  %1541 = vmatpush1.bf16.msra.mxu0 %v1080
  %1542 = vmatprep.subr.bf16.mxu0 %v1083
  %1543 = vmatpush1.bf16.msra.mxu0 %v1082
  %1544 = vmatprep.subr.bf16.mxu0 %v1085
  %1545 = vmatpush1.bf16.msra.mxu0 %v1084
  %1546 = vmatprep.subr.bf16.mxu0 %v1087
  %1547 = vmatpush1.bf16.msra.mxu0 %v1086
  %1548 = vmatprep.subr.bf16.mxu0 %v1089
  %1549 = vmatpush1.bf16.msra.mxu0 %v1088
  %1550 = vmatprep.subr.bf16.mxu0 %v1091
  %1551 = vmatpush1.bf16.msra.mxu0 %v1090
  %1552 = vmatprep.subr.bf16.mxu0 %v1093
  %1553 = vmatpush1.bf16.msra.mxu0 %v1092
  %1554 = vmatprep.subr.bf16.mxu0 %v1095
  %1555 = vmatpush1.bf16.msra.mxu0 %v1094
  %1556 = vmatprep.subr.bf16.mxu0 %v1097
  %1557 = vmatpush1.bf16.msra.mxu0 %v1096
  %1558 = vmatprep.subr.bf16.mxu0 %v1099
  %1559 = vmatpush1.bf16.msra.mxu0 %v1098
  %1560 = vmatprep.subr.bf16.mxu0 %v1101
  %1561 = vmatpush1.bf16.msra.mxu0 %v1100
  %1562 = vmatprep.subr.bf16.mxu0 %v1103
  %1563 = vmatpush1.bf16.msra.mxu0 %v1102
  %1564 = vmatprep.subr.bf16.mxu0 %v1105
  %1565 = vmatpush1.bf16.msra.mxu0 %v1104
  %1566 = vmatprep.subr.bf16.mxu0 %v1107
  %1567 = vmatpush1.bf16.msra.mxu0 %v1106
  %1568 = vmatprep.mubr.bf16.mxu0 %v345
  %1569 = vmatmul.mubr.bf16.gmra.mrb[0].mxu0 %v344
  %v1570 = vpop.f32.mrb[0].mxu0
  %v1571 = vadd.f32 %v1518, %v1570
  %v1572 = vpop.f32.mrb[0].mxu0
  %v1573 = vadd.f32 %v1520, %v1572
  %v1574 = vpop.f32.mrb[0].mxu0
  %v1575 = vadd.f32 %v1522, %v1574
  %v1576 = vpop.f32.mrb[0].mxu0
  %v1577 = vadd.f32 %v1524, %v1576
  %1578 = vmatprep.mubr.bf16.mxu0 %v359
  %1579 = vmatmul.mubr.bf16.gmra.mrb[0].mxu0 %v358
  %v1580 = vpop.f32.mrb[0].mxu0
  %v1581 = vadd.f32 %v1528, %v1580
  %v1582 = vpop.f32.mrb[0].mxu0
  %v1583 = vadd.f32 %v1530, %v1582
  %v1584 = vpop.f32.mrb[0].mxu0
  %v1585 = vadd.f32 %v1532, %v1584
  %v1586 = vpop.f32.mrb[0].mxu0
  %v1587 = vadd.f32 %v1534, %v1586
  %1588 = vdwg.mxu0
  %1589 = vmatprep.subr.bf16.mxu0 %v1109
  %1590 = vmatpush1.bf16.msra.mxu0 %v1108
  %1591 = vmatprep.subr.bf16.mxu0 %v1111
  %1592 = vmatpush1.bf16.msra.mxu0 %v1110
  %1593 = vmatprep.subr.bf16.mxu0 %v1113
  %1594 = vmatpush1.bf16.msra.mxu0 %v1112
  %1595 = vmatprep.subr.bf16.mxu0 %v1115
  %1596 = vmatpush1.bf16.msra.mxu0 %v1114
  %1597 = vmatprep.subr.bf16.mxu0 %v1117
  %1598 = vmatpush1.bf16.msra.mxu0 %v1116
  %1599 = vmatprep.subr.bf16.mxu0 %v1119
  %1600 = vmatpush1.bf16.msra.mxu0 %v1118
  %1601 = vmatprep.subr.bf16.mxu0 %v1121
  %1602 = vmatpush1.bf16.msra.mxu0 %v1120
  %1603 = vmatprep.subr.bf16.mxu0 %v1123
  %1604 = vmatpush1.bf16.msra.mxu0 %v1122
  %1605 = vmatprep.subr.bf16.mxu0 %v1125
  %1606 = vmatpush1.bf16.msra.mxu0 %v1124
  %1607 = vmatprep.subr.bf16.mxu0 %v1127
  %1608 = vmatpush1.bf16.msra.mxu0 %v1126
  %1609 = vmatprep.subr.bf16.mxu0 %v1129
  %1610 = vmatpush1.bf16.msra.mxu0 %v1128
  %1611 = vmatprep.subr.bf16.mxu0 %v1131
  %1612 = vmatpush1.bf16.msra.mxu0 %v1130
  %1613 = vmatprep.subr.bf16.mxu0 %v1133
  %1614 = vmatpush1.bf16.msra.mxu0 %v1132
  %1615 = vmatprep.subr.bf16.mxu0 %v1135
  %1616 = vmatpush1.bf16.msra.mxu0 %v1134
  %1617 = vmatprep.subr.bf16.mxu0 %v1137
  %1618 = vmatpush1.bf16.msra.mxu0 %v1136
  %1619 = vmatprep.subr.bf16.mxu0 %v1139
  %1620 = vmatpush1.bf16.msra.mxu0 %v1138
  %1621 = vmatprep.mubr.bf16.mxu0 %v347
  %1622 = vmatmul.mubr.bf16.gmra.mrb[0].mxu0 %v346
  %v1623 = vpop.f32.mrb[0].mxu0
  %v1624 = vadd.f32 %v1571, %v1623
  %v1625 = vpop.f32.mrb[0].mxu0
  %v1626 = vadd.f32 %v1573, %v1625
  %v1627 = vpop.f32.mrb[0].mxu0
  %v1628 = vadd.f32 %v1575, %v1627
  %v1629 = vpop.f32.mrb[0].mxu0
  %v1630 = vadd.f32 %v1577, %v1629
  %1631 = vmatprep.mubr.bf16.mxu0 %v361
  %1632 = vmatmul.mubr.bf16.gmra.mrb[0].mxu0 %v360
  %v1633 = vpop.f32.mrb[0].mxu0
  %v1634 = vadd.f32 %v1581, %v1633
  %v1635 = vpop.f32.mrb[0].mxu0
  %v1636 = vadd.f32 %v1583, %v1635
  %v1637 = vpop.f32.mrb[0].mxu0
  %v1638 = vadd.f32 %v1585, %v1637
  %v1639 = vpop.f32.mrb[0].mxu0
  %v1640 = vadd.f32 %v1587, %v1639
  %1641 = vdwg.mxu0
  %1642 = vmatprep.subr.bf16.mxu0 %v1141
  %1643 = vmatpush1.bf16.msra.mxu0 %v1140
  %1644 = vmatprep.subr.bf16.mxu0 %v1143
  %1645 = vmatpush1.bf16.msra.mxu0 %v1142
  %1646 = vmatprep.subr.bf16.mxu0 %v1145
  %1647 = vmatpush1.bf16.msra.mxu0 %v1144
  %1648 = vmatprep.subr.bf16.mxu0 %v1147
  %1649 = vmatpush1.bf16.msra.mxu0 %v1146
  %1650 = vmatprep.subr.bf16.mxu0 %v1149
  %1651 = vmatpush1.bf16.msra.mxu0 %v1148
  %1652 = vmatprep.subr.bf16.mxu0 %v1151
  %1653 = vmatpush1.bf16.msra.mxu0 %v1150
  %1654 = vmatprep.subr.bf16.mxu0 %v1153
  %1655 = vmatpush1.bf16.msra.mxu0 %v1152
  %1656 = vmatprep.subr.bf16.mxu0 %v1155
  %1657 = vmatpush1.bf16.msra.mxu0 %v1154
  %1658 = vmatprep.subr.bf16.mxu0 %v1157
  %1659 = vmatpush1.bf16.msra.mxu0 %v1156
  %1660 = vmatprep.subr.bf16.mxu0 %v1159
  %1661 = vmatpush1.bf16.msra.mxu0 %v1158
  %1662 = vmatprep.subr.bf16.mxu0 %v1161
  %1663 = vmatpush1.bf16.msra.mxu0 %v1160
  %1664 = vmatprep.subr.bf16.mxu0 %v1163
  %1665 = vmatpush1.bf16.msra.mxu0 %v1162
  %1666 = vmatprep.subr.bf16.mxu0 %v1165
  %1667 = vmatpush1.bf16.msra.mxu0 %v1164
  %1668 = vmatprep.subr.bf16.mxu0 %v1167
  %1669 = vmatpush1.bf16.msra.mxu0 %v1166
  %1670 = vmatprep.subr.bf16.mxu0 %v1169
  %1671 = vmatpush1.bf16.msra.mxu0 %v1168
  %1672 = vmatprep.subr.bf16.mxu0 %v1171
  %1673 = vmatpush1.bf16.msra.mxu0 %v1170
  %1674 = vmatprep.mubr.bf16.mxu0 %v349
  %1675 = vmatmul.mubr.bf16.gmra.mrb[0].mxu0 %v348
  %v1676 = vpop.f32.mrb[0].mxu0
  %v1677 = vadd.f32 %v1624, %v1676
  %v1678 = vpop.f32.mrb[0].mxu0
  %v1679 = vadd.f32 %v1626, %v1678
  %v1680 = vpop.f32.mrb[0].mxu0
  %v1681 = vadd.f32 %v1628, %v1680
  %v1682 = vpop.f32.mrb[0].mxu0
  %v1683 = vadd.f32 %v1630, %v1682
  %1684 = vmatprep.mubr.bf16.mxu0 %v363
  %1685 = vmatmul.mubr.bf16.gmra.mrb[0].mxu0 %v362
  %v1686 = vpop.f32.mrb[0].mxu0
  %v1687 = vadd.f32 %v1634, %v1686
  %v1688 = vpop.f32.mrb[0].mxu0
  %v1689 = vadd.f32 %v1636, %v1688
  %v1690 = vpop.f32.mrb[0].mxu0
  %v1691 = vadd.f32 %v1638, %v1690
  %v1692 = vpop.f32.mrb[0].mxu0
  %v1693 = vadd.f32 %v1640, %v1692
  %1694 = vdwg.mxu0
  %1695 = vmatprep.subr.bf16.mxu0 %v1173
  %1696 = vmatpush1.bf16.msra.mxu0 %v1172
  %1697 = vmatprep.subr.bf16.mxu0 %v1175
  %1698 = vmatpush1.bf16.msra.mxu0 %v1174
  %1699 = vmatprep.subr.bf16.mxu0 %v1177
  %1700 = vmatpush1.bf16.msra.mxu0 %v1176
  %1701 = vmatprep.subr.bf16.mxu0 %v1179
  %1702 = vmatpush1.bf16.msra.mxu0 %v1178
  %1703 = vmatprep.subr.bf16.mxu0 %v1181
  %1704 = vmatpush1.bf16.msra.mxu0 %v1180
  %1705 = vmatprep.subr.bf16.mxu0 %v1183
  %1706 = vmatpush1.bf16.msra.mxu0 %v1182
  %1707 = vmatprep.subr.bf16.mxu0 %v1185
  %1708 = vmatpush1.bf16.msra.mxu0 %v1184
  %1709 = vmatprep.subr.bf16.mxu0 %v1187
  %1710 = vmatpush1.bf16.msra.mxu0 %v1186
  %1711 = vmatprep.subr.bf16.mxu0 %v1189
  %1712 = vmatpush1.bf16.msra.mxu0 %v1188
  %1713 = vmatprep.subr.bf16.mxu0 %v1191
  %1714 = vmatpush1.bf16.msra.mxu0 %v1190
  %1715 = vmatprep.subr.bf16.mxu0 %v1193
  %1716 = vmatpush1.bf16.msra.mxu0 %v1192
  %1717 = vmatprep.subr.bf16.mxu0 %v1195
  %1718 = vmatpush1.bf16.msra.mxu0 %v1194
  %1719 = vmatprep.subr.bf16.mxu0 %v1197
  %1720 = vmatpush1.bf16.msra.mxu0 %v1196
  %1721 = vmatprep.subr.bf16.mxu0 %v1199
  %1722 = vmatpush1.bf16.msra.mxu0 %v1198
  %1723 = vmatprep.subr.bf16.mxu0 %v1201
  %1724 = vmatpush1.bf16.msra.mxu0 %v1200
  %1725 = vmatprep.subr.bf16.mxu0 %v1203
  %1726 = vmatpush1.bf16.msra.mxu0 %v1202
  %1727 = vmatprep.mubr.bf16.mxu0 %v351
  %1728 = vmatmul.mubr.bf16.gmra.mrb[0].mxu0 %v350
  %v1729 = vpop.f32.mrb[0].mxu0
  %v1730 = vadd.f32 %v1677, %v1729
  %v1731 = vpop.f32.mrb[0].mxu0
  %v1732 = vadd.f32 %v1679, %v1731
  %v1733 = vpop.f32.mrb[0].mxu0
  %v1734 = vadd.f32 %v1681, %v1733
  %v1735 = vpop.f32.mrb[0].mxu0
  %v1736 = vadd.f32 %v1683, %v1735
  %1737 = vmatprep.mubr.bf16.mxu0 %v365
  %1738 = vmatmul.mubr.bf16.gmra.mrb[0].mxu0 %v364
  %v1739 = vpop.f32.mrb[0].mxu0
  %v1740 = vadd.f32 %v1687, %v1739
  %v1741 = vpop.f32.mrb[0].mxu0
  %v1742 = vadd.f32 %v1689, %v1741
  %v1743 = vpop.f32.mrb[0].mxu0
  %v1744 = vadd.f32 %v1691, %v1743
  %v1745 = vpop.f32.mrb[0].mxu0
  %v1746 = vadd.f32 %v1693, %v1745
  %1747 = vdwg.mxu0
  %1748 = vmatprep.subr.bf16.mxu0 %v1205
  %1749 = vmatpush1.bf16.msra.mxu0 %v1204
  %1750 = vmatprep.subr.bf16.mxu0 %v1207
  %1751 = vmatpush1.bf16.msra.mxu0 %v1206
  %1752 = vmatprep.subr.bf16.mxu0 %v1209
  %1753 = vmatpush1.bf16.msra.mxu0 %v1208
  %1754 = vmatprep.subr.bf16.mxu0 %v1211
  %1755 = vmatpush1.bf16.msra.mxu0 %v1210
  %1756 = vmatprep.subr.bf16.mxu0 %v1213
  %1757 = vmatpush1.bf16.msra.mxu0 %v1212
  %1758 = vmatprep.subr.bf16.mxu0 %v1215
  %1759 = vmatpush1.bf16.msra.mxu0 %v1214
  %1760 = vmatprep.subr.bf16.mxu0 %v1217
  %1761 = vmatpush1.bf16.msra.mxu0 %v1216
  %1762 = vmatprep.subr.bf16.mxu0 %v1219
  %1763 = vmatpush1.bf16.msra.mxu0 %v1218
  %1764 = vmatprep.subr.bf16.mxu0 %v1221
  %1765 = vmatpush1.bf16.msra.mxu0 %v1220
  %1766 = vmatprep.subr.bf16.mxu0 %v1223
  %1767 = vmatpush1.bf16.msra.mxu0 %v1222
  %1768 = vmatprep.subr.bf16.mxu0 %v1225
  %1769 = vmatpush1.bf16.msra.mxu0 %v1224
  %1770 = vmatprep.subr.bf16.mxu0 %v1227
  %1771 = vmatpush1.bf16.msra.mxu0 %v1226
  %1772 = vmatprep.subr.bf16.mxu0 %v1229
  %1773 = vmatpush1.bf16.msra.mxu0 %v1228
  %1774 = vmatprep.subr.bf16.mxu0 %v1231
  %1775 = vmatpush1.bf16.msra.mxu0 %v1230
  %1776 = vmatprep.subr.bf16.mxu0 %v1233
  %1777 = vmatpush1.bf16.msra.mxu0 %v1232
  %1778 = vmatprep.subr.bf16.mxu0 %v1235
  %1779 = vmatpush1.bf16.msra.mxu0 %v1234
  %1780 = vmatprep.mubr.bf16.mxu0 %v353
  %1781 = vmatmul.mubr.bf16.gmra.mrb[0].mxu0 %v352
  %v1782 = vpop.f32.mrb[0].mxu0
  %v1783 = vadd.f32 %v1730, %v1782
  %v1784 = vpop.f32.mrb[0].mxu0
  %v1785 = vadd.f32 %v1732, %v1784
  %v1786 = vpop.f32.mrb[0].mxu0
  %v1787 = vadd.f32 %v1734, %v1786
  %v1788 = vpop.f32.mrb[0].mxu0
  %v1789 = vadd.f32 %v1736, %v1788
  %1790 = vmatprep.mubr.bf16.mxu0 %v367
  %1791 = vmatmul.mubr.bf16.gmra.mrb[0].mxu0 %v366
  %v1792 = vpop.f32.mrb[0].mxu0
  %v1793 = vadd.f32 %v1740, %v1792
  %v1794 = vpop.f32.mrb[0].mxu0
  %v1795 = vadd.f32 %v1742, %v1794
  %v1796 = vpop.f32.mrb[0].mxu0
  %v1797 = vadd.f32 %v1744, %v1796
  %v1798 = vpop.f32.mrb[0].mxu0
  %v1799 = vadd.f32 %v1746, %v1798
  %1800 = vdwg.mxu0
  %1801 = vmatprep.subr.bf16.mxu0 %v1237
  %1802 = vmatpush1.bf16.msra.mxu0 %v1236
  %1803 = vmatprep.subr.bf16.mxu0 %v1239
  %1804 = vmatpush1.bf16.msra.mxu0 %v1238
  %1805 = vmatprep.subr.bf16.mxu0 %v1241
  %1806 = vmatpush1.bf16.msra.mxu0 %v1240
  %1807 = vmatprep.subr.bf16.mxu0 %v1243
  %1808 = vmatpush1.bf16.msra.mxu0 %v1242
  %1809 = vmatprep.subr.bf16.mxu0 %v1245
  %1810 = vmatpush1.bf16.msra.mxu0 %v1244
  %1811 = vmatprep.subr.bf16.mxu0 %v1247
  %1812 = vmatpush1.bf16.msra.mxu0 %v1246
  %1813 = vmatprep.subr.bf16.mxu0 %v1249
  %1814 = vmatpush1.bf16.msra.mxu0 %v1248
  %1815 = vmatprep.subr.bf16.mxu0 %v1251
  %1816 = vmatpush1.bf16.msra.mxu0 %v1250
  %1817 = vmatprep.subr.bf16.mxu0 %v1253
  %1818 = vmatpush1.bf16.msra.mxu0 %v1252
  %1819 = vmatprep.subr.bf16.mxu0 %v1255
  %1820 = vmatpush1.bf16.msra.mxu0 %v1254
  %1821 = vmatprep.subr.bf16.mxu0 %v1257
  %1822 = vmatpush1.bf16.msra.mxu0 %v1256
  %1823 = vmatprep.subr.bf16.mxu0 %v1259
  %1824 = vmatpush1.bf16.msra.mxu0 %v1258
  %1825 = vmatprep.subr.bf16.mxu0 0
  %1826 = vmatpush1.bf16.msra.mxu0 0
  %1827 = vmatprep.subr.bf16.mxu0 0
  %1828 = vmatpush1.bf16.msra.mxu0 0
  %1829 = vmatprep.subr.bf16.mxu0 0
  %1830 = vmatpush1.bf16.msra.mxu0 0
  %1831 = vmatprep.subr.bf16.mxu0 0
  %1832 = vmatpush1.bf16.msra.mxu0 0
  %1833 = vmatprep.mubr.bf16.mxu0 %v1478
  %1834 = vmatmul.mubr.bf16.gmra.mrb[0].mxu0 %v354
  %v1835 = vpop.f32.mrb[0].mxu0
  %v1836 = vadd.f32 %v1783, %v1835
  %v1837 = vpop.f32.mrb[0].mxu0
  %v1838 = vadd.f32 %v1785, %v1837
  %v1839 = vpop.f32.mrb[0].mxu0
  %v1840 = vadd.f32 %v1787, %v1839
  %v1841 = vpop.f32.mrb[0].mxu0
  %v1842 = vadd.f32 %v1789, %v1841
  %1843 = vmatprep.mubr.bf16.mxu0 %v1481
  %1844 = vmatmul.mubr.bf16.gmra.mrb[0].mxu0 %v368
  %v1845 = vpop.f32.mrb[0].mxu0
  %v1846 = vadd.f32 %v1793, %v1845
  %v1847 = vpop.f32.mrb[0].mxu0
  %v1848 = vadd.f32 %v1795, %v1847
  %v1849 = vpop.f32.mrb[0].mxu0
  %v1850 = vadd.f32 %v1797, %v1849
  %v1851 = vpop.f32.mrb[0].mxu0
  %v1852 = vadd.f32 %v1799, %v1851
  %1853 = vdwg.mxu0
  %1854 = vst [vmem:[%s2] sm:$0xff] %v1836
  %1855 = vst [vmem:[%s2 + $0x8] sm:$0xff] %v1838
  %1856 = vst [vmem:[%s2 + $0x10] sm:$0xff] %v1840
  %1857 = vst [vmem:[%s2 + $0x18] sm:$0xff] %v1842
  %1858 = vst [vmem:[%s2 + $0x20] sm:$0xff] %v1846
  %1859 = vst [vmem:[%s2 + $0x28] sm:$0xff] %v1848
  %1860 = vst [vmem:[%s2 + $0x30] sm:$0xff] %v1850
  %1861 = vst [vmem:[%s2 + $0x38] sm:$0xff] %v1852
  %v1862 = vadd.f32 %v1836, %v1840
  %v1863 = vadd.f32 %v1862, %v1846
  %v1864 = vadd.f32 %v1863, %v1850
  %v1865 = vrot.slane %v1864, 4
  %v1866 = vadd.f32 %v1864, %v1865
  %v1867 = vrot.slane %v1866, 2
  %v1868 = vadd.f32 %v1866, %v1867
  %v1869 = vrot.slane %v1868, 1
  %v1870 = vadd.f32 %v1868, %v1869
  %v1871 = vadd.f32 %v1838, %v1842
  %v1872 = vadd.f32 %v1871, %v1848
  %v1873 = vadd.f32 %v1872, %v1852
  %v1874 = vrot.slane %v1873, 4
  %v1875 = vadd.f32 %v1873, %v1874
  %v1876 = vrot.slane %v1875, 2
  %v1877 = vadd.f32 %v1875, %v1876
  %v1878 = vrot.slane %v1877, 1
  %v1879 = vadd.f32 %v1877, %v1878
  %v1882 = vcombine.low %v1870, %v1879
  %v1884 = vunpack.c.l.s4 1966171168
  %v1885 = vunpack.c.0.s8 %v1884
  %v1886 = vlaneseq
  %v1887 = vshrl.u32 %v1886, 7
  %v1888 = vsub.s32 %v1885, %v1887
  %v1889 = vrot.slane %v1882, %v1888
  %v1891 = vunpack.c.l.s4 1966171168
  %v1892 = vunpack.c.0.s8 %v1891
  %v1893 = vlaneseq
  %v1894 = vshrl.u32 %v1893, 7
  %v1895 = vsub.s32 %v1892, %v1894
  %v1896 = vrot.slane %v1889, %v1895
  %v1898 = vlaneseq
  %vm1899 = vcmp.ge.s32.totalorder %v1898, 0
  %vm1900 = vcmp.lt.s32.totalorder %v1898, 256
  %vm1901 = vmand %vm1899, %vm1900
  %1902 = vst.msk [vmem:[%s3] ss:$2 sm:$0x3] %vm1901, %v1896
  %v1903 = vmul.f32 %v1836, %v1836
  %v1904 = vmul.f32 %v1838, %v1838
  %v1905 = vmul.f32 %v1840, %v1840
  %v1906 = vmul.f32 %v1842, %v1842
  %v1907 = vmul.f32 %v1846, %v1846
  %v1908 = vmul.f32 %v1848, %v1848
  %v1909 = vmul.f32 %v1850, %v1850
  %v1910 = vmul.f32 %v1852, %v1852
  %v1911 = vadd.f32 %v1903, %v1905
  %v1912 = vadd.f32 %v1911, %v1907
  %v1913 = vadd.f32 %v1912, %v1909
  %v1914 = vrot.slane %v1913, 4
  %v1915 = vadd.f32 %v1913, %v1914
  %v1916 = vrot.slane %v1915, 2
  %v1917 = vadd.f32 %v1915, %v1916
  %v1918 = vrot.slane %v1917, 1
  %v1919 = vadd.f32 %v1917, %v1918
  %v1920 = vadd.f32 %v1904, %v1906
  %v1921 = vadd.f32 %v1920, %v1908
  %v1922 = vadd.f32 %v1921, %v1910
  %v1923 = vrot.slane %v1922, 4
  %v1924 = vadd.f32 %v1922, %v1923
  %v1925 = vrot.slane %v1924, 2
  %v1926 = vadd.f32 %v1924, %v1925
  %v1927 = vrot.slane %v1926, 1
  %v1928 = vadd.f32 %v1926, %v1927
  %v1931 = vcombine.low %v1919, %v1928
  %v1933 = vunpack.c.l.s4 1966171168
  %v1934 = vunpack.c.0.s8 %v1933
  %v1935 = vlaneseq
  %v1936 = vshrl.u32 %v1935, 7
  %v1937 = vsub.s32 %v1934, %v1936
  %v1938 = vrot.slane %v1931, %v1937
  %v1940 = vunpack.c.l.s4 1966171168
  %v1941 = vunpack.c.0.s8 %v1940
  %v1942 = vlaneseq
  %v1943 = vshrl.u32 %v1942, 7
  %v1944 = vsub.s32 %v1941, %v1943
  %v1945 = vrot.slane %v1938, %v1944
  %s1947 = scalar_lea.vmem %s3, 1
  %1948 = vst.msk [vmem:[%s1947] ss:$2 sm:$0x3] %vm1901, %v1945
  // Predicated region
  $region10: #{inception_d_forward.23} parent=0 // pred_check
    _
  $region11: #{inception_d_forward.23} parent=0 // pred_check_branch
    %1950 = sbr.rel (0) target = $region13
  $region12: #{inception_d_forward.23} parent=0 // pred_region
    _
  $region13: #{inception_d_forward.23} parent=0 // pred_fallthru
    _
  // Predicated region
  $region14: #{inception_d_forward.23} parent=0 // pred_check
    _
  $region15: #{inception_d_forward.23} parent=0 // pred_check_branch
    %1952 = sbr.rel (0) target = $region17
  $region16: #{inception_d_forward.23} parent=0 // pred_region
    _
  $region17: #{inception_d_forward.23} parent=0 // pred_fallthru
    _
  // Predicated region
  $region18: #{inception_d_forward.23} parent=0 // pred_check
    _
  $region19: #{inception_d_forward.23} parent=0 // pred_check_branch
    %1954 = sbr.rel (0) target = $region21
  $region20: #{inception_d_forward.23} parent=0 // pred_region
    _
  $region21: #{inception_d_forward.23} parent=0 // pred_fallthru
    _
  // Predicated region
  $region22: #{inception_d_forward.23} parent=0 // pred_check
    _
  $region23: #{inception_d_forward.23} parent=0 // pred_check_branch
    %1956 = sbr.rel (0) target = $region25
  $region24: #{inception_d_forward.23} parent=0 // pred_region
    _
  $region25: #{inception_d_forward.23} parent=0 // pred_fallthru
    _

</llo_original>
